<compile_context>
chip_gen: v6e
topology: v6e:2x2x1
jax: 0.10.0
libtpu: 0.0.40
codegen_flags: <defaults>
</compile_context>

<pallas_src>
import jax
import jax.numpy as jnp
from jax import lax
from jax.experimental import pallas as pl
from jax.experimental.pallas import tpu as pltpu

C = 256          # fixed by the module (Conv2d(256, 256, 3, 1, 1))
KH = KW = 3
K3 = KW * C      # fused-kw contraction depth (768)


# --------------------------------------------------------------------------
# Kernel
# --------------------------------------------------------------------------
def _residual_kernel(x_ref, xtop_ref, xbot_ref,
                     w1_ref, s1_ref, o1_ref,
                     w2_ref, s2_ref, o2_ref,
                     out_ref, xpad_ref, mid_ref):
    """One (batch-block, row-block) tile per grid step.

    x_ref    : (NB, TH, W, C)    f32   rows [r*TH, r*TH+TH)  (also the skip)
    xtop_ref : (NB, 2,  W, C)    f32   rows r*TH-2, r*TH-1  (clamped; masked at edge)
    xbot_ref : (NB, 2,  W, C)    f32   rows r*TH+TH, r*TH+TH+1 (clamped; masked)
    w*_ref   : (3, 3*C, C)       bf16  conv weights, kh-major, kw fused into K
    s*/o*_ref: (1, C)            f32   folded BN scale / (BN offset + conv bias)
    out_ref  : (NB, TH, W, C)    f32
    xpad_ref : (NB, TH+4, W+2, C) bf16 scratch: zero-padded conv1 input
    mid_ref  : (NB, TH+2, W+2, C) bf16 scratch: zero-padded conv2 input
    """
    NB, TH, W, Cc = x_ref.shape
    r = pl.program_id(1)
    last_r = pl.num_programs(1) - 1

    # ---- assemble the zero-padded bf16 conv1 input (rows r*TH-2 .. r*TH+TH+1) ----
    xpad_ref[:, 2:TH + 2, 1:W + 1, :] = x_ref[...].astype(jnp.bfloat16)
    xpad_ref[:, 0:2, 1:W + 1, :] = jnp.where(
        r > 0, xtop_ref[...], 0.0).astype(jnp.bfloat16)
    xpad_ref[:, TH + 2:TH + 4, 1:W + 1, :] = jnp.where(
        r < last_r, xbot_ref[...], 0.0).astype(jnp.bfloat16)
    # thin left/right zero-pad columns (rewritten every step: see header note)
    zcol1 = jnp.zeros((NB, TH + 4, 1, Cc), jnp.bfloat16)
    xpad_ref[:, :, 0:1, :] = zcol1
    xpad_ref[:, :, W + 1:W + 2, :] = zcol1

    # ---- conv1: 3 fused-kw (M1, 3C) x (3C, C) bf16 matmuls, f32 accumulation ----
    # Produces TH+2 output rows (1-row halo each side) so conv2 is tile-local.
    M1 = NB * (TH + 2) * W
    acc1 = jnp.zeros((M1, Cc), jnp.float32)
    for kh in range(KH):
        rows = xpad_ref[:, kh:kh + TH + 2, :, :]            # (NB, TH+2, W+2, C) bf16
        patch = jnp.concatenate(
            [rows[:, :, 0:W, :], rows[:, :, 1:W + 1, :], rows[:, :, 2:W + 2, :]],
            axis=-1).reshape(M1, K3)                        # lane-axis concat (3*256)
        acc1 = acc1 + jnp.dot(patch, w1_ref[kh],
                              preferred_element_type=jnp.float32)
    y1 = jnp.maximum(acc1 * s1_ref[...] + o1_ref[...], 0.0)  # BN1 (+bias) + ReLU

    # ---- padded bf16 conv2 input (conv1 output rows r*TH-1 .. r*TH+TH) ----
    mid_ref[:, :, 1:W + 1, :] = y1.reshape(NB, TH + 2, W, Cc).astype(jnp.bfloat16)
    zcol2 = jnp.zeros((NB, TH + 2, 1, Cc), jnp.bfloat16)
    mid_ref[:, :, 0:1, :] = zcol2
    mid_ref[:, :, W + 1:W + 2, :] = zcol2

    @pl.when(r == 0)                       # image row -1 is zero padding
    def _():
        mid_ref[:, 0:1, :, :] = jnp.zeros((NB, 1, W + 2, Cc), jnp.bfloat16)

    @pl.when(r == last_r)                  # image row H is zero padding
    def _():
        mid_ref[:, TH + 1:TH + 2, :, :] = jnp.zeros((NB, 1, W + 2, Cc), jnp.bfloat16)

    # ---- conv2 ----
    M2 = NB * TH * W
    acc2 = jnp.zeros((M2, Cc), jnp.float32)
    for kh in range(KH):
        rows = mid_ref[:, kh:kh + TH, :, :]                 # (NB, TH, W+2, C) bf16
        patch = jnp.concatenate(
            [rows[:, :, 0:W, :], rows[:, :, 1:W + 1, :], rows[:, :, 2:W + 2, :]],
            axis=-1).reshape(M2, K3)
        acc2 = acc2 + jnp.dot(patch, w2_ref[kh],
                              preferred_element_type=jnp.float32)
    y2 = acc2 * s2_ref[...] + o2_ref[...]                    # BN2 (+bias)

    # ---- residual add (original f32 x) + final ReLU ----
    out = jnp.maximum(y2 + x_ref[...].reshape(M2, Cc), 0.0)
    out_ref[...] = out.reshape(NB, TH, W, Cc)


# --------------------------------------------------------------------------
# Wrapper / glue
# --------------------------------------------------------------------------
def _fold_bn(conv_bias, gamma, beta, mean, var, eps=1e-5):
    """Fold conv bias + inference BatchNorm into per-channel scale/offset."""
    scale = gamma * lax.rsqrt(var + eps)
    offset = beta + (conv_bias - mean) * scale
    return scale, offset


def _pick_tiles(N, H, W):
    """Choose (batch-block nb, row-tile th).

    Targets an M dim (nb*th*W rows) of ~2-4K under a ~40 MiB VMEM working-set
    budget (fits v7x's 64 MiB/TC), with nb | N, th | H, th even (2-row halo),
    and a preference for >= 2 steps on a "parallel" grid axis (v7x megacore).
    """
    budget = 40 * 1024 * 1024
    target_m = 4096

    def vmem_bytes(nb, th):
        io = 2 * (2 * nb * th * W * C * 4 + 2 * nb * 2 * W * C * 4)   # dbl-buf x/out + halos
        scratch = (nb * (th + 4) * (W + 2) * C * 2
                   + nb * (th + 2) * (W + 2) * C * 2)                 # bf16 pads
        weights = 2 * 2 * KH * KW * C * C * 2                          # dbl-buf bf16 w1+w2
        interm = 2 * nb * (th + 2) * W * (C * 4 + K3 * 2)              # acc + bf16 patch
        return io + scratch + weights + interm

    nbs = [d for d in range(1, N + 1) if N % d == 0]
    ths = [t for t in range(2, H + 1, 2) if H % t == 0]
    assert ths, "row tiling with a 2-row halo needs even H"

    best = None
    for nb in nbs:
        for th in ths:
            if vmem_bytes(nb, th) > budget:
                continue
            m = nb * th * W
            steps_batch = N // nb
            steps_rows = H // th
            key = (
                0 if steps_batch >= 2 else (1 if steps_rows >= 2 else 2),
                0 if m <= target_m else 1,
                -m if m <= target_m else m,
            )
            if best is None or key < best[0]:
                best = (key, nb, th)
    assert best is not None, "no (nb, th) tiling fits the VMEM budget"
    return best[1], best[2]


def _vmem_limit_bytes():
    """Generation-aware VMEM budget (never above ~3/4 of physical, <= 56 MiB)."""
    try:
        cap = int(pltpu.get_tpu_info().vmem_capacity_bytes)
    except Exception:
        cap = 0
    if cap <= 0:
        cap = 64 * 1024 * 1024          # assume the smallest (v7x per-core) VMEM
    return max(32 * 1024 * 1024, min(56 * 1024 * 1024, (cap * 3) // 4))


def _residual_nhwc(x_nhwc, w1_t, s1, o1, w2_t, s2, o2):
    N, H, W, Cin = x_nhwc.shape
    assert Cin == C, f"channels must be {C}"
    assert H % 2 == 0, "row tiling with a 2-row halo needs even H"
    nb, th = _pick_tiles(N, H, W)
    assert N % nb == 0 and H % th == 0 and th % 2 == 0, (nb, th, N, H)

    io_map = lambda b, r: (b, r, 0, 0)
    top_map = lambda b, r: (b, jnp.maximum(r * (th // 2) - 1, 0), 0, 0)
    bot_map = lambda b, r: (b, jnp.minimum((r + 1) * (th // 2), H // 2 - 1), 0, 0)
    w_map = lambda b, r: (0, 0, 0)
    v_map = lambda b, r: (0, 0)

    return pl.pallas_call(
        _residual_kernel,
        out_shape=jax.ShapeDtypeStruct((N, H, W, C), jnp.float32),
        grid_spec=pltpu.PrefetchScalarGridSpec(
            num_scalar_prefetch=0,
            grid=(N // nb, H // th),
            in_specs=[
                pl.BlockSpec((nb, th, W, C), io_map),      # x tile (conv1 in + skip)
                pl.BlockSpec((nb, 2, W, C), top_map),      # top 2-row halo
                pl.BlockSpec((nb, 2, W, C), bot_map),      # bottom 2-row halo
                pl.BlockSpec((KH, K3, C), w_map),          # conv1 weights (bf16, kw-fused)
                pl.BlockSpec((1, C), v_map),               # BN1 scale
                pl.BlockSpec((1, C), v_map),               # BN1 offset (+bias)
                pl.BlockSpec((KH, K3, C), w_map),          # conv2 weights (bf16, kw-fused)
                pl.BlockSpec((1, C), v_map),               # BN2 scale
                pl.BlockSpec((1, C), v_map),               # BN2 offset (+bias)
            ],
            out_specs=pl.BlockSpec((nb, th, W, C), io_map),
            scratch_shapes=[
                pltpu.VMEM((nb, th + 4, W + 2, C), jnp.bfloat16),   # padded conv1 input
                pltpu.VMEM((nb, th + 2, W + 2, C), jnp.bfloat16),   # padded conv2 input
            ],
        ),
        compiler_params=pltpu.CompilerParams(
            dimension_semantics=("parallel", "parallel"),
            vmem_limit_bytes=_vmem_limit_bytes(),
        ),
    )(x_nhwc, x_nhwc, x_nhwc, w1_t, s1, o1, w2_t, s2, o2)


@jax.jit
def residual_forward(x_nhwc, params):
    """Forward of the PyTorch `Residual` module in NHWC layout.

    x_nhwc: (N, H, W, 256) f32 -> (N, H, W, 256) f32.  Keeping the surrounding
    model in NHWC avoids the two full HBM-roundtrip layout transposes the old
    NCHW wrapper paid; converting a PyTorch NCHW activation is the caller's
    one-time job if ever needed.

    params: (w1, b1, g1, beta1, mean1, var1, w2, b2, g2, beta2, mean2, var2),
            conv weights in PyTorch OIHW layout (256, 256, 3, 3).
    """
    w1, b1, g1, be1, m1, v1, w2, b2, g2, be2, m2, v2 = params
    s1, o1 = _fold_bn(b1, g1, be1, m1, v1)
    s2, o2 = _fold_bn(b2, g2, be2, m2, v2)

    # OIHW -> (kh, kw*Cin, Cout) with kw fused into K; bf16 so the MXU runs native.
    w1_t = jnp.transpose(w1, (2, 3, 1, 0)).reshape(KH, K3, C).astype(jnp.bfloat16)
    w2_t = jnp.transpose(w2, (2, 3, 1, 0)).reshape(KH, K3, C).astype(jnp.bfloat16)

    return _residual_nhwc(
        x_nhwc,
        w1_t, s1.reshape(1, C).astype(jnp.float32), o1.reshape(1, C).astype(jnp.float32),
        w2_t, s2.reshape(1, C).astype(jnp.float32), o2.reshape(1, C).astype(jnp.float32))


# --------------------------------------------------------------------------
# Reference (same bf16 matmul dtype path, XLA conv, NHWC) for validation
# --------------------------------------------------------------------------
def _reference(x_nhwc, params):
    w1, b1, g1, be1, m1, v1, w2, b2, g2, be2, m2, v2 = params
    s1, o1 = _fold_bn(b1, g1, be1, m1, v1)
    s2, o2 = _fold_bn(b2, g2, be2, m2, v2)
    dn = ('NHWC', 'HWIO', 'NHWC')
    w1h = jnp.transpose(w1, (2, 3, 1, 0)).astype(jnp.bfloat16)
    w2h = jnp.transpose(w2, (2, 3, 1, 0)).astype(jnp.bfloat16)
    y = lax.conv_general_dilated(
        x_nhwc.astype(jnp.bfloat16), w1h, (1, 1), 'SAME',
        dimension_numbers=dn, preferred_element_type=jnp.float32)
    y = jnp.maximum(y * s1 + o1, 0.0)
    y = lax.conv_general_dilated(
        y.astype(jnp.bfloat16), w2h, (1, 1), 'SAME',
        dimension_numbers=dn, preferred_element_type=jnp.float32)
    y = y * s2 + o2
    return jnp.maximum(y + x_nhwc, 0.0)


if __name__ == "__main__":
    key = jax.random.PRNGKey(0)
    N, H, W = 2, 8, 8                      # C is fixed at 256 by the module

    ks = jax.random.split(key, 13)
    x = jax.random.normal(ks[0], (N, H, W, C), jnp.float32)

    # Deterministic synthetic parameters (PyTorch layouts).
    w1 = jax.random.normal(ks[1], (C, C, KH, KW), jnp.float32) * 0.05
    b1 = 0.1 * jax.random.normal(ks[2], (C,), jnp.float32)
    g1 = 1.0 + 0.1 * jax.random.normal(ks[3], (C,), jnp.float32)
    be1 = 0.1 * jax.random.normal(ks[4], (C,), jnp.float32)
    m1 = 0.1 * jax.random.normal(ks[5], (C,), jnp.float32)
    v1 = 1.0 + 0.1 * jax.random.uniform(ks[6], (C,), jnp.float32)

    w2 = jax.random.normal(ks[7], (C, C, KH, KW), jnp.float32) * 0.05
    b2 = 0.1 * jax.random.normal(ks[8], (C,), jnp.float32)
    g2 = 1.0 + 0.1 * jax.random.normal(ks[9], (C,), jnp.float32)
    be2 = 0.1 * jax.random.normal(ks[10], (C,), jnp.float32)
    m2 = 0.1 * jax.random.normal(ks[11], (C,), jnp.float32)
    v2 = 1.0 + 0.1 * jax.random.uniform(ks[12], (C,), jnp.float32)

    params = (w1, b1, g1, be1, m1, v1, w2, b2, g2, be2, m2, v2)

    out = jax.block_until_ready(residual_forward(x, params))

    ref = jax.block_until_ready(_reference(x, params))
    max_err = float(jnp.max(jnp.abs(out - ref)))
    assert max_err < 2e-2, f"mismatch vs bf16 reference: {max_err}"

    print("KERNEL_OK")
</pallas_src>

<mosaic_0001>
module attributes {stable_mosaic.version = 11 : i64} {
  func.func @_residual_kernel(%arg0: i32, %arg1: i32, %arg2: memref<1x8x8x256xf32, #tpu.memory_space<vmem>>, %arg3: memref<1x2x8x256xf32, #tpu.memory_space<vmem>>, %arg4: memref<1x2x8x256xf32, #tpu.memory_space<vmem>>, %arg5: memref<3x768x256xbf16, #tpu.memory_space<vmem>>, %arg6: memref<1x256xf32, #tpu.memory_space<vmem>>, %arg7: memref<1x256xf32, #tpu.memory_space<vmem>>, %arg8: memref<3x768x256xbf16, #tpu.memory_space<vmem>>, %arg9: memref<1x256xf32, #tpu.memory_space<vmem>>, %arg10: memref<1x256xf32, #tpu.memory_space<vmem>>, %arg11: memref<1x8x8x256xf32, #tpu.memory_space<vmem>>, %arg12: memref<1x12x10x256xbf16, #tpu.memory_space<vmem>>, %arg13: memref<1x10x10x256xbf16, #tpu.memory_space<vmem>>) attributes {dimension_semantics = [#tpu.dimension_semantics<parallel>, #tpu.dimension_semantics<parallel>], iteration_bounds = array<i64: 2, 1>, scalar_prefetch = 0 : i64, scratch_operands = 2 : i64, tpu.core_type = #tpu.core_type<tc>, window_params = [{transform_indices = @transform_0, window_bounds = array<i64: 1, 8, 8, 256>}, {transform_indices = @transform_1, window_bounds = array<i64: 1, 2, 8, 256>}, {transform_indices = @transform_2, window_bounds = array<i64: 1, 2, 8, 256>}, {pipeline_mode = #tpu.pipeline_mode<synchronous>, transform_indices = @transform_3, window_bounds = array<i64: 3, 768, 256>}, {pipeline_mode = #tpu.pipeline_mode<synchronous>, transform_indices = @transform_4, window_bounds = array<i64: 1, 256>}, {pipeline_mode = #tpu.pipeline_mode<synchronous>, transform_indices = @transform_5, window_bounds = array<i64: 1, 256>}, {pipeline_mode = #tpu.pipeline_mode<synchronous>, transform_indices = @transform_6, window_bounds = array<i64: 3, 768, 256>}, {pipeline_mode = #tpu.pipeline_mode<synchronous>, transform_indices = @transform_7, window_bounds = array<i64: 1, 256>}, {pipeline_mode = #tpu.pipeline_mode<synchronous>, transform_indices = @transform_8, window_bounds = array<i64: 1, 256>}, {transform_indices = @transform_9, window_bounds = array<i64: 1, 8, 8, 256>}]} {
    %c0 = arith.constant 0 : index
    %c0_0 = arith.constant 0 : index
    %c0_1 = arith.constant 0 : index
    %c0_2 = arith.constant 0 : index
    %0 = vector.load %arg2[%c0, %c0_0, %c0_1, %c0_2] : memref<1x8x8x256xf32, #tpu.memory_space<vmem>>, vector<1x8x8x256xf32>
    %1 = arith.truncf %0 : vector<1x8x8x256xf32> to vector<1x8x8x256xbf16>
    %c0_3 = arith.constant 0 : index
    %c2 = arith.constant 2 : index
    %c1 = arith.constant 1 : index
    %c0_4 = arith.constant 0 : index
    %2 = vector.load %arg12[%c0_3, %c2, %c1, %c0_4] : memref<1x12x10x256xbf16, #tpu.memory_space<vmem>>, vector<1x8x8x256xbf16>
    tpu.vector_store %arg12[%c0_3, %c2, %c1, %c0_4], %1 {strides = array<i32>} : memref<1x12x10x256xbf16, #tpu.memory_space<vmem>>, vector<1x8x8x256xbf16>,
    %c0_i32 = arith.constant 0 : i32
    %3 = arith.cmpi sgt, %arg1, %c0_i32 : i32
    %c0_5 = arith.constant 0 : index
    %c0_6 = arith.constant 0 : index
    %c0_7 = arith.constant 0 : index
    %c0_8 = arith.constant 0 : index
    %4 = vector.load %arg3[%c0_5, %c0_6, %c0_7, %c0_8] : memref<1x2x8x256xf32, #tpu.memory_space<vmem>>, vector<1x2x8x256xf32>
    %cst = arith.constant 0.000000e+00 : f32
    %5 = vector.broadcast %cst : f32 to vector<1x2x8x256xf32>
    %6 = arith.select %3, %4, %5 : vector<1x2x8x256xf32>
    %7 = arith.truncf %6 : vector<1x2x8x256xf32> to vector<1x2x8x256xbf16>
    %c0_9 = arith.constant 0 : index
    %c0_10 = arith.constant 0 : index
    %c1_11 = arith.constant 1 : index
    %c0_12 = arith.constant 0 : index
    %8 = vector.load %arg12[%c0_9, %c0_10, %c1_11, %c0_12] : memref<1x12x10x256xbf16, #tpu.memory_space<vmem>>, vector<1x2x8x256xbf16>
    tpu.vector_store %arg12[%c0_9, %c0_10, %c1_11, %c0_12], %7 {strides = array<i32>} : memref<1x12x10x256xbf16, #tpu.memory_space<vmem>>, vector<1x2x8x256xbf16>,
    %c0_i32_13 = arith.constant 0 : i32
    %9 = arith.cmpi slt, %arg1, %c0_i32_13 : i32
    %c0_14 = arith.constant 0 : index
    %c0_15 = arith.constant 0 : index
    %c0_16 = arith.constant 0 : index
    %c0_17 = arith.constant 0 : index
    %10 = vector.load %arg4[%c0_14, %c0_15, %c0_16, %c0_17] : memref<1x2x8x256xf32, #tpu.memory_space<vmem>>, vector<1x2x8x256xf32>
    %cst_18 = arith.constant 0.000000e+00 : f32
    %11 = vector.broadcast %cst_18 : f32 to vector<1x2x8x256xf32>
    %12 = arith.select %9, %10, %11 : vector<1x2x8x256xf32>
    %13 = arith.truncf %12 : vector<1x2x8x256xf32> to vector<1x2x8x256xbf16>
    %c0_19 = arith.constant 0 : index
    %c10 = arith.constant 10 : index
    %c1_20 = arith.constant 1 : index
    %c0_21 = arith.constant 0 : index
    %14 = vector.load %arg12[%c0_19, %c10, %c1_20, %c0_21] : memref<1x12x10x256xbf16, #tpu.memory_space<vmem>>, vector<1x2x8x256xbf16>
    tpu.vector_store %arg12[%c0_19, %c10, %c1_20, %c0_21], %13 {strides = array<i32>} : memref<1x12x10x256xbf16, #tpu.memory_space<vmem>>, vector<1x2x8x256xbf16>,
    %cst_22 = arith.constant 0.000000e+00 : bf16
    %15 = vector.broadcast %cst_22 : bf16 to vector<1x12x1x256xbf16>
    %c0_23 = arith.constant 0 : index
    %c0_24 = arith.constant 0 : index
    %c0_25 = arith.constant 0 : index
    %c0_26 = arith.constant 0 : index
    %16 = vector.load %arg12[%c0_23, %c0_24, %c0_25, %c0_26] : memref<1x12x10x256xbf16, #tpu.memory_space<vmem>>, vector<1x12x1x256xbf16>
    tpu.vector_store %arg12[%c0_23, %c0_24, %c0_25, %c0_26], %15 {strides = array<i32>} : memref<1x12x10x256xbf16, #tpu.memory_space<vmem>>, vector<1x12x1x256xbf16>,
    %c0_27 = arith.constant 0 : index
    %c0_28 = arith.constant 0 : index
    %c9 = arith.constant 9 : index
    %c0_29 = arith.constant 0 : index
    %17 = vector.load %arg12[%c0_27, %c0_28, %c9, %c0_29] : memref<1x12x10x256xbf16, #tpu.memory_space<vmem>>, vector<1x12x1x256xbf16>
    tpu.vector_store %arg12[%c0_27, %c0_28, %c9, %c0_29], %15 {strides = array<i32>} : memref<1x12x10x256xbf16, #tpu.memory_space<vmem>>, vector<1x12x1x256xbf16>,
    %cst_30 = arith.constant 0.000000e+00 : f32
    %18 = vector.broadcast %cst_30 : f32 to vector<80x256xf32>
    %c0_31 = arith.constant 0 : index
    %c0_32 = arith.constant 0 : index
    %c0_33 = arith.constant 0 : index
    %c0_34 = arith.constant 0 : index
    %19 = vector.load %arg12[%c0_31, %c0_32, %c0_33, %c0_34] : memref<1x12x10x256xbf16, #tpu.memory_space<vmem>>, vector<1x10x10x256xbf16>
    %20 = vector.extract_strided_slice %19 {offsets = [0, 0, 0, 0], sizes = [1, 10, 8, 256], strides = [1, 1, 1, 1]} : vector<1x10x10x256xbf16> to vector<1x10x8x256xbf16>
    %21 = vector.extract_strided_slice %19 {offsets = [0, 0, 1, 0], sizes = [1, 10, 8, 256], strides = [1, 1, 1, 1]} : vector<1x10x10x256xbf16> to vector<1x10x8x256xbf16>
    %22 = vector.extract_strided_slice %19 {offsets = [0, 0, 2, 0], sizes = [1, 10, 8, 256], strides = [1, 1, 1, 1]} : vector<1x10x10x256xbf16> to vector<1x10x8x256xbf16>
    %23 = tpu.concatenate %20, %21, %22 in 3 : vector<1x10x8x256xbf16>, vector<1x10x8x256xbf16>, vector<1x10x8x256xbf16> -> vector<1x10x8x768xbf16>
    %24 = vector.shape_cast %23 : vector<1x10x8x768xbf16> to vector<80x768xbf16>
    %c0_35 = arith.constant 0 : index
    %c0_36 = arith.constant 0 : index
    %c0_37 = arith.constant 0 : index
    %25 = vector.load %arg5[%c0_35, %c0_36, %c0_37] : memref<3x768x256xbf16, #tpu.memory_space<vmem>>, vector<1x768x256xbf16>
    %26 = vector.shape_cast %25 : vector<1x768x256xbf16> to vector<768x256xbf16>
    %cst_38 = arith.constant dense<0.000000e+00> : vector<80x256xf32>
    %27 = tpu.matmul %24, %26, %cst_38 {dimension_numbers = #tpu.dot_dimension_numbers<[1], [0], [0], [1], [0, 0, 1, 1], [], []>} : vector<80x768xbf16>, vector<768x256xbf16>, vector<80x256xf32> -> vector<80x256xf32>
    %28 = arith.addf %18, %27 : vector<80x256xf32>
    %c0_39 = arith.constant 0 : index
    %c1_40 = arith.constant 1 : index
    %c0_41 = arith.constant 0 : index
    %c0_42 = arith.constant 0 : index
    %29 = vector.load %arg12[%c0_39, %c1_40, %c0_41, %c0_42] : memref<1x12x10x256xbf16, #tpu.memory_space<vmem>>, vector<1x10x10x256xbf16>
    %30 = vector.extract_strided_slice %29 {offsets = [0, 0, 0, 0], sizes = [1, 10, 8, 256], strides = [1, 1, 1, 1]} : vector<1x10x10x256xbf16> to vector<1x10x8x256xbf16>
    %31 = vector.extract_strided_slice %29 {offsets = [0, 0, 1, 0], sizes = [1, 10, 8, 256], strides = [1, 1, 1, 1]} : vector<1x10x10x256xbf16> to vector<1x10x8x256xbf16>
    %32 = vector.extract_strided_slice %29 {offsets = [0, 0, 2, 0], sizes = [1, 10, 8, 256], strides = [1, 1, 1, 1]} : vector<1x10x10x256xbf16> to vector<1x10x8x256xbf16>
    %33 = tpu.concatenate %30, %31, %32 in 3 : vector<1x10x8x256xbf16>, vector<1x10x8x256xbf16>, vector<1x10x8x256xbf16> -> vector<1x10x8x768xbf16>
    %34 = vector.shape_cast %33 : vector<1x10x8x768xbf16> to vector<80x768xbf16>
    %c1_43 = arith.constant 1 : index
    %c0_44 = arith.constant 0 : index
    %c0_45 = arith.constant 0 : index
    %35 = vector.load %arg5[%c1_43, %c0_44, %c0_45] : memref<3x768x256xbf16, #tpu.memory_space<vmem>>, vector<1x768x256xbf16>
    %36 = vector.shape_cast %35 : vector<1x768x256xbf16> to vector<768x256xbf16>
    %cst_46 = arith.constant dense<0.000000e+00> : vector<80x256xf32>
    %37 = tpu.matmul %34, %36, %cst_46 {dimension_numbers = #tpu.dot_dimension_numbers<[1], [0], [0], [1], [0, 0, 1, 1], [], []>} : vector<80x768xbf16>, vector<768x256xbf16>, vector<80x256xf32> -> vector<80x256xf32>
    %38 = arith.addf %28, %37 : vector<80x256xf32>
    %c0_47 = arith.constant 0 : index
    %c2_48 = arith.constant 2 : index
    %c0_49 = arith.constant 0 : index
    %c0_50 = arith.constant 0 : index
    %39 = vector.load %arg12[%c0_47, %c2_48, %c0_49, %c0_50] : memref<1x12x10x256xbf16, #tpu.memory_space<vmem>>, vector<1x10x10x256xbf16>
    %40 = vector.extract_strided_slice %39 {offsets = [0, 0, 0, 0], sizes = [1, 10, 8, 256], strides = [1, 1, 1, 1]} : vector<1x10x10x256xbf16> to vector<1x10x8x256xbf16>
    %41 = vector.extract_strided_slice %39 {offsets = [0, 0, 1, 0], sizes = [1, 10, 8, 256], strides = [1, 1, 1, 1]} : vector<1x10x10x256xbf16> to vector<1x10x8x256xbf16>
    %42 = vector.extract_strided_slice %39 {offsets = [0, 0, 2, 0], sizes = [1, 10, 8, 256], strides = [1, 1, 1, 1]} : vector<1x10x10x256xbf16> to vector<1x10x8x256xbf16>
    %43 = tpu.concatenate %40, %41, %42 in 3 : vector<1x10x8x256xbf16>, vector<1x10x8x256xbf16>, vector<1x10x8x256xbf16> -> vector<1x10x8x768xbf16>
    %44 = vector.shape_cast %43 : vector<1x10x8x768xbf16> to vector<80x768xbf16>
    %c2_51 = arith.constant 2 : index
    %c0_52 = arith.constant 0 : index
    %c0_53 = arith.constant 0 : index
    %45 = vector.load %arg5[%c2_51, %c0_52, %c0_53] : memref<3x768x256xbf16, #tpu.memory_space<vmem>>, vector<1x768x256xbf16>
    %46 = vector.shape_cast %45 : vector<1x768x256xbf16> to vector<768x256xbf16>
    %cst_54 = arith.constant dense<0.000000e+00> : vector<80x256xf32>
    %47 = tpu.matmul %44, %46, %cst_54 {dimension_numbers = #tpu.dot_dimension_numbers<[1], [0], [0], [1], [0, 0, 1, 1], [], []>} : vector<80x768xbf16>, vector<768x256xbf16>, vector<80x256xf32> -> vector<80x256xf32>
    %48 = arith.addf %38, %47 : vector<80x256xf32>
    %c0_55 = arith.constant 0 : index
    %c0_56 = arith.constant 0 : index
    %49 = vector.load %arg6[%c0_55, %c0_56] : memref<1x256xf32, #tpu.memory_space<vmem>>, vector<1x256xf32>
    %50 = vector.broadcast %49 : vector<1x256xf32> to vector<80x256xf32>
    %51 = arith.mulf %48, %50 : vector<80x256xf32>
    %c0_57 = arith.constant 0 : index
    %c0_58 = arith.constant 0 : index
    %52 = vector.load %arg7[%c0_57, %c0_58] : memref<1x256xf32, #tpu.memory_space<vmem>>, vector<1x256xf32>
    %53 = vector.broadcast %52 : vector<1x256xf32> to vector<80x256xf32>
    %54 = arith.addf %51, %53 : vector<80x256xf32>
    %cst_59 = arith.constant 0.000000e+00 : f32
    %55 = vector.broadcast %cst_59 : f32 to vector<80x256xf32>
    %56 = arith.maximumf %54, %55 : vector<80x256xf32>
    %57 = vector.shape_cast %56 : vector<80x256xf32> to vector<1x10x8x256xf32>
    %58 = arith.truncf %57 : vector<1x10x8x256xf32> to vector<1x10x8x256xbf16>
    %c0_60 = arith.constant 0 : index
    %c0_61 = arith.constant 0 : index
    %c1_62 = arith.constant 1 : index
    %c0_63 = arith.constant 0 : index
    %59 = vector.load %arg13[%c0_60, %c0_61, %c1_62, %c0_63] : memref<1x10x10x256xbf16, #tpu.memory_space<vmem>>, vector<1x10x8x256xbf16>
    tpu.vector_store %arg13[%c0_60, %c0_61, %c1_62, %c0_63], %58 {strides = array<i32>} : memref<1x10x10x256xbf16, #tpu.memory_space<vmem>>, vector<1x10x8x256xbf16>,
    %cst_64 = arith.constant 0.000000e+00 : bf16
    %60 = vector.broadcast %cst_64 : bf16 to vector<1x10x1x256xbf16>
    %c0_65 = arith.constant 0 : index
    %c0_66 = arith.constant 0 : index
    %c0_67 = arith.constant 0 : index
    %c0_68 = arith.constant 0 : index
    %61 = vector.load %arg13[%c0_65, %c0_66, %c0_67, %c0_68] : memref<1x10x10x256xbf16, #tpu.memory_space<vmem>>, vector<1x10x1x256xbf16>
    tpu.vector_store %arg13[%c0_65, %c0_66, %c0_67, %c0_68], %60 {strides = array<i32>} : memref<1x10x10x256xbf16, #tpu.memory_space<vmem>>, vector<1x10x1x256xbf16>,
    %c0_69 = arith.constant 0 : index
    %c0_70 = arith.constant 0 : index
    %c9_71 = arith.constant 9 : index
    %c0_72 = arith.constant 0 : index
    %62 = vector.load %arg13[%c0_69, %c0_70, %c9_71, %c0_72] : memref<1x10x10x256xbf16, #tpu.memory_space<vmem>>, vector<1x10x1x256xbf16>
    tpu.vector_store %arg13[%c0_69, %c0_70, %c9_71, %c0_72], %60 {strides = array<i32>} : memref<1x10x10x256xbf16, #tpu.memory_space<vmem>>, vector<1x10x1x256xbf16>,
    %c0_i32_73 = arith.constant 0 : i32
    %63 = arith.cmpi eq, %arg1, %c0_i32_73 : i32
    %64 = arith.extui %63 : i1 to i32
    %c0_i32_74 = arith.constant 0 : i32
    %65 = arith.cmpi ne, %64, %c0_i32_74 : i32
    scf.if %65 {
      %cst_115 = arith.constant 0.000000e+00 : bf16
      %113 = vector.broadcast %cst_115 : bf16 to vector<1x1x10x256xbf16>
      %c0_116 = arith.constant 0 : index
      %c0_117 = arith.constant 0 : index
      %c0_118 = arith.constant 0 : index
      %c0_119 = arith.constant 0 : index
      %114 = vector.load %arg13[%c0_116, %c0_117, %c0_118, %c0_119] : memref<1x10x10x256xbf16, #tpu.memory_space<vmem>>, vector<1x1x10x256xbf16>
      tpu.vector_store %arg13[%c0_116, %c0_117, %c0_118, %c0_119], %113 {strides = array<i32>} : memref<1x10x10x256xbf16, #tpu.memory_space<vmem>>, vector<1x1x10x256xbf16>,
    } else {
    }
    %c0_i32_75 = arith.constant 0 : i32
    %66 = arith.cmpi eq, %arg1, %c0_i32_75 : i32
    %67 = arith.extui %66 : i1 to i32
    %c0_i32_76 = arith.constant 0 : i32
    %68 = arith.cmpi ne, %67, %c0_i32_76 : i32
    scf.if %68 {
      %cst_115 = arith.constant 0.000000e+00 : bf16
      %113 = vector.broadcast %cst_115 : bf16 to vector<1x1x10x256xbf16>
      %c0_116 = arith.constant 0 : index
      %c9_117 = arith.constant 9 : index
      %c0_118 = arith.constant 0 : index
      %c0_119 = arith.constant 0 : index
      %114 = vector.load %arg13[%c0_116, %c9_117, %c0_118, %c0_119] : memref<1x10x10x256xbf16, #tpu.memory_space<vmem>>, vector<1x1x10x256xbf16>
      tpu.vector_store %arg13[%c0_116, %c9_117, %c0_118, %c0_119], %113 {strides = array<i32>} : memref<1x10x10x256xbf16, #tpu.memory_space<vmem>>, vector<1x1x10x256xbf16>,
    } else {
    }
    %cst_77 = arith.constant 0.000000e+00 : f32
    %69 = vector.broadcast %cst_77 : f32 to vector<64x256xf32>
    %c0_78 = arith.constant 0 : index
    %c0_79 = arith.constant 0 : index
    %c0_80 = arith.constant 0 : index
    %c0_81 = arith.constant 0 : index
    %70 = vector.load %arg13[%c0_78, %c0_79, %c0_80, %c0_81] : memref<1x10x10x256xbf16, #tpu.memory_space<vmem>>, vector<1x8x10x256xbf16>
    %71 = vector.extract_strided_slice %70 {offsets = [0, 0, 0, 0], sizes = [1, 8, 8, 256], strides = [1, 1, 1, 1]} : vector<1x8x10x256xbf16> to vector<1x8x8x256xbf16>
    %72 = vector.extract_strided_slice %70 {offsets = [0, 0, 1, 0], sizes = [1, 8, 8, 256], strides = [1, 1, 1, 1]} : vector<1x8x10x256xbf16> to vector<1x8x8x256xbf16>
    %73 = vector.extract_strided_slice %70 {offsets = [0, 0, 2, 0], sizes = [1, 8, 8, 256], strides = [1, 1, 1, 1]} : vector<1x8x10x256xbf16> to vector<1x8x8x256xbf16>
    %74 = tpu.concatenate %71, %72, %73 in 3 : vector<1x8x8x256xbf16>, vector<1x8x8x256xbf16>, vector<1x8x8x256xbf16> -> vector<1x8x8x768xbf16>
    %75 = vector.shape_cast %74 : vector<1x8x8x768xbf16> to vector<64x768xbf16>
    %c0_82 = arith.constant 0 : index
    %c0_83 = arith.constant 0 : index
    %c0_84 = arith.constant 0 : index
    %76 = vector.load %arg8[%c0_82, %c0_83, %c0_84] : memref<3x768x256xbf16, #tpu.memory_space<vmem>>, vector<1x768x256xbf16>
    %77 = vector.shape_cast %76 : vector<1x768x256xbf16> to vector<768x256xbf16>
    %cst_85 = arith.constant dense<0.000000e+00> : vector<64x256xf32>
    %78 = tpu.matmul %75, %77, %cst_85 {dimension_numbers = #tpu.dot_dimension_numbers<[1], [0], [0], [1], [0, 0, 1, 1], [], []>} : vector<64x768xbf16>, vector<768x256xbf16>, vector<64x256xf32> -> vector<64x256xf32>
    %79 = arith.addf %69, %78 : vector<64x256xf32>
    %c0_86 = arith.constant 0 : index
    %c1_87 = arith.constant 1 : index
    %c0_88 = arith.constant 0 : index
    %c0_89 = arith.constant 0 : index
    %80 = vector.load %arg13[%c0_86, %c1_87, %c0_88, %c0_89] : memref<1x10x10x256xbf16, #tpu.memory_space<vmem>>, vector<1x8x10x256xbf16>
    %81 = vector.extract_strided_slice %80 {offsets = [0, 0, 0, 0], sizes = [1, 8, 8, 256], strides = [1, 1, 1, 1]} : vector<1x8x10x256xbf16> to vector<1x8x8x256xbf16>
    %82 = vector.extract_strided_slice %80 {offsets = [0, 0, 1, 0], sizes = [1, 8, 8, 256], strides = [1, 1, 1, 1]} : vector<1x8x10x256xbf16> to vector<1x8x8x256xbf16>
    %83 = vector.extract_strided_slice %80 {offsets = [0, 0, 2, 0], sizes = [1, 8, 8, 256], strides = [1, 1, 1, 1]} : vector<1x8x10x256xbf16> to vector<1x8x8x256xbf16>
    %84 = tpu.concatenate %81, %82, %83 in 3 : vector<1x8x8x256xbf16>, vector<1x8x8x256xbf16>, vector<1x8x8x256xbf16> -> vector<1x8x8x768xbf16>
    %85 = vector.shape_cast %84 : vector<1x8x8x768xbf16> to vector<64x768xbf16>
    %c1_90 = arith.constant 1 : index
    %c0_91 = arith.constant 0 : index
    %c0_92 = arith.constant 0 : index
    %86 = vector.load %arg8[%c1_90, %c0_91, %c0_92] : memref<3x768x256xbf16, #tpu.memory_space<vmem>>, vector<1x768x256xbf16>
    %87 = vector.shape_cast %86 : vector<1x768x256xbf16> to vector<768x256xbf16>
    %cst_93 = arith.constant dense<0.000000e+00> : vector<64x256xf32>
    %88 = tpu.matmul %85, %87, %cst_93 {dimension_numbers = #tpu.dot_dimension_numbers<[1], [0], [0], [1], [0, 0, 1, 1], [], []>} : vector<64x768xbf16>, vector<768x256xbf16>, vector<64x256xf32> -> vector<64x256xf32>
    %89 = arith.addf %79, %88 : vector<64x256xf32>
    %c0_94 = arith.constant 0 : index
    %c2_95 = arith.constant 2 : index
    %c0_96 = arith.constant 0 : index
    %c0_97 = arith.constant 0 : index
    %90 = vector.load %arg13[%c0_94, %c2_95, %c0_96, %c0_97] : memref<1x10x10x256xbf16, #tpu.memory_space<vmem>>, vector<1x8x10x256xbf16>
    %91 = vector.extract_strided_slice %90 {offsets = [0, 0, 0, 0], sizes = [1, 8, 8, 256], strides = [1, 1, 1, 1]} : vector<1x8x10x256xbf16> to vector<1x8x8x256xbf16>
    %92 = vector.extract_strided_slice %90 {offsets = [0, 0, 1, 0], sizes = [1, 8, 8, 256], strides = [1, 1, 1, 1]} : vector<1x8x10x256xbf16> to vector<1x8x8x256xbf16>
    %93 = vector.extract_strided_slice %90 {offsets = [0, 0, 2, 0], sizes = [1, 8, 8, 256], strides = [1, 1, 1, 1]} : vector<1x8x10x256xbf16> to vector<1x8x8x256xbf16>
    %94 = tpu.concatenate %91, %92, %93 in 3 : vector<1x8x8x256xbf16>, vector<1x8x8x256xbf16>, vector<1x8x8x256xbf16> -> vector<1x8x8x768xbf16>
    %95 = vector.shape_cast %94 : vector<1x8x8x768xbf16> to vector<64x768xbf16>
    %c2_98 = arith.constant 2 : index
    %c0_99 = arith.constant 0 : index
    %c0_100 = arith.constant 0 : index
    %96 = vector.load %arg8[%c2_98, %c0_99, %c0_100] : memref<3x768x256xbf16, #tpu.memory_space<vmem>>, vector<1x768x256xbf16>
    %97 = vector.shape_cast %96 : vector<1x768x256xbf16> to vector<768x256xbf16>
    %cst_101 = arith.constant dense<0.000000e+00> : vector<64x256xf32>
    %98 = tpu.matmul %95, %97, %cst_101 {dimension_numbers = #tpu.dot_dimension_numbers<[1], [0], [0], [1], [0, 0, 1, 1], [], []>} : vector<64x768xbf16>, vector<768x256xbf16>, vector<64x256xf32> -> vector<64x256xf32>
    %99 = arith.addf %89, %98 : vector<64x256xf32>
    %c0_102 = arith.constant 0 : index
    %c0_103 = arith.constant 0 : index
    %100 = vector.load %arg9[%c0_102, %c0_103] : memref<1x256xf32, #tpu.memory_space<vmem>>, vector<1x256xf32>
    %101 = vector.broadcast %100 : vector<1x256xf32> to vector<64x256xf32>
    %102 = arith.mulf %99, %101 : vector<64x256xf32>
    %c0_104 = arith.constant 0 : index
    %c0_105 = arith.constant 0 : index
    %103 = vector.load %arg10[%c0_104, %c0_105] : memref<1x256xf32, #tpu.memory_space<vmem>>, vector<1x256xf32>
    %104 = vector.broadcast %103 : vector<1x256xf32> to vector<64x256xf32>
    %105 = arith.addf %102, %104 : vector<64x256xf32>
    %c0_106 = arith.constant 0 : index
    %c0_107 = arith.constant 0 : index
    %c0_108 = arith.constant 0 : index
    %c0_109 = arith.constant 0 : index
    %106 = vector.load %arg2[%c0_106, %c0_107, %c0_108, %c0_109] : memref<1x8x8x256xf32, #tpu.memory_space<vmem>>, vector<1x8x8x256xf32>
    %107 = vector.shape_cast %106 : vector<1x8x8x256xf32> to vector<64x256xf32>
    %108 = arith.addf %105, %107 : vector<64x256xf32>
    %cst_110 = arith.constant 0.000000e+00 : f32
    %109 = vector.broadcast %cst_110 : f32 to vector<64x256xf32>
    %110 = arith.maximumf %108, %109 : vector<64x256xf32>
    %111 = vector.shape_cast %110 : vector<64x256xf32> to vector<1x8x8x256xf32>
    %c0_111 = arith.constant 0 : index
    %c0_112 = arith.constant 0 : index
    %c0_113 = arith.constant 0 : index
    %c0_114 = arith.constant 0 : index
    %112 = vector.load %arg11[%c0_111, %c0_112, %c0_113, %c0_114] : memref<1x8x8x256xf32, #tpu.memory_space<vmem>>, vector<1x8x8x256xf32>
    tpu.vector_store %arg11[%c0_111, %c0_112, %c0_113, %c0_114], %111 {strides = array<i32>} : memref<1x8x8x256xf32, #tpu.memory_space<vmem>>, vector<1x8x8x256xf32>,
    return
  }
  func.func @transform_0(%arg0: i32, %arg1: i32) -> (i32, i32, i32, i32) {
    %c0_i32 = arith.constant 0 : i32
    %c0_i32_0 = arith.constant 0 : i32
    %c0_i32_1 = arith.constant 0 : i32
    return %arg0, %arg1, %c0_i32, %c0_i32_0 : i32, i32, i32, i32
  }
  func.func @transform_1(%arg0: i32, %arg1: i32) -> (i32, i32, i32, i32) {
    %c4_i32 = arith.constant 4 : i32
    %0 = arith.muli %arg1, %c4_i32 : i32
    %c1_i32 = arith.constant 1 : i32
    %1 = arith.subi %0, %c1_i32 : i32
    %c0_i32 = arith.constant 0 : i32
    %2 = arith.maxsi %1, %c0_i32 : i32
    %c0_i32_0 = arith.constant 0 : i32
    %c0_i32_1 = arith.constant 0 : i32
    %c0_i32_2 = arith.constant 0 : i32
    return %arg0, %2, %c0_i32_0, %c0_i32_1 : i32, i32, i32, i32
  }
  func.func @transform_2(%arg0: i32, %arg1: i32) -> (i32, i32, i32, i32) {
    %c1_i32 = arith.constant 1 : i32
    %0 = arith.addi %arg1, %c1_i32 : i32
    %c4_i32 = arith.constant 4 : i32
    %1 = arith.muli %0, %c4_i32 : i32
    %c3_i32 = arith.constant 3 : i32
    %2 = arith.minsi %1, %c3_i32 : i32
    %c0_i32 = arith.constant 0 : i32
    %c0_i32_0 = arith.constant 0 : i32
    %c0_i32_1 = arith.constant 0 : i32
    return %arg0, %2, %c0_i32, %c0_i32_0 : i32, i32, i32, i32
  }
  func.func @transform_3(%arg0: i32, %arg1: i32) -> (i32, i32, i32) {
    %c0_i32 = arith.constant 0 : i32
    %c0_i32_0 = arith.constant 0 : i32
    %c0_i32_1 = arith.constant 0 : i32
    %c0_i32_2 = arith.constant 0 : i32
    return %c0_i32, %c0_i32_0, %c0_i32_1 : i32, i32, i32
  }
  func.func @transform_4(%arg0: i32, %arg1: i32) -> (i32, i32) {
    %c0_i32 = arith.constant 0 : i32
    %c0_i32_0 = arith.constant 0 : i32
    %c0_i32_1 = arith.constant 0 : i32
    return %c0_i32, %c0_i32_0 : i32, i32
  }
  func.func @transform_5(%arg0: i32, %arg1: i32) -> (i32, i32) {
    %c0_i32 = arith.constant 0 : i32
    %c0_i32_0 = arith.constant 0 : i32
    %c0_i32_1 = arith.constant 0 : i32
    return %c0_i32, %c0_i32_0 : i32, i32
  }
  func.func @transform_6(%arg0: i32, %arg1: i32) -> (i32, i32, i32) {
    %c0_i32 = arith.constant 0 : i32
    %c0_i32_0 = arith.constant 0 : i32
    %c0_i32_1 = arith.constant 0 : i32
    %c0_i32_2 = arith.constant 0 : i32
    return %c0_i32, %c0_i32_0, %c0_i32_1 : i32, i32, i32
  }
  func.func @transform_7(%arg0: i32, %arg1: i32) -> (i32, i32) {
    %c0_i32 = arith.constant 0 : i32
    %c0_i32_0 = arith.constant 0 : i32
    %c0_i32_1 = arith.constant 0 : i32
    return %c0_i32, %c0_i32_0 : i32, i32
  }
  func.func @transform_8(%arg0: i32, %arg1: i32) -> (i32, i32) {
    %c0_i32 = arith.constant 0 : i32
    %c0_i32_0 = arith.constant 0 : i32
    %c0_i32_1 = arith.constant 0 : i32
    return %c0_i32, %c0_i32_0 : i32, i32
  }
  func.func @transform_9(%arg0: i32, %arg1: i32) -> (i32, i32, i32, i32) {
    %c0_i32 = arith.constant 0 : i32
    %c0_i32_0 = arith.constant 0 : i32
    %c0_i32_1 = arith.constant 0 : i32
    return %arg0, %arg1, %c0_i32, %c0_i32_0 : i32, i32, i32, i32
  }
}

</mosaic_0001>

<llo_original>
// kernel: residual_forward.1
$region0: #{residual_forward.1}
  #allocation0 [shape = 'u32[]', space=smem, size = 0x4, offset = 0x4, fixed_abs, tag = 'smem constant byte address 0x4 - core index']
  #allocation1 [shape = 'u32[144,128]{1,0:T(1,128)}', space=vmem, size = 0x12000, scoped, tag = 'internal scratch']
  #allocation2 [shape = 'bf16[1,12,10,256]{3,2,1,0:T(8,128)(2,1)}', space=vmem, size = 0x18000, scoped, tag = 'scratch operand']
  #allocation3 [shape = 'bf16[1,10,10,256]{3,2,1,0:T(8,128)(2,1)}', space=vmem, size = 0x14000, scoped, tag = 'scratch operand']
  %s0 = inlined_call_operand.vmem [shape: f32[2,8,8,256], index: 0, kind: input, shape index: {}, may-alias: {0,1,2}]
  %s1 = inlined_call_operand.vmem [shape: f32[2,8,8,256], index: 1, kind: input, shape index: {}, may-alias: {0,1,2}]
  %s2 = inlined_call_operand.vmem [shape: f32[2,8,8,256], index: 2, kind: input, shape index: {}, may-alias: {0,1,2}]
  %s3 = inlined_call_operand.vmem [shape: bf16[3,768,256], index: 3, kind: input, shape index: {}]
  %s4 = inlined_call_operand.vmem [shape: f32[1,256], index: 4, kind: input, shape index: {}]
  %s5 = inlined_call_operand.vmem [shape: f32[1,256], index: 5, kind: input, shape index: {}]
  %s6 = inlined_call_operand.vmem [shape: bf16[3,768,256], index: 6, kind: input, shape index: {}]
  %s7 = inlined_call_operand.vmem [shape: f32[1,256], index: 7, kind: input, shape index: {}]
  %s8 = inlined_call_operand.vmem [shape: f32[1,256], index: 8, kind: input, shape index: {}]
  %s9 = inlined_call_operand.hbm [shape: f32[2,8,8,256], index: 9, kind: output, shape index: {}]
  %s10 = sld [smem:[#allocation0]]
  $region73: #{residual_forward.1} parent=0
    _
  %s12 = ssub.s32 1, %s10
  %s13 = scalar_select 0, %s12, %s10
  $region1: #{residual_forward.1} parent=0
    #allocation4 [shape = 'u8[131072]{0}', space=vmem, size = 0x20000, scoped, tag = 'output window, operand 0']
    #allocation5 [shape = 's32[2]{0}', space=sflag, size = 0x8, scoped, tag = 'scoped memory for residual_forward.1']
    %14 = vsyncpa [#allocation5], 0
    %s15 = scalar_lea.sflag [#allocation5], 1
    %16 = vsyncpa %s15, 0
    loop: start=0, step=1, limit=4
    $region2: #{residual_forward.1} parent=1 // loop_pre_header
      _
    $region3: #{residual_forward.1} parent=1 // loop_header
      %s18 = sphi 0, %s22
      %p19 = scmp.ge.s32.totalorder %s18, 4
      %s25 = sphi 0, %s37
      %s26 = sphi 0, %s33
      %s27 = sphi 0, %s25
      %s28 = sphi 0, %s26
      %s29 = sphi 0, %s27
      %s30 = sphi 0, %s28
      %s42 = sphi 0, %s44
      %s45 = sphi 0, %s42
      %s46 = sphi 0, %s45
      %s62 = sphi 0, %s46
      %s78 = sphi 0, %s80
      %s81 = sphi 0, %s78
      %s82 = sphi 0, %s81
      %s98 = sphi 0, %s82
      %s114 = sphi 0, %s116
      %s117 = sphi 0, %s114
      %s118 = sphi 0, %s117
      %s134 = sphi 0, %s118
      %s138 = sphi 0, %s138
      %s140 = sphi 0, %s138
      %s141 = sphi 0, %s140
      %s155 = sphi 0, %s141
      %s159 = sphi 0, %s159
      %s161 = sphi 0, %s159
      %s162 = sphi 0, %s161
      %s176 = sphi 0, %s162
      %s180 = sphi 0, %s180
      %s182 = sphi 0, %s180
      %s183 = sphi 0, %s182
      %s197 = sphi 0, %s183
      %s201 = sphi 0, %s201
      %s203 = sphi 0, %s201
      %s204 = sphi 0, %s203
      %s218 = sphi 0, %s204
      %s222 = sphi 0, %s222
      %s224 = sphi 0, %s222
      %s225 = sphi 0, %s224
      %s239 = sphi 0, %s225
      %s243 = sphi 0, %s243
      %s245 = sphi 0, %s243
      %s246 = sphi 0, %s245
      %s260 = sphi 0, %s246
      %s268 = sphi 0, %s270
      %s271 = sphi 0, %s268
      %s272 = sphi 0, %s271
      %s288 = sphi 0, %s272
    $region4: #{residual_forward.1} parent=1 // loop_header_branch
      %21 = sbr.rel (%p19) target = $region8
    $region5: #{residual_forward.1} parent=1 // loop_body
      %s23 = ssub.s32 %s18, 1
      %s24 = ssub.s32 %s18, 2
      %s31 = sadd.s32 1, %s26
      %p32 = scmp.ge.s32.totalorder %s31, 1
      %s33 = scalar_select %p32, 0, %s31
      %s34 = sadd.s32 1, %s25
      %s35 = scalar_select %p32, %s34, %s25
      %p36 = scmp.ge.s32.totalorder %s35, 2
      %s37 = scalar_select %p36, 0, %s35
      %s38 = ssub.s32 %s25, %s37
      %s39 = ssub.s32 %s26, %s33
      %s40 = sor.u32 %s38, %s39
      %p41 = scmp.eq.s32.totalorder %s40, 0
      %s43 = sadd.s32 %s42, 1
      %s44 = scalar_select %p41, %s42, %s43
      %p47 = pneg %p41
      %p48 = scmp.eq.s32.totalorder %s18, 1
      %p49 = por %p47, %p48
      %p50 = scmp.ne.s32.totalorder %s42, %s45
      %p51 = scmp.eq.s32.totalorder %s18, 0
      %p52 = por %p50, %p51
      %p53 = scmp.ne.s32.totalorder %s42, %s45
      %p54 = scmp.eq.s32.totalorder %s23, 1
      %p55 = por %p53, %p54
      %p56 = scmp.ne.s32.totalorder %s45, %s46
      %p57 = scmp.eq.s32.totalorder %s23, 0
      %p58 = por %p56, %p57
      %p59 = scmp.ne.s32.totalorder %s45, %s46
      %p60 = scmp.eq.s32.totalorder %s24, 1
      %p61 = por %p59, %p60
      %p63 = scmp.ne.s32.totalorder %s46, %s62
      %p64 = scmp.eq.s32.totalorder %s24, 0
      %p65 = por %p63, %p64
      %s66 = smul.u32 %s26, 4
      %s67 = ssub.s32 %s66, 1
      %p68 = scmp.gt.s32.totalorder %s67, 0
      %s69 = scalar_select %p68, %s67, 0
      %s70 = smul.u32 %s33, 4
      %s71 = ssub.s32 %s70, 1
      %p72 = scmp.gt.s32.totalorder %s71, 0
      %s73 = scalar_select %p72, %s71, 0
      %s74 = ssub.s32 %s25, %s37
      %s75 = ssub.s32 %s69, %s73
      %s76 = sor.u32 %s74, %s75
      %p77 = scmp.eq.s32.totalorder %s76, 0
      %s79 = sadd.s32 %s78, 1
      %s80 = scalar_select %p77, %s78, %s79
      %p83 = pneg %p77
      %p84 = scmp.eq.s32.totalorder %s18, 1
      %p85 = por %p83, %p84
      %p86 = scmp.ne.s32.totalorder %s78, %s81
      %p87 = scmp.eq.s32.totalorder %s18, 0
      %p88 = por %p86, %p87
      %p89 = scmp.ne.s32.totalorder %s78, %s81
      %p90 = scmp.eq.s32.totalorder %s23, 1
      %p91 = por %p89, %p90
      %p92 = scmp.ne.s32.totalorder %s81, %s82
      %p93 = scmp.eq.s32.totalorder %s23, 0
      %p94 = por %p92, %p93
      %p95 = scmp.ne.s32.totalorder %s81, %s82
      %p96 = scmp.eq.s32.totalorder %s24, 1
      %p97 = por %p95, %p96
      %p99 = scmp.ne.s32.totalorder %s82, %s98
      %p100 = scmp.eq.s32.totalorder %s24, 0
      %p101 = por %p99, %p100
      %s102 = sadd.s32 %s26, 1
      %s103 = smul.u32 %s102, 4
      %p104 = scmp.lt.s32.totalorder %s103, 3
      %s105 = scalar_select %p104, %s103, 3
      %s106 = sadd.s32 %s33, 1
      %s107 = smul.u32 %s106, 4
      %p108 = scmp.lt.s32.totalorder %s107, 3
      %s109 = scalar_select %p108, %s107, 3
      %s110 = ssub.s32 %s25, %s37
      %s111 = ssub.s32 %s105, %s109
      %s112 = sor.u32 %s110, %s111
      %p113 = scmp.eq.s32.totalorder %s112, 0
      %s115 = sadd.s32 %s114, 1
      %s116 = scalar_select %p113, %s114, %s115
      %p119 = pneg %p113
      %p120 = scmp.eq.s32.totalorder %s18, 1
      %p121 = por %p119, %p120
      %p122 = scmp.ne.s32.totalorder %s114, %s117
      %p123 = scmp.eq.s32.totalorder %s18, 0
      %p124 = por %p122, %p123
      %p125 = scmp.ne.s32.totalorder %s114, %s117
      %p126 = scmp.eq.s32.totalorder %s23, 1
      %p127 = por %p125, %p126
      %p128 = scmp.ne.s32.totalorder %s117, %s118
      %p129 = scmp.eq.s32.totalorder %s23, 0
      %p130 = por %p128, %p129
      %p131 = scmp.ne.s32.totalorder %s117, %s118
      %p132 = scmp.eq.s32.totalorder %s24, 1
      %p133 = por %p131, %p132
      %p135 = scmp.ne.s32.totalorder %s118, %s134
      %p136 = scmp.eq.s32.totalorder %s24, 0
      %p137 = por %p135, %p136
      %s139 = sadd.s32 %s138, 1
      %p142 = scmp.eq.s32.totalorder %s18, 1
      %p143 = scmp.ne.s32.totalorder %s138, %s140
      %p144 = scmp.eq.s32.totalorder %s18, 0
      %p145 = por %p143, %p144
      %p146 = scmp.ne.s32.totalorder %s138, %s140
      %p147 = scmp.eq.s32.totalorder %s23, 1
      %p148 = por %p146, %p147
      %p149 = scmp.ne.s32.totalorder %s140, %s141
      %p150 = scmp.eq.s32.totalorder %s23, 0
      %p151 = por %p149, %p150
      %p152 = scmp.ne.s32.totalorder %s140, %s141
      %p153 = scmp.eq.s32.totalorder %s24, 1
      %p154 = por %p152, %p153
      %p156 = scmp.ne.s32.totalorder %s141, %s155
      %p157 = scmp.eq.s32.totalorder %s24, 0
      %p158 = por %p156, %p157
      %s160 = sadd.s32 %s159, 1
      %p163 = scmp.eq.s32.totalorder %s18, 1
      %p164 = scmp.ne.s32.totalorder %s159, %s161
      %p165 = scmp.eq.s32.totalorder %s18, 0
      %p166 = por %p164, %p165
      %p167 = scmp.ne.s32.totalorder %s159, %s161
      %p168 = scmp.eq.s32.totalorder %s23, 1
      %p169 = por %p167, %p168
      %p170 = scmp.ne.s32.totalorder %s161, %s162
      %p171 = scmp.eq.s32.totalorder %s23, 0
      %p172 = por %p170, %p171
      %p173 = scmp.ne.s32.totalorder %s161, %s162
      %p174 = scmp.eq.s32.totalorder %s24, 1
      %p175 = por %p173, %p174
      %p177 = scmp.ne.s32.totalorder %s162, %s176
      %p178 = scmp.eq.s32.totalorder %s24, 0
      %p179 = por %p177, %p178
      %s181 = sadd.s32 %s180, 1
      %p184 = scmp.eq.s32.totalorder %s18, 1
      %p185 = scmp.ne.s32.totalorder %s180, %s182
      %p186 = scmp.eq.s32.totalorder %s18, 0
      %p187 = por %p185, %p186
      %p188 = scmp.ne.s32.totalorder %s180, %s182
      %p189 = scmp.eq.s32.totalorder %s23, 1
      %p190 = por %p188, %p189
      %p191 = scmp.ne.s32.totalorder %s182, %s183
      %p192 = scmp.eq.s32.totalorder %s23, 0
      %p193 = por %p191, %p192
      %p194 = scmp.ne.s32.totalorder %s182, %s183
      %p195 = scmp.eq.s32.totalorder %s24, 1
      %p196 = por %p194, %p195
      %p198 = scmp.ne.s32.totalorder %s183, %s197
      %p199 = scmp.eq.s32.totalorder %s24, 0
      %p200 = por %p198, %p199
      %s202 = sadd.s32 %s201, 1
      %p205 = scmp.eq.s32.totalorder %s18, 1
      %p206 = scmp.ne.s32.totalorder %s201, %s203
      %p207 = scmp.eq.s32.totalorder %s18, 0
      %p208 = por %p206, %p207
      %p209 = scmp.ne.s32.totalorder %s201, %s203
      %p210 = scmp.eq.s32.totalorder %s23, 1
      %p211 = por %p209, %p210
      %p212 = scmp.ne.s32.totalorder %s203, %s204
      %p213 = scmp.eq.s32.totalorder %s23, 0
      %p214 = por %p212, %p213
      %p215 = scmp.ne.s32.totalorder %s203, %s204
      %p216 = scmp.eq.s32.totalorder %s24, 1
      %p217 = por %p215, %p216
      %p219 = scmp.ne.s32.totalorder %s204, %s218
      %p220 = scmp.eq.s32.totalorder %s24, 0
      %p221 = por %p219, %p220
      %s223 = sadd.s32 %s222, 1
      %p226 = scmp.eq.s32.totalorder %s18, 1
      %p227 = scmp.ne.s32.totalorder %s222, %s224
      %p228 = scmp.eq.s32.totalorder %s18, 0
      %p229 = por %p227, %p228
      %p230 = scmp.ne.s32.totalorder %s222, %s224
      %p231 = scmp.eq.s32.totalorder %s23, 1
      %p232 = por %p230, %p231
      %p233 = scmp.ne.s32.totalorder %s224, %s225
      %p234 = scmp.eq.s32.totalorder %s23, 0
      %p235 = por %p233, %p234
      %p236 = scmp.ne.s32.totalorder %s224, %s225
      %p237 = scmp.eq.s32.totalorder %s24, 1
      %p238 = por %p236, %p237
      %p240 = scmp.ne.s32.totalorder %s225, %s239
      %p241 = scmp.eq.s32.totalorder %s24, 0
      %p242 = por %p240, %p241
      %s244 = sadd.s32 %s243, 1
      %p247 = scmp.eq.s32.totalorder %s18, 1
      %p248 = scmp.ne.s32.totalorder %s243, %s245
      %p249 = scmp.eq.s32.totalorder %s18, 0
      %p250 = por %p248, %p249
      %p251 = scmp.ne.s32.totalorder %s243, %s245
      %p252 = scmp.eq.s32.totalorder %s23, 1
      %p253 = por %p251, %p252
      %p254 = scmp.ne.s32.totalorder %s245, %s246
      %p255 = scmp.eq.s32.totalorder %s23, 0
      %p256 = por %p254, %p255
      %p257 = scmp.ne.s32.totalorder %s245, %s246
      %p258 = scmp.eq.s32.totalorder %s24, 1
      %p259 = por %p257, %p258
      %p261 = scmp.ne.s32.totalorder %s246, %s260
      %p262 = scmp.eq.s32.totalorder %s24, 0
      %p263 = por %p261, %p262
      %s264 = ssub.s32 %s25, %s37
      %s265 = ssub.s32 %s26, %s33
      %s266 = sor.u32 %s264, %s265
      %p267 = scmp.eq.s32.totalorder %s266, 0
      %s269 = sadd.s32 %s268, 1
      %s270 = scalar_select %p267, %s268, %s269
      %p273 = pneg %p267
      %p274 = scmp.eq.s32.totalorder %s18, 1
      %p275 = por %p273, %p274
      %p276 = scmp.ne.s32.totalorder %s268, %s271
      %p277 = scmp.eq.s32.totalorder %s18, 0
      %p278 = por %p276, %p277
      %p279 = scmp.ne.s32.totalorder %s268, %s271
      %p280 = scmp.eq.s32.totalorder %s23, 1
      %p281 = por %p279, %p280
      %p282 = scmp.ne.s32.totalorder %s271, %s272
      %p283 = scmp.eq.s32.totalorder %s23, 0
      %p284 = por %p282, %p283
      %p285 = scmp.ne.s32.totalorder %s271, %s272
      %p286 = scmp.eq.s32.totalorder %s24, 1
      %p287 = por %p285, %p286
      %p289 = scmp.ne.s32.totalorder %s272, %s288
      %p290 = scmp.eq.s32.totalorder %s24, 0
      %p291 = por %p289, %p290
      %p292 = scmp.le.s32.totalorder 1, %s18
      %p293 = scmp.lt.s32.totalorder %s18, 3
      %p294 = pnand %p292, %p293
      %p295 = pneg %p294
      // Predicated region
      $region9: #{residual_forward.1} parent=5 // pred_check
        _
      $region10: #{residual_forward.1} parent=5 // pred_check_branch
        %297 = sbr.rel (%p294) target = $region12
      $region11: #{residual_forward.1} parent=5 // pred_region
        %s298 = ssub.s32 %s18, 1
        // Predicated region
        $region13: #{residual_forward.1} parent=11 // pred_check
          %p299 = pneg %p151
        $region14: #{residual_forward.1} parent=11 // pred_check_branch
          %301 = sbr.rel (%p299) target = $region16
        $region15: #{residual_forward.1} parent=11 // pred_region
          _
        $region16: #{residual_forward.1} parent=11 // pred_fallthru
          _
        // Predicated region
        $region17: #{residual_forward.1} parent=11 // pred_check
          %p302 = pneg %p172
        $region18: #{residual_forward.1} parent=11 // pred_check_branch
          %304 = sbr.rel (%p302) target = $region20
        $region19: #{residual_forward.1} parent=11 // pred_region
          _
        $region20: #{residual_forward.1} parent=11 // pred_fallthru
          _
        // Predicated region
        $region21: #{residual_forward.1} parent=11 // pred_check
          %p305 = pneg %p193
        $region22: #{residual_forward.1} parent=11 // pred_check_branch
          %307 = sbr.rel (%p305) target = $region24
        $region23: #{residual_forward.1} parent=11 // pred_region
          _
        $region24: #{residual_forward.1} parent=11 // pred_fallthru
          _
        // Predicated region
        $region25: #{residual_forward.1} parent=11 // pred_check
          %p308 = pneg %p214
        $region26: #{residual_forward.1} parent=11 // pred_check_branch
          %310 = sbr.rel (%p308) target = $region28
        $region27: #{residual_forward.1} parent=11 // pred_region
          _
        $region28: #{residual_forward.1} parent=11 // pred_fallthru
          _
        // Predicated region
        $region29: #{residual_forward.1} parent=11 // pred_check
          %p311 = pneg %p235
        $region30: #{residual_forward.1} parent=11 // pred_check_branch
          %313 = sbr.rel (%p311) target = $region32
        $region31: #{residual_forward.1} parent=11 // pred_region
          _
        $region32: #{residual_forward.1} parent=11 // pred_fallthru
          _
        // Predicated region
        $region33: #{residual_forward.1} parent=11 // pred_check
          %p314 = pneg %p256
        $region34: #{residual_forward.1} parent=11 // pred_check_branch
          %316 = sbr.rel (%p314) target = $region36
        $region35: #{residual_forward.1} parent=11 // pred_region
          _
        $region36: #{residual_forward.1} parent=11 // pred_fallthru
          _
      $region12: #{residual_forward.1} parent=5 // pred_fallthru
        _
      %p317 = scmp.lt.s32.totalorder %s18, 2
      // Predicated region
      $region37: #{residual_forward.1} parent=5 // pred_check
        %p318 = pneg %p317
      $region38: #{residual_forward.1} parent=5 // pred_check_branch
        %320 = sbr.rel (%p318) target = $region40
      $region39: #{residual_forward.1} parent=5 // pred_region
        // Predicated region
        $region41: #{residual_forward.1} parent=39 // pred_check
          %p321 = pneg %p52
        $region42: #{residual_forward.1} parent=39 // pred_check_branch
          %323 = sbr.rel (%p321) target = $region44
        $region43: #{residual_forward.1} parent=39 // pred_region
          %s324 = smul.u32 8, %s26
          %p325 = scmp.lt.s32.totalorder %s25, 1
          %s326 = scalar_select %p325, %s25, 1
          %p327 = scmp.lt.s32.totalorder %s324, 7
          %s328 = scalar_select %p327, %s324, 7
          %s329 = smul.addr %s328, 2
          %s330 = smul.addr %s326, 16
          %s331 = sadd.s32 %s329, %s330
          %s332 = smul.addr %s331, 8
          %s333 = scalar_lea.vmem %s0, %s332
          %s334 = smul.u32 8, %s26
        $region44: #{residual_forward.1} parent=39 // pred_fallthru
          _
        // Predicated region
        $region45: #{residual_forward.1} parent=39 // pred_check
          %p335 = pneg %p88
        $region46: #{residual_forward.1} parent=39 // pred_check_branch
          %337 = sbr.rel (%p335) target = $region48
        $region47: #{residual_forward.1} parent=39 // pred_region
          %s338 = smul.u32 %s26, 4
          %s339 = ssub.s32 %s338, 1
          %p340 = scmp.gt.s32.totalorder %s339, 0
          %s341 = scalar_select %p340, %s339, 0
          %s342 = smul.u32 2, %s341
          %p343 = scmp.lt.s32.totalorder %s25, 1
          %s344 = scalar_select %p343, %s25, 1
          %p345 = scmp.lt.s32.totalorder %s342, 7
          %s346 = scalar_select %p345, %s342, 7
          %s347 = smul.addr %s346, 2
          %s348 = smul.addr %s344, 16
          %s349 = sadd.s32 %s347, %s348
          %s350 = smul.addr %s349, 8
          %s351 = scalar_lea.vmem %s1, %s350
          %s352 = smul.u32 %s26, 4
          %s353 = ssub.s32 %s352, 1
          %p354 = scmp.gt.s32.totalorder %s353, 0
          %s355 = scalar_select %p354, %s353, 0
          %s356 = smul.u32 2, %s355
        $region48: #{residual_forward.1} parent=39 // pred_fallthru
          _
        // Predicated region
        $region49: #{residual_forward.1} parent=39 // pred_check
          %p357 = pneg %p124
        $region50: #{residual_forward.1} parent=39 // pred_check_branch
          %359 = sbr.rel (%p357) target = $region52
        $region51: #{residual_forward.1} parent=39 // pred_region
          %s360 = sadd.s32 %s26, 1
          %s361 = smul.u32 %s360, 4
          %p362 = scmp.lt.s32.totalorder %s361, 3
          %s363 = scalar_select %p362, %s361, 3
          %s364 = smul.u32 2, %s363
          %p365 = scmp.lt.s32.totalorder %s25, 1
          %s366 = scalar_select %p365, %s25, 1
          %p367 = scmp.lt.s32.totalorder %s364, 7
          %s368 = scalar_select %p367, %s364, 7
          %s369 = smul.addr %s368, 2
          %s370 = smul.addr %s366, 16
          %s371 = sadd.s32 %s369, %s370
          %s372 = smul.addr %s371, 8
          %s373 = scalar_lea.vmem %s2, %s372
          %s374 = sadd.s32 %s26, 1
          %s375 = smul.u32 %s374, 4
          %p376 = scmp.lt.s32.totalorder %s375, 3
          %s377 = scalar_select %p376, %s375, 3
          %s378 = smul.u32 2, %s377
        $region52: #{residual_forward.1} parent=39 // pred_fallthru
          _
      $region40: #{residual_forward.1} parent=5 // pred_fallthru
        _
      %p379 = scmp.le.s32.totalorder 1, %s18
      %p380 = scmp.lt.s32.totalorder %s18, 3
      %p381 = pnand %p379, %p380
      %p382 = pneg %p381
      // Predicated region
      $region53: #{residual_forward.1} parent=5 // pred_check
        _
      $region54: #{residual_forward.1} parent=5 // pred_check_branch
        %384 = sbr.rel (%p381) target = $region56
      $region55: #{residual_forward.1} parent=5 // pred_region
        %s385 = ssub.s32 %s18, 1
        %s386 = smul.u32 8, %s28
        %p387 = scmp.lt.s32.totalorder %s27, 1
        %s388 = scalar_select %p387, %s27, 1
        %p389 = scmp.lt.s32.totalorder %s386, 7
        %s390 = scalar_select %p389, %s386, 7
        %s391 = smul.addr %s390, 2
        %s392 = smul.addr %s388, 16
        %s393 = sadd.s32 %s391, %s392
        %s394 = smul.addr %s393, 8
        %s395 = scalar_lea.vmem %s0, %s394
        %p396 = pneg %p58
        %p397 = pneg %p55
        %s398 = smul.u32 %s28, 4
        %s399 = ssub.s32 %s398, 1
        %p400 = scmp.gt.s32.totalorder %s399, 0
        %s401 = scalar_select %p400, %s399, 0
        %s402 = smul.u32 2, %s401
        %p403 = scmp.lt.s32.totalorder %s27, 1
        %s404 = scalar_select %p403, %s27, 1
        %p405 = scmp.lt.s32.totalorder %s402, 7
        %s406 = scalar_select %p405, %s402, 7
        %s407 = smul.addr %s406, 2
        %s408 = smul.addr %s404, 16
        %s409 = sadd.s32 %s407, %s408
        %s410 = smul.addr %s409, 8
        %s411 = scalar_lea.vmem %s1, %s410
        %p412 = pneg %p94
        %p413 = pneg %p91
        %s414 = sadd.s32 %s28, 1
        %s415 = smul.u32 %s414, 4
        %p416 = scmp.lt.s32.totalorder %s415, 3
        %s417 = scalar_select %p416, %s415, 3
        %s418 = smul.u32 2, %s417
        %p419 = scmp.lt.s32.totalorder %s27, 1
        %s420 = scalar_select %p419, %s27, 1
        %p421 = scmp.lt.s32.totalorder %s418, 7
        %s422 = scalar_select %p421, %s418, 7
        %s423 = smul.addr %s422, 2
        %s424 = smul.addr %s420, 16
        %s425 = sadd.s32 %s423, %s424
        %s426 = smul.addr %s425, 8
        %s427 = scalar_lea.vmem %s2, %s426
        %p428 = pneg %p130
        %p429 = pneg %p127
        %p430 = pneg %p151
        %p431 = pneg %p148
        %p432 = pneg %p172
        %p433 = pneg %p169
        %p434 = pneg %p193
        %p435 = pneg %p190
        %p436 = pneg %p214
        %p437 = pneg %p211
        %p438 = pneg %p235
        %p439 = pneg %p232
        %p440 = pneg %p256
        %p441 = pneg %p253
        %p442 = pneg %p284
        %p443 = pneg %p281
        %s444 = sand.u32 %s271, 1
        %s445 = scalar_lea.sflag [#allocation5], %s444
        %s446 = sand.u32 %s271, 1
        %s447 = smul.addr %s446, 128
        %s448 = scalar_lea.vmem [#allocation4], %s447
        %s449 = smul.u32 8, %s28
        %p450 = scmp.lt.s32.totalorder %s27, 1
        %s451 = scalar_select %p450, %s27, 1
        %p452 = scmp.lt.s32.totalorder %s449, 7
        %s453 = scalar_select %p452, %s449, 7
        %s454 = smul.addr %s453, 2
        %s455 = smul.addr %s451, 16
        %s456 = sadd.s32 %s454, %s455
        %s457 = smul.addr %s456, 8
        %s458 = scalar_lea.vmem %s0, %s457
        %s459 = smul.u32 8, %s28
        %s460 = smul.u32 %s28, 4
        %s461 = ssub.s32 %s460, 1
        %p462 = scmp.gt.s32.totalorder %s461, 0
        %s463 = scalar_select %p462, %s461, 0
        %s464 = smul.u32 2, %s463
        %p465 = scmp.lt.s32.totalorder %s27, 1
        %s466 = scalar_select %p465, %s27, 1
        %p467 = scmp.lt.s32.totalorder %s464, 7
        %s468 = scalar_select %p467, %s464, 7
        %s469 = smul.addr %s468, 2
        %s470 = smul.addr %s466, 16
        %s471 = sadd.s32 %s469, %s470
        %s472 = smul.addr %s471, 8
        %s473 = scalar_lea.vmem %s1, %s472
        %s474 = smul.u32 %s28, 4
        %s475 = ssub.s32 %s474, 1
        %p476 = scmp.gt.s32.totalorder %s475, 0
        %s477 = scalar_select %p476, %s475, 0
        %s478 = smul.u32 2, %s477
        %s479 = sadd.s32 %s28, 1
        %s480 = smul.u32 %s479, 4
        %p481 = scmp.lt.s32.totalorder %s480, 3
        %s482 = scalar_select %p481, %s480, 3
        %s483 = smul.u32 2, %s482
        %p484 = scmp.lt.s32.totalorder %s27, 1
        %s485 = scalar_select %p484, %s27, 1
        %p486 = scmp.lt.s32.totalorder %s483, 7
        %s487 = scalar_select %p486, %s483, 7
        %s488 = smul.addr %s487, 2
        %s489 = smul.addr %s485, 16
        %s490 = sadd.s32 %s488, %s489
        %s491 = smul.addr %s490, 8
        %s492 = scalar_lea.vmem %s2, %s491
        %s493 = sadd.s32 %s28, 1
        %s494 = smul.u32 %s493, 4
        %p495 = scmp.lt.s32.totalorder %s494, 3
        %s496 = scalar_select %p495, %s494, 3
        %s497 = smul.u32 2, %s496
        %s498 = smul.u32 8, %s28
        %v500 = vld [vmem:[%s458] sm:$0xff]
        %v501 = vld [vmem:[%s458 + $0x8] sm:$0xff]
        %v502 = vld [vmem:[%s458 + $0x10] sm:$0xff]
        %v503 = vld [vmem:[%s458 + $0x18] sm:$0xff]
        %v504 = vld [vmem:[%s458 + $0x20] sm:$0xff]
        %v505 = vld [vmem:[%s458 + $0x28] sm:$0xff]
        %v506 = vld [vmem:[%s458 + $0x30] sm:$0xff]
        %v507 = vld [vmem:[%s458 + $0x38] sm:$0xff]
        %v508 = vld [vmem:[%s458 + $0x40] sm:$0xff]
        %v509 = vld [vmem:[%s458 + $0x48] sm:$0xff]
        %v510 = vld [vmem:[%s458 + $0x50] sm:$0xff]
        %v511 = vld [vmem:[%s458 + $0x58] sm:$0xff]
        %v512 = vld [vmem:[%s458 + $0x60] sm:$0xff]
        %v513 = vld [vmem:[%s458 + $0x68] sm:$0xff]
        %v514 = vld [vmem:[%s458 + $0x70] sm:$0xff]
        %v515 = vld [vmem:[%s458 + $0x78] sm:$0xff]
        %v516 = vpack.c.bf16 %v500, %v500
        %v517 = vpack.c.bf16 %v501, %v501
        %v518 = vpack.c.bf16 %v502, %v502
        %v519 = vpack.c.bf16 %v503, %v503
        %v520 = vpack.c.bf16 %v504, %v504
        %v521 = vpack.c.bf16 %v505, %v505
        %v522 = vpack.c.bf16 %v506, %v506
        %v523 = vpack.c.bf16 %v507, %v507
        %v524 = vpack.c.bf16 %v508, %v508
        %v525 = vpack.c.bf16 %v509, %v509
        %v526 = vpack.c.bf16 %v510, %v510
        %v527 = vpack.c.bf16 %v511, %v511
        %v528 = vpack.c.bf16 %v512, %v512
        %v529 = vpack.c.bf16 %v513, %v513
        %v530 = vpack.c.bf16 %v514, %v514
        %v531 = vpack.c.bf16 %v515, %v515
        %v548 = vunpack.c.l.b16 %v516
        %v549 = vunpack.c.l.b16 %v517
        %v550 = vunpack.c.l.b16 %v518
        %v551 = vunpack.c.l.b16 %v519
        %v552 = vunpack.c.l.b16 %v520
        %v553 = vunpack.c.l.b16 %v521
        %v554 = vunpack.c.l.b16 %v522
        %v555 = vunpack.c.l.b16 %v523
        %v556 = vunpack.c.l.b16 %v524
        %v557 = vunpack.c.l.b16 %v525
        %v558 = vunpack.c.l.b16 %v526
        %v559 = vunpack.c.l.b16 %v527
        %v560 = vunpack.c.l.b16 %v528
        %v561 = vunpack.c.l.b16 %v529
        %v562 = vunpack.c.l.b16 %v530
        %v563 = vunpack.c.l.b16 %v531
        %v564 = vpack.c.b16 %v549, %v548
        %v565 = vpack.c.b16 %v551, %v550
        %v566 = vpack.c.b16 %v553, %v552
        %v567 = vpack.c.b16 %v555, %v554
        %v568 = vpack.c.b16 %v557, %v556
        %v569 = vpack.c.b16 %v559, %v558
        %v570 = vpack.c.b16 %v561, %v560
        %v571 = vpack.c.b16 %v563, %v562
        %v573 = vshrl.u32 %v564, 16
        %v575 = vrot.slane %v573, 7
        %v576 = vshll.u32 %v564, 16
        %v578 = vor.u32 %v575, %v576
        %v579 = vrot.slane %v575, 4
        %v581 = vshrl.u32 %v565, 16
        %v583 = vrot.slane %v581, 7
        %v584 = vshll.u32 %v565, 16
        %v586 = vor.u32 %v583, %v584
        %v587 = vrot.slane %v583, 4
        %v589 = vshrl.u32 %v566, 16
        %v591 = vrot.slane %v589, 7
        %v592 = vshll.u32 %v566, 16
        %v594 = vor.u32 %v591, %v592
        %v595 = vrot.slane %v591, 4
        %v597 = vshrl.u32 %v567, 16
        %v599 = vrot.slane %v597, 7
        %v600 = vshll.u32 %v567, 16
        %v602 = vor.u32 %v599, %v600
        %v603 = vrot.slane %v599, 4
        %v605 = vshrl.u32 %v568, 16
        %v607 = vrot.slane %v605, 7
        %v608 = vshll.u32 %v568, 16
        %v610 = vor.u32 %v607, %v608
        %v611 = vrot.slane %v607, 4
        %v613 = vshrl.u32 %v569, 16
        %v615 = vrot.slane %v613, 7
        %v616 = vshll.u32 %v569, 16
        %v618 = vor.u32 %v615, %v616
        %v619 = vrot.slane %v615, 4
        %v621 = vshrl.u32 %v570, 16
        %v623 = vrot.slane %v621, 7
        %v624 = vshll.u32 %v570, 16
        %v626 = vor.u32 %v623, %v624
        %v627 = vrot.slane %v623, 4
        %v629 = vshrl.u32 %v571, 16
        %v631 = vrot.slane %v629, 7
        %v632 = vshll.u32 %v571, 16
        %v634 = vor.u32 %v631, %v632
        %v635 = vrot.slane %v631, 4
        %s652 = scalar_lea.vmem [#allocation2], 32
        %vm653 = vcmask 1043456
        %vm654 = vsmask.f32 7938
        %vm655 = vmand %vm653, %vm654
        %vm656 = vcmask 1047556
        %vm657 = vsmask.f32 7954
        %vm658 = vmand %vm656, %vm657
        %vm659 = vmor %vm658, %vm655
        %v660 = vld [vmem:[%s652] sm:$0xff]
        %v661 = vsel %vm659, %v578, %v660
        %662 = vst [vmem:[%s652] sm:$0xff] %v661
        %vm663 = vcmask 1040384
        %vm664 = vsmask.f32 256
        %vm665 = vmand %vm663, %vm664
        %vm666 = vcmask 1044484
        %vm667 = vsmask.f32 4352
        %vm668 = vmand %vm666, %vm667
        %vm669 = vmor %vm668, %vm665
        %v670 = vld [vmem:[%s652 + $0x8] sm:$0x11]
        %v671 = vsel %vm669, %v579, %v670
        %672 = vst [vmem:[%s652 + $0x8] sm:$0x11] %v671
        %v673 = vld [vmem:[%s652 + $0x10] sm:$0xff]
        %v674 = vsel %vm659, %v586, %v673
        %675 = vst [vmem:[%s652 + $0x10] sm:$0xff] %v674
        %v676 = vld [vmem:[%s652 + $0x18] sm:$0x11]
        %v677 = vsel %vm669, %v587, %v676
        %678 = vst [vmem:[%s652 + $0x18] sm:$0x11] %v677
        %v679 = vld [vmem:[%s652 + $0x20] sm:$0xff]
        %v680 = vsel %vm659, %v594, %v679
        %681 = vst [vmem:[%s652 + $0x20] sm:$0xff] %v680
        %v682 = vld [vmem:[%s652 + $0x28] sm:$0x11]
        %v683 = vsel %vm669, %v595, %v682
        %684 = vst [vmem:[%s652 + $0x28] sm:$0x11] %v683
        %v685 = vld [vmem:[%s652 + $0x30] sm:$0xff]
        %v686 = vsel %vm659, %v602, %v685
        %687 = vst [vmem:[%s652 + $0x30] sm:$0xff] %v686
        %v688 = vld [vmem:[%s652 + $0x38] sm:$0x11]
        %v689 = vsel %vm669, %v603, %v688
        %690 = vst [vmem:[%s652 + $0x38] sm:$0x11] %v689
        %v691 = vld [vmem:[%s652 + $0x40] sm:$0xff]
        %v692 = vsel %vm659, %v610, %v691
        %693 = vst [vmem:[%s652 + $0x40] sm:$0xff] %v692
        %v694 = vld [vmem:[%s652 + $0x48] sm:$0x11]
        %v695 = vsel %vm669, %v611, %v694
        %696 = vst [vmem:[%s652 + $0x48] sm:$0x11] %v695
        %v697 = vld [vmem:[%s652 + $0x50] sm:$0xff]
        %v698 = vsel %vm659, %v618, %v697
        %699 = vst [vmem:[%s652 + $0x50] sm:$0xff] %v698
        %v700 = vld [vmem:[%s652 + $0x58] sm:$0x11]
        %v701 = vsel %vm669, %v619, %v700
        %702 = vst [vmem:[%s652 + $0x58] sm:$0x11] %v701
        %v703 = vld [vmem:[%s652 + $0x60] sm:$0xff]
        %v704 = vsel %vm659, %v626, %v703
        %705 = vst [vmem:[%s652 + $0x60] sm:$0xff] %v704
        %v706 = vld [vmem:[%s652 + $0x68] sm:$0x11]
        %v707 = vsel %vm669, %v627, %v706
        %708 = vst [vmem:[%s652 + $0x68] sm:$0x11] %v707
        %v709 = vld [vmem:[%s652 + $0x70] sm:$0xff]
        %v710 = vsel %vm659, %v634, %v709
        %711 = vst [vmem:[%s652 + $0x70] sm:$0xff] %v710
        %v712 = vld [vmem:[%s652 + $0x78] sm:$0x11]
        %v713 = vsel %vm669, %v635, %v712
        %714 = vst [vmem:[%s652 + $0x78] sm:$0x11] %v713
        %p715 = scmp.gt.s32.totalorder %s28, 0
        %v716 = vld [vmem:[%s473] sm:$0xff]
        %v717 = vld [vmem:[%s473 + $0x8] sm:$0xff]
        %v718 = vld [vmem:[%s473 + $0x10] sm:$0xff]
        %v719 = vld [vmem:[%s473 + $0x18] sm:$0xff]
        %s720 = scalar_select %p715, 1, 0
        %v721 = vstv %s720
        %vm722 = vcmp.eq.s32.totalorder %v721, 1
        %v723 = vsel %vm722, %v716, 0.0
        %v724 = vsel %vm722, %v717, 0.0
        %v725 = vsel %vm722, %v718, 0.0
        %v726 = vsel %vm722, %v719, 0.0
        %v727 = vpack.c.bf16 %v723, %v723
        %v728 = vpack.c.bf16 %v724, %v724
        %v729 = vpack.c.bf16 %v725, %v725
        %v730 = vpack.c.bf16 %v726, %v726
        %v735 = vunpack.c.l.b16 %v727
        %v736 = vunpack.c.l.b16 %v728
        %v737 = vunpack.c.l.b16 %v729
        %v738 = vunpack.c.l.b16 %v730
        %v739 = vpack.c.b16 %v736, %v735
        %v740 = vpack.c.b16 %v738, %v737
        %v742 = vshrl.u32 %v739, 16
        %v744 = vrot.slane %v742, 7
        %v745 = vshll.u32 %v739, 16
        %v747 = vor.u32 %v744, %v745
        %v748 = vrot.slane %v744, 4
        %v750 = vshrl.u32 %v740, 16
        %v752 = vrot.slane %v750, 7
        %v753 = vshll.u32 %v740, 16
        %v755 = vor.u32 %v752, %v753
        %v756 = vrot.slane %v752, 4
        %v761 = vld [vmem:[#allocation2] sm:$0xff]
        %v762 = vsel %vm659, %v747, %v761
        %763 = vst [vmem:[#allocation2] sm:$0xff] %v762
        %v764 = vld [vmem:[#allocation2 + $0x8] sm:$0x11]
        %v765 = vsel %vm669, %v748, %v764
        %766 = vst [vmem:[#allocation2 + $0x8] sm:$0x11] %v765
        %v767 = vld [vmem:[#allocation2 + $0x10] sm:$0xff]
        %v768 = vsel %vm659, %v755, %v767
        %769 = vst [vmem:[#allocation2 + $0x10] sm:$0xff] %v768
        %v770 = vld [vmem:[#allocation2 + $0x18] sm:$0x11]
        %v771 = vsel %vm669, %v756, %v770
        %772 = vst [vmem:[#allocation2 + $0x18] sm:$0x11] %v771
        %p773 = scmp.lt.s32.totalorder %s28, 0
        %v774 = vld [vmem:[%s492] sm:$0xff]
        %v775 = vld [vmem:[%s492 + $0x8] sm:$0xff]
        %v776 = vld [vmem:[%s492 + $0x10] sm:$0xff]
        %v777 = vld [vmem:[%s492 + $0x18] sm:$0xff]
        %s778 = scalar_select %p773, 1, 0
        %v779 = vstv %s778
        %vm780 = vcmp.eq.s32.totalorder %v779, 1
        %v781 = vsel %vm780, %v774, 0.0
        %v782 = vsel %vm780, %v775, 0.0
        %v783 = vsel %vm780, %v776, 0.0
        %v784 = vsel %vm780, %v777, 0.0
        %v785 = vpack.c.bf16 %v781, %v781
        %v786 = vpack.c.bf16 %v782, %v782
        %v787 = vpack.c.bf16 %v783, %v783
        %v788 = vpack.c.bf16 %v784, %v784
        %v793 = vunpack.c.l.b16 %v785
        %v794 = vunpack.c.l.b16 %v786
        %v795 = vunpack.c.l.b16 %v787
        %v796 = vunpack.c.l.b16 %v788
        %v797 = vpack.c.b16 %v794, %v793
        %v798 = vpack.c.b16 %v796, %v795
        %v800 = vshrl.u32 %v797, 16
        %v802 = vrot.slane %v800, 7
        %v803 = vshll.u32 %v797, 16
        %v805 = vor.u32 %v802, %v803
        %v806 = vrot.slane %v802, 4
        %v808 = vshrl.u32 %v798, 16
        %v810 = vrot.slane %v808, 7
        %v811 = vshll.u32 %v798, 16
        %v813 = vor.u32 %v810, %v811
        %v814 = vrot.slane %v810, 4
        %s819 = scalar_lea.vmem [#allocation2], 160
        %v820 = vld [vmem:[%s819] sm:$0xff]
        %v821 = vsel %vm659, %v805, %v820
        %822 = vst [vmem:[%s819] sm:$0xff] %v821
        %v823 = vld [vmem:[%s819 + $0x8] sm:$0x11]
        %v824 = vsel %vm669, %v806, %v823
        %825 = vst [vmem:[%s819 + $0x8] sm:$0x11] %v824
        %v826 = vld [vmem:[%s819 + $0x10] sm:$0xff]
        %v827 = vsel %vm659, %v813, %v826
        %828 = vst [vmem:[%s819 + $0x10] sm:$0xff] %v827
        %v829 = vld [vmem:[%s819 + $0x18] sm:$0x11]
        %v830 = vsel %vm669, %v814, %v829
        %831 = vst [vmem:[%s819 + $0x18] sm:$0x11] %v830
        %v832 = vld [vmem:[#allocation2] sm:$0x11]
        %v833 = vsel %vm669, 0, %v832
        %834 = vst [vmem:[#allocation2] sm:$0x11] %v833
        %v835 = vld [vmem:[#allocation2 + $0x10] sm:$0x11]
        %v836 = vsel %vm669, 0, %v835
        %837 = vst [vmem:[#allocation2 + $0x10] sm:$0x11] %v836
        %v838 = vld [vmem:[#allocation2 + $0x20] sm:$0x11]
        %v839 = vsel %vm669, 0, %v838
        %840 = vst [vmem:[#allocation2 + $0x20] sm:$0x11] %v839
        %v841 = vld [vmem:[#allocation2 + $0x30] sm:$0x11]
        %v842 = vsel %vm669, 0, %v841
        %843 = vst [vmem:[#allocation2 + $0x30] sm:$0x11] %v842
        %v844 = vld [vmem:[#allocation2 + $0x40] sm:$0x11]
        %v845 = vsel %vm669, 0, %v844
        %846 = vst [vmem:[#allocation2 + $0x40] sm:$0x11] %v845
        %v847 = vld [vmem:[#allocation2 + $0x50] sm:$0x11]
        %v848 = vsel %vm669, 0, %v847
        %849 = vst [vmem:[#allocation2 + $0x50] sm:$0x11] %v848
        %v850 = vld [vmem:[#allocation2 + $0x60] sm:$0x11]
        %v851 = vsel %vm669, 0, %v850
        %852 = vst [vmem:[#allocation2 + $0x60] sm:$0x11] %v851
        %v853 = vld [vmem:[#allocation2 + $0x70] sm:$0x11]
        %v854 = vsel %vm669, 0, %v853
        %855 = vst [vmem:[#allocation2 + $0x70] sm:$0x11] %v854
        %v856 = vld [vmem:[#allocation2 + $0x80] sm:$0x11]
        %v857 = vsel %vm669, 0, %v856
        %858 = vst [vmem:[#allocation2 + $0x80] sm:$0x11] %v857
        %v859 = vld [vmem:[#allocation2 + $0x90] sm:$0x11]
        %v860 = vsel %vm669, 0, %v859
        %861 = vst [vmem:[#allocation2 + $0x90] sm:$0x11] %v860
        %v862 = vld [vmem:[#allocation2 + $0xa0] sm:$0x11]
        %v863 = vsel %vm669, 0, %v862
        %864 = vst [vmem:[#allocation2 + $0xa0] sm:$0x11] %v863
        %v865 = vld [vmem:[#allocation2 + $0xb0] sm:$0x11]
        %v866 = vsel %vm669, 0, %v865
        %867 = vst [vmem:[#allocation2 + $0xb0] sm:$0x11] %v866
        %vm868 = vmand %vm663, %vm654
        %vm869 = vmand %vm666, %vm657
        %vm870 = vmor %vm869, %vm868
        %v871 = vld [vmem:[#allocation2 + $0x8] sm:$0x11]
        %v872 = vsel %vm870, 0, %v871
        %873 = vst [vmem:[#allocation2 + $0x8] sm:$0x11] %v872
        %v874 = vld [vmem:[#allocation2 + $0x18] sm:$0x11]
        %v875 = vsel %vm870, 0, %v874
        %876 = vst [vmem:[#allocation2 + $0x18] sm:$0x11] %v875
        %v877 = vld [vmem:[#allocation2 + $0x28] sm:$0x11]
        %v878 = vsel %vm870, 0, %v877
        %879 = vst [vmem:[#allocation2 + $0x28] sm:$0x11] %v878
        %v880 = vld [vmem:[#allocation2 + $0x38] sm:$0x11]
        %v881 = vsel %vm870, 0, %v880
        %882 = vst [vmem:[#allocation2 + $0x38] sm:$0x11] %v881
        %v883 = vld [vmem:[#allocation2 + $0x48] sm:$0x11]
        %v884 = vsel %vm870, 0, %v883
        %885 = vst [vmem:[#allocation2 + $0x48] sm:$0x11] %v884
        %v886 = vld [vmem:[#allocation2 + $0x58] sm:$0x11]
        %v887 = vsel %vm870, 0, %v886
        %888 = vst [vmem:[#allocation2 + $0x58] sm:$0x11] %v887
        %v889 = vld [vmem:[#allocation2 + $0x68] sm:$0x11]
        %v890 = vsel %vm870, 0, %v889
        %891 = vst [vmem:[#allocation2 + $0x68] sm:$0x11] %v890
        %v892 = vld [vmem:[#allocation2 + $0x78] sm:$0x11]
        %v893 = vsel %vm870, 0, %v892
        %894 = vst [vmem:[#allocation2 + $0x78] sm:$0x11] %v893
        %v895 = vld [vmem:[#allocation2 + $0x88] sm:$0x11]
        %v896 = vsel %vm870, 0, %v895
        %897 = vst [vmem:[#allocation2 + $0x88] sm:$0x11] %v896
        %v898 = vld [vmem:[#allocation2 + $0x98] sm:$0x11]
        %v899 = vsel %vm870, 0, %v898
        %900 = vst [vmem:[#allocation2 + $0x98] sm:$0x11] %v899
        %v901 = vld [vmem:[#allocation2 + $0xa8] sm:$0x11]
        %v902 = vsel %vm870, 0, %v901
        %903 = vst [vmem:[#allocation2 + $0xa8] sm:$0x11] %v902
        %v904 = vld [vmem:[#allocation2 + $0xb8] sm:$0x11]
        %v905 = vsel %vm870, 0, %v904
        %906 = vst [vmem:[#allocation2 + $0xb8] sm:$0x11] %v905
        %v907 = vld [vmem:[#allocation2] sm:$0xff]
        %v908 = vld [vmem:[#allocation2 + $0x8] sm:$0x11]
        %v909 = vld [vmem:[#allocation2 + $0x10] sm:$0xff]
        %v910 = vld [vmem:[#allocation2 + $0x18] sm:$0x11]
        %v911 = vld [vmem:[#allocation2 + $0x20] sm:$0xff]
        %v912 = vld [vmem:[#allocation2 + $0x28] sm:$0x11]
        %v913 = vld [vmem:[#allocation2 + $0x30] sm:$0xff]
        %v914 = vld [vmem:[#allocation2 + $0x38] sm:$0x11]
        %v915 = vld [vmem:[#allocation2 + $0x40] sm:$0xff]
        %v916 = vld [vmem:[#allocation2 + $0x48] sm:$0x11]
        %v917 = vld [vmem:[#allocation2 + $0x50] sm:$0xff]
        %v918 = vld [vmem:[#allocation2 + $0x58] sm:$0x11]
        %v919 = vld [vmem:[#allocation2 + $0x60] sm:$0xff]
        %v920 = vld [vmem:[#allocation2 + $0x68] sm:$0x11]
        %v921 = vld [vmem:[#allocation2 + $0x70] sm:$0xff]
        %v922 = vld [vmem:[#allocation2 + $0x78] sm:$0x11]
        %v923 = vld [vmem:[#allocation2 + $0x80] sm:$0xff]
        %v924 = vld [vmem:[#allocation2 + $0x88] sm:$0x11]
        %v925 = vld [vmem:[#allocation2 + $0x90] sm:$0xff]
        %v926 = vld [vmem:[#allocation2 + $0x98] sm:$0x11]
        %v937 = vunpack.c.l.b16 %v907
        %v938 = vunpack.c.h.b16 %v907
        %v939 = vunpack.c.l.b16 %v909
        %v940 = vunpack.c.h.b16 %v909
        %v941 = vunpack.c.l.b16 %v911
        %v942 = vunpack.c.h.b16 %v911
        %v943 = vunpack.c.l.b16 %v913
        %v944 = vunpack.c.h.b16 %v913
        %v945 = vunpack.c.l.b16 %v915
        %v946 = vunpack.c.h.b16 %v915
        %v947 = vunpack.c.l.b16 %v917
        %v948 = vunpack.c.h.b16 %v917
        %v949 = vunpack.c.l.b16 %v919
        %v950 = vunpack.c.h.b16 %v919
        %v951 = vunpack.c.l.b16 %v921
        %v952 = vunpack.c.h.b16 %v921
        %v953 = vunpack.c.l.b16 %v923
        %v954 = vunpack.c.h.b16 %v923
        %v955 = vunpack.c.l.b16 %v925
        %v956 = vunpack.c.h.b16 %v925
        %v967 = vunpack.c.l.b16 %v908
        %v968 = vunpack.c.h.b16 %v908
        %v969 = vunpack.c.l.b16 %v910
        %v970 = vunpack.c.h.b16 %v910
        %v971 = vunpack.c.l.b16 %v912
        %v972 = vunpack.c.h.b16 %v912
        %v973 = vunpack.c.l.b16 %v914
        %v974 = vunpack.c.h.b16 %v914
        %v975 = vunpack.c.l.b16 %v916
        %v976 = vunpack.c.h.b16 %v916
        %v977 = vunpack.c.l.b16 %v918
        %v978 = vunpack.c.h.b16 %v918
        %v979 = vunpack.c.l.b16 %v920
        %v980 = vunpack.c.h.b16 %v920
        %v981 = vunpack.c.l.b16 %v922
        %v982 = vunpack.c.h.b16 %v922
        %v983 = vunpack.c.l.b16 %v924
        %v984 = vunpack.c.h.b16 %v924
        %v985 = vunpack.c.l.b16 %v926
        %v986 = vunpack.c.h.b16 %v926
        %v987 = vpack.c.b16 %v967, %v937
        %v988 = vpack.c.b16 %v968, %v938
        %v989 = vpack.c.b16 %v969, %v939
        %v990 = vpack.c.b16 %v970, %v940
        %v991 = vpack.c.b16 %v971, %v941
        %v992 = vpack.c.b16 %v972, %v942
        %v993 = vpack.c.b16 %v973, %v943
        %v994 = vpack.c.b16 %v974, %v944
        %v995 = vpack.c.b16 %v975, %v945
        %v996 = vpack.c.b16 %v976, %v946
        %v997 = vpack.c.b16 %v977, %v947
        %v998 = vpack.c.b16 %v978, %v948
        %v999 = vpack.c.b16 %v979, %v949
        %v1000 = vpack.c.b16 %v980, %v950
        %v1001 = vpack.c.b16 %v981, %v951
        %v1002 = vpack.c.b16 %v982, %v952
        %v1003 = vpack.c.b16 %v983, %v953
        %v1004 = vpack.c.b16 %v984, %v954
        %v1005 = vpack.c.b16 %v985, %v955
        %v1006 = vpack.c.b16 %v986, %v956
        %v1008 = vshrl.u32 %v987, 16
        %v1010 = vshll.u32 %v987, 16
        %v1012 = vrot.slane %v1010, 1
        %v1013 = vor.u32 %v1008, %v1012
        %v1015 = vshrl.u32 %v988, 16
        %v1017 = vshll.u32 %v988, 16
        %v1019 = vrot.slane %v1017, 1
        %v1020 = vor.u32 %v1015, %v1019
        %v1022 = vshrl.u32 %v989, 16
        %v1024 = vshll.u32 %v989, 16
        %v1026 = vrot.slane %v1024, 1
        %v1027 = vor.u32 %v1022, %v1026
        %v1029 = vshrl.u32 %v990, 16
        %v1031 = vshll.u32 %v990, 16
        %v1033 = vrot.slane %v1031, 1
        %v1034 = vor.u32 %v1029, %v1033
        %v1036 = vshrl.u32 %v991, 16
        %v1038 = vshll.u32 %v991, 16
        %v1040 = vrot.slane %v1038, 1
        %v1041 = vor.u32 %v1036, %v1040
        %v1043 = vshrl.u32 %v992, 16
        %v1045 = vshll.u32 %v992, 16
        %v1047 = vrot.slane %v1045, 1
        %v1048 = vor.u32 %v1043, %v1047
        %v1050 = vshrl.u32 %v993, 16
        %v1052 = vshll.u32 %v993, 16
        %v1054 = vrot.slane %v1052, 1
        %v1055 = vor.u32 %v1050, %v1054
        %v1057 = vshrl.u32 %v994, 16
        %v1059 = vshll.u32 %v994, 16
        %v1061 = vrot.slane %v1059, 1
        %v1062 = vor.u32 %v1057, %v1061
        %v1064 = vshrl.u32 %v995, 16
        %v1066 = vshll.u32 %v995, 16
        %v1068 = vrot.slane %v1066, 1
        %v1069 = vor.u32 %v1064, %v1068
        %v1071 = vshrl.u32 %v996, 16
        %v1073 = vshll.u32 %v996, 16
        %v1075 = vrot.slane %v1073, 1
        %v1076 = vor.u32 %v1071, %v1075
        %v1078 = vshrl.u32 %v997, 16
        %v1080 = vshll.u32 %v997, 16
        %v1082 = vrot.slane %v1080, 1
        %v1083 = vor.u32 %v1078, %v1082
        %v1085 = vshrl.u32 %v998, 16
        %v1087 = vshll.u32 %v998, 16
        %v1089 = vrot.slane %v1087, 1
        %v1090 = vor.u32 %v1085, %v1089
        %v1092 = vshrl.u32 %v999, 16
        %v1094 = vshll.u32 %v999, 16
        %v1096 = vrot.slane %v1094, 1
        %v1097 = vor.u32 %v1092, %v1096
        %v1099 = vshrl.u32 %v1000, 16
        %v1101 = vshll.u32 %v1000, 16
        %v1103 = vrot.slane %v1101, 1
        %v1104 = vor.u32 %v1099, %v1103
        %v1106 = vshrl.u32 %v1001, 16
        %v1108 = vshll.u32 %v1001, 16
        %v1110 = vrot.slane %v1108, 1
        %v1111 = vor.u32 %v1106, %v1110
        %v1113 = vshrl.u32 %v1002, 16
        %v1115 = vshll.u32 %v1002, 16
        %v1117 = vrot.slane %v1115, 1
        %v1118 = vor.u32 %v1113, %v1117
        %v1120 = vshrl.u32 %v1003, 16
        %v1122 = vshll.u32 %v1003, 16
        %v1124 = vrot.slane %v1122, 1
        %v1125 = vor.u32 %v1120, %v1124
        %v1127 = vshrl.u32 %v1004, 16
        %v1129 = vshll.u32 %v1004, 16
        %v1131 = vrot.slane %v1129, 1
        %v1132 = vor.u32 %v1127, %v1131
        %v1134 = vshrl.u32 %v1005, 16
        %v1136 = vshll.u32 %v1005, 16
        %v1138 = vrot.slane %v1136, 1
        %v1139 = vor.u32 %v1134, %v1138
        %v1141 = vshrl.u32 %v1006, 16
        %v1143 = vshll.u32 %v1006, 16
        %v1145 = vrot.slane %v1143, 1
        %v1146 = vor.u32 %v1141, %v1145
        %v1147 = vrot.slane %v987, 1
        %v1148 = vrot.slane %v988, 1
        %v1149 = vrot.slane %v989, 1
        %v1150 = vrot.slane %v990, 1
        %v1151 = vrot.slane %v991, 1
        %v1152 = vrot.slane %v992, 1
        %v1153 = vrot.slane %v993, 1
        %v1154 = vrot.slane %v994, 1
        %v1155 = vrot.slane %v995, 1
        %v1156 = vrot.slane %v996, 1
        %v1157 = vrot.slane %v997, 1
        %v1158 = vrot.slane %v998, 1
        %v1159 = vrot.slane %v999, 1
        %v1160 = vrot.slane %v1000, 1
        %v1161 = vrot.slane %v1001, 1
        %v1162 = vrot.slane %v1002, 1
        %v1163 = vrot.slane %v1003, 1
        %v1164 = vrot.slane %v1004, 1
        %v1165 = vrot.slane %v1005, 1
        %v1166 = vrot.slane %v1006, 1
        %v1167 = vunpack.c.l.b16 %v1013
        %v1168 = vunpack.c.l.b16 %v1020
        %v1169 = vunpack.c.l.b16 %v1147
        %v1170 = vunpack.c.l.b16 %v1148
        %v1171 = vunpack.c.l.b16 %v1027
        %v1172 = vunpack.c.l.b16 %v1034
        %v1173 = vunpack.c.l.b16 %v1149
        %v1174 = vunpack.c.l.b16 %v1150
        %v1175 = vunpack.c.l.b16 %v1041
        %v1176 = vunpack.c.l.b16 %v1048
        %v1177 = vunpack.c.l.b16 %v1151
        %v1178 = vunpack.c.l.b16 %v1152
        %v1179 = vunpack.c.l.b16 %v1055
        %v1180 = vunpack.c.l.b16 %v1062
        %v1181 = vunpack.c.l.b16 %v1153
        %v1182 = vunpack.c.l.b16 %v1154
        %v1183 = vunpack.c.l.b16 %v1069
        %v1184 = vunpack.c.l.b16 %v1076
        %v1185 = vunpack.c.l.b16 %v1155
        %v1186 = vunpack.c.l.b16 %v1156
        %v1187 = vunpack.c.l.b16 %v1083
        %v1188 = vunpack.c.l.b16 %v1090
        %v1189 = vunpack.c.l.b16 %v1157
        %v1190 = vunpack.c.l.b16 %v1158
        %v1191 = vunpack.c.l.b16 %v1097
        %v1192 = vunpack.c.l.b16 %v1104
        %v1193 = vunpack.c.l.b16 %v1159
        %v1194 = vunpack.c.l.b16 %v1160
        %v1195 = vunpack.c.l.b16 %v1111
        %v1196 = vunpack.c.l.b16 %v1118
        %v1197 = vunpack.c.l.b16 %v1161
        %v1198 = vunpack.c.l.b16 %v1162
        %v1199 = vunpack.c.l.b16 %v1125
        %v1200 = vunpack.c.l.b16 %v1132
        %v1201 = vunpack.c.l.b16 %v1163
        %v1202 = vunpack.c.l.b16 %v1164
        %v1203 = vunpack.c.l.b16 %v1139
        %v1204 = vunpack.c.l.b16 %v1146
        %v1205 = vunpack.c.l.b16 %v1165
        %v1206 = vunpack.c.l.b16 %v1166
        %v1207 = vld [vmem:[%s3] sm:$0xff]
        %v1208 = vld [vmem:[%s3 + $0x8] sm:$0xff]
        %v1209 = vld [vmem:[%s3 + $0x10] sm:$0xff]
        %v1210 = vld [vmem:[%s3 + $0x18] sm:$0xff]
        %v1211 = vld [vmem:[%s3 + $0x20] sm:$0xff]
        %v1212 = vld [vmem:[%s3 + $0x28] sm:$0xff]
        %v1213 = vld [vmem:[%s3 + $0x30] sm:$0xff]
        %v1214 = vld [vmem:[%s3 + $0x38] sm:$0xff]
        %v1215 = vld [vmem:[%s3 + $0x40] sm:$0xff]
        %v1216 = vld [vmem:[%s3 + $0x48] sm:$0xff]
        %v1217 = vld [vmem:[%s3 + $0x50] sm:$0xff]
        %v1218 = vld [vmem:[%s3 + $0x58] sm:$0xff]
        %v1219 = vld [vmem:[%s3 + $0x60] sm:$0xff]
        %v1220 = vld [vmem:[%s3 + $0x68] sm:$0xff]
        %v1221 = vld [vmem:[%s3 + $0x70] sm:$0xff]
        %v1222 = vld [vmem:[%s3 + $0x78] sm:$0xff]
        %v1223 = vld [vmem:[%s3 + $0x80] sm:$0xff]
        %v1224 = vld [vmem:[%s3 + $0x88] sm:$0xff]
        %v1225 = vld [vmem:[%s3 + $0x90] sm:$0xff]
        %v1226 = vld [vmem:[%s3 + $0x98] sm:$0xff]
        %v1227 = vld [vmem:[%s3 + $0xa0] sm:$0xff]
        %v1228 = vld [vmem:[%s3 + $0xa8] sm:$0xff]
        %v1229 = vld [vmem:[%s3 + $0xb0] sm:$0xff]
        %v1230 = vld [vmem:[%s3 + $0xb8] sm:$0xff]
        %v1231 = vld [vmem:[%s3 + $0xc0] sm:$0xff]
        %v1232 = vld [vmem:[%s3 + $0xc8] sm:$0xff]
        %v1233 = vld [vmem:[%s3 + $0xd0] sm:$0xff]
        %v1234 = vld [vmem:[%s3 + $0xd8] sm:$0xff]
        %v1235 = vld [vmem:[%s3 + $0xe0] sm:$0xff]
        %v1236 = vld [vmem:[%s3 + $0xe8] sm:$0xff]
        %v1237 = vld [vmem:[%s3 + $0xf0] sm:$0xff]
        %v1238 = vld [vmem:[%s3 + $0xf8] sm:$0xff]
        %v1239 = vld [vmem:[%s3 + $0x100] sm:$0xff]
        %v1240 = vld [vmem:[%s3 + $0x108] sm:$0xff]
        %v1241 = vld [vmem:[%s3 + $0x110] sm:$0xff]
        %v1242 = vld [vmem:[%s3 + $0x118] sm:$0xff]
        %v1243 = vld [vmem:[%s3 + $0x120] sm:$0xff]
        %v1244 = vld [vmem:[%s3 + $0x128] sm:$0xff]
        %v1245 = vld [vmem:[%s3 + $0x130] sm:$0xff]
        %v1246 = vld [vmem:[%s3 + $0x138] sm:$0xff]
        %v1247 = vld [vmem:[%s3 + $0x140] sm:$0xff]
        %v1248 = vld [vmem:[%s3 + $0x148] sm:$0xff]
        %v1249 = vld [vmem:[%s3 + $0x150] sm:$0xff]
        %v1250 = vld [vmem:[%s3 + $0x158] sm:$0xff]
        %v1251 = vld [vmem:[%s3 + $0x160] sm:$0xff]
        %v1252 = vld [vmem:[%s3 + $0x168] sm:$0xff]
        %v1253 = vld [vmem:[%s3 + $0x170] sm:$0xff]
        %v1254 = vld [vmem:[%s3 + $0x178] sm:$0xff]
        %v1255 = vld [vmem:[%s3 + $0x180] sm:$0xff]
        %v1256 = vld [vmem:[%s3 + $0x188] sm:$0xff]
        %v1257 = vld [vmem:[%s3 + $0x190] sm:$0xff]
        %v1258 = vld [vmem:[%s3 + $0x198] sm:$0xff]
        %v1259 = vld [vmem:[%s3 + $0x1a0] sm:$0xff]
        %v1260 = vld [vmem:[%s3 + $0x1a8] sm:$0xff]
        %v1261 = vld [vmem:[%s3 + $0x1b0] sm:$0xff]
        %v1262 = vld [vmem:[%s3 + $0x1b8] sm:$0xff]
        %v1263 = vld [vmem:[%s3 + $0x1c0] sm:$0xff]
        %v1264 = vld [vmem:[%s3 + $0x1c8] sm:$0xff]
        %v1265 = vld [vmem:[%s3 + $0x1d0] sm:$0xff]
        %v1266 = vld [vmem:[%s3 + $0x1d8] sm:$0xff]
        %v1267 = vld [vmem:[%s3 + $0x1e0] sm:$0xff]
        %v1268 = vld [vmem:[%s3 + $0x1e8] sm:$0xff]
        %v1269 = vld [vmem:[%s3 + $0x1f0] sm:$0xff]
        %v1270 = vld [vmem:[%s3 + $0x1f8] sm:$0xff]
        %v1271 = vld [vmem:[%s3 + $0x200] sm:$0xff]
        %v1272 = vld [vmem:[%s3 + $0x208] sm:$0xff]
        %v1273 = vld [vmem:[%s3 + $0x210] sm:$0xff]
        %v1274 = vld [vmem:[%s3 + $0x218] sm:$0xff]
        %v1275 = vld [vmem:[%s3 + $0x220] sm:$0xff]
        %v1276 = vld [vmem:[%s3 + $0x228] sm:$0xff]
        %v1277 = vld [vmem:[%s3 + $0x230] sm:$0xff]
        %v1278 = vld [vmem:[%s3 + $0x238] sm:$0xff]
        %v1279 = vld [vmem:[%s3 + $0x240] sm:$0xff]
        %v1280 = vld [vmem:[%s3 + $0x248] sm:$0xff]
        %v1281 = vld [vmem:[%s3 + $0x250] sm:$0xff]
        %v1282 = vld [vmem:[%s3 + $0x258] sm:$0xff]
        %v1283 = vld [vmem:[%s3 + $0x260] sm:$0xff]
        %v1284 = vld [vmem:[%s3 + $0x268] sm:$0xff]
        %v1285 = vld [vmem:[%s3 + $0x270] sm:$0xff]
        %v1286 = vld [vmem:[%s3 + $0x278] sm:$0xff]
        %v1287 = vld [vmem:[%s3 + $0x280] sm:$0xff]
        %v1288 = vld [vmem:[%s3 + $0x288] sm:$0xff]
        %v1289 = vld [vmem:[%s3 + $0x290] sm:$0xff]
        %v1290 = vld [vmem:[%s3 + $0x298] sm:$0xff]
        %v1291 = vld [vmem:[%s3 + $0x2a0] sm:$0xff]
        %v1292 = vld [vmem:[%s3 + $0x2a8] sm:$0xff]
        %v1293 = vld [vmem:[%s3 + $0x2b0] sm:$0xff]
        %v1294 = vld [vmem:[%s3 + $0x2b8] sm:$0xff]
        %v1295 = vld [vmem:[%s3 + $0x2c0] sm:$0xff]
        %v1296 = vld [vmem:[%s3 + $0x2c8] sm:$0xff]
        %v1297 = vld [vmem:[%s3 + $0x2d0] sm:$0xff]
        %v1298 = vld [vmem:[%s3 + $0x2d8] sm:$0xff]
        %v1299 = vld [vmem:[%s3 + $0x2e0] sm:$0xff]
        %v1300 = vld [vmem:[%s3 + $0x2e8] sm:$0xff]
        %v1301 = vld [vmem:[%s3 + $0x2f0] sm:$0xff]
        %v1302 = vld [vmem:[%s3 + $0x2f8] sm:$0xff]
        %s1303 = scalar_lea.vmem [#allocation2], 16
        %v1304 = vld [vmem:[%s1303] sm:$0xff]
        %v1305 = vld [vmem:[%s1303 + $0x8] sm:$0x11]
        %v1306 = vld [vmem:[%s1303 + $0x10] sm:$0xff]
        %v1307 = vld [vmem:[%s1303 + $0x18] sm:$0x11]
        %v1308 = vld [vmem:[%s1303 + $0x20] sm:$0xff]
        %v1309 = vld [vmem:[%s1303 + $0x28] sm:$0x11]
        %v1310 = vld [vmem:[%s1303 + $0x30] sm:$0xff]
        %v1311 = vld [vmem:[%s1303 + $0x38] sm:$0x11]
        %v1312 = vld [vmem:[%s1303 + $0x40] sm:$0xff]
        %v1313 = vld [vmem:[%s1303 + $0x48] sm:$0x11]
        %v1314 = vld [vmem:[%s1303 + $0x50] sm:$0xff]
        %v1315 = vld [vmem:[%s1303 + $0x58] sm:$0x11]
        %v1316 = vld [vmem:[%s1303 + $0x60] sm:$0xff]
        %v1317 = vld [vmem:[%s1303 + $0x68] sm:$0x11]
        %v1318 = vld [vmem:[%s1303 + $0x70] sm:$0xff]
        %v1319 = vld [vmem:[%s1303 + $0x78] sm:$0x11]
        %v1320 = vld [vmem:[%s1303 + $0x80] sm:$0xff]
        %v1321 = vld [vmem:[%s1303 + $0x88] sm:$0x11]
        %v1322 = vld [vmem:[%s1303 + $0x90] sm:$0xff]
        %v1323 = vld [vmem:[%s1303 + $0x98] sm:$0x11]
        %v1334 = vunpack.c.l.b16 %v1304
        %v1335 = vunpack.c.h.b16 %v1304
        %v1336 = vunpack.c.l.b16 %v1306
        %v1337 = vunpack.c.h.b16 %v1306
        %v1338 = vunpack.c.l.b16 %v1308
        %v1339 = vunpack.c.h.b16 %v1308
        %v1340 = vunpack.c.l.b16 %v1310
        %v1341 = vunpack.c.h.b16 %v1310
        %v1342 = vunpack.c.l.b16 %v1312
        %v1343 = vunpack.c.h.b16 %v1312
        %v1344 = vunpack.c.l.b16 %v1314
        %v1345 = vunpack.c.h.b16 %v1314
        %v1346 = vunpack.c.l.b16 %v1316
        %v1347 = vunpack.c.h.b16 %v1316
        %v1348 = vunpack.c.l.b16 %v1318
        %v1349 = vunpack.c.h.b16 %v1318
        %v1350 = vunpack.c.l.b16 %v1320
        %v1351 = vunpack.c.h.b16 %v1320
        %v1352 = vunpack.c.l.b16 %v1322
        %v1353 = vunpack.c.h.b16 %v1322
        %v1364 = vunpack.c.l.b16 %v1305
        %v1365 = vunpack.c.h.b16 %v1305
        %v1366 = vunpack.c.l.b16 %v1307
        %v1367 = vunpack.c.h.b16 %v1307
        %v1368 = vunpack.c.l.b16 %v1309
        %v1369 = vunpack.c.h.b16 %v1309
        %v1370 = vunpack.c.l.b16 %v1311
        %v1371 = vunpack.c.h.b16 %v1311
        %v1372 = vunpack.c.l.b16 %v1313
        %v1373 = vunpack.c.h.b16 %v1313
        %v1374 = vunpack.c.l.b16 %v1315
        %v1375 = vunpack.c.h.b16 %v1315
        %v1376 = vunpack.c.l.b16 %v1317
        %v1377 = vunpack.c.h.b16 %v1317
        %v1378 = vunpack.c.l.b16 %v1319
        %v1379 = vunpack.c.h.b16 %v1319
        %v1380 = vunpack.c.l.b16 %v1321
        %v1381 = vunpack.c.h.b16 %v1321
        %v1382 = vunpack.c.l.b16 %v1323
        %v1383 = vunpack.c.h.b16 %v1323
        %v1384 = vpack.c.b16 %v1364, %v1334
        %v1385 = vpack.c.b16 %v1365, %v1335
        %v1386 = vpack.c.b16 %v1366, %v1336
        %v1387 = vpack.c.b16 %v1367, %v1337
        %v1388 = vpack.c.b16 %v1368, %v1338
        %v1389 = vpack.c.b16 %v1369, %v1339
        %v1390 = vpack.c.b16 %v1370, %v1340
        %v1391 = vpack.c.b16 %v1371, %v1341
        %v1392 = vpack.c.b16 %v1372, %v1342
        %v1393 = vpack.c.b16 %v1373, %v1343
        %v1394 = vpack.c.b16 %v1374, %v1344
        %v1395 = vpack.c.b16 %v1375, %v1345
        %v1396 = vpack.c.b16 %v1376, %v1346
        %v1397 = vpack.c.b16 %v1377, %v1347
        %v1398 = vpack.c.b16 %v1378, %v1348
        %v1399 = vpack.c.b16 %v1379, %v1349
        %v1400 = vpack.c.b16 %v1380, %v1350
        %v1401 = vpack.c.b16 %v1381, %v1351
        %v1402 = vpack.c.b16 %v1382, %v1352
        %v1403 = vpack.c.b16 %v1383, %v1353
        %v1405 = vshrl.u32 %v1384, 16
        %v1407 = vshll.u32 %v1384, 16
        %v1409 = vrot.slane %v1407, 1
        %v1410 = vor.u32 %v1405, %v1409
        %v1412 = vshrl.u32 %v1385, 16
        %v1414 = vshll.u32 %v1385, 16
        %v1416 = vrot.slane %v1414, 1
        %v1417 = vor.u32 %v1412, %v1416
        %v1419 = vshrl.u32 %v1386, 16
        %v1421 = vshll.u32 %v1386, 16
        %v1423 = vrot.slane %v1421, 1
        %v1424 = vor.u32 %v1419, %v1423
        %v1426 = vshrl.u32 %v1387, 16
        %v1428 = vshll.u32 %v1387, 16
        %v1430 = vrot.slane %v1428, 1
        %v1431 = vor.u32 %v1426, %v1430
        %v1433 = vshrl.u32 %v1388, 16
        %v1435 = vshll.u32 %v1388, 16
        %v1437 = vrot.slane %v1435, 1
        %v1438 = vor.u32 %v1433, %v1437
        %v1440 = vshrl.u32 %v1389, 16
        %v1442 = vshll.u32 %v1389, 16
        %v1444 = vrot.slane %v1442, 1
        %v1445 = vor.u32 %v1440, %v1444
        %v1447 = vshrl.u32 %v1390, 16
        %v1449 = vshll.u32 %v1390, 16
        %v1451 = vrot.slane %v1449, 1
        %v1452 = vor.u32 %v1447, %v1451
        %v1454 = vshrl.u32 %v1391, 16
        %v1456 = vshll.u32 %v1391, 16
        %v1458 = vrot.slane %v1456, 1
        %v1459 = vor.u32 %v1454, %v1458
        %v1461 = vshrl.u32 %v1392, 16
        %v1463 = vshll.u32 %v1392, 16
        %v1465 = vrot.slane %v1463, 1
        %v1466 = vor.u32 %v1461, %v1465
        %v1468 = vshrl.u32 %v1393, 16
        %v1470 = vshll.u32 %v1393, 16
        %v1472 = vrot.slane %v1470, 1
        %v1473 = vor.u32 %v1468, %v1472
        %v1475 = vshrl.u32 %v1394, 16
        %v1477 = vshll.u32 %v1394, 16
        %v1479 = vrot.slane %v1477, 1
        %v1480 = vor.u32 %v1475, %v1479
        %v1482 = vshrl.u32 %v1395, 16
        %v1484 = vshll.u32 %v1395, 16
        %v1486 = vrot.slane %v1484, 1
        %v1487 = vor.u32 %v1482, %v1486
        %v1489 = vshrl.u32 %v1396, 16
        %v1491 = vshll.u32 %v1396, 16
        %v1493 = vrot.slane %v1491, 1
        %v1494 = vor.u32 %v1489, %v1493
        %v1496 = vshrl.u32 %v1397, 16
        %v1498 = vshll.u32 %v1397, 16
        %v1500 = vrot.slane %v1498, 1
        %v1501 = vor.u32 %v1496, %v1500
        %v1503 = vshrl.u32 %v1398, 16
        %v1505 = vshll.u32 %v1398, 16
        %v1507 = vrot.slane %v1505, 1
        %v1508 = vor.u32 %v1503, %v1507
        %v1510 = vshrl.u32 %v1399, 16
        %v1512 = vshll.u32 %v1399, 16
        %v1514 = vrot.slane %v1512, 1
        %v1515 = vor.u32 %v1510, %v1514
        %v1517 = vshrl.u32 %v1400, 16
        %v1519 = vshll.u32 %v1400, 16
        %v1521 = vrot.slane %v1519, 1
        %v1522 = vor.u32 %v1517, %v1521
        %v1524 = vshrl.u32 %v1401, 16
        %v1526 = vshll.u32 %v1401, 16
        %v1528 = vrot.slane %v1526, 1
        %v1529 = vor.u32 %v1524, %v1528
        %v1531 = vshrl.u32 %v1402, 16
        %v1533 = vshll.u32 %v1402, 16
        %v1535 = vrot.slane %v1533, 1
        %v1536 = vor.u32 %v1531, %v1535
        %v1538 = vshrl.u32 %v1403, 16
        %v1540 = vshll.u32 %v1403, 16
        %v1542 = vrot.slane %v1540, 1
        %v1543 = vor.u32 %v1538, %v1542
        %v1544 = vrot.slane %v1384, 1
        %v1545 = vrot.slane %v1385, 1
        %v1546 = vrot.slane %v1386, 1
        %v1547 = vrot.slane %v1387, 1
        %v1548 = vrot.slane %v1388, 1
        %v1549 = vrot.slane %v1389, 1
        %v1550 = vrot.slane %v1390, 1
        %v1551 = vrot.slane %v1391, 1
        %v1552 = vrot.slane %v1392, 1
        %v1553 = vrot.slane %v1393, 1
        %v1554 = vrot.slane %v1394, 1
        %v1555 = vrot.slane %v1395, 1
        %v1556 = vrot.slane %v1396, 1
        %v1557 = vrot.slane %v1397, 1
        %v1558 = vrot.slane %v1398, 1
        %v1559 = vrot.slane %v1399, 1
        %v1560 = vrot.slane %v1400, 1
        %v1561 = vrot.slane %v1401, 1
        %v1562 = vrot.slane %v1402, 1
        %v1563 = vrot.slane %v1403, 1
        %v1564 = vunpack.c.l.b16 %v1410
        %v1565 = vunpack.c.l.b16 %v1417
        %v1566 = vunpack.c.l.b16 %v1544
        %v1567 = vunpack.c.l.b16 %v1545
        %v1568 = vunpack.c.l.b16 %v1424
        %v1569 = vunpack.c.l.b16 %v1431
        %v1570 = vunpack.c.l.b16 %v1546
        %v1571 = vunpack.c.l.b16 %v1547
        %v1572 = vunpack.c.l.b16 %v1438
        %v1573 = vunpack.c.l.b16 %v1445
        %v1574 = vunpack.c.l.b16 %v1548
        %v1575 = vunpack.c.l.b16 %v1549
        %v1576 = vunpack.c.l.b16 %v1452
        %v1577 = vunpack.c.l.b16 %v1459
        %v1578 = vunpack.c.l.b16 %v1550
        %v1579 = vunpack.c.l.b16 %v1551
        %v1580 = vunpack.c.l.b16 %v1466
        %v1581 = vunpack.c.l.b16 %v1473
        %v1582 = vunpack.c.l.b16 %v1552
        %v1583 = vunpack.c.l.b16 %v1553
        %v1584 = vunpack.c.l.b16 %v1480
        %v1585 = vunpack.c.l.b16 %v1487
        %v1586 = vunpack.c.l.b16 %v1554
        %v1587 = vunpack.c.l.b16 %v1555
        %v1588 = vunpack.c.l.b16 %v1494
        %v1589 = vunpack.c.l.b16 %v1501
        %v1590 = vunpack.c.l.b16 %v1556
        %v1591 = vunpack.c.l.b16 %v1557
        %v1592 = vunpack.c.l.b16 %v1508
        %v1593 = vunpack.c.l.b16 %v1515
        %v1594 = vunpack.c.l.b16 %v1558
        %v1595 = vunpack.c.l.b16 %v1559
        %v1596 = vunpack.c.l.b16 %v1522
        %v1597 = vunpack.c.l.b16 %v1529
        %v1598 = vunpack.c.l.b16 %v1560
        %v1599 = vunpack.c.l.b16 %v1561
        %v1600 = vunpack.c.l.b16 %v1536
        %v1601 = vunpack.c.l.b16 %v1543
        %v1602 = vunpack.c.l.b16 %v1562
        %v1603 = vunpack.c.l.b16 %v1563
        %s1604 = scalar_lea.vmem %s3, 768
        %v1605 = vld [vmem:[%s1604] sm:$0xff]
        %v1606 = vld [vmem:[%s1604 + $0x8] sm:$0xff]
        %v1607 = vld [vmem:[%s1604 + $0x10] sm:$0xff]
        %v1608 = vld [vmem:[%s1604 + $0x18] sm:$0xff]
        %v1609 = vld [vmem:[%s1604 + $0x20] sm:$0xff]
        %v1610 = vld [vmem:[%s1604 + $0x28] sm:$0xff]
        %v1611 = vld [vmem:[%s1604 + $0x30] sm:$0xff]
        %v1612 = vld [vmem:[%s1604 + $0x38] sm:$0xff]
        %v1613 = vld [vmem:[%s1604 + $0x40] sm:$0xff]
        %v1614 = vld [vmem:[%s1604 + $0x48] sm:$0xff]
        %v1615 = vld [vmem:[%s1604 + $0x50] sm:$0xff]
        %v1616 = vld [vmem:[%s1604 + $0x58] sm:$0xff]
        %v1617 = vld [vmem:[%s1604 + $0x60] sm:$0xff]
        %v1618 = vld [vmem:[%s1604 + $0x68] sm:$0xff]
        %v1619 = vld [vmem:[%s1604 + $0x70] sm:$0xff]
        %v1620 = vld [vmem:[%s1604 + $0x78] sm:$0xff]
        %v1621 = vld [vmem:[%s1604 + $0x80] sm:$0xff]
        %v1622 = vld [vmem:[%s1604 + $0x88] sm:$0xff]
        %v1623 = vld [vmem:[%s1604 + $0x90] sm:$0xff]
        %v1624 = vld [vmem:[%s1604 + $0x98] sm:$0xff]
        %v1625 = vld [vmem:[%s1604 + $0xa0] sm:$0xff]
        %v1626 = vld [vmem:[%s1604 + $0xa8] sm:$0xff]
        %v1627 = vld [vmem:[%s1604 + $0xb0] sm:$0xff]
        %v1628 = vld [vmem:[%s1604 + $0xb8] sm:$0xff]
        %v1629 = vld [vmem:[%s1604 + $0xc0] sm:$0xff]
        %v1630 = vld [vmem:[%s1604 + $0xc8] sm:$0xff]
        %v1631 = vld [vmem:[%s1604 + $0xd0] sm:$0xff]
        %v1632 = vld [vmem:[%s1604 + $0xd8] sm:$0xff]
        %v1633 = vld [vmem:[%s1604 + $0xe0] sm:$0xff]
        %v1634 = vld [vmem:[%s1604 + $0xe8] sm:$0xff]
        %v1635 = vld [vmem:[%s1604 + $0xf0] sm:$0xff]
        %v1636 = vld [vmem:[%s1604 + $0xf8] sm:$0xff]
        %v1637 = vld [vmem:[%s1604 + $0x100] sm:$0xff]
        %v1638 = vld [vmem:[%s1604 + $0x108] sm:$0xff]
        %v1639 = vld [vmem:[%s1604 + $0x110] sm:$0xff]
        %v1640 = vld [vmem:[%s1604 + $0x118] sm:$0xff]
        %v1641 = vld [vmem:[%s1604 + $0x120] sm:$0xff]
        %v1642 = vld [vmem:[%s1604 + $0x128] sm:$0xff]
        %v1643 = vld [vmem:[%s1604 + $0x130] sm:$0xff]
        %v1644 = vld [vmem:[%s1604 + $0x138] sm:$0xff]
        %v1645 = vld [vmem:[%s1604 + $0x140] sm:$0xff]
        %v1646 = vld [vmem:[%s1604 + $0x148] sm:$0xff]
        %v1647 = vld [vmem:[%s1604 + $0x150] sm:$0xff]
        %v1648 = vld [vmem:[%s1604 + $0x158] sm:$0xff]
        %v1649 = vld [vmem:[%s1604 + $0x160] sm:$0xff]
        %v1650 = vld [vmem:[%s1604 + $0x168] sm:$0xff]
        %v1651 = vld [vmem:[%s1604 + $0x170] sm:$0xff]
        %v1652 = vld [vmem:[%s1604 + $0x178] sm:$0xff]
        %v1653 = vld [vmem:[%s1604 + $0x180] sm:$0xff]
        %v1654 = vld [vmem:[%s1604 + $0x188] sm:$0xff]
        %v1655 = vld [vmem:[%s1604 + $0x190] sm:$0xff]
        %v1656 = vld [vmem:[%s1604 + $0x198] sm:$0xff]
        %v1657 = vld [vmem:[%s1604 + $0x1a0] sm:$0xff]
        %v1658 = vld [vmem:[%s1604 + $0x1a8] sm:$0xff]
        %v1659 = vld [vmem:[%s1604 + $0x1b0] sm:$0xff]
        %v1660 = vld [vmem:[%s1604 + $0x1b8] sm:$0xff]
        %v1661 = vld [vmem:[%s1604 + $0x1c0] sm:$0xff]
        %v1662 = vld [vmem:[%s1604 + $0x1c8] sm:$0xff]
        %v1663 = vld [vmem:[%s1604 + $0x1d0] sm:$0xff]
        %v1664 = vld [vmem:[%s1604 + $0x1d8] sm:$0xff]
        %v1665 = vld [vmem:[%s1604 + $0x1e0] sm:$0xff]
        %v1666 = vld [vmem:[%s1604 + $0x1e8] sm:$0xff]
        %v1667 = vld [vmem:[%s1604 + $0x1f0] sm:$0xff]
        %v1668 = vld [vmem:[%s1604 + $0x1f8] sm:$0xff]
        %v1669 = vld [vmem:[%s1604 + $0x200] sm:$0xff]
        %v1670 = vld [vmem:[%s1604 + $0x208] sm:$0xff]
        %v1671 = vld [vmem:[%s1604 + $0x210] sm:$0xff]
        %v1672 = vld [vmem:[%s1604 + $0x218] sm:$0xff]
        %v1673 = vld [vmem:[%s1604 + $0x220] sm:$0xff]
        %v1674 = vld [vmem:[%s1604 + $0x228] sm:$0xff]
        %v1675 = vld [vmem:[%s1604 + $0x230] sm:$0xff]
        %v1676 = vld [vmem:[%s1604 + $0x238] sm:$0xff]
        %v1677 = vld [vmem:[%s1604 + $0x240] sm:$0xff]
        %v1678 = vld [vmem:[%s1604 + $0x248] sm:$0xff]
        %v1679 = vld [vmem:[%s1604 + $0x250] sm:$0xff]
        %v1680 = vld [vmem:[%s1604 + $0x258] sm:$0xff]
        %v1681 = vld [vmem:[%s1604 + $0x260] sm:$0xff]
        %v1682 = vld [vmem:[%s1604 + $0x268] sm:$0xff]
        %v1683 = vld [vmem:[%s1604 + $0x270] sm:$0xff]
        %v1684 = vld [vmem:[%s1604 + $0x278] sm:$0xff]
        %v1685 = vld [vmem:[%s1604 + $0x280] sm:$0xff]
        %v1686 = vld [vmem:[%s1604 + $0x288] sm:$0xff]
        %v1687 = vld [vmem:[%s1604 + $0x290] sm:$0xff]
        %v1688 = vld [vmem:[%s1604 + $0x298] sm:$0xff]
        %v1689 = vld [vmem:[%s1604 + $0x2a0] sm:$0xff]
        %v1690 = vld [vmem:[%s1604 + $0x2a8] sm:$0xff]
        %v1691 = vld [vmem:[%s1604 + $0x2b0] sm:$0xff]
        %v1692 = vld [vmem:[%s1604 + $0x2b8] sm:$0xff]
        %v1693 = vld [vmem:[%s1604 + $0x2c0] sm:$0xff]
        %v1694 = vld [vmem:[%s1604 + $0x2c8] sm:$0xff]
        %v1695 = vld [vmem:[%s1604 + $0x2d0] sm:$0xff]
        %v1696 = vld [vmem:[%s1604 + $0x2d8] sm:$0xff]
        %v1697 = vld [vmem:[%s1604 + $0x2e0] sm:$0xff]
        %v1698 = vld [vmem:[%s1604 + $0x2e8] sm:$0xff]
        %v1699 = vld [vmem:[%s1604 + $0x2f0] sm:$0xff]
        %v1700 = vld [vmem:[%s1604 + $0x2f8] sm:$0xff]
        %v1701 = vpack.c.b16 %v1336, %v1334
        %v1702 = vpack.c.b16 %v1337, %v1335
        %v1703 = vpack.c.b16 %v1568, %v1564
        %v1704 = vpack.c.b16 %v1569, %v1565
        %v1705 = vpack.c.b16 %v1570, %v1566
        %v1706 = vpack.c.b16 %v1571, %v1567
        %v1707 = vpack.c.b16 %v1340, %v1338
        %v1708 = vpack.c.b16 %v1341, %v1339
        %v1709 = vpack.c.b16 %v1576, %v1572
        %v1710 = vpack.c.b16 %v1577, %v1573
        %v1711 = vpack.c.b16 %v1578, %v1574
        %v1712 = vpack.c.b16 %v1579, %v1575
        %v1713 = vpack.c.b16 %v1344, %v1342
        %v1714 = vpack.c.b16 %v1345, %v1343
        %v1715 = vpack.c.b16 %v1584, %v1580
        %v1716 = vpack.c.b16 %v1585, %v1581
        %v1717 = vpack.c.b16 %v1586, %v1582
        %v1718 = vpack.c.b16 %v1587, %v1583
        %v1719 = vpack.c.b16 %v1348, %v1346
        %v1720 = vpack.c.b16 %v1349, %v1347
        %v1721 = vpack.c.b16 %v1592, %v1588
        %v1722 = vpack.c.b16 %v1593, %v1589
        %v1723 = vpack.c.b16 %v1594, %v1590
        %v1724 = vpack.c.b16 %v1595, %v1591
        %v1725 = vpack.c.b16 %v1352, %v1350
        %v1726 = vpack.c.b16 %v1353, %v1351
        %v1727 = vpack.c.b16 %v1600, %v1596
        %v1728 = vpack.c.b16 %v1601, %v1597
        %v1729 = vpack.c.b16 %v1602, %v1598
        %v1730 = vpack.c.b16 %v1603, %v1599
        %v1857 = vunpack.c.l.b16 %v1605
        %v1858 = vunpack.c.h.b16 %v1605
        %v1859 = vunpack.c.l.b16 %v1606
        %v1860 = vunpack.c.h.b16 %v1606
        %v1861 = vunpack.c.l.b16 %v1607
        %v1862 = vunpack.c.h.b16 %v1607
        %v1863 = vunpack.c.l.b16 %v1608
        %v1864 = vunpack.c.h.b16 %v1608
        %v1865 = vunpack.c.l.b16 %v1609
        %v1866 = vunpack.c.h.b16 %v1609
        %v1867 = vunpack.c.l.b16 %v1610
        %v1868 = vunpack.c.h.b16 %v1610
        %v1869 = vunpack.c.l.b16 %v1611
        %v1870 = vunpack.c.h.b16 %v1611
        %v1871 = vunpack.c.l.b16 %v1612
        %v1872 = vunpack.c.h.b16 %v1612
        %v1873 = vunpack.c.l.b16 %v1613
        %v1874 = vunpack.c.h.b16 %v1613
        %v1875 = vunpack.c.l.b16 %v1614
        %v1876 = vunpack.c.h.b16 %v1614
        %v1877 = vunpack.c.l.b16 %v1615
        %v1878 = vunpack.c.h.b16 %v1615
        %v1879 = vunpack.c.l.b16 %v1616
        %v1880 = vunpack.c.h.b16 %v1616
        %v1881 = vunpack.c.l.b16 %v1617
        %v1882 = vunpack.c.h.b16 %v1617
        %v1883 = vunpack.c.l.b16 %v1618
        %v1884 = vunpack.c.h.b16 %v1618
        %v1885 = vunpack.c.l.b16 %v1619
        %v1886 = vunpack.c.h.b16 %v1619
        %v1887 = vunpack.c.l.b16 %v1620
        %v1888 = vunpack.c.h.b16 %v1620
        %v1889 = vunpack.c.l.b16 %v1621
        %v1890 = vunpack.c.h.b16 %v1621
        %v1891 = vunpack.c.l.b16 %v1622
        %v1892 = vunpack.c.h.b16 %v1622
        %v1893 = vunpack.c.l.b16 %v1623
        %v1894 = vunpack.c.h.b16 %v1623
        %v1895 = vunpack.c.l.b16 %v1624
        %v1896 = vunpack.c.h.b16 %v1624
        %v1897 = vunpack.c.l.b16 %v1625
        %v1898 = vunpack.c.h.b16 %v1625
        %v1899 = vunpack.c.l.b16 %v1626
        %v1900 = vunpack.c.h.b16 %v1626
        %v1901 = vunpack.c.l.b16 %v1627
        %v1902 = vunpack.c.h.b16 %v1627
        %v1903 = vunpack.c.l.b16 %v1628
        %v1904 = vunpack.c.h.b16 %v1628
        %v1905 = vunpack.c.l.b16 %v1629
        %v1906 = vunpack.c.h.b16 %v1629
        %v1907 = vunpack.c.l.b16 %v1630
        %v1908 = vunpack.c.h.b16 %v1630
        %v1909 = vunpack.c.l.b16 %v1631
        %v1910 = vunpack.c.h.b16 %v1631
        %v1911 = vunpack.c.l.b16 %v1632
        %v1912 = vunpack.c.h.b16 %v1632
        %v1913 = vunpack.c.l.b16 %v1633
        %v1914 = vunpack.c.h.b16 %v1633
        %v1915 = vunpack.c.l.b16 %v1634
        %v1916 = vunpack.c.h.b16 %v1634
        %v1917 = vunpack.c.l.b16 %v1635
        %v1918 = vunpack.c.h.b16 %v1635
        %v1919 = vunpack.c.l.b16 %v1636
        %v1920 = vunpack.c.h.b16 %v1636
        %v1921 = vunpack.c.l.b16 %v1637
        %v1922 = vunpack.c.h.b16 %v1637
        %v1923 = vunpack.c.l.b16 %v1638
        %v1924 = vunpack.c.h.b16 %v1638
        %v1925 = vunpack.c.l.b16 %v1639
        %v1926 = vunpack.c.h.b16 %v1639
        %v1927 = vunpack.c.l.b16 %v1640
        %v1928 = vunpack.c.h.b16 %v1640
        %v1929 = vunpack.c.l.b16 %v1641
        %v1930 = vunpack.c.h.b16 %v1641
        %v1931 = vunpack.c.l.b16 %v1642
        %v1932 = vunpack.c.h.b16 %v1642
        %v1933 = vunpack.c.l.b16 %v1643
        %v1934 = vunpack.c.h.b16 %v1643
        %v1935 = vunpack.c.l.b16 %v1644
        %v1936 = vunpack.c.h.b16 %v1644
        %v1937 = vunpack.c.l.b16 %v1645
        %v1938 = vunpack.c.h.b16 %v1645
        %v1939 = vunpack.c.l.b16 %v1646
        %v1940 = vunpack.c.h.b16 %v1646
        %v1941 = vunpack.c.l.b16 %v1647
        %v1942 = vunpack.c.h.b16 %v1647
        %v1943 = vunpack.c.l.b16 %v1648
        %v1944 = vunpack.c.h.b16 %v1648
        %v1945 = vunpack.c.l.b16 %v1649
        %v1946 = vunpack.c.h.b16 %v1649
        %v1947 = vunpack.c.l.b16 %v1650
        %v1948 = vunpack.c.h.b16 %v1650
        %v1949 = vunpack.c.l.b16 %v1651
        %v1950 = vunpack.c.h.b16 %v1651
        %v1951 = vunpack.c.l.b16 %v1652
        %v1952 = vunpack.c.h.b16 %v1652
        %v1953 = vunpack.c.l.b16 %v1653
        %v1954 = vunpack.c.h.b16 %v1653
        %v1955 = vunpack.c.l.b16 %v1654
        %v1956 = vunpack.c.h.b16 %v1654
        %v1957 = vunpack.c.l.b16 %v1655
        %v1958 = vunpack.c.h.b16 %v1655
        %v1959 = vunpack.c.l.b16 %v1656
        %v1960 = vunpack.c.h.b16 %v1656
        %v1961 = vunpack.c.l.b16 %v1657
        %v1962 = vunpack.c.h.b16 %v1657
        %v1963 = vunpack.c.l.b16 %v1658
        %v1964 = vunpack.c.h.b16 %v1658
        %v1965 = vunpack.c.l.b16 %v1659
        %v1966 = vunpack.c.h.b16 %v1659
        %v1967 = vunpack.c.l.b16 %v1660
        %v1968 = vunpack.c.h.b16 %v1660
        %v1969 = vunpack.c.l.b16 %v1661
        %v1970 = vunpack.c.h.b16 %v1661
        %v1971 = vunpack.c.l.b16 %v1662
        %v1972 = vunpack.c.h.b16 %v1662
        %v1973 = vunpack.c.l.b16 %v1663
        %v1974 = vunpack.c.h.b16 %v1663
        %v1975 = vunpack.c.l.b16 %v1664
        %v1976 = vunpack.c.h.b16 %v1664
        %v1977 = vunpack.c.l.b16 %v1665
        %v1978 = vunpack.c.h.b16 %v1665
        %v1979 = vunpack.c.l.b16 %v1666
        %v1980 = vunpack.c.h.b16 %v1666
        %v1981 = vunpack.c.l.b16 %v1667
        %v1982 = vunpack.c.h.b16 %v1667
        %v1983 = vunpack.c.l.b16 %v1668
        %v1984 = vunpack.c.h.b16 %v1668
        %v1985 = vunpack.c.l.b16 %v1669
        %v1986 = vunpack.c.h.b16 %v1669
        %v1987 = vunpack.c.l.b16 %v1670
        %v1988 = vunpack.c.h.b16 %v1670
        %v1989 = vunpack.c.l.b16 %v1671
        %v1990 = vunpack.c.h.b16 %v1671
        %v1991 = vunpack.c.l.b16 %v1672
        %v1992 = vunpack.c.h.b16 %v1672
        %v1993 = vunpack.c.l.b16 %v1673
        %v1994 = vunpack.c.h.b16 %v1673
        %v1995 = vunpack.c.l.b16 %v1674
        %v1996 = vunpack.c.h.b16 %v1674
        %v1997 = vunpack.c.l.b16 %v1675
        %v1998 = vunpack.c.h.b16 %v1675
        %v1999 = vunpack.c.l.b16 %v1676
        %v2000 = vunpack.c.h.b16 %v1676
        %v2001 = vunpack.c.l.b16 %v1677
        %v2002 = vunpack.c.h.b16 %v1677
        %v2003 = vunpack.c.l.b16 %v1678
        %v2004 = vunpack.c.h.b16 %v1678
        %v2005 = vunpack.c.l.b16 %v1679
        %v2006 = vunpack.c.h.b16 %v1679
        %v2007 = vunpack.c.l.b16 %v1680
        %v2008 = vunpack.c.h.b16 %v1680
        %v2009 = vunpack.c.l.b16 %v1681
        %v2010 = vunpack.c.h.b16 %v1681
        %v2011 = vunpack.c.l.b16 %v1682
        %v2012 = vunpack.c.h.b16 %v1682
        %v2013 = vunpack.c.l.b16 %v1683
        %v2014 = vunpack.c.h.b16 %v1683
        %v2015 = vunpack.c.l.b16 %v1684
        %v2016 = vunpack.c.h.b16 %v1684
        %v2017 = vunpack.c.l.b16 %v1685
        %v2018 = vunpack.c.h.b16 %v1685
        %v2019 = vunpack.c.l.b16 %v1686
        %v2020 = vunpack.c.h.b16 %v1686
        %v2021 = vunpack.c.l.b16 %v1687
        %v2022 = vunpack.c.h.b16 %v1687
        %v2023 = vunpack.c.l.b16 %v1688
        %v2024 = vunpack.c.h.b16 %v1688
        %v2025 = vunpack.c.l.b16 %v1689
        %v2026 = vunpack.c.h.b16 %v1689
        %v2027 = vunpack.c.l.b16 %v1690
        %v2028 = vunpack.c.h.b16 %v1690
        %v2029 = vunpack.c.l.b16 %v1691
        %v2030 = vunpack.c.h.b16 %v1691
        %v2031 = vunpack.c.l.b16 %v1692
        %v2032 = vunpack.c.h.b16 %v1692
        %v2033 = vunpack.c.l.b16 %v1693
        %v2034 = vunpack.c.h.b16 %v1693
        %v2035 = vunpack.c.l.b16 %v1694
        %v2036 = vunpack.c.h.b16 %v1694
        %v2037 = vunpack.c.l.b16 %v1695
        %v2038 = vunpack.c.h.b16 %v1695
        %v2039 = vunpack.c.l.b16 %v1696
        %v2040 = vunpack.c.h.b16 %v1696
        %v2041 = vunpack.c.l.b16 %v1697
        %v2042 = vunpack.c.h.b16 %v1697
        %v2043 = vunpack.c.l.b16 %v1698
        %v2044 = vunpack.c.h.b16 %v1698
        %v2045 = vunpack.c.l.b16 %v1699
        %v2046 = vunpack.c.h.b16 %v1699
        %v2047 = vunpack.c.l.b16 %v1700
        %v2048 = vunpack.c.h.b16 %v1700
        %v2049 = vpack.c.b16 %v1859, %v1857
        %v2050 = vpack.c.b16 %v1860, %v1858
        %v2051 = vpack.c.b16 %v1863, %v1861
        %v2052 = vpack.c.b16 %v1864, %v1862
        %v2053 = vpack.c.b16 %v1867, %v1865
        %v2054 = vpack.c.b16 %v1868, %v1866
        %v2055 = vpack.c.b16 %v1871, %v1869
        %v2056 = vpack.c.b16 %v1872, %v1870
        %v2057 = vpack.c.b16 %v1875, %v1873
        %v2058 = vpack.c.b16 %v1876, %v1874
        %v2059 = vpack.c.b16 %v1879, %v1877
        %v2060 = vpack.c.b16 %v1880, %v1878
        %v2061 = vpack.c.b16 %v1883, %v1881
        %v2062 = vpack.c.b16 %v1884, %v1882
        %v2063 = vpack.c.b16 %v1887, %v1885
        %v2064 = vpack.c.b16 %v1888, %v1886
        %v2065 = vpack.c.b16 %v1891, %v1889
        %v2066 = vpack.c.b16 %v1892, %v1890
        %v2067 = vpack.c.b16 %v1895, %v1893
        %v2068 = vpack.c.b16 %v1896, %v1894
        %v2069 = vpack.c.b16 %v1899, %v1897
        %v2070 = vpack.c.b16 %v1900, %v1898
        %v2071 = vpack.c.b16 %v1903, %v1901
        %v2072 = vpack.c.b16 %v1904, %v1902
        %v2073 = vpack.c.b16 %v1907, %v1905
        %v2074 = vpack.c.b16 %v1908, %v1906
        %v2075 = vpack.c.b16 %v1911, %v1909
        %v2076 = vpack.c.b16 %v1912, %v1910
        %v2077 = vpack.c.b16 %v1915, %v1913
        %v2078 = vpack.c.b16 %v1916, %v1914
        %v2079 = vpack.c.b16 %v1919, %v1917
        %v2080 = vpack.c.b16 %v1920, %v1918
        %v2081 = vpack.c.b16 %v1923, %v1921
        %v2082 = vpack.c.b16 %v1924, %v1922
        %v2083 = vpack.c.b16 %v1927, %v1925
        %v2084 = vpack.c.b16 %v1928, %v1926
        %v2085 = vpack.c.b16 %v1931, %v1929
        %v2086 = vpack.c.b16 %v1932, %v1930
        %v2087 = vpack.c.b16 %v1935, %v1933
        %v2088 = vpack.c.b16 %v1936, %v1934
        %v2089 = vpack.c.b16 %v1939, %v1937
        %v2090 = vpack.c.b16 %v1940, %v1938
        %v2091 = vpack.c.b16 %v1943, %v1941
        %v2092 = vpack.c.b16 %v1944, %v1942
        %v2093 = vpack.c.b16 %v1947, %v1945
        %v2094 = vpack.c.b16 %v1948, %v1946
        %v2095 = vpack.c.b16 %v1951, %v1949
        %v2096 = vpack.c.b16 %v1952, %v1950
        %v2097 = vpack.c.b16 %v1955, %v1953
        %v2098 = vpack.c.b16 %v1956, %v1954
        %v2099 = vpack.c.b16 %v1959, %v1957
        %v2100 = vpack.c.b16 %v1960, %v1958
        %v2101 = vpack.c.b16 %v1963, %v1961
        %v2102 = vpack.c.b16 %v1964, %v1962
        %v2103 = vpack.c.b16 %v1967, %v1965
        %v2104 = vpack.c.b16 %v1968, %v1966
        %v2105 = vpack.c.b16 %v1971, %v1969
        %v2106 = vpack.c.b16 %v1972, %v1970
        %v2107 = vpack.c.b16 %v1975, %v1973
        %v2108 = vpack.c.b16 %v1976, %v1974
        %v2109 = vpack.c.b16 %v1979, %v1977
        %v2110 = vpack.c.b16 %v1980, %v1978
        %v2111 = vpack.c.b16 %v1983, %v1981
        %v2112 = vpack.c.b16 %v1984, %v1982
        %v2113 = vpack.c.b16 %v1987, %v1985
        %v2114 = vpack.c.b16 %v1988, %v1986
        %v2115 = vpack.c.b16 %v1991, %v1989
        %v2116 = vpack.c.b16 %v1992, %v1990
        %v2117 = vpack.c.b16 %v1995, %v1993
        %v2118 = vpack.c.b16 %v1996, %v1994
        %v2119 = vpack.c.b16 %v1999, %v1997
        %v2120 = vpack.c.b16 %v2000, %v1998
        %v2121 = vpack.c.b16 %v2003, %v2001
        %v2122 = vpack.c.b16 %v2004, %v2002
        %v2123 = vpack.c.b16 %v2007, %v2005
        %v2124 = vpack.c.b16 %v2008, %v2006
        %v2125 = vpack.c.b16 %v2011, %v2009
        %v2126 = vpack.c.b16 %v2012, %v2010
        %v2127 = vpack.c.b16 %v2015, %v2013
        %v2128 = vpack.c.b16 %v2016, %v2014
        %v2129 = vpack.c.b16 %v2019, %v2017
        %v2130 = vpack.c.b16 %v2020, %v2018
        %v2131 = vpack.c.b16 %v2023, %v2021
        %v2132 = vpack.c.b16 %v2024, %v2022
        %v2133 = vpack.c.b16 %v2027, %v2025
        %v2134 = vpack.c.b16 %v2028, %v2026
        %v2135 = vpack.c.b16 %v2031, %v2029
        %v2136 = vpack.c.b16 %v2032, %v2030
        %v2137 = vpack.c.b16 %v2035, %v2033
        %v2138 = vpack.c.b16 %v2036, %v2034
        %v2139 = vpack.c.b16 %v2039, %v2037
        %v2140 = vpack.c.b16 %v2040, %v2038
        %v2141 = vpack.c.b16 %v2043, %v2041
        %v2142 = vpack.c.b16 %v2044, %v2042
        %v2143 = vpack.c.b16 %v2047, %v2045
        %v2144 = vpack.c.b16 %v2048, %v2046
        %2241 = vmatprep.subr.bf16.mxu0 %v2064
        %2242 = vmatpush1.bf16.msra.mxu0 %v2063
        %2243 = vmatprep.subr.bf16.mxu0 %v2062
        %2244 = vmatpush1.bf16.msra.mxu0 %v2061
        %2245 = vmatprep.subr.bf16.mxu0 %v2060
        %2246 = vmatpush1.bf16.msra.mxu0 %v2059
        %2247 = vmatprep.subr.bf16.mxu0 %v2058
        %2248 = vmatpush1.bf16.msra.mxu0 %v2057
        %2249 = vmatprep.subr.bf16.mxu0 %v2056
        %2250 = vmatpush1.bf16.msra.mxu0 %v2055
        %2251 = vmatprep.subr.bf16.mxu0 %v2054
        %2252 = vmatpush1.bf16.msra.mxu0 %v2053
        %2253 = vmatprep.subr.bf16.mxu0 %v2052
        %2254 = vmatpush1.bf16.msra.mxu0 %v2051
        %2255 = vmatprep.subr.bf16.mxu0 %v2050
        %2256 = vmatpush1.bf16.msra.mxu0 %v2049
        %2257 = vmatprep.subr.bf16.mxu0 %v2080
        %2258 = vmatpush2.bf16.msra.mxu0 %v2079
        %2259 = vmatprep.subr.bf16.mxu0 %v2078
        %2260 = vmatpush2.bf16.msra.mxu0 %v2077
        %2261 = vmatprep.subr.bf16.mxu0 %v2076
        %2262 = vmatpush2.bf16.msra.mxu0 %v2075
        %2263 = vmatprep.subr.bf16.mxu0 %v2074
        %2264 = vmatpush2.bf16.msra.mxu0 %v2073
        %2265 = vmatprep.subr.bf16.mxu0 %v2072
        %2266 = vmatpush2.bf16.msra.mxu0 %v2071
        %2267 = vmatprep.subr.bf16.mxu0 %v2070
        %2268 = vmatpush2.bf16.msra.mxu0 %v2069
        %2269 = vmatprep.subr.bf16.mxu0 %v2068
        %2270 = vmatpush2.bf16.msra.mxu0 %v2067
        %2271 = vmatprep.subr.bf16.mxu0 %v2066
        %2272 = vmatpush2.bf16.msra.mxu0 %v2065
        %2273 = vmatprep.mubr.bf16.mxu0 %v1702
        %2274 = vmatmul.mubr.bf16.gmra.mxu0 %v1701
        %v2275 = vpop.f32.mrf.mxu0
        %v2276 = vadd.f32 0.0, %v2275
        %v2277 = vpop.f32.mrf.mxu0
        %v2278 = vadd.f32 0.0, %v2277
        %v2279 = vpop.f32.mrf.mxu0
        %v2280 = vadd.f32 0.0, %v2279
        %v2281 = vpop.f32.mrf.mxu0
        %v2282 = vadd.f32 0.0, %v2281
        %2283 = vmatprep.mubr.bf16.mxu0 %v1708
        %2284 = vmatmul.mubr.bf16.gmra.mxu0 %v1707
        %v2285 = vpop.f32.mrf.mxu0
        %v2286 = vadd.f32 0.0, %v2285
        %v2287 = vpop.f32.mrf.mxu0
        %v2288 = vadd.f32 0.0, %v2287
        %v2289 = vpop.f32.mrf.mxu0
        %v2290 = vadd.f32 0.0, %v2289
        %v2291 = vpop.f32.mrf.mxu0
        %v2292 = vadd.f32 0.0, %v2291
        %2293 = vmatprep.mubr.bf16.mxu0 %v1714
        %2294 = vmatmul.mubr.bf16.gmra.mxu0 %v1713
        %v2295 = vpop.f32.mrf.mxu0
        %v2296 = vadd.f32 0.0, %v2295
        %v2297 = vpop.f32.mrf.mxu0
        %v2298 = vadd.f32 0.0, %v2297
        %v2299 = vpop.f32.mrf.mxu0
        %v2300 = vadd.f32 0.0, %v2299
        %v2301 = vpop.f32.mrf.mxu0
        %v2302 = vadd.f32 0.0, %v2301
        %2303 = vmatprep.mubr.bf16.mxu0 %v1720
        %2304 = vmatmul.mubr.bf16.gmra.mxu0 %v1719
        %v2305 = vpop.f32.mrf.mxu0
        %v2306 = vadd.f32 0.0, %v2305
        %v2307 = vpop.f32.mrf.mxu0
        %v2308 = vadd.f32 0.0, %v2307
        %v2309 = vpop.f32.mrf.mxu0
        %v2310 = vadd.f32 0.0, %v2309
        %v2311 = vpop.f32.mrf.mxu0
        %v2312 = vadd.f32 0.0, %v2311
        %2313 = vmatprep.mubr.bf16.mxu0 %v1726
        %2314 = vmatmul.mubr.bf16.gmra.mxu0 %v1725
        %v2315 = vpop.f32.mrf.mxu0
        %v2316 = vadd.f32 0.0, %v2315
        %v2317 = vpop.f32.mrf.mxu0
        %v2318 = vadd.f32 0.0, %v2317
        %v2319 = vpop.f32.mrf.mxu0
        %v2320 = vadd.f32 0.0, %v2319
        %v2321 = vpop.f32.mrf.mxu0
        %v2322 = vadd.f32 0.0, %v2321
        %2323 = vdwg.mxu0
        %2324 = vmatprep.subr.bf16.mxu0 %v2096
        %2325 = vmatpush1.bf16.msra.mxu0 %v2095
        %2326 = vmatprep.subr.bf16.mxu0 %v2094
        %2327 = vmatpush1.bf16.msra.mxu0 %v2093
        %2328 = vmatprep.subr.bf16.mxu0 %v2092
        %2329 = vmatpush1.bf16.msra.mxu0 %v2091
        %2330 = vmatprep.subr.bf16.mxu0 %v2090
        %2331 = vmatpush1.bf16.msra.mxu0 %v2089
        %2332 = vmatprep.subr.bf16.mxu0 %v2088
        %2333 = vmatpush1.bf16.msra.mxu0 %v2087
        %2334 = vmatprep.subr.bf16.mxu0 %v2086
        %2335 = vmatpush1.bf16.msra.mxu0 %v2085
        %2336 = vmatprep.subr.bf16.mxu0 %v2084
        %2337 = vmatpush1.bf16.msra.mxu0 %v2083
        %2338 = vmatprep.subr.bf16.mxu0 %v2082
        %2339 = vmatpush1.bf16.msra.mxu0 %v2081
        %2340 = vmatprep.subr.bf16.mxu0 %v2112
        %2341 = vmatpush2.bf16.msra.mxu0 %v2111
        %2342 = vmatprep.subr.bf16.mxu0 %v2110
        %2343 = vmatpush2.bf16.msra.mxu0 %v2109
        %2344 = vmatprep.subr.bf16.mxu0 %v2108
        %2345 = vmatpush2.bf16.msra.mxu0 %v2107
        %2346 = vmatprep.subr.bf16.mxu0 %v2106
        %2347 = vmatpush2.bf16.msra.mxu0 %v2105
        %2348 = vmatprep.subr.bf16.mxu0 %v2104
        %2349 = vmatpush2.bf16.msra.mxu0 %v2103
        %2350 = vmatprep.subr.bf16.mxu0 %v2102
        %2351 = vmatpush2.bf16.msra.mxu0 %v2101
        %2352 = vmatprep.subr.bf16.mxu0 %v2100
        %2353 = vmatpush2.bf16.msra.mxu0 %v2099
        %2354 = vmatprep.subr.bf16.mxu0 %v2098
        %2355 = vmatpush2.bf16.msra.mxu0 %v2097
        %2356 = vmatprep.mubr.bf16.mxu0 %v1704
        %2357 = vmatmul.mubr.bf16.gmra.mxu0 %v1703
        %v2358 = vpop.f32.mrf.mxu0
        %v2359 = vadd.f32 %v2276, %v2358
        %v2360 = vpop.f32.mrf.mxu0
        %v2361 = vadd.f32 %v2278, %v2360
        %v2362 = vpop.f32.mrf.mxu0
        %v2363 = vadd.f32 %v2280, %v2362
        %v2364 = vpop.f32.mrf.mxu0
        %v2365 = vadd.f32 %v2282, %v2364
        %2366 = vmatprep.mubr.bf16.mxu0 %v1710
        %2367 = vmatmul.mubr.bf16.gmra.mxu0 %v1709
        %v2368 = vpop.f32.mrf.mxu0
        %v2369 = vadd.f32 %v2286, %v2368
        %v2370 = vpop.f32.mrf.mxu0
        %v2371 = vadd.f32 %v2288, %v2370
        %v2372 = vpop.f32.mrf.mxu0
        %v2373 = vadd.f32 %v2290, %v2372
        %v2374 = vpop.f32.mrf.mxu0
        %v2375 = vadd.f32 %v2292, %v2374
        %2376 = vmatprep.mubr.bf16.mxu0 %v1716
        %2377 = vmatmul.mubr.bf16.gmra.mxu0 %v1715
        %v2378 = vpop.f32.mrf.mxu0
        %v2379 = vadd.f32 %v2296, %v2378
        %v2380 = vpop.f32.mrf.mxu0
        %v2381 = vadd.f32 %v2298, %v2380
        %v2382 = vpop.f32.mrf.mxu0
        %v2383 = vadd.f32 %v2300, %v2382
        %v2384 = vpop.f32.mrf.mxu0
        %v2385 = vadd.f32 %v2302, %v2384
        %2386 = vmatprep.mubr.bf16.mxu0 %v1722
        %2387 = vmatmul.mubr.bf16.gmra.mxu0 %v1721
        %v2388 = vpop.f32.mrf.mxu0
        %v2389 = vadd.f32 %v2306, %v2388
        %v2390 = vpop.f32.mrf.mxu0
        %v2391 = vadd.f32 %v2308, %v2390
        %v2392 = vpop.f32.mrf.mxu0
        %v2393 = vadd.f32 %v2310, %v2392
        %v2394 = vpop.f32.mrf.mxu0
        %v2395 = vadd.f32 %v2312, %v2394
        %2396 = vmatprep.mubr.bf16.mxu0 %v1728
        %2397 = vmatmul.mubr.bf16.gmra.mxu0 %v1727
        %v2398 = vpop.f32.mrf.mxu0
        %v2399 = vadd.f32 %v2316, %v2398
        %v2400 = vpop.f32.mrf.mxu0
        %v2401 = vadd.f32 %v2318, %v2400
        %v2402 = vpop.f32.mrf.mxu0
        %v2403 = vadd.f32 %v2320, %v2402
        %v2404 = vpop.f32.mrf.mxu0
        %v2405 = vadd.f32 %v2322, %v2404
        %2406 = vdwg.mxu0
        %2407 = vmatprep.subr.bf16.mxu0 %v2128
        %2408 = vmatpush1.bf16.msra.mxu0 %v2127
        %2409 = vmatprep.subr.bf16.mxu0 %v2126
        %2410 = vmatpush1.bf16.msra.mxu0 %v2125
        %2411 = vmatprep.subr.bf16.mxu0 %v2124
        %2412 = vmatpush1.bf16.msra.mxu0 %v2123
        %2413 = vmatprep.subr.bf16.mxu0 %v2122
        %2414 = vmatpush1.bf16.msra.mxu0 %v2121
        %2415 = vmatprep.subr.bf16.mxu0 %v2120
        %2416 = vmatpush1.bf16.msra.mxu0 %v2119
        %2417 = vmatprep.subr.bf16.mxu0 %v2118
        %2418 = vmatpush1.bf16.msra.mxu0 %v2117
        %2419 = vmatprep.subr.bf16.mxu0 %v2116
        %2420 = vmatpush1.bf16.msra.mxu0 %v2115
        %2421 = vmatprep.subr.bf16.mxu0 %v2114
        %2422 = vmatpush1.bf16.msra.mxu0 %v2113
        %2423 = vmatprep.subr.bf16.mxu0 %v2144
        %2424 = vmatpush2.bf16.msra.mxu0 %v2143
        %2425 = vmatprep.subr.bf16.mxu0 %v2142
        %2426 = vmatpush2.bf16.msra.mxu0 %v2141
        %2427 = vmatprep.subr.bf16.mxu0 %v2140
        %2428 = vmatpush2.bf16.msra.mxu0 %v2139
        %2429 = vmatprep.subr.bf16.mxu0 %v2138
        %2430 = vmatpush2.bf16.msra.mxu0 %v2137
        %2431 = vmatprep.subr.bf16.mxu0 %v2136
        %2432 = vmatpush2.bf16.msra.mxu0 %v2135
        %2433 = vmatprep.subr.bf16.mxu0 %v2134
        %2434 = vmatpush2.bf16.msra.mxu0 %v2133
        %2435 = vmatprep.subr.bf16.mxu0 %v2132
        %2436 = vmatpush2.bf16.msra.mxu0 %v2131
        %2437 = vmatprep.subr.bf16.mxu0 %v2130
        %2438 = vmatpush2.bf16.msra.mxu0 %v2129
        %2439 = vmatprep.mubr.bf16.mxu0 %v1706
        %2440 = vmatmul.mubr.bf16.gmra.mxu0 %v1705
        %v2441 = vpop.f32.mrf.mxu0
        %v2442 = vadd.f32 %v2359, %v2441
        %v2443 = vpop.f32.mrf.mxu0
        %v2444 = vadd.f32 %v2361, %v2443
        %v2445 = vpop.f32.mrf.mxu0
        %v2446 = vadd.f32 %v2363, %v2445
        %v2447 = vpop.f32.mrf.mxu0
        %v2448 = vadd.f32 %v2365, %v2447
        %2449 = vmatprep.mubr.bf16.mxu0 %v1712
        %2450 = vmatmul.mubr.bf16.gmra.mxu0 %v1711
        %v2451 = vpop.f32.mrf.mxu0
        %v2452 = vadd.f32 %v2369, %v2451
        %v2453 = vpop.f32.mrf.mxu0
        %v2454 = vadd.f32 %v2371, %v2453
        %v2455 = vpop.f32.mrf.mxu0
        %v2456 = vadd.f32 %v2373, %v2455
        %v2457 = vpop.f32.mrf.mxu0
        %v2458 = vadd.f32 %v2375, %v2457
        %2459 = vmatprep.mubr.bf16.mxu0 %v1718
        %2460 = vmatmul.mubr.bf16.gmra.mxu0 %v1717
        %v2461 = vpop.f32.mrf.mxu0
        %v2462 = vadd.f32 %v2379, %v2461
        %v2463 = vpop.f32.mrf.mxu0
        %v2464 = vadd.f32 %v2381, %v2463
        %v2465 = vpop.f32.mrf.mxu0
        %v2466 = vadd.f32 %v2383, %v2465
        %v2467 = vpop.f32.mrf.mxu0
        %v2468 = vadd.f32 %v2385, %v2467
        %2469 = vmatprep.mubr.bf16.mxu0 %v1724
        %2470 = vmatmul.mubr.bf16.gmra.mxu0 %v1723
        %v2471 = vpop.f32.mrf.mxu0
        %v2472 = vadd.f32 %v2389, %v2471
        %v2473 = vpop.f32.mrf.mxu0
        %v2474 = vadd.f32 %v2391, %v2473
        %v2475 = vpop.f32.mrf.mxu0
        %v2476 = vadd.f32 %v2393, %v2475
        %v2477 = vpop.f32.mrf.mxu0
        %v2478 = vadd.f32 %v2395, %v2477
        %2479 = vmatprep.mubr.bf16.mxu0 %v1730
        %2480 = vmatmul.mubr.bf16.gmra.mxu0 %v1729
        %v2481 = vpop.f32.mrf.mxu0
        %v2482 = vadd.f32 %v2399, %v2481
        %v2483 = vpop.f32.mrf.mxu0
        %v2484 = vadd.f32 %v2401, %v2483
        %v2485 = vpop.f32.mrf.mxu0
        %v2486 = vadd.f32 %v2403, %v2485
        %v2487 = vpop.f32.mrf.mxu0
        %v2488 = vadd.f32 %v2405, %v2487
        %2489 = vdwg.mxu0
        %v2490 = vpack.c.b16 %v939, %v937
        %v2491 = vpack.c.b16 %v940, %v938
        %v2492 = vpack.c.b16 %v1171, %v1167
        %v2493 = vpack.c.b16 %v1172, %v1168
        %v2494 = vpack.c.b16 %v1173, %v1169
        %v2495 = vpack.c.b16 %v1174, %v1170
        %v2496 = vpack.c.b16 %v943, %v941
        %v2497 = vpack.c.b16 %v944, %v942
        %v2498 = vpack.c.b16 %v1179, %v1175
        %v2499 = vpack.c.b16 %v1180, %v1176
        %v2500 = vpack.c.b16 %v1181, %v1177
        %v2501 = vpack.c.b16 %v1182, %v1178
        %v2502 = vpack.c.b16 %v947, %v945
        %v2503 = vpack.c.b16 %v948, %v946
        %v2504 = vpack.c.b16 %v1187, %v1183
        %v2505 = vpack.c.b16 %v1188, %v1184
        %v2506 = vpack.c.b16 %v1189, %v1185
        %v2507 = vpack.c.b16 %v1190, %v1186
        %v2508 = vpack.c.b16 %v951, %v949
        %v2509 = vpack.c.b16 %v952, %v950
        %v2510 = vpack.c.b16 %v1195, %v1191
        %v2511 = vpack.c.b16 %v1196, %v1192
        %v2512 = vpack.c.b16 %v1197, %v1193
        %v2513 = vpack.c.b16 %v1198, %v1194
        %v2514 = vpack.c.b16 %v955, %v953
        %v2515 = vpack.c.b16 %v956, %v954
        %v2516 = vpack.c.b16 %v1203, %v1199
        %v2517 = vpack.c.b16 %v1204, %v1200
        %v2518 = vpack.c.b16 %v1205, %v1201
        %v2519 = vpack.c.b16 %v1206, %v1202
        %v2646 = vunpack.c.l.b16 %v1207
        %v2647 = vunpack.c.h.b16 %v1207
        %v2648 = vunpack.c.l.b16 %v1208
        %v2649 = vunpack.c.h.b16 %v1208
        %v2650 = vunpack.c.l.b16 %v1209
        %v2651 = vunpack.c.h.b16 %v1209
        %v2652 = vunpack.c.l.b16 %v1210
        %v2653 = vunpack.c.h.b16 %v1210
        %v2654 = vunpack.c.l.b16 %v1211
        %v2655 = vunpack.c.h.b16 %v1211
        %v2656 = vunpack.c.l.b16 %v1212
        %v2657 = vunpack.c.h.b16 %v1212
        %v2658 = vunpack.c.l.b16 %v1213
        %v2659 = vunpack.c.h.b16 %v1213
        %v2660 = vunpack.c.l.b16 %v1214
        %v2661 = vunpack.c.h.b16 %v1214
        %v2662 = vunpack.c.l.b16 %v1215
        %v2663 = vunpack.c.h.b16 %v1215
        %v2664 = vunpack.c.l.b16 %v1216
        %v2665 = vunpack.c.h.b16 %v1216
        %v2666 = vunpack.c.l.b16 %v1217
        %v2667 = vunpack.c.h.b16 %v1217
        %v2668 = vunpack.c.l.b16 %v1218
        %v2669 = vunpack.c.h.b16 %v1218
        %v2670 = vunpack.c.l.b16 %v1219
        %v2671 = vunpack.c.h.b16 %v1219
        %v2672 = vunpack.c.l.b16 %v1220
        %v2673 = vunpack.c.h.b16 %v1220
        %v2674 = vunpack.c.l.b16 %v1221
        %v2675 = vunpack.c.h.b16 %v1221
        %v2676 = vunpack.c.l.b16 %v1222
        %v2677 = vunpack.c.h.b16 %v1222
        %v2678 = vunpack.c.l.b16 %v1223
        %v2679 = vunpack.c.h.b16 %v1223
        %v2680 = vunpack.c.l.b16 %v1224
        %v2681 = vunpack.c.h.b16 %v1224
        %v2682 = vunpack.c.l.b16 %v1225
        %v2683 = vunpack.c.h.b16 %v1225
        %v2684 = vunpack.c.l.b16 %v1226
        %v2685 = vunpack.c.h.b16 %v1226
        %v2686 = vunpack.c.l.b16 %v1227
        %v2687 = vunpack.c.h.b16 %v1227
        %v2688 = vunpack.c.l.b16 %v1228
        %v2689 = vunpack.c.h.b16 %v1228
        %v2690 = vunpack.c.l.b16 %v1229
        %v2691 = vunpack.c.h.b16 %v1229
        %v2692 = vunpack.c.l.b16 %v1230
        %v2693 = vunpack.c.h.b16 %v1230
        %v2694 = vunpack.c.l.b16 %v1231
        %v2695 = vunpack.c.h.b16 %v1231
        %v2696 = vunpack.c.l.b16 %v1232
        %v2697 = vunpack.c.h.b16 %v1232
        %v2698 = vunpack.c.l.b16 %v1233
        %v2699 = vunpack.c.h.b16 %v1233
        %v2700 = vunpack.c.l.b16 %v1234
        %v2701 = vunpack.c.h.b16 %v1234
        %v2702 = vunpack.c.l.b16 %v1235
        %v2703 = vunpack.c.h.b16 %v1235
        %v2704 = vunpack.c.l.b16 %v1236
        %v2705 = vunpack.c.h.b16 %v1236
        %v2706 = vunpack.c.l.b16 %v1237
        %v2707 = vunpack.c.h.b16 %v1237
        %v2708 = vunpack.c.l.b16 %v1238
        %v2709 = vunpack.c.h.b16 %v1238
        %v2710 = vunpack.c.l.b16 %v1239
        %v2711 = vunpack.c.h.b16 %v1239
        %v2712 = vunpack.c.l.b16 %v1240
        %v2713 = vunpack.c.h.b16 %v1240
        %v2714 = vunpack.c.l.b16 %v1241
        %v2715 = vunpack.c.h.b16 %v1241
        %v2716 = vunpack.c.l.b16 %v1242
        %v2717 = vunpack.c.h.b16 %v1242
        %v2718 = vunpack.c.l.b16 %v1243
        %v2719 = vunpack.c.h.b16 %v1243
        %v2720 = vunpack.c.l.b16 %v1244
        %v2721 = vunpack.c.h.b16 %v1244
        %v2722 = vunpack.c.l.b16 %v1245
        %v2723 = vunpack.c.h.b16 %v1245
        %v2724 = vunpack.c.l.b16 %v1246
        %v2725 = vunpack.c.h.b16 %v1246
        %v2726 = vunpack.c.l.b16 %v1247
        %v2727 = vunpack.c.h.b16 %v1247
        %v2728 = vunpack.c.l.b16 %v1248
        %v2729 = vunpack.c.h.b16 %v1248
        %v2730 = vunpack.c.l.b16 %v1249
        %v2731 = vunpack.c.h.b16 %v1249
        %v2732 = vunpack.c.l.b16 %v1250
        %v2733 = vunpack.c.h.b16 %v1250
        %v2734 = vunpack.c.l.b16 %v1251
        %v2735 = vunpack.c.h.b16 %v1251
        %v2736 = vunpack.c.l.b16 %v1252
        %v2737 = vunpack.c.h.b16 %v1252
        %v2738 = vunpack.c.l.b16 %v1253
        %v2739 = vunpack.c.h.b16 %v1253
        %v2740 = vunpack.c.l.b16 %v1254
        %v2741 = vunpack.c.h.b16 %v1254
        %v2742 = vunpack.c.l.b16 %v1255
        %v2743 = vunpack.c.h.b16 %v1255
        %v2744 = vunpack.c.l.b16 %v1256
        %v2745 = vunpack.c.h.b16 %v1256
        %v2746 = vunpack.c.l.b16 %v1257
        %v2747 = vunpack.c.h.b16 %v1257
        %v2748 = vunpack.c.l.b16 %v1258
        %v2749 = vunpack.c.h.b16 %v1258
        %v2750 = vunpack.c.l.b16 %v1259
        %v2751 = vunpack.c.h.b16 %v1259
        %v2752 = vunpack.c.l.b16 %v1260
        %v2753 = vunpack.c.h.b16 %v1260
        %v2754 = vunpack.c.l.b16 %v1261
        %v2755 = vunpack.c.h.b16 %v1261
        %v2756 = vunpack.c.l.b16 %v1262
        %v2757 = vunpack.c.h.b16 %v1262
        %v2758 = vunpack.c.l.b16 %v1263
        %v2759 = vunpack.c.h.b16 %v1263
        %v2760 = vunpack.c.l.b16 %v1264
        %v2761 = vunpack.c.h.b16 %v1264
        %v2762 = vunpack.c.l.b16 %v1265
        %v2763 = vunpack.c.h.b16 %v1265
        %v2764 = vunpack.c.l.b16 %v1266
        %v2765 = vunpack.c.h.b16 %v1266
        %v2766 = vunpack.c.l.b16 %v1267
        %v2767 = vunpack.c.h.b16 %v1267
        %v2768 = vunpack.c.l.b16 %v1268
        %v2769 = vunpack.c.h.b16 %v1268
        %v2770 = vunpack.c.l.b16 %v1269
        %v2771 = vunpack.c.h.b16 %v1269
        %v2772 = vunpack.c.l.b16 %v1270
        %v2773 = vunpack.c.h.b16 %v1270
        %v2774 = vunpack.c.l.b16 %v1271
        %v2775 = vunpack.c.h.b16 %v1271
        %v2776 = vunpack.c.l.b16 %v1272
        %v2777 = vunpack.c.h.b16 %v1272
        %v2778 = vunpack.c.l.b16 %v1273
        %v2779 = vunpack.c.h.b16 %v1273
        %v2780 = vunpack.c.l.b16 %v1274
        %v2781 = vunpack.c.h.b16 %v1274
        %v2782 = vunpack.c.l.b16 %v1275
        %v2783 = vunpack.c.h.b16 %v1275
        %v2784 = vunpack.c.l.b16 %v1276
        %v2785 = vunpack.c.h.b16 %v1276
        %v2786 = vunpack.c.l.b16 %v1277
        %v2787 = vunpack.c.h.b16 %v1277
        %v2788 = vunpack.c.l.b16 %v1278
        %v2789 = vunpack.c.h.b16 %v1278
        %v2790 = vunpack.c.l.b16 %v1279
        %v2791 = vunpack.c.h.b16 %v1279
        %v2792 = vunpack.c.l.b16 %v1280
        %v2793 = vunpack.c.h.b16 %v1280
        %v2794 = vunpack.c.l.b16 %v1281
        %v2795 = vunpack.c.h.b16 %v1281
        %v2796 = vunpack.c.l.b16 %v1282
        %v2797 = vunpack.c.h.b16 %v1282
        %v2798 = vunpack.c.l.b16 %v1283
        %v2799 = vunpack.c.h.b16 %v1283
        %v2800 = vunpack.c.l.b16 %v1284
        %v2801 = vunpack.c.h.b16 %v1284
        %v2802 = vunpack.c.l.b16 %v1285
        %v2803 = vunpack.c.h.b16 %v1285
        %v2804 = vunpack.c.l.b16 %v1286
        %v2805 = vunpack.c.h.b16 %v1286
        %v2806 = vunpack.c.l.b16 %v1287
        %v2807 = vunpack.c.h.b16 %v1287
        %v2808 = vunpack.c.l.b16 %v1288
        %v2809 = vunpack.c.h.b16 %v1288
        %v2810 = vunpack.c.l.b16 %v1289
        %v2811 = vunpack.c.h.b16 %v1289
        %v2812 = vunpack.c.l.b16 %v1290
        %v2813 = vunpack.c.h.b16 %v1290
        %v2814 = vunpack.c.l.b16 %v1291
        %v2815 = vunpack.c.h.b16 %v1291
        %v2816 = vunpack.c.l.b16 %v1292
        %v2817 = vunpack.c.h.b16 %v1292
        %v2818 = vunpack.c.l.b16 %v1293
        %v2819 = vunpack.c.h.b16 %v1293
        %v2820 = vunpack.c.l.b16 %v1294
        %v2821 = vunpack.c.h.b16 %v1294
        %v2822 = vunpack.c.l.b16 %v1295
        %v2823 = vunpack.c.h.b16 %v1295
        %v2824 = vunpack.c.l.b16 %v1296
        %v2825 = vunpack.c.h.b16 %v1296
        %v2826 = vunpack.c.l.b16 %v1297
        %v2827 = vunpack.c.h.b16 %v1297
        %v2828 = vunpack.c.l.b16 %v1298
        %v2829 = vunpack.c.h.b16 %v1298
        %v2830 = vunpack.c.l.b16 %v1299
        %v2831 = vunpack.c.h.b16 %v1299
        %v2832 = vunpack.c.l.b16 %v1300
        %v2833 = vunpack.c.h.b16 %v1300
        %v2834 = vunpack.c.l.b16 %v1301
        %v2835 = vunpack.c.h.b16 %v1301
        %v2836 = vunpack.c.l.b16 %v1302
        %v2837 = vunpack.c.h.b16 %v1302
        %v2838 = vpack.c.b16 %v2648, %v2646
        %v2839 = vpack.c.b16 %v2649, %v2647
        %v2840 = vpack.c.b16 %v2652, %v2650
        %v2841 = vpack.c.b16 %v2653, %v2651
        %v2842 = vpack.c.b16 %v2656, %v2654
        %v2843 = vpack.c.b16 %v2657, %v2655
        %v2844 = vpack.c.b16 %v2660, %v2658
        %v2845 = vpack.c.b16 %v2661, %v2659
        %v2846 = vpack.c.b16 %v2664, %v2662
        %v2847 = vpack.c.b16 %v2665, %v2663
        %v2848 = vpack.c.b16 %v2668, %v2666
        %v2849 = vpack.c.b16 %v2669, %v2667
        %v2850 = vpack.c.b16 %v2672, %v2670
        %v2851 = vpack.c.b16 %v2673, %v2671
        %v2852 = vpack.c.b16 %v2676, %v2674
        %v2853 = vpack.c.b16 %v2677, %v2675
        %v2854 = vpack.c.b16 %v2680, %v2678
        %v2855 = vpack.c.b16 %v2681, %v2679
        %v2856 = vpack.c.b16 %v2684, %v2682
        %v2857 = vpack.c.b16 %v2685, %v2683
        %v2858 = vpack.c.b16 %v2688, %v2686
        %v2859 = vpack.c.b16 %v2689, %v2687
        %v2860 = vpack.c.b16 %v2692, %v2690
        %v2861 = vpack.c.b16 %v2693, %v2691
        %v2862 = vpack.c.b16 %v2696, %v2694
        %v2863 = vpack.c.b16 %v2697, %v2695
        %v2864 = vpack.c.b16 %v2700, %v2698
        %v2865 = vpack.c.b16 %v2701, %v2699
        %v2866 = vpack.c.b16 %v2704, %v2702
        %v2867 = vpack.c.b16 %v2705, %v2703
        %v2868 = vpack.c.b16 %v2708, %v2706
        %v2869 = vpack.c.b16 %v2709, %v2707
        %v2870 = vpack.c.b16 %v2712, %v2710
        %v2871 = vpack.c.b16 %v2713, %v2711
        %v2872 = vpack.c.b16 %v2716, %v2714
        %v2873 = vpack.c.b16 %v2717, %v2715
        %v2874 = vpack.c.b16 %v2720, %v2718
        %v2875 = vpack.c.b16 %v2721, %v2719
        %v2876 = vpack.c.b16 %v2724, %v2722
        %v2877 = vpack.c.b16 %v2725, %v2723
        %v2878 = vpack.c.b16 %v2728, %v2726
        %v2879 = vpack.c.b16 %v2729, %v2727
        %v2880 = vpack.c.b16 %v2732, %v2730
        %v2881 = vpack.c.b16 %v2733, %v2731
        %v2882 = vpack.c.b16 %v2736, %v2734
        %v2883 = vpack.c.b16 %v2737, %v2735
        %v2884 = vpack.c.b16 %v2740, %v2738
        %v2885 = vpack.c.b16 %v2741, %v2739
        %v2886 = vpack.c.b16 %v2744, %v2742
        %v2887 = vpack.c.b16 %v2745, %v2743
        %v2888 = vpack.c.b16 %v2748, %v2746
        %v2889 = vpack.c.b16 %v2749, %v2747
        %v2890 = vpack.c.b16 %v2752, %v2750
        %v2891 = vpack.c.b16 %v2753, %v2751
        %v2892 = vpack.c.b16 %v2756, %v2754
        %v2893 = vpack.c.b16 %v2757, %v2755
        %v2894 = vpack.c.b16 %v2760, %v2758
        %v2895 = vpack.c.b16 %v2761, %v2759
        %v2896 = vpack.c.b16 %v2764, %v2762
        %v2897 = vpack.c.b16 %v2765, %v2763
        %v2898 = vpack.c.b16 %v2768, %v2766
        %v2899 = vpack.c.b16 %v2769, %v2767
        %v2900 = vpack.c.b16 %v2772, %v2770
        %v2901 = vpack.c.b16 %v2773, %v2771
        %v2902 = vpack.c.b16 %v2776, %v2774
        %v2903 = vpack.c.b16 %v2777, %v2775
        %v2904 = vpack.c.b16 %v2780, %v2778
        %v2905 = vpack.c.b16 %v2781, %v2779
        %v2906 = vpack.c.b16 %v2784, %v2782
        %v2907 = vpack.c.b16 %v2785, %v2783
        %v2908 = vpack.c.b16 %v2788, %v2786
        %v2909 = vpack.c.b16 %v2789, %v2787
        %v2910 = vpack.c.b16 %v2792, %v2790
        %v2911 = vpack.c.b16 %v2793, %v2791
        %v2912 = vpack.c.b16 %v2796, %v2794
        %v2913 = vpack.c.b16 %v2797, %v2795
        %v2914 = vpack.c.b16 %v2800, %v2798
        %v2915 = vpack.c.b16 %v2801, %v2799
        %v2916 = vpack.c.b16 %v2804, %v2802
        %v2917 = vpack.c.b16 %v2805, %v2803
        %v2918 = vpack.c.b16 %v2808, %v2806
        %v2919 = vpack.c.b16 %v2809, %v2807
        %v2920 = vpack.c.b16 %v2812, %v2810
        %v2921 = vpack.c.b16 %v2813, %v2811
        %v2922 = vpack.c.b16 %v2816, %v2814
        %v2923 = vpack.c.b16 %v2817, %v2815
        %v2924 = vpack.c.b16 %v2820, %v2818
        %v2925 = vpack.c.b16 %v2821, %v2819
        %v2926 = vpack.c.b16 %v2824, %v2822
        %v2927 = vpack.c.b16 %v2825, %v2823
        %v2928 = vpack.c.b16 %v2828, %v2826
        %v2929 = vpack.c.b16 %v2829, %v2827
        %v2930 = vpack.c.b16 %v2832, %v2830
        %v2931 = vpack.c.b16 %v2833, %v2831
        %v2932 = vpack.c.b16 %v2836, %v2834
        %v2933 = vpack.c.b16 %v2837, %v2835
        %3030 = vmatprep.subr.bf16.mxu0 %v2853
        %3031 = vmatpush1.bf16.msra.mxu0 %v2852
        %3032 = vmatprep.subr.bf16.mxu0 %v2851
        %3033 = vmatpush1.bf16.msra.mxu0 %v2850
        %3034 = vmatprep.subr.bf16.mxu0 %v2849
        %3035 = vmatpush1.bf16.msra.mxu0 %v2848
        %3036 = vmatprep.subr.bf16.mxu0 %v2847
        %3037 = vmatpush1.bf16.msra.mxu0 %v2846
        %3038 = vmatprep.subr.bf16.mxu0 %v2845
        %3039 = vmatpush1.bf16.msra.mxu0 %v2844
        %3040 = vmatprep.subr.bf16.mxu0 %v2843
        %3041 = vmatpush1.bf16.msra.mxu0 %v2842
        %3042 = vmatprep.subr.bf16.mxu0 %v2841
        %3043 = vmatpush1.bf16.msra.mxu0 %v2840
        %3044 = vmatprep.subr.bf16.mxu0 %v2839
        %3045 = vmatpush1.bf16.msra.mxu0 %v2838
        %3046 = vmatprep.subr.bf16.mxu0 %v2869
        %3047 = vmatpush2.bf16.msra.mxu0 %v2868
        %3048 = vmatprep.subr.bf16.mxu0 %v2867
        %3049 = vmatpush2.bf16.msra.mxu0 %v2866
        %3050 = vmatprep.subr.bf16.mxu0 %v2865
        %3051 = vmatpush2.bf16.msra.mxu0 %v2864
        %3052 = vmatprep.subr.bf16.mxu0 %v2863
        %3053 = vmatpush2.bf16.msra.mxu0 %v2862
        %3054 = vmatprep.subr.bf16.mxu0 %v2861
        %3055 = vmatpush2.bf16.msra.mxu0 %v2860
        %3056 = vmatprep.subr.bf16.mxu0 %v2859
        %3057 = vmatpush2.bf16.msra.mxu0 %v2858
        %3058 = vmatprep.subr.bf16.mxu0 %v2857
        %3059 = vmatpush2.bf16.msra.mxu0 %v2856
        %3060 = vmatprep.subr.bf16.mxu0 %v2855
        %3061 = vmatpush2.bf16.msra.mxu0 %v2854
        %3062 = vmatprep.mubr.bf16.mxu0 %v2491
        %3063 = vmatmul.mubr.bf16.gmra.mxu0 %v2490
        %v3064 = vpop.f32.mrf.mxu0
        %v3065 = vadd.f32 %v2442, %v3064
        %v3066 = vpop.f32.mrf.mxu0
        %v3067 = vadd.f32 %v2444, %v3066
        %v3068 = vpop.f32.mrf.mxu0
        %v3069 = vadd.f32 %v2446, %v3068
        %v3070 = vpop.f32.mrf.mxu0
        %v3071 = vadd.f32 %v2448, %v3070
        %3072 = vmatprep.mubr.bf16.mxu0 %v2497
        %3073 = vmatmul.mubr.bf16.gmra.mxu0 %v2496
        %v3074 = vpop.f32.mrf.mxu0
        %v3075 = vadd.f32 %v2452, %v3074
        %v3076 = vpop.f32.mrf.mxu0
        %v3077 = vadd.f32 %v2454, %v3076
        %v3078 = vpop.f32.mrf.mxu0
        %v3079 = vadd.f32 %v2456, %v3078
        %v3080 = vpop.f32.mrf.mxu0
        %v3081 = vadd.f32 %v2458, %v3080
        %3082 = vmatprep.mubr.bf16.mxu0 %v2503
        %3083 = vmatmul.mubr.bf16.gmra.mxu0 %v2502
        %v3084 = vpop.f32.mrf.mxu0
        %v3085 = vadd.f32 %v2462, %v3084
        %v3086 = vpop.f32.mrf.mxu0
        %v3087 = vadd.f32 %v2464, %v3086
        %v3088 = vpop.f32.mrf.mxu0
        %v3089 = vadd.f32 %v2466, %v3088
        %v3090 = vpop.f32.mrf.mxu0
        %v3091 = vadd.f32 %v2468, %v3090
        %3092 = vmatprep.mubr.bf16.mxu0 %v2509
        %3093 = vmatmul.mubr.bf16.gmra.mxu0 %v2508
        %v3094 = vpop.f32.mrf.mxu0
        %v3095 = vadd.f32 %v2472, %v3094
        %v3096 = vpop.f32.mrf.mxu0
        %v3097 = vadd.f32 %v2474, %v3096
        %v3098 = vpop.f32.mrf.mxu0
        %v3099 = vadd.f32 %v2476, %v3098
        %v3100 = vpop.f32.mrf.mxu0
        %v3101 = vadd.f32 %v2478, %v3100
        %3102 = vmatprep.mubr.bf16.mxu0 %v2515
        %3103 = vmatmul.mubr.bf16.gmra.mxu0 %v2514
        %v3104 = vpop.f32.mrf.mxu0
        %v3105 = vadd.f32 %v2482, %v3104
        %v3106 = vpop.f32.mrf.mxu0
        %v3107 = vadd.f32 %v2484, %v3106
        %v3108 = vpop.f32.mrf.mxu0
        %v3109 = vadd.f32 %v2486, %v3108
        %v3110 = vpop.f32.mrf.mxu0
        %v3111 = vadd.f32 %v2488, %v3110
        %3112 = vdwg.mxu0
        %3113 = vmatprep.subr.bf16.mxu0 %v2885
        %3114 = vmatpush1.bf16.msra.mxu0 %v2884
        %3115 = vmatprep.subr.bf16.mxu0 %v2883
        %3116 = vmatpush1.bf16.msra.mxu0 %v2882
        %3117 = vmatprep.subr.bf16.mxu0 %v2881
        %3118 = vmatpush1.bf16.msra.mxu0 %v2880
        %3119 = vmatprep.subr.bf16.mxu0 %v2879
        %3120 = vmatpush1.bf16.msra.mxu0 %v2878
        %3121 = vmatprep.subr.bf16.mxu0 %v2877
        %3122 = vmatpush1.bf16.msra.mxu0 %v2876
        %3123 = vmatprep.subr.bf16.mxu0 %v2875
        %3124 = vmatpush1.bf16.msra.mxu0 %v2874
        %3125 = vmatprep.subr.bf16.mxu0 %v2873
        %3126 = vmatpush1.bf16.msra.mxu0 %v2872
        %3127 = vmatprep.subr.bf16.mxu0 %v2871
        %3128 = vmatpush1.bf16.msra.mxu0 %v2870
        %3129 = vmatprep.subr.bf16.mxu0 %v2901
        %3130 = vmatpush2.bf16.msra.mxu0 %v2900
        %3131 = vmatprep.subr.bf16.mxu0 %v2899
        %3132 = vmatpush2.bf16.msra.mxu0 %v2898
        %3133 = vmatprep.subr.bf16.mxu0 %v2897
        %3134 = vmatpush2.bf16.msra.mxu0 %v2896
        %3135 = vmatprep.subr.bf16.mxu0 %v2895
        %3136 = vmatpush2.bf16.msra.mxu0 %v2894
        %3137 = vmatprep.subr.bf16.mxu0 %v2893
        %3138 = vmatpush2.bf16.msra.mxu0 %v2892
        %3139 = vmatprep.subr.bf16.mxu0 %v2891
        %3140 = vmatpush2.bf16.msra.mxu0 %v2890
        %3141 = vmatprep.subr.bf16.mxu0 %v2889
        %3142 = vmatpush2.bf16.msra.mxu0 %v2888
        %3143 = vmatprep.subr.bf16.mxu0 %v2887
        %3144 = vmatpush2.bf16.msra.mxu0 %v2886
        %3145 = vmatprep.mubr.bf16.mxu0 %v2493
        %3146 = vmatmul.mubr.bf16.gmra.mxu0 %v2492
        %v3147 = vpop.f32.mrf.mxu0
        %v3148 = vadd.f32 %v3065, %v3147
        %v3149 = vpop.f32.mrf.mxu0
        %v3150 = vadd.f32 %v3067, %v3149
        %v3151 = vpop.f32.mrf.mxu0
        %v3152 = vadd.f32 %v3069, %v3151
        %v3153 = vpop.f32.mrf.mxu0
        %v3154 = vadd.f32 %v3071, %v3153
        %3155 = vmatprep.mubr.bf16.mxu0 %v2499
        %3156 = vmatmul.mubr.bf16.gmra.mxu0 %v2498
        %v3157 = vpop.f32.mrf.mxu0
        %v3158 = vadd.f32 %v3075, %v3157
        %v3159 = vpop.f32.mrf.mxu0
        %v3160 = vadd.f32 %v3077, %v3159
        %v3161 = vpop.f32.mrf.mxu0
        %v3162 = vadd.f32 %v3079, %v3161
        %v3163 = vpop.f32.mrf.mxu0
        %v3164 = vadd.f32 %v3081, %v3163
        %3165 = vmatprep.mubr.bf16.mxu0 %v2505
        %3166 = vmatmul.mubr.bf16.gmra.mxu0 %v2504
        %v3167 = vpop.f32.mrf.mxu0
        %v3168 = vadd.f32 %v3085, %v3167
        %v3169 = vpop.f32.mrf.mxu0
        %v3170 = vadd.f32 %v3087, %v3169
        %v3171 = vpop.f32.mrf.mxu0
        %v3172 = vadd.f32 %v3089, %v3171
        %v3173 = vpop.f32.mrf.mxu0
        %v3174 = vadd.f32 %v3091, %v3173
        %3175 = vmatprep.mubr.bf16.mxu0 %v2511
        %3176 = vmatmul.mubr.bf16.gmra.mxu0 %v2510
        %v3177 = vpop.f32.mrf.mxu0
        %v3178 = vadd.f32 %v3095, %v3177
        %v3179 = vpop.f32.mrf.mxu0
        %v3180 = vadd.f32 %v3097, %v3179
        %v3181 = vpop.f32.mrf.mxu0
        %v3182 = vadd.f32 %v3099, %v3181
        %v3183 = vpop.f32.mrf.mxu0
        %v3184 = vadd.f32 %v3101, %v3183
        %3185 = vmatprep.mubr.bf16.mxu0 %v2517
        %3186 = vmatmul.mubr.bf16.gmra.mxu0 %v2516
        %v3187 = vpop.f32.mrf.mxu0
        %v3188 = vadd.f32 %v3105, %v3187
        %v3189 = vpop.f32.mrf.mxu0
        %v3190 = vadd.f32 %v3107, %v3189
        %v3191 = vpop.f32.mrf.mxu0
        %v3192 = vadd.f32 %v3109, %v3191
        %v3193 = vpop.f32.mrf.mxu0
        %v3194 = vadd.f32 %v3111, %v3193
        %3195 = vdwg.mxu0
        %3196 = vmatprep.subr.bf16.mxu0 %v2917
        %3197 = vmatpush1.bf16.msra.mxu0 %v2916
        %3198 = vmatprep.subr.bf16.mxu0 %v2915
        %3199 = vmatpush1.bf16.msra.mxu0 %v2914
        %3200 = vmatprep.subr.bf16.mxu0 %v2913
        %3201 = vmatpush1.bf16.msra.mxu0 %v2912
        %3202 = vmatprep.subr.bf16.mxu0 %v2911
        %3203 = vmatpush1.bf16.msra.mxu0 %v2910
        %3204 = vmatprep.subr.bf16.mxu0 %v2909
        %3205 = vmatpush1.bf16.msra.mxu0 %v2908
        %3206 = vmatprep.subr.bf16.mxu0 %v2907
        %3207 = vmatpush1.bf16.msra.mxu0 %v2906
        %3208 = vmatprep.subr.bf16.mxu0 %v2905
        %3209 = vmatpush1.bf16.msra.mxu0 %v2904
        %3210 = vmatprep.subr.bf16.mxu0 %v2903
        %3211 = vmatpush1.bf16.msra.mxu0 %v2902
        %3212 = vmatprep.subr.bf16.mxu0 %v2933
        %3213 = vmatpush2.bf16.msra.mxu0 %v2932
        %3214 = vmatprep.subr.bf16.mxu0 %v2931
        %3215 = vmatpush2.bf16.msra.mxu0 %v2930
        %3216 = vmatprep.subr.bf16.mxu0 %v2929
        %3217 = vmatpush2.bf16.msra.mxu0 %v2928
        %3218 = vmatprep.subr.bf16.mxu0 %v2927
        %3219 = vmatpush2.bf16.msra.mxu0 %v2926
        %3220 = vmatprep.subr.bf16.mxu0 %v2925
        %3221 = vmatpush2.bf16.msra.mxu0 %v2924
        %3222 = vmatprep.subr.bf16.mxu0 %v2923
        %3223 = vmatpush2.bf16.msra.mxu0 %v2922
        %3224 = vmatprep.subr.bf16.mxu0 %v2921
        %3225 = vmatpush2.bf16.msra.mxu0 %v2920
        %3226 = vmatprep.subr.bf16.mxu0 %v2919
        %3227 = vmatpush2.bf16.msra.mxu0 %v2918
        %3228 = vmatprep.mubr.bf16.mxu0 %v2495
        %3229 = vmatmul.mubr.bf16.gmra.mxu0 %v2494
        %v3230 = vpop.f32.mrf.mxu0
        %v3231 = vadd.f32 %v3148, %v3230
        %v3232 = vpop.f32.mrf.mxu0
        %v3233 = vadd.f32 %v3150, %v3232
        %v3234 = vpop.f32.mrf.mxu0
        %v3235 = vadd.f32 %v3152, %v3234
        %v3236 = vpop.f32.mrf.mxu0
        %v3237 = vadd.f32 %v3154, %v3236
        %3238 = vmatprep.mubr.bf16.mxu0 %v2501
        %3239 = vmatmul.mubr.bf16.gmra.mxu0 %v2500
        %v3240 = vpop.f32.mrf.mxu0
        %v3241 = vadd.f32 %v3158, %v3240
        %v3242 = vpop.f32.mrf.mxu0
        %v3243 = vadd.f32 %v3160, %v3242
        %v3244 = vpop.f32.mrf.mxu0
        %v3245 = vadd.f32 %v3162, %v3244
        %v3246 = vpop.f32.mrf.mxu0
        %v3247 = vadd.f32 %v3164, %v3246
        %3248 = vmatprep.mubr.bf16.mxu0 %v2507
        %3249 = vmatmul.mubr.bf16.gmra.mxu0 %v2506
        %v3250 = vpop.f32.mrf.mxu0
        %v3251 = vadd.f32 %v3168, %v3250
        %v3252 = vpop.f32.mrf.mxu0
        %v3253 = vadd.f32 %v3170, %v3252
        %v3254 = vpop.f32.mrf.mxu0
        %v3255 = vadd.f32 %v3172, %v3254
        %v3256 = vpop.f32.mrf.mxu0
        %v3257 = vadd.f32 %v3174, %v3256
        %3258 = vmatprep.mubr.bf16.mxu0 %v2513
        %3259 = vmatmul.mubr.bf16.gmra.mxu0 %v2512
        %v3260 = vpop.f32.mrf.mxu0
        %v3261 = vadd.f32 %v3178, %v3260
        %v3262 = vpop.f32.mrf.mxu0
        %v3263 = vadd.f32 %v3180, %v3262
        %v3264 = vpop.f32.mrf.mxu0
        %v3265 = vadd.f32 %v3182, %v3264
        %v3266 = vpop.f32.mrf.mxu0
        %v3267 = vadd.f32 %v3184, %v3266
        %3268 = vmatprep.mubr.bf16.mxu0 %v2519
        %3269 = vmatmul.mubr.bf16.gmra.mxu0 %v2518
        %v3270 = vpop.f32.mrf.mxu0
        %v3271 = vadd.f32 %v3188, %v3270
        %v3272 = vpop.f32.mrf.mxu0
        %v3273 = vadd.f32 %v3190, %v3272
        %v3274 = vpop.f32.mrf.mxu0
        %v3275 = vadd.f32 %v3192, %v3274
        %v3276 = vpop.f32.mrf.mxu0
        %v3277 = vadd.f32 %v3194, %v3276
        %3278 = vdwg.mxu0
        %v3279 = vld [vmem:[%s652] sm:$0xff]
        %v3280 = vld [vmem:[%s652 + $0x8] sm:$0x11]
        %v3281 = vld [vmem:[%s652 + $0x10] sm:$0xff]
        %v3282 = vld [vmem:[%s652 + $0x18] sm:$0x11]
        %v3283 = vld [vmem:[%s652 + $0x20] sm:$0xff]
        %v3284 = vld [vmem:[%s652 + $0x28] sm:$0x11]
        %v3285 = vld [vmem:[%s652 + $0x30] sm:$0xff]
        %v3286 = vld [vmem:[%s652 + $0x38] sm:$0x11]
        %v3287 = vld [vmem:[%s652 + $0x40] sm:$0xff]
        %v3288 = vld [vmem:[%s652 + $0x48] sm:$0x11]
        %v3289 = vld [vmem:[%s652 + $0x50] sm:$0xff]
        %v3290 = vld [vmem:[%s652 + $0x58] sm:$0x11]
        %v3291 = vld [vmem:[%s652 + $0x60] sm:$0xff]
        %v3292 = vld [vmem:[%s652 + $0x68] sm:$0x11]
        %v3293 = vld [vmem:[%s652 + $0x70] sm:$0xff]
        %v3294 = vld [vmem:[%s652 + $0x78] sm:$0x11]
        %v3295 = vld [vmem:[%s652 + $0x80] sm:$0xff]
        %v3296 = vld [vmem:[%s652 + $0x88] sm:$0x11]
        %v3297 = vld [vmem:[%s652 + $0x90] sm:$0xff]
        %v3298 = vld [vmem:[%s652 + $0x98] sm:$0x11]
        %v3309 = vunpack.c.l.b16 %v3279
        %v3310 = vunpack.c.h.b16 %v3279
        %v3311 = vunpack.c.l.b16 %v3281
        %v3312 = vunpack.c.h.b16 %v3281
        %v3313 = vunpack.c.l.b16 %v3283
        %v3314 = vunpack.c.h.b16 %v3283
        %v3315 = vunpack.c.l.b16 %v3285
        %v3316 = vunpack.c.h.b16 %v3285
        %v3317 = vunpack.c.l.b16 %v3287
        %v3318 = vunpack.c.h.b16 %v3287
        %v3319 = vunpack.c.l.b16 %v3289
        %v3320 = vunpack.c.h.b16 %v3289
        %v3321 = vunpack.c.l.b16 %v3291
        %v3322 = vunpack.c.h.b16 %v3291
        %v3323 = vunpack.c.l.b16 %v3293
        %v3324 = vunpack.c.h.b16 %v3293
        %v3325 = vunpack.c.l.b16 %v3295
        %v3326 = vunpack.c.h.b16 %v3295
        %v3327 = vunpack.c.l.b16 %v3297
        %v3328 = vunpack.c.h.b16 %v3297
        %v3339 = vunpack.c.l.b16 %v3280
        %v3340 = vunpack.c.h.b16 %v3280
        %v3341 = vunpack.c.l.b16 %v3282
        %v3342 = vunpack.c.h.b16 %v3282
        %v3343 = vunpack.c.l.b16 %v3284
        %v3344 = vunpack.c.h.b16 %v3284
        %v3345 = vunpack.c.l.b16 %v3286
        %v3346 = vunpack.c.h.b16 %v3286
        %v3347 = vunpack.c.l.b16 %v3288
        %v3348 = vunpack.c.h.b16 %v3288
        %v3349 = vunpack.c.l.b16 %v3290
        %v3350 = vunpack.c.h.b16 %v3290
        %v3351 = vunpack.c.l.b16 %v3292
        %v3352 = vunpack.c.h.b16 %v3292
        %v3353 = vunpack.c.l.b16 %v3294
        %v3354 = vunpack.c.h.b16 %v3294
        %v3355 = vunpack.c.l.b16 %v3296
        %v3356 = vunpack.c.h.b16 %v3296
        %v3357 = vunpack.c.l.b16 %v3298
        %v3358 = vunpack.c.h.b16 %v3298
        %v3359 = vpack.c.b16 %v3339, %v3309
        %v3360 = vpack.c.b16 %v3340, %v3310
        %v3361 = vpack.c.b16 %v3341, %v3311
        %v3362 = vpack.c.b16 %v3342, %v3312
        %v3363 = vpack.c.b16 %v3343, %v3313
        %v3364 = vpack.c.b16 %v3344, %v3314
        %v3365 = vpack.c.b16 %v3345, %v3315
        %v3366 = vpack.c.b16 %v3346, %v3316
        %v3367 = vpack.c.b16 %v3347, %v3317
        %v3368 = vpack.c.b16 %v3348, %v3318
        %v3369 = vpack.c.b16 %v3349, %v3319
        %v3370 = vpack.c.b16 %v3350, %v3320
        %v3371 = vpack.c.b16 %v3351, %v3321
        %v3372 = vpack.c.b16 %v3352, %v3322
        %v3373 = vpack.c.b16 %v3353, %v3323
        %v3374 = vpack.c.b16 %v3354, %v3324
        %v3375 = vpack.c.b16 %v3355, %v3325
        %v3376 = vpack.c.b16 %v3356, %v3326
        %v3377 = vpack.c.b16 %v3357, %v3327
        %v3378 = vpack.c.b16 %v3358, %v3328
        %v3380 = vshrl.u32 %v3359, 16
        %v3382 = vshll.u32 %v3359, 16
        %v3384 = vrot.slane %v3382, 1
        %v3385 = vor.u32 %v3380, %v3384
        %v3387 = vshrl.u32 %v3360, 16
        %v3389 = vshll.u32 %v3360, 16
        %v3391 = vrot.slane %v3389, 1
        %v3392 = vor.u32 %v3387, %v3391
        %v3394 = vshrl.u32 %v3361, 16
        %v3396 = vshll.u32 %v3361, 16
        %v3398 = vrot.slane %v3396, 1
        %v3399 = vor.u32 %v3394, %v3398
        %v3401 = vshrl.u32 %v3362, 16
        %v3403 = vshll.u32 %v3362, 16
        %v3405 = vrot.slane %v3403, 1
        %v3406 = vor.u32 %v3401, %v3405
        %v3408 = vshrl.u32 %v3363, 16
        %v3410 = vshll.u32 %v3363, 16
        %v3412 = vrot.slane %v3410, 1
        %v3413 = vor.u32 %v3408, %v3412
        %v3415 = vshrl.u32 %v3364, 16
        %v3417 = vshll.u32 %v3364, 16
        %v3419 = vrot.slane %v3417, 1
        %v3420 = vor.u32 %v3415, %v3419
        %v3422 = vshrl.u32 %v3365, 16
        %v3424 = vshll.u32 %v3365, 16
        %v3426 = vrot.slane %v3424, 1
        %v3427 = vor.u32 %v3422, %v3426
        %v3429 = vshrl.u32 %v3366, 16
        %v3431 = vshll.u32 %v3366, 16
        %v3433 = vrot.slane %v3431, 1
        %v3434 = vor.u32 %v3429, %v3433
        %v3436 = vshrl.u32 %v3367, 16
        %v3438 = vshll.u32 %v3367, 16
        %v3440 = vrot.slane %v3438, 1
        %v3441 = vor.u32 %v3436, %v3440
        %v3443 = vshrl.u32 %v3368, 16
        %v3445 = vshll.u32 %v3368, 16
        %v3447 = vrot.slane %v3445, 1
        %v3448 = vor.u32 %v3443, %v3447
        %v3450 = vshrl.u32 %v3369, 16
        %v3452 = vshll.u32 %v3369, 16
        %v3454 = vrot.slane %v3452, 1
        %v3455 = vor.u32 %v3450, %v3454
        %v3457 = vshrl.u32 %v3370, 16
        %v3459 = vshll.u32 %v3370, 16
        %v3461 = vrot.slane %v3459, 1
        %v3462 = vor.u32 %v3457, %v3461
        %v3464 = vshrl.u32 %v3371, 16
        %v3466 = vshll.u32 %v3371, 16
        %v3468 = vrot.slane %v3466, 1
        %v3469 = vor.u32 %v3464, %v3468
        %v3471 = vshrl.u32 %v3372, 16
        %v3473 = vshll.u32 %v3372, 16
        %v3475 = vrot.slane %v3473, 1
        %v3476 = vor.u32 %v3471, %v3475
        %v3478 = vshrl.u32 %v3373, 16
        %v3480 = vshll.u32 %v3373, 16
        %v3482 = vrot.slane %v3480, 1
        %v3483 = vor.u32 %v3478, %v3482
        %v3485 = vshrl.u32 %v3374, 16
        %v3487 = vshll.u32 %v3374, 16
        %v3489 = vrot.slane %v3487, 1
        %v3490 = vor.u32 %v3485, %v3489
        %v3492 = vshrl.u32 %v3375, 16
        %v3494 = vshll.u32 %v3375, 16
        %v3496 = vrot.slane %v3494, 1
        %v3497 = vor.u32 %v3492, %v3496
        %v3499 = vshrl.u32 %v3376, 16
        %v3501 = vshll.u32 %v3376, 16
        %v3503 = vrot.slane %v3501, 1
        %v3504 = vor.u32 %v3499, %v3503
        %v3506 = vshrl.u32 %v3377, 16
        %v3508 = vshll.u32 %v3377, 16
        %v3510 = vrot.slane %v3508, 1
        %v3511 = vor.u32 %v3506, %v3510
        %v3513 = vshrl.u32 %v3378, 16
        %v3515 = vshll.u32 %v3378, 16
        %v3517 = vrot.slane %v3515, 1
        %v3518 = vor.u32 %v3513, %v3517
        %v3519 = vrot.slane %v3359, 1
        %v3520 = vrot.slane %v3360, 1
        %v3521 = vrot.slane %v3361, 1
        %v3522 = vrot.slane %v3362, 1
        %v3523 = vrot.slane %v3363, 1
        %v3524 = vrot.slane %v3364, 1
        %v3525 = vrot.slane %v3365, 1
        %v3526 = vrot.slane %v3366, 1
        %v3527 = vrot.slane %v3367, 1
        %v3528 = vrot.slane %v3368, 1
        %v3529 = vrot.slane %v3369, 1
        %v3530 = vrot.slane %v3370, 1
        %v3531 = vrot.slane %v3371, 1
        %v3532 = vrot.slane %v3372, 1
        %v3533 = vrot.slane %v3373, 1
        %v3534 = vrot.slane %v3374, 1
        %v3535 = vrot.slane %v3375, 1
        %v3536 = vrot.slane %v3376, 1
        %v3537 = vrot.slane %v3377, 1
        %v3538 = vrot.slane %v3378, 1
        %v3539 = vunpack.c.l.b16 %v3385
        %v3540 = vunpack.c.l.b16 %v3392
        %v3541 = vunpack.c.l.b16 %v3519
        %v3542 = vunpack.c.l.b16 %v3520
        %v3543 = vunpack.c.l.b16 %v3399
        %v3544 = vunpack.c.l.b16 %v3406
        %v3545 = vunpack.c.l.b16 %v3521
        %v3546 = vunpack.c.l.b16 %v3522
        %v3547 = vunpack.c.l.b16 %v3413
        %v3548 = vunpack.c.l.b16 %v3420
        %v3549 = vunpack.c.l.b16 %v3523
        %v3550 = vunpack.c.l.b16 %v3524
        %v3551 = vunpack.c.l.b16 %v3427
        %v3552 = vunpack.c.l.b16 %v3434
        %v3553 = vunpack.c.l.b16 %v3525
        %v3554 = vunpack.c.l.b16 %v3526
        %v3555 = vunpack.c.l.b16 %v3441
        %v3556 = vunpack.c.l.b16 %v3448
        %v3557 = vunpack.c.l.b16 %v3527
        %v3558 = vunpack.c.l.b16 %v3528
        %v3559 = vunpack.c.l.b16 %v3455
        %v3560 = vunpack.c.l.b16 %v3462
        %v3561 = vunpack.c.l.b16 %v3529
        %v3562 = vunpack.c.l.b16 %v3530
        %v3563 = vunpack.c.l.b16 %v3469
        %v3564 = vunpack.c.l.b16 %v3476
        %v3565 = vunpack.c.l.b16 %v3531
        %v3566 = vunpack.c.l.b16 %v3532
        %v3567 = vunpack.c.l.b16 %v3483
        %v3568 = vunpack.c.l.b16 %v3490
        %v3569 = vunpack.c.l.b16 %v3533
        %v3570 = vunpack.c.l.b16 %v3534
        %v3571 = vunpack.c.l.b16 %v3497
        %v3572 = vunpack.c.l.b16 %v3504
        %v3573 = vunpack.c.l.b16 %v3535
        %v3574 = vunpack.c.l.b16 %v3536
        %v3575 = vunpack.c.l.b16 %v3511
        %v3576 = vunpack.c.l.b16 %v3518
        %v3577 = vunpack.c.l.b16 %v3537
        %v3578 = vunpack.c.l.b16 %v3538
        %s3579 = scalar_lea.vmem %s3, 1536
        %v3580 = vld [vmem:[%s3579] sm:$0xff]
        %v3581 = vld [vmem:[%s3579 + $0x8] sm:$0xff]
        %v3582 = vld [vmem:[%s3579 + $0x10] sm:$0xff]
        %v3583 = vld [vmem:[%s3579 + $0x18] sm:$0xff]
        %v3584 = vld [vmem:[%s3579 + $0x20] sm:$0xff]
        %v3585 = vld [vmem:[%s3579 + $0x28] sm:$0xff]
        %v3586 = vld [vmem:[%s3579 + $0x30] sm:$0xff]
        %v3587 = vld [vmem:[%s3579 + $0x38] sm:$0xff]
        %v3588 = vld [vmem:[%s3579 + $0x40] sm:$0xff]
        %v3589 = vld [vmem:[%s3579 + $0x48] sm:$0xff]
        %v3590 = vld [vmem:[%s3579 + $0x50] sm:$0xff]
        %v3591 = vld [vmem:[%s3579 + $0x58] sm:$0xff]
        %v3592 = vld [vmem:[%s3579 + $0x60] sm:$0xff]
        %v3593 = vld [vmem:[%s3579 + $0x68] sm:$0xff]
        %v3594 = vld [vmem:[%s3579 + $0x70] sm:$0xff]
        %v3595 = vld [vmem:[%s3579 + $0x78] sm:$0xff]
        %v3596 = vld [vmem:[%s3579 + $0x80] sm:$0xff]
        %v3597 = vld [vmem:[%s3579 + $0x88] sm:$0xff]
        %v3598 = vld [vmem:[%s3579 + $0x90] sm:$0xff]
        %v3599 = vld [vmem:[%s3579 + $0x98] sm:$0xff]
        %v3600 = vld [vmem:[%s3579 + $0xa0] sm:$0xff]
        %v3601 = vld [vmem:[%s3579 + $0xa8] sm:$0xff]
        %v3602 = vld [vmem:[%s3579 + $0xb0] sm:$0xff]
        %v3603 = vld [vmem:[%s3579 + $0xb8] sm:$0xff]
        %v3604 = vld [vmem:[%s3579 + $0xc0] sm:$0xff]
        %v3605 = vld [vmem:[%s3579 + $0xc8] sm:$0xff]
        %v3606 = vld [vmem:[%s3579 + $0xd0] sm:$0xff]
        %v3607 = vld [vmem:[%s3579 + $0xd8] sm:$0xff]
        %v3608 = vld [vmem:[%s3579 + $0xe0] sm:$0xff]
        %v3609 = vld [vmem:[%s3579 + $0xe8] sm:$0xff]
        %v3610 = vld [vmem:[%s3579 + $0xf0] sm:$0xff]
        %v3611 = vld [vmem:[%s3579 + $0xf8] sm:$0xff]
        %v3612 = vld [vmem:[%s3579 + $0x100] sm:$0xff]
        %v3613 = vld [vmem:[%s3579 + $0x108] sm:$0xff]
        %v3614 = vld [vmem:[%s3579 + $0x110] sm:$0xff]
        %v3615 = vld [vmem:[%s3579 + $0x118] sm:$0xff]
        %v3616 = vld [vmem:[%s3579 + $0x120] sm:$0xff]
        %v3617 = vld [vmem:[%s3579 + $0x128] sm:$0xff]
        %v3618 = vld [vmem:[%s3579 + $0x130] sm:$0xff]
        %v3619 = vld [vmem:[%s3579 + $0x138] sm:$0xff]
        %v3620 = vld [vmem:[%s3579 + $0x140] sm:$0xff]
        %v3621 = vld [vmem:[%s3579 + $0x148] sm:$0xff]
        %v3622 = vld [vmem:[%s3579 + $0x150] sm:$0xff]
        %v3623 = vld [vmem:[%s3579 + $0x158] sm:$0xff]
        %v3624 = vld [vmem:[%s3579 + $0x160] sm:$0xff]
        %v3625 = vld [vmem:[%s3579 + $0x168] sm:$0xff]
        %v3626 = vld [vmem:[%s3579 + $0x170] sm:$0xff]
        %v3627 = vld [vmem:[%s3579 + $0x178] sm:$0xff]
        %v3628 = vld [vmem:[%s3579 + $0x180] sm:$0xff]
        %v3629 = vld [vmem:[%s3579 + $0x188] sm:$0xff]
        %v3630 = vld [vmem:[%s3579 + $0x190] sm:$0xff]
        %v3631 = vld [vmem:[%s3579 + $0x198] sm:$0xff]
        %v3632 = vld [vmem:[%s3579 + $0x1a0] sm:$0xff]
        %v3633 = vld [vmem:[%s3579 + $0x1a8] sm:$0xff]
        %v3634 = vld [vmem:[%s3579 + $0x1b0] sm:$0xff]
        %v3635 = vld [vmem:[%s3579 + $0x1b8] sm:$0xff]
        %v3636 = vld [vmem:[%s3579 + $0x1c0] sm:$0xff]
        %v3637 = vld [vmem:[%s3579 + $0x1c8] sm:$0xff]
        %v3638 = vld [vmem:[%s3579 + $0x1d0] sm:$0xff]
        %v3639 = vld [vmem:[%s3579 + $0x1d8] sm:$0xff]
        %v3640 = vld [vmem:[%s3579 + $0x1e0] sm:$0xff]
        %v3641 = vld [vmem:[%s3579 + $0x1e8] sm:$0xff]
        %v3642 = vld [vmem:[%s3579 + $0x1f0] sm:$0xff]
        %v3643 = vld [vmem:[%s3579 + $0x1f8] sm:$0xff]
        %v3644 = vld [vmem:[%s3579 + $0x200] sm:$0xff]
        %v3645 = vld [vmem:[%s3579 + $0x208] sm:$0xff]
        %v3646 = vld [vmem:[%s3579 + $0x210] sm:$0xff]
        %v3647 = vld [vmem:[%s3579 + $0x218] sm:$0xff]
        %v3648 = vld [vmem:[%s3579 + $0x220] sm:$0xff]
        %v3649 = vld [vmem:[%s3579 + $0x228] sm:$0xff]
        %v3650 = vld [vmem:[%s3579 + $0x230] sm:$0xff]
        %v3651 = vld [vmem:[%s3579 + $0x238] sm:$0xff]
        %v3652 = vld [vmem:[%s3579 + $0x240] sm:$0xff]
        %v3653 = vld [vmem:[%s3579 + $0x248] sm:$0xff]
        %v3654 = vld [vmem:[%s3579 + $0x250] sm:$0xff]
        %v3655 = vld [vmem:[%s3579 + $0x258] sm:$0xff]
        %v3656 = vld [vmem:[%s3579 + $0x260] sm:$0xff]
        %v3657 = vld [vmem:[%s3579 + $0x268] sm:$0xff]
        %v3658 = vld [vmem:[%s3579 + $0x270] sm:$0xff]
        %v3659 = vld [vmem:[%s3579 + $0x278] sm:$0xff]
        %v3660 = vld [vmem:[%s3579 + $0x280] sm:$0xff]
        %v3661 = vld [vmem:[%s3579 + $0x288] sm:$0xff]
        %v3662 = vld [vmem:[%s3579 + $0x290] sm:$0xff]
        %v3663 = vld [vmem:[%s3579 + $0x298] sm:$0xff]
        %v3664 = vld [vmem:[%s3579 + $0x2a0] sm:$0xff]
        %v3665 = vld [vmem:[%s3579 + $0x2a8] sm:$0xff]
        %v3666 = vld [vmem:[%s3579 + $0x2b0] sm:$0xff]
        %v3667 = vld [vmem:[%s3579 + $0x2b8] sm:$0xff]
        %v3668 = vld [vmem:[%s3579 + $0x2c0] sm:$0xff]
        %v3669 = vld [vmem:[%s3579 + $0x2c8] sm:$0xff]
        %v3670 = vld [vmem:[%s3579 + $0x2d0] sm:$0xff]
        %v3671 = vld [vmem:[%s3579 + $0x2d8] sm:$0xff]
        %v3672 = vld [vmem:[%s3579 + $0x2e0] sm:$0xff]
        %v3673 = vld [vmem:[%s3579 + $0x2e8] sm:$0xff]
        %v3674 = vld [vmem:[%s3579 + $0x2f0] sm:$0xff]
        %v3675 = vld [vmem:[%s3579 + $0x2f8] sm:$0xff]
        %v3676 = vpack.c.b16 %v3311, %v3309
        %v3677 = vpack.c.b16 %v3312, %v3310
        %v3678 = vpack.c.b16 %v3543, %v3539
        %v3679 = vpack.c.b16 %v3544, %v3540
        %v3680 = vpack.c.b16 %v3545, %v3541
        %v3681 = vpack.c.b16 %v3546, %v3542
        %v3682 = vpack.c.b16 %v3315, %v3313
        %v3683 = vpack.c.b16 %v3316, %v3314
        %v3684 = vpack.c.b16 %v3551, %v3547
        %v3685 = vpack.c.b16 %v3552, %v3548
        %v3686 = vpack.c.b16 %v3553, %v3549
        %v3687 = vpack.c.b16 %v3554, %v3550
        %v3688 = vpack.c.b16 %v3319, %v3317
        %v3689 = vpack.c.b16 %v3320, %v3318
        %v3690 = vpack.c.b16 %v3559, %v3555
        %v3691 = vpack.c.b16 %v3560, %v3556
        %v3692 = vpack.c.b16 %v3561, %v3557
        %v3693 = vpack.c.b16 %v3562, %v3558
        %v3694 = vpack.c.b16 %v3323, %v3321
        %v3695 = vpack.c.b16 %v3324, %v3322
        %v3696 = vpack.c.b16 %v3567, %v3563
        %v3697 = vpack.c.b16 %v3568, %v3564
        %v3698 = vpack.c.b16 %v3569, %v3565
        %v3699 = vpack.c.b16 %v3570, %v3566
        %v3700 = vpack.c.b16 %v3327, %v3325
        %v3701 = vpack.c.b16 %v3328, %v3326
        %v3702 = vpack.c.b16 %v3575, %v3571
        %v3703 = vpack.c.b16 %v3576, %v3572
        %v3704 = vpack.c.b16 %v3577, %v3573
        %v3705 = vpack.c.b16 %v3578, %v3574
        %v3832 = vunpack.c.l.b16 %v3580
        %v3833 = vunpack.c.h.b16 %v3580
        %v3834 = vunpack.c.l.b16 %v3581
        %v3835 = vunpack.c.h.b16 %v3581
        %v3836 = vunpack.c.l.b16 %v3582
        %v3837 = vunpack.c.h.b16 %v3582
        %v3838 = vunpack.c.l.b16 %v3583
        %v3839 = vunpack.c.h.b16 %v3583
        %v3840 = vunpack.c.l.b16 %v3584
        %v3841 = vunpack.c.h.b16 %v3584
        %v3842 = vunpack.c.l.b16 %v3585
        %v3843 = vunpack.c.h.b16 %v3585
        %v3844 = vunpack.c.l.b16 %v3586
        %v3845 = vunpack.c.h.b16 %v3586
        %v3846 = vunpack.c.l.b16 %v3587
        %v3847 = vunpack.c.h.b16 %v3587
        %v3848 = vunpack.c.l.b16 %v3588
        %v3849 = vunpack.c.h.b16 %v3588
        %v3850 = vunpack.c.l.b16 %v3589
        %v3851 = vunpack.c.h.b16 %v3589
        %v3852 = vunpack.c.l.b16 %v3590
        %v3853 = vunpack.c.h.b16 %v3590
        %v3854 = vunpack.c.l.b16 %v3591
        %v3855 = vunpack.c.h.b16 %v3591
        %v3856 = vunpack.c.l.b16 %v3592
        %v3857 = vunpack.c.h.b16 %v3592
        %v3858 = vunpack.c.l.b16 %v3593
        %v3859 = vunpack.c.h.b16 %v3593
        %v3860 = vunpack.c.l.b16 %v3594
        %v3861 = vunpack.c.h.b16 %v3594
        %v3862 = vunpack.c.l.b16 %v3595
        %v3863 = vunpack.c.h.b16 %v3595
        %v3864 = vunpack.c.l.b16 %v3596
        %v3865 = vunpack.c.h.b16 %v3596
        %v3866 = vunpack.c.l.b16 %v3597
        %v3867 = vunpack.c.h.b16 %v3597
        %v3868 = vunpack.c.l.b16 %v3598
        %v3869 = vunpack.c.h.b16 %v3598
        %v3870 = vunpack.c.l.b16 %v3599
        %v3871 = vunpack.c.h.b16 %v3599
        %v3872 = vunpack.c.l.b16 %v3600
        %v3873 = vunpack.c.h.b16 %v3600
        %v3874 = vunpack.c.l.b16 %v3601
        %v3875 = vunpack.c.h.b16 %v3601
        %v3876 = vunpack.c.l.b16 %v3602
        %v3877 = vunpack.c.h.b16 %v3602
        %v3878 = vunpack.c.l.b16 %v3603
        %v3879 = vunpack.c.h.b16 %v3603
        %v3880 = vunpack.c.l.b16 %v3604
        %v3881 = vunpack.c.h.b16 %v3604
        %v3882 = vunpack.c.l.b16 %v3605
        %v3883 = vunpack.c.h.b16 %v3605
        %v3884 = vunpack.c.l.b16 %v3606
        %v3885 = vunpack.c.h.b16 %v3606
        %v3886 = vunpack.c.l.b16 %v3607
        %v3887 = vunpack.c.h.b16 %v3607
        %v3888 = vunpack.c.l.b16 %v3608
        %v3889 = vunpack.c.h.b16 %v3608
        %v3890 = vunpack.c.l.b16 %v3609
        %v3891 = vunpack.c.h.b16 %v3609
        %v3892 = vunpack.c.l.b16 %v3610
        %v3893 = vunpack.c.h.b16 %v3610
        %v3894 = vunpack.c.l.b16 %v3611
        %v3895 = vunpack.c.h.b16 %v3611
        %v3896 = vunpack.c.l.b16 %v3612
        %v3897 = vunpack.c.h.b16 %v3612
        %v3898 = vunpack.c.l.b16 %v3613
        %v3899 = vunpack.c.h.b16 %v3613
        %v3900 = vunpack.c.l.b16 %v3614
        %v3901 = vunpack.c.h.b16 %v3614
        %v3902 = vunpack.c.l.b16 %v3615
        %v3903 = vunpack.c.h.b16 %v3615
        %v3904 = vunpack.c.l.b16 %v3616
        %v3905 = vunpack.c.h.b16 %v3616
        %v3906 = vunpack.c.l.b16 %v3617
        %v3907 = vunpack.c.h.b16 %v3617
        %v3908 = vunpack.c.l.b16 %v3618
        %v3909 = vunpack.c.h.b16 %v3618
        %v3910 = vunpack.c.l.b16 %v3619
        %v3911 = vunpack.c.h.b16 %v3619
        %v3912 = vunpack.c.l.b16 %v3620
        %v3913 = vunpack.c.h.b16 %v3620
        %v3914 = vunpack.c.l.b16 %v3621
        %v3915 = vunpack.c.h.b16 %v3621
        %v3916 = vunpack.c.l.b16 %v3622
        %v3917 = vunpack.c.h.b16 %v3622
        %v3918 = vunpack.c.l.b16 %v3623
        %v3919 = vunpack.c.h.b16 %v3623
        %v3920 = vunpack.c.l.b16 %v3624
        %v3921 = vunpack.c.h.b16 %v3624
        %v3922 = vunpack.c.l.b16 %v3625
        %v3923 = vunpack.c.h.b16 %v3625
        %v3924 = vunpack.c.l.b16 %v3626
        %v3925 = vunpack.c.h.b16 %v3626
        %v3926 = vunpack.c.l.b16 %v3627
        %v3927 = vunpack.c.h.b16 %v3627
        %v3928 = vunpack.c.l.b16 %v3628
        %v3929 = vunpack.c.h.b16 %v3628
        %v3930 = vunpack.c.l.b16 %v3629
        %v3931 = vunpack.c.h.b16 %v3629
        %v3932 = vunpack.c.l.b16 %v3630
        %v3933 = vunpack.c.h.b16 %v3630
        %v3934 = vunpack.c.l.b16 %v3631
        %v3935 = vunpack.c.h.b16 %v3631
        %v3936 = vunpack.c.l.b16 %v3632
        %v3937 = vunpack.c.h.b16 %v3632
        %v3938 = vunpack.c.l.b16 %v3633
        %v3939 = vunpack.c.h.b16 %v3633
        %v3940 = vunpack.c.l.b16 %v3634
        %v3941 = vunpack.c.h.b16 %v3634
        %v3942 = vunpack.c.l.b16 %v3635
        %v3943 = vunpack.c.h.b16 %v3635
        %v3944 = vunpack.c.l.b16 %v3636
        %v3945 = vunpack.c.h.b16 %v3636
        %v3946 = vunpack.c.l.b16 %v3637
        %v3947 = vunpack.c.h.b16 %v3637
        %v3948 = vunpack.c.l.b16 %v3638
        %v3949 = vunpack.c.h.b16 %v3638
        %v3950 = vunpack.c.l.b16 %v3639
        %v3951 = vunpack.c.h.b16 %v3639
        %v3952 = vunpack.c.l.b16 %v3640
        %v3953 = vunpack.c.h.b16 %v3640
        %v3954 = vunpack.c.l.b16 %v3641
        %v3955 = vunpack.c.h.b16 %v3641
        %v3956 = vunpack.c.l.b16 %v3642
        %v3957 = vunpack.c.h.b16 %v3642
        %v3958 = vunpack.c.l.b16 %v3643
        %v3959 = vunpack.c.h.b16 %v3643
        %v3960 = vunpack.c.l.b16 %v3644
        %v3961 = vunpack.c.h.b16 %v3644
        %v3962 = vunpack.c.l.b16 %v3645
        %v3963 = vunpack.c.h.b16 %v3645
        %v3964 = vunpack.c.l.b16 %v3646
        %v3965 = vunpack.c.h.b16 %v3646
        %v3966 = vunpack.c.l.b16 %v3647
        %v3967 = vunpack.c.h.b16 %v3647
        %v3968 = vunpack.c.l.b16 %v3648
        %v3969 = vunpack.c.h.b16 %v3648
        %v3970 = vunpack.c.l.b16 %v3649
        %v3971 = vunpack.c.h.b16 %v3649
        %v3972 = vunpack.c.l.b16 %v3650
        %v3973 = vunpack.c.h.b16 %v3650
        %v3974 = vunpack.c.l.b16 %v3651
        %v3975 = vunpack.c.h.b16 %v3651
        %v3976 = vunpack.c.l.b16 %v3652
        %v3977 = vunpack.c.h.b16 %v3652
        %v3978 = vunpack.c.l.b16 %v3653
        %v3979 = vunpack.c.h.b16 %v3653
        %v3980 = vunpack.c.l.b16 %v3654
        %v3981 = vunpack.c.h.b16 %v3654
        %v3982 = vunpack.c.l.b16 %v3655
        %v3983 = vunpack.c.h.b16 %v3655
        %v3984 = vunpack.c.l.b16 %v3656
        %v3985 = vunpack.c.h.b16 %v3656
        %v3986 = vunpack.c.l.b16 %v3657
        %v3987 = vunpack.c.h.b16 %v3657
        %v3988 = vunpack.c.l.b16 %v3658
        %v3989 = vunpack.c.h.b16 %v3658
        %v3990 = vunpack.c.l.b16 %v3659
        %v3991 = vunpack.c.h.b16 %v3659
        %v3992 = vunpack.c.l.b16 %v3660
        %v3993 = vunpack.c.h.b16 %v3660
        %v3994 = vunpack.c.l.b16 %v3661
        %v3995 = vunpack.c.h.b16 %v3661
        %v3996 = vunpack.c.l.b16 %v3662
        %v3997 = vunpack.c.h.b16 %v3662
        %v3998 = vunpack.c.l.b16 %v3663
        %v3999 = vunpack.c.h.b16 %v3663
        %v4000 = vunpack.c.l.b16 %v3664
        %v4001 = vunpack.c.h.b16 %v3664
        %v4002 = vunpack.c.l.b16 %v3665
        %v4003 = vunpack.c.h.b16 %v3665
        %v4004 = vunpack.c.l.b16 %v3666
        %v4005 = vunpack.c.h.b16 %v3666
        %v4006 = vunpack.c.l.b16 %v3667
        %v4007 = vunpack.c.h.b16 %v3667
        %v4008 = vunpack.c.l.b16 %v3668
        %v4009 = vunpack.c.h.b16 %v3668
        %v4010 = vunpack.c.l.b16 %v3669
        %v4011 = vunpack.c.h.b16 %v3669
        %v4012 = vunpack.c.l.b16 %v3670
        %v4013 = vunpack.c.h.b16 %v3670
        %v4014 = vunpack.c.l.b16 %v3671
        %v4015 = vunpack.c.h.b16 %v3671
        %v4016 = vunpack.c.l.b16 %v3672
        %v4017 = vunpack.c.h.b16 %v3672
        %v4018 = vunpack.c.l.b16 %v3673
        %v4019 = vunpack.c.h.b16 %v3673
        %v4020 = vunpack.c.l.b16 %v3674
        %v4021 = vunpack.c.h.b16 %v3674
        %v4022 = vunpack.c.l.b16 %v3675
        %v4023 = vunpack.c.h.b16 %v3675
        %v4024 = vpack.c.b16 %v3834, %v3832
        %v4025 = vpack.c.b16 %v3835, %v3833
        %v4026 = vpack.c.b16 %v3838, %v3836
        %v4027 = vpack.c.b16 %v3839, %v3837
        %v4028 = vpack.c.b16 %v3842, %v3840
        %v4029 = vpack.c.b16 %v3843, %v3841
        %v4030 = vpack.c.b16 %v3846, %v3844
        %v4031 = vpack.c.b16 %v3847, %v3845
        %v4032 = vpack.c.b16 %v3850, %v3848
        %v4033 = vpack.c.b16 %v3851, %v3849
        %v4034 = vpack.c.b16 %v3854, %v3852
        %v4035 = vpack.c.b16 %v3855, %v3853
        %v4036 = vpack.c.b16 %v3858, %v3856
        %v4037 = vpack.c.b16 %v3859, %v3857
        %v4038 = vpack.c.b16 %v3862, %v3860
        %v4039 = vpack.c.b16 %v3863, %v3861
        %v4040 = vpack.c.b16 %v3866, %v3864
        %v4041 = vpack.c.b16 %v3867, %v3865
        %v4042 = vpack.c.b16 %v3870, %v3868
        %v4043 = vpack.c.b16 %v3871, %v3869
        %v4044 = vpack.c.b16 %v3874, %v3872
        %v4045 = vpack.c.b16 %v3875, %v3873
        %v4046 = vpack.c.b16 %v3878, %v3876
        %v4047 = vpack.c.b16 %v3879, %v3877
        %v4048 = vpack.c.b16 %v3882, %v3880
        %v4049 = vpack.c.b16 %v3883, %v3881
        %v4050 = vpack.c.b16 %v3886, %v3884
        %v4051 = vpack.c.b16 %v3887, %v3885
        %v4052 = vpack.c.b16 %v3890, %v3888
        %v4053 = vpack.c.b16 %v3891, %v3889
        %v4054 = vpack.c.b16 %v3894, %v3892
        %v4055 = vpack.c.b16 %v3895, %v3893
        %v4056 = vpack.c.b16 %v3898, %v3896
        %v4057 = vpack.c.b16 %v3899, %v3897
        %v4058 = vpack.c.b16 %v3902, %v3900
        %v4059 = vpack.c.b16 %v3903, %v3901
        %v4060 = vpack.c.b16 %v3906, %v3904
        %v4061 = vpack.c.b16 %v3907, %v3905
        %v4062 = vpack.c.b16 %v3910, %v3908
        %v4063 = vpack.c.b16 %v3911, %v3909
        %v4064 = vpack.c.b16 %v3914, %v3912
        %v4065 = vpack.c.b16 %v3915, %v3913
        %v4066 = vpack.c.b16 %v3918, %v3916
        %v4067 = vpack.c.b16 %v3919, %v3917
        %v4068 = vpack.c.b16 %v3922, %v3920
        %v4069 = vpack.c.b16 %v3923, %v3921
        %v4070 = vpack.c.b16 %v3926, %v3924
        %v4071 = vpack.c.b16 %v3927, %v3925
        %v4072 = vpack.c.b16 %v3930, %v3928
        %v4073 = vpack.c.b16 %v3931, %v3929
        %v4074 = vpack.c.b16 %v3934, %v3932
        %v4075 = vpack.c.b16 %v3935, %v3933
        %v4076 = vpack.c.b16 %v3938, %v3936
        %v4077 = vpack.c.b16 %v3939, %v3937
        %v4078 = vpack.c.b16 %v3942, %v3940
        %v4079 = vpack.c.b16 %v3943, %v3941
        %v4080 = vpack.c.b16 %v3946, %v3944
        %v4081 = vpack.c.b16 %v3947, %v3945
        %v4082 = vpack.c.b16 %v3950, %v3948
        %v4083 = vpack.c.b16 %v3951, %v3949
        %v4084 = vpack.c.b16 %v3954, %v3952
        %v4085 = vpack.c.b16 %v3955, %v3953
        %v4086 = vpack.c.b16 %v3958, %v3956
        %v4087 = vpack.c.b16 %v3959, %v3957
        %v4088 = vpack.c.b16 %v3962, %v3960
        %v4089 = vpack.c.b16 %v3963, %v3961
        %v4090 = vpack.c.b16 %v3966, %v3964
        %v4091 = vpack.c.b16 %v3967, %v3965
        %v4092 = vpack.c.b16 %v3970, %v3968
        %v4093 = vpack.c.b16 %v3971, %v3969
        %v4094 = vpack.c.b16 %v3974, %v3972
        %v4095 = vpack.c.b16 %v3975, %v3973
        %v4096 = vpack.c.b16 %v3978, %v3976
        %v4097 = vpack.c.b16 %v3979, %v3977
        %v4098 = vpack.c.b16 %v3982, %v3980
        %v4099 = vpack.c.b16 %v3983, %v3981
        %v4100 = vpack.c.b16 %v3986, %v3984
        %v4101 = vpack.c.b16 %v3987, %v3985
        %v4102 = vpack.c.b16 %v3990, %v3988
        %v4103 = vpack.c.b16 %v3991, %v3989
        %v4104 = vpack.c.b16 %v3994, %v3992
        %v4105 = vpack.c.b16 %v3995, %v3993
        %v4106 = vpack.c.b16 %v3998, %v3996
        %v4107 = vpack.c.b16 %v3999, %v3997
        %v4108 = vpack.c.b16 %v4002, %v4000
        %v4109 = vpack.c.b16 %v4003, %v4001
        %v4110 = vpack.c.b16 %v4006, %v4004
        %v4111 = vpack.c.b16 %v4007, %v4005
        %v4112 = vpack.c.b16 %v4010, %v4008
        %v4113 = vpack.c.b16 %v4011, %v4009
        %v4114 = vpack.c.b16 %v4014, %v4012
        %v4115 = vpack.c.b16 %v4015, %v4013
        %v4116 = vpack.c.b16 %v4018, %v4016
        %v4117 = vpack.c.b16 %v4019, %v4017
        %v4118 = vpack.c.b16 %v4022, %v4020
        %v4119 = vpack.c.b16 %v4023, %v4021
        %4216 = vmatprep.subr.bf16.mxu0 %v4039
        %4217 = vmatpush1.bf16.msra.mxu0 %v4038
        %4218 = vmatprep.subr.bf16.mxu0 %v4037
        %4219 = vmatpush1.bf16.msra.mxu0 %v4036
        %4220 = vmatprep.subr.bf16.mxu0 %v4035
        %4221 = vmatpush1.bf16.msra.mxu0 %v4034
        %4222 = vmatprep.subr.bf16.mxu0 %v4033
        %4223 = vmatpush1.bf16.msra.mxu0 %v4032
        %4224 = vmatprep.subr.bf16.mxu0 %v4031
        %4225 = vmatpush1.bf16.msra.mxu0 %v4030
        %4226 = vmatprep.subr.bf16.mxu0 %v4029
        %4227 = vmatpush1.bf16.msra.mxu0 %v4028
        %4228 = vmatprep.subr.bf16.mxu0 %v4027
        %4229 = vmatpush1.bf16.msra.mxu0 %v4026
        %4230 = vmatprep.subr.bf16.mxu0 %v4025
        %4231 = vmatpush1.bf16.msra.mxu0 %v4024
        %4232 = vmatprep.subr.bf16.mxu0 %v4055
        %4233 = vmatpush2.bf16.msra.mxu0 %v4054
        %4234 = vmatprep.subr.bf16.mxu0 %v4053
        %4235 = vmatpush2.bf16.msra.mxu0 %v4052
        %4236 = vmatprep.subr.bf16.mxu0 %v4051
        %4237 = vmatpush2.bf16.msra.mxu0 %v4050
        %4238 = vmatprep.subr.bf16.mxu0 %v4049
        %4239 = vmatpush2.bf16.msra.mxu0 %v4048
        %4240 = vmatprep.subr.bf16.mxu0 %v4047
        %4241 = vmatpush2.bf16.msra.mxu0 %v4046
        %4242 = vmatprep.subr.bf16.mxu0 %v4045
        %4243 = vmatpush2.bf16.msra.mxu0 %v4044
        %4244 = vmatprep.subr.bf16.mxu0 %v4043
        %4245 = vmatpush2.bf16.msra.mxu0 %v4042
        %4246 = vmatprep.subr.bf16.mxu0 %v4041
        %4247 = vmatpush2.bf16.msra.mxu0 %v4040
        %4248 = vmatprep.mubr.bf16.mxu0 %v3677
        %4249 = vmatmul.mubr.bf16.gmra.mxu0 %v3676
        %v4250 = vpop.f32.mrf.mxu0
        %v4251 = vadd.f32 0.0, %v4250
        %v4252 = vpop.f32.mrf.mxu0
        %v4253 = vadd.f32 0.0, %v4252
        %v4254 = vpop.f32.mrf.mxu0
        %v4255 = vadd.f32 0.0, %v4254
        %v4256 = vpop.f32.mrf.mxu0
        %v4257 = vadd.f32 0.0, %v4256
        %4258 = vmatprep.mubr.bf16.mxu0 %v3683
        %4259 = vmatmul.mubr.bf16.gmra.mxu0 %v3682
        %v4260 = vpop.f32.mrf.mxu0
        %v4261 = vadd.f32 0.0, %v4260
        %v4262 = vpop.f32.mrf.mxu0
        %v4263 = vadd.f32 0.0, %v4262
        %v4264 = vpop.f32.mrf.mxu0
        %v4265 = vadd.f32 0.0, %v4264
        %v4266 = vpop.f32.mrf.mxu0
        %v4267 = vadd.f32 0.0, %v4266
        %4268 = vmatprep.mubr.bf16.mxu0 %v3689
        %4269 = vmatmul.mubr.bf16.gmra.mxu0 %v3688
        %v4270 = vpop.f32.mrf.mxu0
        %v4271 = vadd.f32 0.0, %v4270
        %v4272 = vpop.f32.mrf.mxu0
        %v4273 = vadd.f32 0.0, %v4272
        %v4274 = vpop.f32.mrf.mxu0
        %v4275 = vadd.f32 0.0, %v4274
        %v4276 = vpop.f32.mrf.mxu0
        %v4277 = vadd.f32 0.0, %v4276
        %4278 = vmatprep.mubr.bf16.mxu0 %v3695
        %4279 = vmatmul.mubr.bf16.gmra.mxu0 %v3694
        %v4280 = vpop.f32.mrf.mxu0
        %v4281 = vadd.f32 0.0, %v4280
        %v4282 = vpop.f32.mrf.mxu0
        %v4283 = vadd.f32 0.0, %v4282
        %v4284 = vpop.f32.mrf.mxu0
        %v4285 = vadd.f32 0.0, %v4284
        %v4286 = vpop.f32.mrf.mxu0
        %v4287 = vadd.f32 0.0, %v4286
        %4288 = vmatprep.mubr.bf16.mxu0 %v3701
        %4289 = vmatmul.mubr.bf16.gmra.mxu0 %v3700
        %v4290 = vpop.f32.mrf.mxu0
        %v4291 = vadd.f32 0.0, %v4290
        %v4292 = vpop.f32.mrf.mxu0
        %v4293 = vadd.f32 0.0, %v4292
        %v4294 = vpop.f32.mrf.mxu0
        %v4295 = vadd.f32 0.0, %v4294
        %v4296 = vpop.f32.mrf.mxu0
        %v4297 = vadd.f32 0.0, %v4296
        %4298 = vdwg.mxu0
        %4299 = vmatprep.subr.bf16.mxu0 %v4071
        %4300 = vmatpush1.bf16.msra.mxu0 %v4070
        %4301 = vmatprep.subr.bf16.mxu0 %v4069
        %4302 = vmatpush1.bf16.msra.mxu0 %v4068
        %4303 = vmatprep.subr.bf16.mxu0 %v4067
        %4304 = vmatpush1.bf16.msra.mxu0 %v4066
        %4305 = vmatprep.subr.bf16.mxu0 %v4065
        %4306 = vmatpush1.bf16.msra.mxu0 %v4064
        %4307 = vmatprep.subr.bf16.mxu0 %v4063
        %4308 = vmatpush1.bf16.msra.mxu0 %v4062
        %4309 = vmatprep.subr.bf16.mxu0 %v4061
        %4310 = vmatpush1.bf16.msra.mxu0 %v4060
        %4311 = vmatprep.subr.bf16.mxu0 %v4059
        %4312 = vmatpush1.bf16.msra.mxu0 %v4058
        %4313 = vmatprep.subr.bf16.mxu0 %v4057
        %4314 = vmatpush1.bf16.msra.mxu0 %v4056
        %4315 = vmatprep.subr.bf16.mxu0 %v4087
        %4316 = vmatpush2.bf16.msra.mxu0 %v4086
        %4317 = vmatprep.subr.bf16.mxu0 %v4085
        %4318 = vmatpush2.bf16.msra.mxu0 %v4084
        %4319 = vmatprep.subr.bf16.mxu0 %v4083
        %4320 = vmatpush2.bf16.msra.mxu0 %v4082
        %4321 = vmatprep.subr.bf16.mxu0 %v4081
        %4322 = vmatpush2.bf16.msra.mxu0 %v4080
        %4323 = vmatprep.subr.bf16.mxu0 %v4079
        %4324 = vmatpush2.bf16.msra.mxu0 %v4078
        %4325 = vmatprep.subr.bf16.mxu0 %v4077
        %4326 = vmatpush2.bf16.msra.mxu0 %v4076
        %4327 = vmatprep.subr.bf16.mxu0 %v4075
        %4328 = vmatpush2.bf16.msra.mxu0 %v4074
        %4329 = vmatprep.subr.bf16.mxu0 %v4073
        %4330 = vmatpush2.bf16.msra.mxu0 %v4072
        %4331 = vmatprep.mubr.bf16.mxu0 %v3679
        %4332 = vmatmul.mubr.bf16.gmra.mxu0 %v3678
        %v4333 = vpop.f32.mrf.mxu0
        %v4334 = vadd.f32 %v4251, %v4333
        %v4335 = vpop.f32.mrf.mxu0
        %v4336 = vadd.f32 %v4253, %v4335
        %v4337 = vpop.f32.mrf.mxu0
        %v4338 = vadd.f32 %v4255, %v4337
        %v4339 = vpop.f32.mrf.mxu0
        %v4340 = vadd.f32 %v4257, %v4339
        %4341 = vmatprep.mubr.bf16.mxu0 %v3685
        %4342 = vmatmul.mubr.bf16.gmra.mxu0 %v3684
        %v4343 = vpop.f32.mrf.mxu0
        %v4344 = vadd.f32 %v4261, %v4343
        %v4345 = vpop.f32.mrf.mxu0
        %v4346 = vadd.f32 %v4263, %v4345
        %v4347 = vpop.f32.mrf.mxu0
        %v4348 = vadd.f32 %v4265, %v4347
        %v4349 = vpop.f32.mrf.mxu0
        %v4350 = vadd.f32 %v4267, %v4349
        %4351 = vmatprep.mubr.bf16.mxu0 %v3691
        %4352 = vmatmul.mubr.bf16.gmra.mxu0 %v3690
        %v4353 = vpop.f32.mrf.mxu0
        %v4354 = vadd.f32 %v4271, %v4353
        %v4355 = vpop.f32.mrf.mxu0
        %v4356 = vadd.f32 %v4273, %v4355
        %v4357 = vpop.f32.mrf.mxu0
        %v4358 = vadd.f32 %v4275, %v4357
        %v4359 = vpop.f32.mrf.mxu0
        %v4360 = vadd.f32 %v4277, %v4359
        %4361 = vmatprep.mubr.bf16.mxu0 %v3697
        %4362 = vmatmul.mubr.bf16.gmra.mxu0 %v3696
        %v4363 = vpop.f32.mrf.mxu0
        %v4364 = vadd.f32 %v4281, %v4363
        %v4365 = vpop.f32.mrf.mxu0
        %v4366 = vadd.f32 %v4283, %v4365
        %v4367 = vpop.f32.mrf.mxu0
        %v4368 = vadd.f32 %v4285, %v4367
        %v4369 = vpop.f32.mrf.mxu0
        %v4370 = vadd.f32 %v4287, %v4369
        %4371 = vmatprep.mubr.bf16.mxu0 %v3703
        %4372 = vmatmul.mubr.bf16.gmra.mxu0 %v3702
        %v4373 = vpop.f32.mrf.mxu0
        %v4374 = vadd.f32 %v4291, %v4373
        %v4375 = vpop.f32.mrf.mxu0
        %v4376 = vadd.f32 %v4293, %v4375
        %v4377 = vpop.f32.mrf.mxu0
        %v4378 = vadd.f32 %v4295, %v4377
        %v4379 = vpop.f32.mrf.mxu0
        %v4380 = vadd.f32 %v4297, %v4379
        %4381 = vdwg.mxu0
        %4382 = vmatprep.subr.bf16.mxu0 %v4103
        %4383 = vmatpush1.bf16.msra.mxu0 %v4102
        %4384 = vmatprep.subr.bf16.mxu0 %v4101
        %4385 = vmatpush1.bf16.msra.mxu0 %v4100
        %4386 = vmatprep.subr.bf16.mxu0 %v4099
        %4387 = vmatpush1.bf16.msra.mxu0 %v4098
        %4388 = vmatprep.subr.bf16.mxu0 %v4097
        %4389 = vmatpush1.bf16.msra.mxu0 %v4096
        %4390 = vmatprep.subr.bf16.mxu0 %v4095
        %4391 = vmatpush1.bf16.msra.mxu0 %v4094
        %4392 = vmatprep.subr.bf16.mxu0 %v4093
        %4393 = vmatpush1.bf16.msra.mxu0 %v4092
        %4394 = vmatprep.subr.bf16.mxu0 %v4091
        %4395 = vmatpush1.bf16.msra.mxu0 %v4090
        %4396 = vmatprep.subr.bf16.mxu0 %v4089
        %4397 = vmatpush1.bf16.msra.mxu0 %v4088
        %4398 = vmatprep.subr.bf16.mxu0 %v4119
        %4399 = vmatpush2.bf16.msra.mxu0 %v4118
        %4400 = vmatprep.subr.bf16.mxu0 %v4117
        %4401 = vmatpush2.bf16.msra.mxu0 %v4116
        %4402 = vmatprep.subr.bf16.mxu0 %v4115
        %4403 = vmatpush2.bf16.msra.mxu0 %v4114
        %4404 = vmatprep.subr.bf16.mxu0 %v4113
        %4405 = vmatpush2.bf16.msra.mxu0 %v4112
        %4406 = vmatprep.subr.bf16.mxu0 %v4111
        %4407 = vmatpush2.bf16.msra.mxu0 %v4110
        %4408 = vmatprep.subr.bf16.mxu0 %v4109
        %4409 = vmatpush2.bf16.msra.mxu0 %v4108
        %4410 = vmatprep.subr.bf16.mxu0 %v4107
        %4411 = vmatpush2.bf16.msra.mxu0 %v4106
        %4412 = vmatprep.subr.bf16.mxu0 %v4105
        %4413 = vmatpush2.bf16.msra.mxu0 %v4104
        %4414 = vmatprep.mubr.bf16.mxu0 %v3681
        %4415 = vmatmul.mubr.bf16.gmra.mxu0 %v3680
        %v4416 = vpop.f32.mrf.mxu0
        %v4417 = vadd.f32 %v4334, %v4416
        %v4418 = vpop.f32.mrf.mxu0
        %v4419 = vadd.f32 %v4336, %v4418
        %v4420 = vpop.f32.mrf.mxu0
        %v4421 = vadd.f32 %v4338, %v4420
        %v4422 = vpop.f32.mrf.mxu0
        %v4423 = vadd.f32 %v4340, %v4422
        %4424 = vmatprep.mubr.bf16.mxu0 %v3687
        %4425 = vmatmul.mubr.bf16.gmra.mxu0 %v3686
        %v4426 = vpop.f32.mrf.mxu0
        %v4427 = vadd.f32 %v4344, %v4426
        %v4428 = vpop.f32.mrf.mxu0
        %v4429 = vadd.f32 %v4346, %v4428
        %v4430 = vpop.f32.mrf.mxu0
        %v4431 = vadd.f32 %v4348, %v4430
        %v4432 = vpop.f32.mrf.mxu0
        %v4433 = vadd.f32 %v4350, %v4432
        %4434 = vmatprep.mubr.bf16.mxu0 %v3693
        %4435 = vmatmul.mubr.bf16.gmra.mxu0 %v3692
        %v4436 = vpop.f32.mrf.mxu0
        %v4437 = vadd.f32 %v4354, %v4436
        %v4438 = vpop.f32.mrf.mxu0
        %v4439 = vadd.f32 %v4356, %v4438
        %v4440 = vpop.f32.mrf.mxu0
        %v4441 = vadd.f32 %v4358, %v4440
        %v4442 = vpop.f32.mrf.mxu0
        %v4443 = vadd.f32 %v4360, %v4442
        %4444 = vmatprep.mubr.bf16.mxu0 %v3699
        %4445 = vmatmul.mubr.bf16.gmra.mxu0 %v3698
        %v4446 = vpop.f32.mrf.mxu0
        %v4447 = vadd.f32 %v4364, %v4446
        %v4448 = vpop.f32.mrf.mxu0
        %v4449 = vadd.f32 %v4366, %v4448
        %v4450 = vpop.f32.mrf.mxu0
        %v4451 = vadd.f32 %v4368, %v4450
        %v4452 = vpop.f32.mrf.mxu0
        %v4453 = vadd.f32 %v4370, %v4452
        %4454 = vmatprep.mubr.bf16.mxu0 %v3705
        %4455 = vmatmul.mubr.bf16.gmra.mxu0 %v3704
        %v4456 = vpop.f32.mrf.mxu0
        %v4457 = vadd.f32 %v4374, %v4456
        %v4458 = vpop.f32.mrf.mxu0
        %v4459 = vadd.f32 %v4376, %v4458
        %v4460 = vpop.f32.mrf.mxu0
        %v4461 = vadd.f32 %v4378, %v4460
        %v4462 = vpop.f32.mrf.mxu0
        %v4463 = vadd.f32 %v4380, %v4462
        %4464 = vdwg.mxu0
        %v4465 = vadd.f32 %v3231, %v4417
        %v4466 = vadd.f32 %v3233, %v4419
        %v4467 = vadd.f32 %v3235, %v4421
        %v4468 = vadd.f32 %v3237, %v4423
        %v4469 = vadd.f32 %v3241, %v4427
        %v4470 = vadd.f32 %v3243, %v4429
        %v4471 = vadd.f32 %v3245, %v4431
        %v4472 = vadd.f32 %v3247, %v4433
        %v4473 = vadd.f32 %v3251, %v4437
        %v4474 = vadd.f32 %v3253, %v4439
        %v4475 = vadd.f32 %v3255, %v4441
        %v4476 = vadd.f32 %v3257, %v4443
        %v4477 = vadd.f32 %v3261, %v4447
        %v4478 = vadd.f32 %v3263, %v4449
        %v4479 = vadd.f32 %v3265, %v4451
        %v4480 = vadd.f32 %v3267, %v4453
        %v4481 = vadd.f32 %v3271, %v4457
        %v4482 = vadd.f32 %v3273, %v4459
        %v4483 = vadd.f32 %v3275, %v4461
        %v4484 = vadd.f32 %v3277, %v4463
        %v4485 = vld [vmem:[%s4] sm:$0x3]
        %v4487 = vlaneseq
        %v4488 = vshrl.u32 %v4487, 7
        %v4489 = vsub.s32 0, %v4488
        %v4490 = vrot.slane %v4485, %v4489
        %v4491 = vlaneseq
        %v4492 = vshrl.u32 %v4491, 7
        %v4493 = vsub.s32 1, %v4492
        %v4494 = vrot.slane %v4485, %v4493
        %v4497 = vmul.f32 %v4465, %v4490
        %v4498 = vmul.f32 %v4466, %v4494
        %v4499 = vmul.f32 %v4467, %v4490
        %v4500 = vmul.f32 %v4468, %v4494
        %v4501 = vmul.f32 %v4469, %v4490
        %v4502 = vmul.f32 %v4470, %v4494
        %v4503 = vmul.f32 %v4471, %v4490
        %v4504 = vmul.f32 %v4472, %v4494
        %v4505 = vmul.f32 %v4473, %v4490
        %v4506 = vmul.f32 %v4474, %v4494
        %v4507 = vmul.f32 %v4475, %v4490
        %v4508 = vmul.f32 %v4476, %v4494
        %v4509 = vmul.f32 %v4477, %v4490
        %v4510 = vmul.f32 %v4478, %v4494
        %v4511 = vmul.f32 %v4479, %v4490
        %v4512 = vmul.f32 %v4480, %v4494
        %v4513 = vmul.f32 %v4481, %v4490
        %v4514 = vmul.f32 %v4482, %v4494
        %v4515 = vmul.f32 %v4483, %v4490
        %v4516 = vmul.f32 %v4484, %v4494
        %v4517 = vld [vmem:[%s5] sm:$0x3]
        %v4519 = vlaneseq
        %v4520 = vshrl.u32 %v4519, 7
        %v4521 = vsub.s32 0, %v4520
        %v4522 = vrot.slane %v4517, %v4521
        %v4523 = vlaneseq
        %v4524 = vshrl.u32 %v4523, 7
        %v4525 = vsub.s32 1, %v4524
        %v4526 = vrot.slane %v4517, %v4525
        %v4529 = vadd.f32 %v4497, %v4522
        %v4530 = vadd.f32 %v4498, %v4526
        %v4531 = vadd.f32 %v4499, %v4522
        %v4532 = vadd.f32 %v4500, %v4526
        %v4533 = vadd.f32 %v4501, %v4522
        %v4534 = vadd.f32 %v4502, %v4526
        %v4535 = vadd.f32 %v4503, %v4522
        %v4536 = vadd.f32 %v4504, %v4526
        %v4537 = vadd.f32 %v4505, %v4522
        %v4538 = vadd.f32 %v4506, %v4526
        %v4539 = vadd.f32 %v4507, %v4522
        %v4540 = vadd.f32 %v4508, %v4526
        %v4541 = vadd.f32 %v4509, %v4522
        %v4542 = vadd.f32 %v4510, %v4526
        %v4543 = vadd.f32 %v4511, %v4522
        %v4544 = vadd.f32 %v4512, %v4526
        %v4545 = vadd.f32 %v4513, %v4522
        %v4546 = vadd.f32 %v4514, %v4526
        %v4547 = vadd.f32 %v4515, %v4522
        %v4548 = vadd.f32 %v4516, %v4526
        %v4549 = vmax.f32 %v4529, 0.0
        %v4550 = vmax.f32 %v4530, 0.0
        %v4551 = vmax.f32 %v4531, 0.0
        %v4552 = vmax.f32 %v4532, 0.0
        %v4553 = vmax.f32 %v4533, 0.0
        %v4554 = vmax.f32 %v4534, 0.0
        %v4555 = vmax.f32 %v4535, 0.0
        %v4556 = vmax.f32 %v4536, 0.0
        %v4557 = vmax.f32 %v4537, 0.0
        %v4558 = vmax.f32 %v4538, 0.0
        %v4559 = vmax.f32 %v4539, 0.0
        %v4560 = vmax.f32 %v4540, 0.0
        %v4561 = vmax.f32 %v4541, 0.0
        %v4562 = vmax.f32 %v4542, 0.0
        %v4563 = vmax.f32 %v4543, 0.0
        %v4564 = vmax.f32 %v4544, 0.0
        %v4565 = vmax.f32 %v4545, 0.0
        %v4566 = vmax.f32 %v4546, 0.0
        %v4567 = vmax.f32 %v4547, 0.0
        %v4568 = vmax.f32 %v4548, 0.0
        %v4569 = vpack.c.bf16 %v4549, %v4549
        %v4570 = vpack.c.bf16 %v4550, %v4550
        %v4571 = vpack.c.bf16 %v4551, %v4551
        %v4572 = vpack.c.bf16 %v4552, %v4552
        %v4573 = vpack.c.bf16 %v4553, %v4553
        %v4574 = vpack.c.bf16 %v4554, %v4554
        %v4575 = vpack.c.bf16 %v4555, %v4555
        %v4576 = vpack.c.bf16 %v4556, %v4556
        %v4577 = vpack.c.bf16 %v4557, %v4557
        %v4578 = vpack.c.bf16 %v4558, %v4558
        %v4579 = vpack.c.bf16 %v4559, %v4559
        %v4580 = vpack.c.bf16 %v4560, %v4560
        %v4581 = vpack.c.bf16 %v4561, %v4561
        %v4582 = vpack.c.bf16 %v4562, %v4562
        %v4583 = vpack.c.bf16 %v4563, %v4563
        %v4584 = vpack.c.bf16 %v4564, %v4564
        %v4585 = vpack.c.bf16 %v4565, %v4565
        %v4586 = vpack.c.bf16 %v4566, %v4566
        %v4587 = vpack.c.bf16 %v4567, %v4567
        %v4588 = vpack.c.bf16 %v4568, %v4568
        %v4609 = vunpack.c.l.b16 %v4569
        %v4610 = vunpack.c.l.b16 %v4570
        %v4611 = vunpack.c.l.b16 %v4571
        %v4612 = vunpack.c.l.b16 %v4572
        %v4613 = vunpack.c.l.b16 %v4573
        %v4614 = vunpack.c.l.b16 %v4574
        %v4615 = vunpack.c.l.b16 %v4575
        %v4616 = vunpack.c.l.b16 %v4576
        %v4617 = vunpack.c.l.b16 %v4577
        %v4618 = vunpack.c.l.b16 %v4578
        %v4619 = vunpack.c.l.b16 %v4579
        %v4620 = vunpack.c.l.b16 %v4580
        %v4621 = vunpack.c.l.b16 %v4581
        %v4622 = vunpack.c.l.b16 %v4582
        %v4623 = vunpack.c.l.b16 %v4583
        %v4624 = vunpack.c.l.b16 %v4584
        %v4625 = vunpack.c.l.b16 %v4585
        %v4626 = vunpack.c.l.b16 %v4586
        %v4627 = vunpack.c.l.b16 %v4587
        %v4628 = vunpack.c.l.b16 %v4588
        %v4629 = vpack.c.b16 %v4610, %v4609
        %v4630 = vpack.c.b16 %v4612, %v4611
        %v4631 = vpack.c.b16 %v4614, %v4613
        %v4632 = vpack.c.b16 %v4616, %v4615
        %v4633 = vpack.c.b16 %v4618, %v4617
        %v4634 = vpack.c.b16 %v4620, %v4619
        %v4635 = vpack.c.b16 %v4622, %v4621
        %v4636 = vpack.c.b16 %v4624, %v4623
        %v4637 = vpack.c.b16 %v4626, %v4625
        %v4638 = vpack.c.b16 %v4628, %v4627
        %v4640 = vshrl.u32 %v4629, 16
        %v4642 = vrot.slane %v4640, 7
        %v4643 = vshll.u32 %v4629, 16
        %v4645 = vor.u32 %v4642, %v4643
        %v4646 = vrot.slane %v4642, 4
        %v4648 = vshrl.u32 %v4630, 16
        %v4650 = vrot.slane %v4648, 7
        %v4651 = vshll.u32 %v4630, 16
        %v4653 = vor.u32 %v4650, %v4651
        %v4654 = vrot.slane %v4650, 4
        %v4656 = vshrl.u32 %v4631, 16
        %v4658 = vrot.slane %v4656, 7
        %v4659 = vshll.u32 %v4631, 16
        %v4661 = vor.u32 %v4658, %v4659
        %v4662 = vrot.slane %v4658, 4
        %v4664 = vshrl.u32 %v4632, 16
        %v4666 = vrot.slane %v4664, 7
        %v4667 = vshll.u32 %v4632, 16
        %v4669 = vor.u32 %v4666, %v4667
        %v4670 = vrot.slane %v4666, 4
        %v4672 = vshrl.u32 %v4633, 16
        %v4674 = vrot.slane %v4672, 7
        %v4675 = vshll.u32 %v4633, 16
        %v4677 = vor.u32 %v4674, %v4675
        %v4678 = vrot.slane %v4674, 4
        %v4680 = vshrl.u32 %v4634, 16
        %v4682 = vrot.slane %v4680, 7
        %v4683 = vshll.u32 %v4634, 16
        %v4685 = vor.u32 %v4682, %v4683
        %v4686 = vrot.slane %v4682, 4
        %v4688 = vshrl.u32 %v4635, 16
        %v4690 = vrot.slane %v4688, 7
        %v4691 = vshll.u32 %v4635, 16
        %v4693 = vor.u32 %v4690, %v4691
        %v4694 = vrot.slane %v4690, 4
        %v4696 = vshrl.u32 %v4636, 16
        %v4698 = vrot.slane %v4696, 7
        %v4699 = vshll.u32 %v4636, 16
        %v4701 = vor.u32 %v4698, %v4699
        %v4702 = vrot.slane %v4698, 4
        %v4704 = vshrl.u32 %v4637, 16
        %v4706 = vrot.slane %v4704, 7
        %v4707 = vshll.u32 %v4637, 16
        %v4709 = vor.u32 %v4706, %v4707
        %v4710 = vrot.slane %v4706, 4
        %v4712 = vshrl.u32 %v4638, 16
        %v4714 = vrot.slane %v4712, 7
        %v4715 = vshll.u32 %v4638, 16
        %v4717 = vor.u32 %v4714, %v4715
        %v4718 = vrot.slane %v4714, 4
        %v4739 = vld [vmem:[#allocation3] sm:$0xff]
        %v4740 = vsel %vm659, %v4645, %v4739
        %4741 = vst [vmem:[#allocation3] sm:$0xff] %v4740
        %v4742 = vld [vmem:[#allocation3 + $0x8] sm:$0x11]
        %v4743 = vsel %vm669, %v4646, %v4742
        %4744 = vst [vmem:[#allocation3 + $0x8] sm:$0x11] %v4743
        %v4745 = vld [vmem:[#allocation3 + $0x10] sm:$0xff]
        %v4746 = vsel %vm659, %v4653, %v4745
        %4747 = vst [vmem:[#allocation3 + $0x10] sm:$0xff] %v4746
        %v4748 = vld [vmem:[#allocation3 + $0x18] sm:$0x11]
        %v4749 = vsel %vm669, %v4654, %v4748
        %4750 = vst [vmem:[#allocation3 + $0x18] sm:$0x11] %v4749
        %v4751 = vld [vmem:[#allocation3 + $0x20] sm:$0xff]
        %v4752 = vsel %vm659, %v4661, %v4751
        %4753 = vst [vmem:[#allocation3 + $0x20] sm:$0xff] %v4752
        %v4754 = vld [vmem:[#allocation3 + $0x28] sm:$0x11]
        %v4755 = vsel %vm669, %v4662, %v4754
        %4756 = vst [vmem:[#allocation3 + $0x28] sm:$0x11] %v4755
        %v4757 = vld [vmem:[#allocation3 + $0x30] sm:$0xff]
        %v4758 = vsel %vm659, %v4669, %v4757
        %4759 = vst [vmem:[#allocation3 + $0x30] sm:$0xff] %v4758
        %v4760 = vld [vmem:[#allocation3 + $0x38] sm:$0x11]
        %v4761 = vsel %vm669, %v4670, %v4760
        %4762 = vst [vmem:[#allocation3 + $0x38] sm:$0x11] %v4761
        %v4763 = vld [vmem:[#allocation3 + $0x40] sm:$0xff]
        %v4764 = vsel %vm659, %v4677, %v4763
        %4765 = vst [vmem:[#allocation3 + $0x40] sm:$0xff] %v4764
        %v4766 = vld [vmem:[#allocation3 + $0x48] sm:$0x11]
        %v4767 = vsel %vm669, %v4678, %v4766
        %4768 = vst [vmem:[#allocation3 + $0x48] sm:$0x11] %v4767
        %v4769 = vld [vmem:[#allocation3 + $0x50] sm:$0xff]
        %v4770 = vsel %vm659, %v4685, %v4769
        %4771 = vst [vmem:[#allocation3 + $0x50] sm:$0xff] %v4770
        %v4772 = vld [vmem:[#allocation3 + $0x58] sm:$0x11]
        %v4773 = vsel %vm669, %v4686, %v4772
        %4774 = vst [vmem:[#allocation3 + $0x58] sm:$0x11] %v4773
        %v4775 = vld [vmem:[#allocation3 + $0x60] sm:$0xff]
        %v4776 = vsel %vm659, %v4693, %v4775
        %4777 = vst [vmem:[#allocation3 + $0x60] sm:$0xff] %v4776
        %v4778 = vld [vmem:[#allocation3 + $0x68] sm:$0x11]
        %v4779 = vsel %vm669, %v4694, %v4778
        %4780 = vst [vmem:[#allocation3 + $0x68] sm:$0x11] %v4779
        %v4781 = vld [vmem:[#allocation3 + $0x70] sm:$0xff]
        %v4782 = vsel %vm659, %v4701, %v4781
        %4783 = vst [vmem:[#allocation3 + $0x70] sm:$0xff] %v4782
        %v4784 = vld [vmem:[#allocation3 + $0x78] sm:$0x11]
        %v4785 = vsel %vm669, %v4702, %v4784
        %4786 = vst [vmem:[#allocation3 + $0x78] sm:$0x11] %v4785
        %v4787 = vld [vmem:[#allocation3 + $0x80] sm:$0xff]
        %v4788 = vsel %vm659, %v4709, %v4787
        %4789 = vst [vmem:[#allocation3 + $0x80] sm:$0xff] %v4788
        %v4790 = vld [vmem:[#allocation3 + $0x88] sm:$0x11]
        %v4791 = vsel %vm669, %v4710, %v4790
        %4792 = vst [vmem:[#allocation3 + $0x88] sm:$0x11] %v4791
        %v4793 = vld [vmem:[#allocation3 + $0x90] sm:$0xff]
        %v4794 = vsel %vm659, %v4717, %v4793
        %4795 = vst [vmem:[#allocation3 + $0x90] sm:$0xff] %v4794
        %v4796 = vld [vmem:[#allocation3 + $0x98] sm:$0x11]
        %v4797 = vsel %vm669, %v4718, %v4796
        %4798 = vst [vmem:[#allocation3 + $0x98] sm:$0x11] %v4797
        %v4799 = vld [vmem:[#allocation3] sm:$0x11]
        %v4800 = vsel %vm669, 0, %v4799
        %4801 = vst [vmem:[#allocation3] sm:$0x11] %v4800
        %v4802 = vld [vmem:[#allocation3 + $0x10] sm:$0x11]
        %v4803 = vsel %vm669, 0, %v4802
        %4804 = vst [vmem:[#allocation3 + $0x10] sm:$0x11] %v4803
        %v4805 = vld [vmem:[#allocation3 + $0x20] sm:$0x11]
        %v4806 = vsel %vm669, 0, %v4805
        %4807 = vst [vmem:[#allocation3 + $0x20] sm:$0x11] %v4806
        %v4808 = vld [vmem:[#allocation3 + $0x30] sm:$0x11]
        %v4809 = vsel %vm669, 0, %v4808
        %4810 = vst [vmem:[#allocation3 + $0x30] sm:$0x11] %v4809
        %v4811 = vld [vmem:[#allocation3 + $0x40] sm:$0x11]
        %v4812 = vsel %vm669, 0, %v4811
        %4813 = vst [vmem:[#allocation3 + $0x40] sm:$0x11] %v4812
        %v4814 = vld [vmem:[#allocation3 + $0x50] sm:$0x11]
        %v4815 = vsel %vm669, 0, %v4814
        %4816 = vst [vmem:[#allocation3 + $0x50] sm:$0x11] %v4815
        %v4817 = vld [vmem:[#allocation3 + $0x60] sm:$0x11]
        %v4818 = vsel %vm669, 0, %v4817
        %4819 = vst [vmem:[#allocation3 + $0x60] sm:$0x11] %v4818
        %v4820 = vld [vmem:[#allocation3 + $0x70] sm:$0x11]
        %v4821 = vsel %vm669, 0, %v4820
        %4822 = vst [vmem:[#allocation3 + $0x70] sm:$0x11] %v4821
        %v4823 = vld [vmem:[#allocation3 + $0x80] sm:$0x11]
        %v4824 = vsel %vm669, 0, %v4823
        %4825 = vst [vmem:[#allocation3 + $0x80] sm:$0x11] %v4824
        %v4826 = vld [vmem:[#allocation3 + $0x90] sm:$0x11]
        %v4827 = vsel %vm669, 0, %v4826
        %4828 = vst [vmem:[#allocation3 + $0x90] sm:$0x11] %v4827
        %v4829 = vld [vmem:[#allocation3 + $0x8] sm:$0x11]
        %v4830 = vsel %vm870, 0, %v4829
        %4831 = vst [vmem:[#allocation3 + $0x8] sm:$0x11] %v4830
        %v4832 = vld [vmem:[#allocation3 + $0x18] sm:$0x11]
        %v4833 = vsel %vm870, 0, %v4832
        %4834 = vst [vmem:[#allocation3 + $0x18] sm:$0x11] %v4833
        %v4835 = vld [vmem:[#allocation3 + $0x28] sm:$0x11]
        %v4836 = vsel %vm870, 0, %v4835
        %4837 = vst [vmem:[#allocation3 + $0x28] sm:$0x11] %v4836
        %v4838 = vld [vmem:[#allocation3 + $0x38] sm:$0x11]
        %v4839 = vsel %vm870, 0, %v4838
        %4840 = vst [vmem:[#allocation3 + $0x38] sm:$0x11] %v4839
        %v4841 = vld [vmem:[#allocation3 + $0x48] sm:$0x11]
        %v4842 = vsel %vm870, 0, %v4841
        %4843 = vst [vmem:[#allocation3 + $0x48] sm:$0x11] %v4842
        %v4844 = vld [vmem:[#allocation3 + $0x58] sm:$0x11]
        %v4845 = vsel %vm870, 0, %v4844
        %4846 = vst [vmem:[#allocation3 + $0x58] sm:$0x11] %v4845
        %v4847 = vld [vmem:[#allocation3 + $0x68] sm:$0x11]
        %v4848 = vsel %vm870, 0, %v4847
        %4849 = vst [vmem:[#allocation3 + $0x68] sm:$0x11] %v4848
        %v4850 = vld [vmem:[#allocation3 + $0x78] sm:$0x11]
        %v4851 = vsel %vm870, 0, %v4850
        %4852 = vst [vmem:[#allocation3 + $0x78] sm:$0x11] %v4851
        %v4853 = vld [vmem:[#allocation3 + $0x88] sm:$0x11]
        %v4854 = vsel %vm870, 0, %v4853
        %4855 = vst [vmem:[#allocation3 + $0x88] sm:$0x11] %v4854
        %v4856 = vld [vmem:[#allocation3 + $0x98] sm:$0x11]
        %v4857 = vsel %vm870, 0, %v4856
        %4858 = vst [vmem:[#allocation3 + $0x98] sm:$0x11] %v4857
        %p4859 = scmp.eq.s32.totalorder %s28, 0
        // Predicated region
        $region57: #{residual_forward.1} parent=55 // pred_check
          %p4860 = pneg %p4859
        $region58: #{residual_forward.1} parent=55 // pred_check_branch
          %4862 = sbr.rel (%p4860) target = $region60
        $region59: #{residual_forward.1} parent=55 // pred_region
          %4863 = vst [vmem:[#allocation3] sm:$0xff] 0
          %4864 = vst [vmem:[#allocation3 + $0x8] sm:$0x11] 0
          %s4865 = scalar_lea.vmem [#allocation3], 144
          %4866 = vst [vmem:[%s4865] sm:$0xff] 0
          %4867 = vst [vmem:[%s4865 + $0x8] sm:$0x11] 0
        $region60: #{residual_forward.1} parent=55 // pred_fallthru
          _
        %v4868 = vld [vmem:[#allocation3] sm:$0xff]
        %v4869 = vld [vmem:[#allocation3 + $0x8] sm:$0x11]
        %v4870 = vld [vmem:[#allocation3 + $0x10] sm:$0xff]
        %v4871 = vld [vmem:[#allocation3 + $0x18] sm:$0x11]
        %v4872 = vld [vmem:[#allocation3 + $0x20] sm:$0xff]
        %v4873 = vld [vmem:[#allocation3 + $0x28] sm:$0x11]
        %v4874 = vld [vmem:[#allocation3 + $0x30] sm:$0xff]
        %v4875 = vld [vmem:[#allocation3 + $0x38] sm:$0x11]
        %v4876 = vld [vmem:[#allocation3 + $0x40] sm:$0xff]
        %v4877 = vld [vmem:[#allocation3 + $0x48] sm:$0x11]
        %v4878 = vld [vmem:[#allocation3 + $0x50] sm:$0xff]
        %v4879 = vld [vmem:[#allocation3 + $0x58] sm:$0x11]
        %v4880 = vld [vmem:[#allocation3 + $0x60] sm:$0xff]
        %v4881 = vld [vmem:[#allocation3 + $0x68] sm:$0x11]
        %v4882 = vld [vmem:[#allocation3 + $0x70] sm:$0xff]
        %v4883 = vld [vmem:[#allocation3 + $0x78] sm:$0x11]
        %v4892 = vunpack.c.l.b16 %v4868
        %v4893 = vunpack.c.h.b16 %v4868
        %v4894 = vunpack.c.l.b16 %v4870
        %v4895 = vunpack.c.h.b16 %v4870
        %v4896 = vunpack.c.l.b16 %v4872
        %v4897 = vunpack.c.h.b16 %v4872
        %v4898 = vunpack.c.l.b16 %v4874
        %v4899 = vunpack.c.h.b16 %v4874
        %v4900 = vunpack.c.l.b16 %v4876
        %v4901 = vunpack.c.h.b16 %v4876
        %v4902 = vunpack.c.l.b16 %v4878
        %v4903 = vunpack.c.h.b16 %v4878
        %v4904 = vunpack.c.l.b16 %v4880
        %v4905 = vunpack.c.h.b16 %v4880
        %v4906 = vunpack.c.l.b16 %v4882
        %v4907 = vunpack.c.h.b16 %v4882
        %v4916 = vunpack.c.l.b16 %v4869
        %v4917 = vunpack.c.h.b16 %v4869
        %v4918 = vunpack.c.l.b16 %v4871
        %v4919 = vunpack.c.h.b16 %v4871
        %v4920 = vunpack.c.l.b16 %v4873
        %v4921 = vunpack.c.h.b16 %v4873
        %v4922 = vunpack.c.l.b16 %v4875
        %v4923 = vunpack.c.h.b16 %v4875
        %v4924 = vunpack.c.l.b16 %v4877
        %v4925 = vunpack.c.h.b16 %v4877
        %v4926 = vunpack.c.l.b16 %v4879
        %v4927 = vunpack.c.h.b16 %v4879
        %v4928 = vunpack.c.l.b16 %v4881
        %v4929 = vunpack.c.h.b16 %v4881
        %v4930 = vunpack.c.l.b16 %v4883
        %v4931 = vunpack.c.h.b16 %v4883
        %v4932 = vpack.c.b16 %v4916, %v4892
        %v4933 = vpack.c.b16 %v4917, %v4893
        %v4934 = vpack.c.b16 %v4918, %v4894
        %v4935 = vpack.c.b16 %v4919, %v4895
        %v4936 = vpack.c.b16 %v4920, %v4896
        %v4937 = vpack.c.b16 %v4921, %v4897
        %v4938 = vpack.c.b16 %v4922, %v4898
        %v4939 = vpack.c.b16 %v4923, %v4899
        %v4940 = vpack.c.b16 %v4924, %v4900
        %v4941 = vpack.c.b16 %v4925, %v4901
        %v4942 = vpack.c.b16 %v4926, %v4902
        %v4943 = vpack.c.b16 %v4927, %v4903
        %v4944 = vpack.c.b16 %v4928, %v4904
        %v4945 = vpack.c.b16 %v4929, %v4905
        %v4946 = vpack.c.b16 %v4930, %v4906
        %v4947 = vpack.c.b16 %v4931, %v4907
        %v4949 = vshrl.u32 %v4932, 16
        %v4951 = vshll.u32 %v4932, 16
        %v4953 = vrot.slane %v4951, 1
        %v4954 = vor.u32 %v4949, %v4953
        %v4956 = vshrl.u32 %v4933, 16
        %v4958 = vshll.u32 %v4933, 16
        %v4960 = vrot.slane %v4958, 1
        %v4961 = vor.u32 %v4956, %v4960
        %v4963 = vshrl.u32 %v4934, 16
        %v4965 = vshll.u32 %v4934, 16
        %v4967 = vrot.slane %v4965, 1
        %v4968 = vor.u32 %v4963, %v4967
        %v4970 = vshrl.u32 %v4935, 16
        %v4972 = vshll.u32 %v4935, 16
        %v4974 = vrot.slane %v4972, 1
        %v4975 = vor.u32 %v4970, %v4974
        %v4977 = vshrl.u32 %v4936, 16
        %v4979 = vshll.u32 %v4936, 16
        %v4981 = vrot.slane %v4979, 1
        %v4982 = vor.u32 %v4977, %v4981
        %v4984 = vshrl.u32 %v4937, 16
        %v4986 = vshll.u32 %v4937, 16
        %v4988 = vrot.slane %v4986, 1
        %v4989 = vor.u32 %v4984, %v4988
        %v4991 = vshrl.u32 %v4938, 16
        %v4993 = vshll.u32 %v4938, 16
        %v4995 = vrot.slane %v4993, 1
        %v4996 = vor.u32 %v4991, %v4995
        %v4998 = vshrl.u32 %v4939, 16
        %v5000 = vshll.u32 %v4939, 16
        %v5002 = vrot.slane %v5000, 1
        %v5003 = vor.u32 %v4998, %v5002
        %v5005 = vshrl.u32 %v4940, 16
        %v5007 = vshll.u32 %v4940, 16
        %v5009 = vrot.slane %v5007, 1
        %v5010 = vor.u32 %v5005, %v5009
        %v5012 = vshrl.u32 %v4941, 16
        %v5014 = vshll.u32 %v4941, 16
        %v5016 = vrot.slane %v5014, 1
        %v5017 = vor.u32 %v5012, %v5016
        %v5019 = vshrl.u32 %v4942, 16
        %v5021 = vshll.u32 %v4942, 16
        %v5023 = vrot.slane %v5021, 1
        %v5024 = vor.u32 %v5019, %v5023
        %v5026 = vshrl.u32 %v4943, 16
        %v5028 = vshll.u32 %v4943, 16
        %v5030 = vrot.slane %v5028, 1
        %v5031 = vor.u32 %v5026, %v5030
        %v5033 = vshrl.u32 %v4944, 16
        %v5035 = vshll.u32 %v4944, 16
        %v5037 = vrot.slane %v5035, 1
        %v5038 = vor.u32 %v5033, %v5037
        %v5040 = vshrl.u32 %v4945, 16
        %v5042 = vshll.u32 %v4945, 16
        %v5044 = vrot.slane %v5042, 1
        %v5045 = vor.u32 %v5040, %v5044
        %v5047 = vshrl.u32 %v4946, 16
        %v5049 = vshll.u32 %v4946, 16
        %v5051 = vrot.slane %v5049, 1
        %v5052 = vor.u32 %v5047, %v5051
        %v5054 = vshrl.u32 %v4947, 16
        %v5056 = vshll.u32 %v4947, 16
        %v5058 = vrot.slane %v5056, 1
        %v5059 = vor.u32 %v5054, %v5058
        %v5060 = vrot.slane %v4932, 1
        %v5061 = vrot.slane %v4933, 1
        %v5062 = vrot.slane %v4934, 1
        %v5063 = vrot.slane %v4935, 1
        %v5064 = vrot.slane %v4936, 1
        %v5065 = vrot.slane %v4937, 1
        %v5066 = vrot.slane %v4938, 1
        %v5067 = vrot.slane %v4939, 1
        %v5068 = vrot.slane %v4940, 1
        %v5069 = vrot.slane %v4941, 1
        %v5070 = vrot.slane %v4942, 1
        %v5071 = vrot.slane %v4943, 1
        %v5072 = vrot.slane %v4944, 1
        %v5073 = vrot.slane %v4945, 1
        %v5074 = vrot.slane %v4946, 1
        %v5075 = vrot.slane %v4947, 1
        %v5076 = vunpack.c.l.b16 %v4954
        %v5077 = vunpack.c.l.b16 %v4961
        %v5078 = vunpack.c.l.b16 %v5060
        %v5079 = vunpack.c.l.b16 %v5061
        %v5080 = vunpack.c.l.b16 %v4968
        %v5081 = vunpack.c.l.b16 %v4975
        %v5082 = vunpack.c.l.b16 %v5062
        %v5083 = vunpack.c.l.b16 %v5063
        %v5084 = vunpack.c.l.b16 %v4982
        %v5085 = vunpack.c.l.b16 %v4989
        %v5086 = vunpack.c.l.b16 %v5064
        %v5087 = vunpack.c.l.b16 %v5065
        %v5088 = vunpack.c.l.b16 %v4996
        %v5089 = vunpack.c.l.b16 %v5003
        %v5090 = vunpack.c.l.b16 %v5066
        %v5091 = vunpack.c.l.b16 %v5067
        %v5092 = vunpack.c.l.b16 %v5010
        %v5093 = vunpack.c.l.b16 %v5017
        %v5094 = vunpack.c.l.b16 %v5068
        %v5095 = vunpack.c.l.b16 %v5069
        %v5096 = vunpack.c.l.b16 %v5024
        %v5097 = vunpack.c.l.b16 %v5031
        %v5098 = vunpack.c.l.b16 %v5070
        %v5099 = vunpack.c.l.b16 %v5071
        %v5100 = vunpack.c.l.b16 %v5038
        %v5101 = vunpack.c.l.b16 %v5045
        %v5102 = vunpack.c.l.b16 %v5072
        %v5103 = vunpack.c.l.b16 %v5073
        %v5104 = vunpack.c.l.b16 %v5052
        %v5105 = vunpack.c.l.b16 %v5059
        %v5106 = vunpack.c.l.b16 %v5074
        %v5107 = vunpack.c.l.b16 %v5075
        %v5108 = vld [vmem:[%s6] sm:$0xff]
        %v5109 = vld [vmem:[%s6 + $0x8] sm:$0xff]
        %v5110 = vld [vmem:[%s6 + $0x10] sm:$0xff]
        %v5111 = vld [vmem:[%s6 + $0x18] sm:$0xff]
        %v5112 = vld [vmem:[%s6 + $0x20] sm:$0xff]
        %v5113 = vld [vmem:[%s6 + $0x28] sm:$0xff]
        %v5114 = vld [vmem:[%s6 + $0x30] sm:$0xff]
        %v5115 = vld [vmem:[%s6 + $0x38] sm:$0xff]
        %v5116 = vld [vmem:[%s6 + $0x40] sm:$0xff]
        %v5117 = vld [vmem:[%s6 + $0x48] sm:$0xff]
        %v5118 = vld [vmem:[%s6 + $0x50] sm:$0xff]
        %v5119 = vld [vmem:[%s6 + $0x58] sm:$0xff]
        %v5120 = vld [vmem:[%s6 + $0x60] sm:$0xff]
        %v5121 = vld [vmem:[%s6 + $0x68] sm:$0xff]
        %v5122 = vld [vmem:[%s6 + $0x70] sm:$0xff]
        %v5123 = vld [vmem:[%s6 + $0x78] sm:$0xff]
        %v5124 = vld [vmem:[%s6 + $0x80] sm:$0xff]
        %v5125 = vld [vmem:[%s6 + $0x88] sm:$0xff]
        %v5126 = vld [vmem:[%s6 + $0x90] sm:$0xff]
        %v5127 = vld [vmem:[%s6 + $0x98] sm:$0xff]
        %v5128 = vld [vmem:[%s6 + $0xa0] sm:$0xff]
        %v5129 = vld [vmem:[%s6 + $0xa8] sm:$0xff]
        %v5130 = vld [vmem:[%s6 + $0xb0] sm:$0xff]
        %v5131 = vld [vmem:[%s6 + $0xb8] sm:$0xff]
        %v5132 = vld [vmem:[%s6 + $0xc0] sm:$0xff]
        %v5133 = vld [vmem:[%s6 + $0xc8] sm:$0xff]
        %v5134 = vld [vmem:[%s6 + $0xd0] sm:$0xff]
        %v5135 = vld [vmem:[%s6 + $0xd8] sm:$0xff]
        %v5136 = vld [vmem:[%s6 + $0xe0] sm:$0xff]
        %v5137 = vld [vmem:[%s6 + $0xe8] sm:$0xff]
        %v5138 = vld [vmem:[%s6 + $0xf0] sm:$0xff]
        %v5139 = vld [vmem:[%s6 + $0xf8] sm:$0xff]
        %v5140 = vld [vmem:[%s6 + $0x100] sm:$0xff]
        %v5141 = vld [vmem:[%s6 + $0x108] sm:$0xff]
        %v5142 = vld [vmem:[%s6 + $0x110] sm:$0xff]
        %v5143 = vld [vmem:[%s6 + $0x118] sm:$0xff]
        %v5144 = vld [vmem:[%s6 + $0x120] sm:$0xff]
        %v5145 = vld [vmem:[%s6 + $0x128] sm:$0xff]
        %v5146 = vld [vmem:[%s6 + $0x130] sm:$0xff]
        %v5147 = vld [vmem:[%s6 + $0x138] sm:$0xff]
        %v5148 = vld [vmem:[%s6 + $0x140] sm:$0xff]
        %v5149 = vld [vmem:[%s6 + $0x148] sm:$0xff]
        %v5150 = vld [vmem:[%s6 + $0x150] sm:$0xff]
        %v5151 = vld [vmem:[%s6 + $0x158] sm:$0xff]
        %v5152 = vld [vmem:[%s6 + $0x160] sm:$0xff]
        %v5153 = vld [vmem:[%s6 + $0x168] sm:$0xff]
        %v5154 = vld [vmem:[%s6 + $0x170] sm:$0xff]
        %v5155 = vld [vmem:[%s6 + $0x178] sm:$0xff]
        %v5156 = vld [vmem:[%s6 + $0x180] sm:$0xff]
        %v5157 = vld [vmem:[%s6 + $0x188] sm:$0xff]
        %v5158 = vld [vmem:[%s6 + $0x190] sm:$0xff]
        %v5159 = vld [vmem:[%s6 + $0x198] sm:$0xff]
        %v5160 = vld [vmem:[%s6 + $0x1a0] sm:$0xff]
        %v5161 = vld [vmem:[%s6 + $0x1a8] sm:$0xff]
        %v5162 = vld [vmem:[%s6 + $0x1b0] sm:$0xff]
        %v5163 = vld [vmem:[%s6 + $0x1b8] sm:$0xff]
        %v5164 = vld [vmem:[%s6 + $0x1c0] sm:$0xff]
        %v5165 = vld [vmem:[%s6 + $0x1c8] sm:$0xff]
        %v5166 = vld [vmem:[%s6 + $0x1d0] sm:$0xff]
        %v5167 = vld [vmem:[%s6 + $0x1d8] sm:$0xff]
        %v5168 = vld [vmem:[%s6 + $0x1e0] sm:$0xff]
        %v5169 = vld [vmem:[%s6 + $0x1e8] sm:$0xff]
        %v5170 = vld [vmem:[%s6 + $0x1f0] sm:$0xff]
        %v5171 = vld [vmem:[%s6 + $0x1f8] sm:$0xff]
        %v5172 = vld [vmem:[%s6 + $0x200] sm:$0xff]
        %v5173 = vld [vmem:[%s6 + $0x208] sm:$0xff]
        %v5174 = vld [vmem:[%s6 + $0x210] sm:$0xff]
        %v5175 = vld [vmem:[%s6 + $0x218] sm:$0xff]
        %v5176 = vld [vmem:[%s6 + $0x220] sm:$0xff]
        %v5177 = vld [vmem:[%s6 + $0x228] sm:$0xff]
        %v5178 = vld [vmem:[%s6 + $0x230] sm:$0xff]
        %v5179 = vld [vmem:[%s6 + $0x238] sm:$0xff]
        %v5180 = vld [vmem:[%s6 + $0x240] sm:$0xff]
        %v5181 = vld [vmem:[%s6 + $0x248] sm:$0xff]
        %v5182 = vld [vmem:[%s6 + $0x250] sm:$0xff]
        %v5183 = vld [vmem:[%s6 + $0x258] sm:$0xff]
        %v5184 = vld [vmem:[%s6 + $0x260] sm:$0xff]
        %v5185 = vld [vmem:[%s6 + $0x268] sm:$0xff]
        %v5186 = vld [vmem:[%s6 + $0x270] sm:$0xff]
        %v5187 = vld [vmem:[%s6 + $0x278] sm:$0xff]
        %v5188 = vld [vmem:[%s6 + $0x280] sm:$0xff]
        %v5189 = vld [vmem:[%s6 + $0x288] sm:$0xff]
        %v5190 = vld [vmem:[%s6 + $0x290] sm:$0xff]
        %v5191 = vld [vmem:[%s6 + $0x298] sm:$0xff]
        %v5192 = vld [vmem:[%s6 + $0x2a0] sm:$0xff]
        %v5193 = vld [vmem:[%s6 + $0x2a8] sm:$0xff]
        %v5194 = vld [vmem:[%s6 + $0x2b0] sm:$0xff]
        %v5195 = vld [vmem:[%s6 + $0x2b8] sm:$0xff]
        %v5196 = vld [vmem:[%s6 + $0x2c0] sm:$0xff]
        %v5197 = vld [vmem:[%s6 + $0x2c8] sm:$0xff]
        %v5198 = vld [vmem:[%s6 + $0x2d0] sm:$0xff]
        %v5199 = vld [vmem:[%s6 + $0x2d8] sm:$0xff]
        %v5200 = vld [vmem:[%s6 + $0x2e0] sm:$0xff]
        %v5201 = vld [vmem:[%s6 + $0x2e8] sm:$0xff]
        %v5202 = vld [vmem:[%s6 + $0x2f0] sm:$0xff]
        %v5203 = vld [vmem:[%s6 + $0x2f8] sm:$0xff]
        %s5204 = scalar_lea.vmem [#allocation3], 16
        %v5205 = vld [vmem:[%s5204] sm:$0xff]
        %v5206 = vld [vmem:[%s5204 + $0x8] sm:$0x11]
        %v5207 = vld [vmem:[%s5204 + $0x10] sm:$0xff]
        %v5208 = vld [vmem:[%s5204 + $0x18] sm:$0x11]
        %v5209 = vld [vmem:[%s5204 + $0x20] sm:$0xff]
        %v5210 = vld [vmem:[%s5204 + $0x28] sm:$0x11]
        %v5211 = vld [vmem:[%s5204 + $0x30] sm:$0xff]
        %v5212 = vld [vmem:[%s5204 + $0x38] sm:$0x11]
        %v5213 = vld [vmem:[%s5204 + $0x40] sm:$0xff]
        %v5214 = vld [vmem:[%s5204 + $0x48] sm:$0x11]
        %v5215 = vld [vmem:[%s5204 + $0x50] sm:$0xff]
        %v5216 = vld [vmem:[%s5204 + $0x58] sm:$0x11]
        %v5217 = vld [vmem:[%s5204 + $0x60] sm:$0xff]
        %v5218 = vld [vmem:[%s5204 + $0x68] sm:$0x11]
        %v5219 = vld [vmem:[%s5204 + $0x70] sm:$0xff]
        %v5220 = vld [vmem:[%s5204 + $0x78] sm:$0x11]
        %v5229 = vunpack.c.l.b16 %v5205
        %v5230 = vunpack.c.h.b16 %v5205
        %v5231 = vunpack.c.l.b16 %v5207
        %v5232 = vunpack.c.h.b16 %v5207
        %v5233 = vunpack.c.l.b16 %v5209
        %v5234 = vunpack.c.h.b16 %v5209
        %v5235 = vunpack.c.l.b16 %v5211
        %v5236 = vunpack.c.h.b16 %v5211
        %v5237 = vunpack.c.l.b16 %v5213
        %v5238 = vunpack.c.h.b16 %v5213
        %v5239 = vunpack.c.l.b16 %v5215
        %v5240 = vunpack.c.h.b16 %v5215
        %v5241 = vunpack.c.l.b16 %v5217
        %v5242 = vunpack.c.h.b16 %v5217
        %v5243 = vunpack.c.l.b16 %v5219
        %v5244 = vunpack.c.h.b16 %v5219
        %v5253 = vunpack.c.l.b16 %v5206
        %v5254 = vunpack.c.h.b16 %v5206
        %v5255 = vunpack.c.l.b16 %v5208
        %v5256 = vunpack.c.h.b16 %v5208
        %v5257 = vunpack.c.l.b16 %v5210
        %v5258 = vunpack.c.h.b16 %v5210
        %v5259 = vunpack.c.l.b16 %v5212
        %v5260 = vunpack.c.h.b16 %v5212
        %v5261 = vunpack.c.l.b16 %v5214
        %v5262 = vunpack.c.h.b16 %v5214
        %v5263 = vunpack.c.l.b16 %v5216
        %v5264 = vunpack.c.h.b16 %v5216
        %v5265 = vunpack.c.l.b16 %v5218
        %v5266 = vunpack.c.h.b16 %v5218
        %v5267 = vunpack.c.l.b16 %v5220
        %v5268 = vunpack.c.h.b16 %v5220
        %v5269 = vpack.c.b16 %v5253, %v5229
        %v5270 = vpack.c.b16 %v5254, %v5230
        %v5271 = vpack.c.b16 %v5255, %v5231
        %v5272 = vpack.c.b16 %v5256, %v5232
        %v5273 = vpack.c.b16 %v5257, %v5233
        %v5274 = vpack.c.b16 %v5258, %v5234
        %v5275 = vpack.c.b16 %v5259, %v5235
        %v5276 = vpack.c.b16 %v5260, %v5236
        %v5277 = vpack.c.b16 %v5261, %v5237
        %v5278 = vpack.c.b16 %v5262, %v5238
        %v5279 = vpack.c.b16 %v5263, %v5239
        %v5280 = vpack.c.b16 %v5264, %v5240
        %v5281 = vpack.c.b16 %v5265, %v5241
        %v5282 = vpack.c.b16 %v5266, %v5242
        %v5283 = vpack.c.b16 %v5267, %v5243
        %v5284 = vpack.c.b16 %v5268, %v5244
        %v5286 = vshrl.u32 %v5269, 16
        %v5288 = vshll.u32 %v5269, 16
        %v5290 = vrot.slane %v5288, 1
        %v5291 = vor.u32 %v5286, %v5290
        %v5293 = vshrl.u32 %v5270, 16
        %v5295 = vshll.u32 %v5270, 16
        %v5297 = vrot.slane %v5295, 1
        %v5298 = vor.u32 %v5293, %v5297
        %v5300 = vshrl.u32 %v5271, 16
        %v5302 = vshll.u32 %v5271, 16
        %v5304 = vrot.slane %v5302, 1
        %v5305 = vor.u32 %v5300, %v5304
        %v5307 = vshrl.u32 %v5272, 16
        %v5309 = vshll.u32 %v5272, 16
        %v5311 = vrot.slane %v5309, 1
        %v5312 = vor.u32 %v5307, %v5311
        %v5314 = vshrl.u32 %v5273, 16
        %v5316 = vshll.u32 %v5273, 16
        %v5318 = vrot.slane %v5316, 1
        %v5319 = vor.u32 %v5314, %v5318
        %v5321 = vshrl.u32 %v5274, 16
        %v5323 = vshll.u32 %v5274, 16
        %v5325 = vrot.slane %v5323, 1
        %v5326 = vor.u32 %v5321, %v5325
        %v5328 = vshrl.u32 %v5275, 16
        %v5330 = vshll.u32 %v5275, 16
        %v5332 = vrot.slane %v5330, 1
        %v5333 = vor.u32 %v5328, %v5332
        %v5335 = vshrl.u32 %v5276, 16
        %v5337 = vshll.u32 %v5276, 16
        %v5339 = vrot.slane %v5337, 1
        %v5340 = vor.u32 %v5335, %v5339
        %v5342 = vshrl.u32 %v5277, 16
        %v5344 = vshll.u32 %v5277, 16
        %v5346 = vrot.slane %v5344, 1
        %v5347 = vor.u32 %v5342, %v5346
        %v5349 = vshrl.u32 %v5278, 16
        %v5351 = vshll.u32 %v5278, 16
        %v5353 = vrot.slane %v5351, 1
        %v5354 = vor.u32 %v5349, %v5353
        %v5356 = vshrl.u32 %v5279, 16
        %v5358 = vshll.u32 %v5279, 16
        %v5360 = vrot.slane %v5358, 1
        %v5361 = vor.u32 %v5356, %v5360
        %v5363 = vshrl.u32 %v5280, 16
        %v5365 = vshll.u32 %v5280, 16
        %v5367 = vrot.slane %v5365, 1
        %v5368 = vor.u32 %v5363, %v5367
        %v5370 = vshrl.u32 %v5281, 16
        %v5372 = vshll.u32 %v5281, 16
        %v5374 = vrot.slane %v5372, 1
        %v5375 = vor.u32 %v5370, %v5374
        %v5377 = vshrl.u32 %v5282, 16
        %v5379 = vshll.u32 %v5282, 16
        %v5381 = vrot.slane %v5379, 1
        %v5382 = vor.u32 %v5377, %v5381
        %v5384 = vshrl.u32 %v5283, 16
        %v5386 = vshll.u32 %v5283, 16
        %v5388 = vrot.slane %v5386, 1
        %v5389 = vor.u32 %v5384, %v5388
        %v5391 = vshrl.u32 %v5284, 16
        %v5393 = vshll.u32 %v5284, 16
        %v5395 = vrot.slane %v5393, 1
        %v5396 = vor.u32 %v5391, %v5395
        %v5397 = vrot.slane %v5269, 1
        %v5398 = vrot.slane %v5270, 1
        %v5399 = vrot.slane %v5271, 1
        %v5400 = vrot.slane %v5272, 1
        %v5401 = vrot.slane %v5273, 1
        %v5402 = vrot.slane %v5274, 1
        %v5403 = vrot.slane %v5275, 1
        %v5404 = vrot.slane %v5276, 1
        %v5405 = vrot.slane %v5277, 1
        %v5406 = vrot.slane %v5278, 1
        %v5407 = vrot.slane %v5279, 1
        %v5408 = vrot.slane %v5280, 1
        %v5409 = vrot.slane %v5281, 1
        %v5410 = vrot.slane %v5282, 1
        %v5411 = vrot.slane %v5283, 1
        %v5412 = vrot.slane %v5284, 1
        %v5413 = vunpack.c.l.b16 %v5291
        %v5414 = vunpack.c.l.b16 %v5298
        %v5415 = vunpack.c.l.b16 %v5397
        %v5416 = vunpack.c.l.b16 %v5398
        %v5417 = vunpack.c.l.b16 %v5305
        %v5418 = vunpack.c.l.b16 %v5312
        %v5419 = vunpack.c.l.b16 %v5399
        %v5420 = vunpack.c.l.b16 %v5400
        %v5421 = vunpack.c.l.b16 %v5319
        %v5422 = vunpack.c.l.b16 %v5326
        %v5423 = vunpack.c.l.b16 %v5401
        %v5424 = vunpack.c.l.b16 %v5402
        %v5425 = vunpack.c.l.b16 %v5333
        %v5426 = vunpack.c.l.b16 %v5340
        %v5427 = vunpack.c.l.b16 %v5403
        %v5428 = vunpack.c.l.b16 %v5404
        %v5429 = vunpack.c.l.b16 %v5347
        %v5430 = vunpack.c.l.b16 %v5354
        %v5431 = vunpack.c.l.b16 %v5405
        %v5432 = vunpack.c.l.b16 %v5406
        %v5433 = vunpack.c.l.b16 %v5361
        %v5434 = vunpack.c.l.b16 %v5368
        %v5435 = vunpack.c.l.b16 %v5407
        %v5436 = vunpack.c.l.b16 %v5408
        %v5437 = vunpack.c.l.b16 %v5375
        %v5438 = vunpack.c.l.b16 %v5382
        %v5439 = vunpack.c.l.b16 %v5409
        %v5440 = vunpack.c.l.b16 %v5410
        %v5441 = vunpack.c.l.b16 %v5389
        %v5442 = vunpack.c.l.b16 %v5396
        %v5443 = vunpack.c.l.b16 %v5411
        %v5444 = vunpack.c.l.b16 %v5412
        %s5445 = scalar_lea.vmem %s6, 768
        %v5446 = vld [vmem:[%s5445] sm:$0xff]
        %v5447 = vld [vmem:[%s5445 + $0x8] sm:$0xff]
        %v5448 = vld [vmem:[%s5445 + $0x10] sm:$0xff]
        %v5449 = vld [vmem:[%s5445 + $0x18] sm:$0xff]
        %v5450 = vld [vmem:[%s5445 + $0x20] sm:$0xff]
        %v5451 = vld [vmem:[%s5445 + $0x28] sm:$0xff]
        %v5452 = vld [vmem:[%s5445 + $0x30] sm:$0xff]
        %v5453 = vld [vmem:[%s5445 + $0x38] sm:$0xff]
        %v5454 = vld [vmem:[%s5445 + $0x40] sm:$0xff]
        %v5455 = vld [vmem:[%s5445 + $0x48] sm:$0xff]
        %v5456 = vld [vmem:[%s5445 + $0x50] sm:$0xff]
        %v5457 = vld [vmem:[%s5445 + $0x58] sm:$0xff]
        %v5458 = vld [vmem:[%s5445 + $0x60] sm:$0xff]
        %v5459 = vld [vmem:[%s5445 + $0x68] sm:$0xff]
        %v5460 = vld [vmem:[%s5445 + $0x70] sm:$0xff]
        %v5461 = vld [vmem:[%s5445 + $0x78] sm:$0xff]
        %v5462 = vld [vmem:[%s5445 + $0x80] sm:$0xff]
        %v5463 = vld [vmem:[%s5445 + $0x88] sm:$0xff]
        %v5464 = vld [vmem:[%s5445 + $0x90] sm:$0xff]
        %v5465 = vld [vmem:[%s5445 + $0x98] sm:$0xff]
        %v5466 = vld [vmem:[%s5445 + $0xa0] sm:$0xff]
        %v5467 = vld [vmem:[%s5445 + $0xa8] sm:$0xff]
        %v5468 = vld [vmem:[%s5445 + $0xb0] sm:$0xff]
        %v5469 = vld [vmem:[%s5445 + $0xb8] sm:$0xff]
        %v5470 = vld [vmem:[%s5445 + $0xc0] sm:$0xff]
        %v5471 = vld [vmem:[%s5445 + $0xc8] sm:$0xff]
        %v5472 = vld [vmem:[%s5445 + $0xd0] sm:$0xff]
        %v5473 = vld [vmem:[%s5445 + $0xd8] sm:$0xff]
        %v5474 = vld [vmem:[%s5445 + $0xe0] sm:$0xff]
        %v5475 = vld [vmem:[%s5445 + $0xe8] sm:$0xff]
        %v5476 = vld [vmem:[%s5445 + $0xf0] sm:$0xff]
        %v5477 = vld [vmem:[%s5445 + $0xf8] sm:$0xff]
        %v5478 = vld [vmem:[%s5445 + $0x100] sm:$0xff]
        %v5479 = vld [vmem:[%s5445 + $0x108] sm:$0xff]
        %v5480 = vld [vmem:[%s5445 + $0x110] sm:$0xff]
        %v5481 = vld [vmem:[%s5445 + $0x118] sm:$0xff]
        %v5482 = vld [vmem:[%s5445 + $0x120] sm:$0xff]
        %v5483 = vld [vmem:[%s5445 + $0x128] sm:$0xff]
        %v5484 = vld [vmem:[%s5445 + $0x130] sm:$0xff]
        %v5485 = vld [vmem:[%s5445 + $0x138] sm:$0xff]
        %v5486 = vld [vmem:[%s5445 + $0x140] sm:$0xff]
        %v5487 = vld [vmem:[%s5445 + $0x148] sm:$0xff]
        %v5488 = vld [vmem:[%s5445 + $0x150] sm:$0xff]
        %v5489 = vld [vmem:[%s5445 + $0x158] sm:$0xff]
        %v5490 = vld [vmem:[%s5445 + $0x160] sm:$0xff]
        %v5491 = vld [vmem:[%s5445 + $0x168] sm:$0xff]
        %v5492 = vld [vmem:[%s5445 + $0x170] sm:$0xff]
        %v5493 = vld [vmem:[%s5445 + $0x178] sm:$0xff]
        %v5494 = vld [vmem:[%s5445 + $0x180] sm:$0xff]
        %v5495 = vld [vmem:[%s5445 + $0x188] sm:$0xff]
        %v5496 = vld [vmem:[%s5445 + $0x190] sm:$0xff]
        %v5497 = vld [vmem:[%s5445 + $0x198] sm:$0xff]
        %v5498 = vld [vmem:[%s5445 + $0x1a0] sm:$0xff]
        %v5499 = vld [vmem:[%s5445 + $0x1a8] sm:$0xff]
        %v5500 = vld [vmem:[%s5445 + $0x1b0] sm:$0xff]
        %v5501 = vld [vmem:[%s5445 + $0x1b8] sm:$0xff]
        %v5502 = vld [vmem:[%s5445 + $0x1c0] sm:$0xff]
        %v5503 = vld [vmem:[%s5445 + $0x1c8] sm:$0xff]
        %v5504 = vld [vmem:[%s5445 + $0x1d0] sm:$0xff]
        %v5505 = vld [vmem:[%s5445 + $0x1d8] sm:$0xff]
        %v5506 = vld [vmem:[%s5445 + $0x1e0] sm:$0xff]
        %v5507 = vld [vmem:[%s5445 + $0x1e8] sm:$0xff]
        %v5508 = vld [vmem:[%s5445 + $0x1f0] sm:$0xff]
        %v5509 = vld [vmem:[%s5445 + $0x1f8] sm:$0xff]
        %v5510 = vld [vmem:[%s5445 + $0x200] sm:$0xff]
        %v5511 = vld [vmem:[%s5445 + $0x208] sm:$0xff]
        %v5512 = vld [vmem:[%s5445 + $0x210] sm:$0xff]
        %v5513 = vld [vmem:[%s5445 + $0x218] sm:$0xff]
        %v5514 = vld [vmem:[%s5445 + $0x220] sm:$0xff]
        %v5515 = vld [vmem:[%s5445 + $0x228] sm:$0xff]
        %v5516 = vld [vmem:[%s5445 + $0x230] sm:$0xff]
        %v5517 = vld [vmem:[%s5445 + $0x238] sm:$0xff]
        %v5518 = vld [vmem:[%s5445 + $0x240] sm:$0xff]
        %v5519 = vld [vmem:[%s5445 + $0x248] sm:$0xff]
        %v5520 = vld [vmem:[%s5445 + $0x250] sm:$0xff]
        %v5521 = vld [vmem:[%s5445 + $0x258] sm:$0xff]
        %v5522 = vld [vmem:[%s5445 + $0x260] sm:$0xff]
        %v5523 = vld [vmem:[%s5445 + $0x268] sm:$0xff]
        %v5524 = vld [vmem:[%s5445 + $0x270] sm:$0xff]
        %v5525 = vld [vmem:[%s5445 + $0x278] sm:$0xff]
        %v5526 = vld [vmem:[%s5445 + $0x280] sm:$0xff]
        %v5527 = vld [vmem:[%s5445 + $0x288] sm:$0xff]
        %v5528 = vld [vmem:[%s5445 + $0x290] sm:$0xff]
        %v5529 = vld [vmem:[%s5445 + $0x298] sm:$0xff]
        %v5530 = vld [vmem:[%s5445 + $0x2a0] sm:$0xff]
        %v5531 = vld [vmem:[%s5445 + $0x2a8] sm:$0xff]
        %v5532 = vld [vmem:[%s5445 + $0x2b0] sm:$0xff]
        %v5533 = vld [vmem:[%s5445 + $0x2b8] sm:$0xff]
        %v5534 = vld [vmem:[%s5445 + $0x2c0] sm:$0xff]
        %v5535 = vld [vmem:[%s5445 + $0x2c8] sm:$0xff]
        %v5536 = vld [vmem:[%s5445 + $0x2d0] sm:$0xff]
        %v5537 = vld [vmem:[%s5445 + $0x2d8] sm:$0xff]
        %v5538 = vld [vmem:[%s5445 + $0x2e0] sm:$0xff]
        %v5539 = vld [vmem:[%s5445 + $0x2e8] sm:$0xff]
        %v5540 = vld [vmem:[%s5445 + $0x2f0] sm:$0xff]
        %v5541 = vld [vmem:[%s5445 + $0x2f8] sm:$0xff]
        %v5542 = vpack.c.b16 %v5231, %v5229
        %v5543 = vpack.c.b16 %v5232, %v5230
        %v5544 = vpack.c.b16 %v5417, %v5413
        %v5545 = vpack.c.b16 %v5418, %v5414
        %v5546 = vpack.c.b16 %v5419, %v5415
        %v5547 = vpack.c.b16 %v5420, %v5416
        %v5548 = vpack.c.b16 %v5235, %v5233
        %v5549 = vpack.c.b16 %v5236, %v5234
        %v5550 = vpack.c.b16 %v5425, %v5421
        %v5551 = vpack.c.b16 %v5426, %v5422
        %v5552 = vpack.c.b16 %v5427, %v5423
        %v5553 = vpack.c.b16 %v5428, %v5424
        %v5554 = vpack.c.b16 %v5239, %v5237
        %v5555 = vpack.c.b16 %v5240, %v5238
        %v5556 = vpack.c.b16 %v5433, %v5429
        %v5557 = vpack.c.b16 %v5434, %v5430
        %v5558 = vpack.c.b16 %v5435, %v5431
        %v5559 = vpack.c.b16 %v5436, %v5432
        %v5560 = vpack.c.b16 %v5243, %v5241
        %v5561 = vpack.c.b16 %v5244, %v5242
        %v5562 = vpack.c.b16 %v5441, %v5437
        %v5563 = vpack.c.b16 %v5442, %v5438
        %v5564 = vpack.c.b16 %v5443, %v5439
        %v5565 = vpack.c.b16 %v5444, %v5440
        %v5686 = vunpack.c.l.b16 %v5446
        %v5687 = vunpack.c.h.b16 %v5446
        %v5688 = vunpack.c.l.b16 %v5447
        %v5689 = vunpack.c.h.b16 %v5447
        %v5690 = vunpack.c.l.b16 %v5448
        %v5691 = vunpack.c.h.b16 %v5448
        %v5692 = vunpack.c.l.b16 %v5449
        %v5693 = vunpack.c.h.b16 %v5449
        %v5694 = vunpack.c.l.b16 %v5450
        %v5695 = vunpack.c.h.b16 %v5450
        %v5696 = vunpack.c.l.b16 %v5451
        %v5697 = vunpack.c.h.b16 %v5451
        %v5698 = vunpack.c.l.b16 %v5452
        %v5699 = vunpack.c.h.b16 %v5452
        %v5700 = vunpack.c.l.b16 %v5453
        %v5701 = vunpack.c.h.b16 %v5453
        %v5702 = vunpack.c.l.b16 %v5454
        %v5703 = vunpack.c.h.b16 %v5454
        %v5704 = vunpack.c.l.b16 %v5455
        %v5705 = vunpack.c.h.b16 %v5455
        %v5706 = vunpack.c.l.b16 %v5456
        %v5707 = vunpack.c.h.b16 %v5456
        %v5708 = vunpack.c.l.b16 %v5457
        %v5709 = vunpack.c.h.b16 %v5457
        %v5710 = vunpack.c.l.b16 %v5458
        %v5711 = vunpack.c.h.b16 %v5458
        %v5712 = vunpack.c.l.b16 %v5459
        %v5713 = vunpack.c.h.b16 %v5459
        %v5714 = vunpack.c.l.b16 %v5460
        %v5715 = vunpack.c.h.b16 %v5460
        %v5716 = vunpack.c.l.b16 %v5461
        %v5717 = vunpack.c.h.b16 %v5461
        %v5718 = vunpack.c.l.b16 %v5462
        %v5719 = vunpack.c.h.b16 %v5462
        %v5720 = vunpack.c.l.b16 %v5463
        %v5721 = vunpack.c.h.b16 %v5463
        %v5722 = vunpack.c.l.b16 %v5464
        %v5723 = vunpack.c.h.b16 %v5464
        %v5724 = vunpack.c.l.b16 %v5465
        %v5725 = vunpack.c.h.b16 %v5465
        %v5726 = vunpack.c.l.b16 %v5466
        %v5727 = vunpack.c.h.b16 %v5466
        %v5728 = vunpack.c.l.b16 %v5467
        %v5729 = vunpack.c.h.b16 %v5467
        %v5730 = vunpack.c.l.b16 %v5468
        %v5731 = vunpack.c.h.b16 %v5468
        %v5732 = vunpack.c.l.b16 %v5469
        %v5733 = vunpack.c.h.b16 %v5469
        %v5734 = vunpack.c.l.b16 %v5470
        %v5735 = vunpack.c.h.b16 %v5470
        %v5736 = vunpack.c.l.b16 %v5471
        %v5737 = vunpack.c.h.b16 %v5471
        %v5738 = vunpack.c.l.b16 %v5472
        %v5739 = vunpack.c.h.b16 %v5472
        %v5740 = vunpack.c.l.b16 %v5473
        %v5741 = vunpack.c.h.b16 %v5473
        %v5742 = vunpack.c.l.b16 %v5474
        %v5743 = vunpack.c.h.b16 %v5474
        %v5744 = vunpack.c.l.b16 %v5475
        %v5745 = vunpack.c.h.b16 %v5475
        %v5746 = vunpack.c.l.b16 %v5476
        %v5747 = vunpack.c.h.b16 %v5476
        %v5748 = vunpack.c.l.b16 %v5477
        %v5749 = vunpack.c.h.b16 %v5477
        %v5750 = vunpack.c.l.b16 %v5478
        %v5751 = vunpack.c.h.b16 %v5478
        %v5752 = vunpack.c.l.b16 %v5479
        %v5753 = vunpack.c.h.b16 %v5479
        %v5754 = vunpack.c.l.b16 %v5480
        %v5755 = vunpack.c.h.b16 %v5480
        %v5756 = vunpack.c.l.b16 %v5481
        %v5757 = vunpack.c.h.b16 %v5481
        %v5758 = vunpack.c.l.b16 %v5482
        %v5759 = vunpack.c.h.b16 %v5482
        %v5760 = vunpack.c.l.b16 %v5483
        %v5761 = vunpack.c.h.b16 %v5483
        %v5762 = vunpack.c.l.b16 %v5484
        %v5763 = vunpack.c.h.b16 %v5484
        %v5764 = vunpack.c.l.b16 %v5485
        %v5765 = vunpack.c.h.b16 %v5485
        %v5766 = vunpack.c.l.b16 %v5486
        %v5767 = vunpack.c.h.b16 %v5486
        %v5768 = vunpack.c.l.b16 %v5487
        %v5769 = vunpack.c.h.b16 %v5487
        %v5770 = vunpack.c.l.b16 %v5488
        %v5771 = vunpack.c.h.b16 %v5488
        %v5772 = vunpack.c.l.b16 %v5489
        %v5773 = vunpack.c.h.b16 %v5489
        %v5774 = vunpack.c.l.b16 %v5490
        %v5775 = vunpack.c.h.b16 %v5490
        %v5776 = vunpack.c.l.b16 %v5491
        %v5777 = vunpack.c.h.b16 %v5491
        %v5778 = vunpack.c.l.b16 %v5492
        %v5779 = vunpack.c.h.b16 %v5492
        %v5780 = vunpack.c.l.b16 %v5493
        %v5781 = vunpack.c.h.b16 %v5493
        %v5782 = vunpack.c.l.b16 %v5494
        %v5783 = vunpack.c.h.b16 %v5494
        %v5784 = vunpack.c.l.b16 %v5495
        %v5785 = vunpack.c.h.b16 %v5495
        %v5786 = vunpack.c.l.b16 %v5496
        %v5787 = vunpack.c.h.b16 %v5496
        %v5788 = vunpack.c.l.b16 %v5497
        %v5789 = vunpack.c.h.b16 %v5497
        %v5790 = vunpack.c.l.b16 %v5498
        %v5791 = vunpack.c.h.b16 %v5498
        %v5792 = vunpack.c.l.b16 %v5499
        %v5793 = vunpack.c.h.b16 %v5499
        %v5794 = vunpack.c.l.b16 %v5500
        %v5795 = vunpack.c.h.b16 %v5500
        %v5796 = vunpack.c.l.b16 %v5501
        %v5797 = vunpack.c.h.b16 %v5501
        %v5798 = vunpack.c.l.b16 %v5502
        %v5799 = vunpack.c.h.b16 %v5502
        %v5800 = vunpack.c.l.b16 %v5503
        %v5801 = vunpack.c.h.b16 %v5503
        %v5802 = vunpack.c.l.b16 %v5504
        %v5803 = vunpack.c.h.b16 %v5504
        %v5804 = vunpack.c.l.b16 %v5505
        %v5805 = vunpack.c.h.b16 %v5505
        %v5806 = vunpack.c.l.b16 %v5506
        %v5807 = vunpack.c.h.b16 %v5506
        %v5808 = vunpack.c.l.b16 %v5507
        %v5809 = vunpack.c.h.b16 %v5507
        %v5810 = vunpack.c.l.b16 %v5508
        %v5811 = vunpack.c.h.b16 %v5508
        %v5812 = vunpack.c.l.b16 %v5509
        %v5813 = vunpack.c.h.b16 %v5509
        %v5814 = vunpack.c.l.b16 %v5510
        %v5815 = vunpack.c.h.b16 %v5510
        %v5816 = vunpack.c.l.b16 %v5511
        %v5817 = vunpack.c.h.b16 %v5511
        %v5818 = vunpack.c.l.b16 %v5512
        %v5819 = vunpack.c.h.b16 %v5512
        %v5820 = vunpack.c.l.b16 %v5513
        %v5821 = vunpack.c.h.b16 %v5513
        %v5822 = vunpack.c.l.b16 %v5514
        %v5823 = vunpack.c.h.b16 %v5514
        %v5824 = vunpack.c.l.b16 %v5515
        %v5825 = vunpack.c.h.b16 %v5515
        %v5826 = vunpack.c.l.b16 %v5516
        %v5827 = vunpack.c.h.b16 %v5516
        %v5828 = vunpack.c.l.b16 %v5517
        %v5829 = vunpack.c.h.b16 %v5517
        %v5830 = vunpack.c.l.b16 %v5518
        %v5831 = vunpack.c.h.b16 %v5518
        %v5832 = vunpack.c.l.b16 %v5519
        %v5833 = vunpack.c.h.b16 %v5519
        %v5834 = vunpack.c.l.b16 %v5520
        %v5835 = vunpack.c.h.b16 %v5520
        %v5836 = vunpack.c.l.b16 %v5521
        %v5837 = vunpack.c.h.b16 %v5521
        %v5838 = vunpack.c.l.b16 %v5522
        %v5839 = vunpack.c.h.b16 %v5522
        %v5840 = vunpack.c.l.b16 %v5523
        %v5841 = vunpack.c.h.b16 %v5523
        %v5842 = vunpack.c.l.b16 %v5524
        %v5843 = vunpack.c.h.b16 %v5524
        %v5844 = vunpack.c.l.b16 %v5525
        %v5845 = vunpack.c.h.b16 %v5525
        %v5846 = vunpack.c.l.b16 %v5526
        %v5847 = vunpack.c.h.b16 %v5526
        %v5848 = vunpack.c.l.b16 %v5527
        %v5849 = vunpack.c.h.b16 %v5527
        %v5850 = vunpack.c.l.b16 %v5528
        %v5851 = vunpack.c.h.b16 %v5528
        %v5852 = vunpack.c.l.b16 %v5529
        %v5853 = vunpack.c.h.b16 %v5529
        %v5854 = vunpack.c.l.b16 %v5530
        %v5855 = vunpack.c.h.b16 %v5530
        %v5856 = vunpack.c.l.b16 %v5531
        %v5857 = vunpack.c.h.b16 %v5531
        %v5858 = vunpack.c.l.b16 %v5532
        %v5859 = vunpack.c.h.b16 %v5532
        %v5860 = vunpack.c.l.b16 %v5533
        %v5861 = vunpack.c.h.b16 %v5533
        %v5862 = vunpack.c.l.b16 %v5534
        %v5863 = vunpack.c.h.b16 %v5534
        %v5864 = vunpack.c.l.b16 %v5535
        %v5865 = vunpack.c.h.b16 %v5535
        %v5866 = vunpack.c.l.b16 %v5536
        %v5867 = vunpack.c.h.b16 %v5536
        %v5868 = vunpack.c.l.b16 %v5537
        %v5869 = vunpack.c.h.b16 %v5537
        %v5870 = vunpack.c.l.b16 %v5538
        %v5871 = vunpack.c.h.b16 %v5538
        %v5872 = vunpack.c.l.b16 %v5539
        %v5873 = vunpack.c.h.b16 %v5539
        %v5874 = vunpack.c.l.b16 %v5540
        %v5875 = vunpack.c.h.b16 %v5540
        %v5876 = vunpack.c.l.b16 %v5541
        %v5877 = vunpack.c.h.b16 %v5541
        %v5878 = vpack.c.b16 %v5688, %v5686
        %v5879 = vpack.c.b16 %v5689, %v5687
        %v5880 = vpack.c.b16 %v5692, %v5690
        %v5881 = vpack.c.b16 %v5693, %v5691
        %v5882 = vpack.c.b16 %v5696, %v5694
        %v5883 = vpack.c.b16 %v5697, %v5695
        %v5884 = vpack.c.b16 %v5700, %v5698
        %v5885 = vpack.c.b16 %v5701, %v5699
        %v5886 = vpack.c.b16 %v5704, %v5702
        %v5887 = vpack.c.b16 %v5705, %v5703
        %v5888 = vpack.c.b16 %v5708, %v5706
        %v5889 = vpack.c.b16 %v5709, %v5707
        %v5890 = vpack.c.b16 %v5712, %v5710
        %v5891 = vpack.c.b16 %v5713, %v5711
        %v5892 = vpack.c.b16 %v5716, %v5714
        %v5893 = vpack.c.b16 %v5717, %v5715
        %v5894 = vpack.c.b16 %v5720, %v5718
        %v5895 = vpack.c.b16 %v5721, %v5719
        %v5896 = vpack.c.b16 %v5724, %v5722
        %v5897 = vpack.c.b16 %v5725, %v5723
        %v5898 = vpack.c.b16 %v5728, %v5726
        %v5899 = vpack.c.b16 %v5729, %v5727
        %v5900 = vpack.c.b16 %v5732, %v5730
        %v5901 = vpack.c.b16 %v5733, %v5731
        %v5902 = vpack.c.b16 %v5736, %v5734
        %v5903 = vpack.c.b16 %v5737, %v5735
        %v5904 = vpack.c.b16 %v5740, %v5738
        %v5905 = vpack.c.b16 %v5741, %v5739
        %v5906 = vpack.c.b16 %v5744, %v5742
        %v5907 = vpack.c.b16 %v5745, %v5743
        %v5908 = vpack.c.b16 %v5748, %v5746
        %v5909 = vpack.c.b16 %v5749, %v5747
        %v5910 = vpack.c.b16 %v5752, %v5750
        %v5911 = vpack.c.b16 %v5753, %v5751
        %v5912 = vpack.c.b16 %v5756, %v5754
        %v5913 = vpack.c.b16 %v5757, %v5755
        %v5914 = vpack.c.b16 %v5760, %v5758
        %v5915 = vpack.c.b16 %v5761, %v5759
        %v5916 = vpack.c.b16 %v5764, %v5762
        %v5917 = vpack.c.b16 %v5765, %v5763
        %v5918 = vpack.c.b16 %v5768, %v5766
        %v5919 = vpack.c.b16 %v5769, %v5767
        %v5920 = vpack.c.b16 %v5772, %v5770
        %v5921 = vpack.c.b16 %v5773, %v5771
        %v5922 = vpack.c.b16 %v5776, %v5774
        %v5923 = vpack.c.b16 %v5777, %v5775
        %v5924 = vpack.c.b16 %v5780, %v5778
        %v5925 = vpack.c.b16 %v5781, %v5779
        %v5926 = vpack.c.b16 %v5784, %v5782
        %v5927 = vpack.c.b16 %v5785, %v5783
        %v5928 = vpack.c.b16 %v5788, %v5786
        %v5929 = vpack.c.b16 %v5789, %v5787
        %v5930 = vpack.c.b16 %v5792, %v5790
        %v5931 = vpack.c.b16 %v5793, %v5791
        %v5932 = vpack.c.b16 %v5796, %v5794
        %v5933 = vpack.c.b16 %v5797, %v5795
        %v5934 = vpack.c.b16 %v5800, %v5798
        %v5935 = vpack.c.b16 %v5801, %v5799
        %v5936 = vpack.c.b16 %v5804, %v5802
        %v5937 = vpack.c.b16 %v5805, %v5803
        %v5938 = vpack.c.b16 %v5808, %v5806
        %v5939 = vpack.c.b16 %v5809, %v5807
        %v5940 = vpack.c.b16 %v5812, %v5810
        %v5941 = vpack.c.b16 %v5813, %v5811
        %v5942 = vpack.c.b16 %v5816, %v5814
        %v5943 = vpack.c.b16 %v5817, %v5815
        %v5944 = vpack.c.b16 %v5820, %v5818
        %v5945 = vpack.c.b16 %v5821, %v5819
        %v5946 = vpack.c.b16 %v5824, %v5822
        %v5947 = vpack.c.b16 %v5825, %v5823
        %v5948 = vpack.c.b16 %v5828, %v5826
        %v5949 = vpack.c.b16 %v5829, %v5827
        %v5950 = vpack.c.b16 %v5832, %v5830
        %v5951 = vpack.c.b16 %v5833, %v5831
        %v5952 = vpack.c.b16 %v5836, %v5834
        %v5953 = vpack.c.b16 %v5837, %v5835
        %v5954 = vpack.c.b16 %v5840, %v5838
        %v5955 = vpack.c.b16 %v5841, %v5839
        %v5956 = vpack.c.b16 %v5844, %v5842
        %v5957 = vpack.c.b16 %v5845, %v5843
        %v5958 = vpack.c.b16 %v5848, %v5846
        %v5959 = vpack.c.b16 %v5849, %v5847
        %v5960 = vpack.c.b16 %v5852, %v5850
        %v5961 = vpack.c.b16 %v5853, %v5851
        %v5962 = vpack.c.b16 %v5856, %v5854
        %v5963 = vpack.c.b16 %v5857, %v5855
        %v5964 = vpack.c.b16 %v5860, %v5858
        %v5965 = vpack.c.b16 %v5861, %v5859
        %v5966 = vpack.c.b16 %v5864, %v5862
        %v5967 = vpack.c.b16 %v5865, %v5863
        %v5968 = vpack.c.b16 %v5868, %v5866
        %v5969 = vpack.c.b16 %v5869, %v5867
        %v5970 = vpack.c.b16 %v5872, %v5870
        %v5971 = vpack.c.b16 %v5873, %v5871
        %v5972 = vpack.c.b16 %v5876, %v5874
        %v5973 = vpack.c.b16 %v5877, %v5875
        %6070 = vmatprep.subr.bf16.mxu0 %v5893
        %6071 = vmatpush1.bf16.msra.mxu0 %v5892
        %6072 = vmatprep.subr.bf16.mxu0 %v5891
        %6073 = vmatpush1.bf16.msra.mxu0 %v5890
        %6074 = vmatprep.subr.bf16.mxu0 %v5889
        %6075 = vmatpush1.bf16.msra.mxu0 %v5888
        %6076 = vmatprep.subr.bf16.mxu0 %v5887
        %6077 = vmatpush1.bf16.msra.mxu0 %v5886
        %6078 = vmatprep.subr.bf16.mxu0 %v5885
        %6079 = vmatpush1.bf16.msra.mxu0 %v5884
        %6080 = vmatprep.subr.bf16.mxu0 %v5883
        %6081 = vmatpush1.bf16.msra.mxu0 %v5882
        %6082 = vmatprep.subr.bf16.mxu0 %v5881
        %6083 = vmatpush1.bf16.msra.mxu0 %v5880
        %6084 = vmatprep.subr.bf16.mxu0 %v5879
        %6085 = vmatpush1.bf16.msra.mxu0 %v5878
        %6086 = vmatprep.subr.bf16.mxu0 %v5909
        %6087 = vmatpush2.bf16.msra.mxu0 %v5908
        %6088 = vmatprep.subr.bf16.mxu0 %v5907
        %6089 = vmatpush2.bf16.msra.mxu0 %v5906
        %6090 = vmatprep.subr.bf16.mxu0 %v5905
        %6091 = vmatpush2.bf16.msra.mxu0 %v5904
        %6092 = vmatprep.subr.bf16.mxu0 %v5903
        %6093 = vmatpush2.bf16.msra.mxu0 %v5902
        %6094 = vmatprep.subr.bf16.mxu0 %v5901
        %6095 = vmatpush2.bf16.msra.mxu0 %v5900
        %6096 = vmatprep.subr.bf16.mxu0 %v5899
        %6097 = vmatpush2.bf16.msra.mxu0 %v5898
        %6098 = vmatprep.subr.bf16.mxu0 %v5897
        %6099 = vmatpush2.bf16.msra.mxu0 %v5896
        %6100 = vmatprep.subr.bf16.mxu0 %v5895
        %6101 = vmatpush2.bf16.msra.mxu0 %v5894
        %6102 = vmatprep.mubr.bf16.mxu0 %v5543
        %6103 = vmatmul.mubr.bf16.gmra.mxu0 %v5542
        %v6104 = vpop.f32.mrf.mxu0
        %v6105 = vadd.f32 0.0, %v6104
        %v6106 = vpop.f32.mrf.mxu0
        %v6107 = vadd.f32 0.0, %v6106
        %v6108 = vpop.f32.mrf.mxu0
        %v6109 = vadd.f32 0.0, %v6108
        %v6110 = vpop.f32.mrf.mxu0
        %v6111 = vadd.f32 0.0, %v6110
        %6112 = vmatprep.mubr.bf16.mxu0 %v5549
        %6113 = vmatmul.mubr.bf16.gmra.mxu0 %v5548
        %v6114 = vpop.f32.mrf.mxu0
        %v6115 = vadd.f32 0.0, %v6114
        %v6116 = vpop.f32.mrf.mxu0
        %v6117 = vadd.f32 0.0, %v6116
        %v6118 = vpop.f32.mrf.mxu0
        %v6119 = vadd.f32 0.0, %v6118
        %v6120 = vpop.f32.mrf.mxu0
        %v6121 = vadd.f32 0.0, %v6120
        %6122 = vmatprep.mubr.bf16.mxu0 %v5555
        %6123 = vmatmul.mubr.bf16.gmra.mxu0 %v5554
        %v6124 = vpop.f32.mrf.mxu0
        %v6125 = vadd.f32 0.0, %v6124
        %v6126 = vpop.f32.mrf.mxu0
        %v6127 = vadd.f32 0.0, %v6126
        %v6128 = vpop.f32.mrf.mxu0
        %v6129 = vadd.f32 0.0, %v6128
        %v6130 = vpop.f32.mrf.mxu0
        %v6131 = vadd.f32 0.0, %v6130
        %6132 = vmatprep.mubr.bf16.mxu0 %v5561
        %6133 = vmatmul.mubr.bf16.gmra.mxu0 %v5560
        %v6134 = vpop.f32.mrf.mxu0
        %v6135 = vadd.f32 0.0, %v6134
        %v6136 = vpop.f32.mrf.mxu0
        %v6137 = vadd.f32 0.0, %v6136
        %v6138 = vpop.f32.mrf.mxu0
        %v6139 = vadd.f32 0.0, %v6138
        %v6140 = vpop.f32.mrf.mxu0
        %v6141 = vadd.f32 0.0, %v6140
        %6142 = vdwg.mxu0
        %6143 = vmatprep.subr.bf16.mxu0 %v5925
        %6144 = vmatpush1.bf16.msra.mxu0 %v5924
        %6145 = vmatprep.subr.bf16.mxu0 %v5923
        %6146 = vmatpush1.bf16.msra.mxu0 %v5922
        %6147 = vmatprep.subr.bf16.mxu0 %v5921
        %6148 = vmatpush1.bf16.msra.mxu0 %v5920
        %6149 = vmatprep.subr.bf16.mxu0 %v5919
        %6150 = vmatpush1.bf16.msra.mxu0 %v5918
        %6151 = vmatprep.subr.bf16.mxu0 %v5917
        %6152 = vmatpush1.bf16.msra.mxu0 %v5916
        %6153 = vmatprep.subr.bf16.mxu0 %v5915
        %6154 = vmatpush1.bf16.msra.mxu0 %v5914
        %6155 = vmatprep.subr.bf16.mxu0 %v5913
        %6156 = vmatpush1.bf16.msra.mxu0 %v5912
        %6157 = vmatprep.subr.bf16.mxu0 %v5911
        %6158 = vmatpush1.bf16.msra.mxu0 %v5910
        %6159 = vmatprep.subr.bf16.mxu0 %v5941
        %6160 = vmatpush2.bf16.msra.mxu0 %v5940
        %6161 = vmatprep.subr.bf16.mxu0 %v5939
        %6162 = vmatpush2.bf16.msra.mxu0 %v5938
        %6163 = vmatprep.subr.bf16.mxu0 %v5937
        %6164 = vmatpush2.bf16.msra.mxu0 %v5936
        %6165 = vmatprep.subr.bf16.mxu0 %v5935
        %6166 = vmatpush2.bf16.msra.mxu0 %v5934
        %6167 = vmatprep.subr.bf16.mxu0 %v5933
        %6168 = vmatpush2.bf16.msra.mxu0 %v5932
        %6169 = vmatprep.subr.bf16.mxu0 %v5931
        %6170 = vmatpush2.bf16.msra.mxu0 %v5930
        %6171 = vmatprep.subr.bf16.mxu0 %v5929
        %6172 = vmatpush2.bf16.msra.mxu0 %v5928
        %6173 = vmatprep.subr.bf16.mxu0 %v5927
        %6174 = vmatpush2.bf16.msra.mxu0 %v5926
        %6175 = vmatprep.mubr.bf16.mxu0 %v5545
        %6176 = vmatmul.mubr.bf16.gmra.mxu0 %v5544
        %v6177 = vpop.f32.mrf.mxu0
        %v6178 = vadd.f32 %v6105, %v6177
        %v6179 = vpop.f32.mrf.mxu0
        %v6180 = vadd.f32 %v6107, %v6179
        %v6181 = vpop.f32.mrf.mxu0
        %v6182 = vadd.f32 %v6109, %v6181
        %v6183 = vpop.f32.mrf.mxu0
        %v6184 = vadd.f32 %v6111, %v6183
        %6185 = vmatprep.mubr.bf16.mxu0 %v5551
        %6186 = vmatmul.mubr.bf16.gmra.mxu0 %v5550
        %v6187 = vpop.f32.mrf.mxu0
        %v6188 = vadd.f32 %v6115, %v6187
        %v6189 = vpop.f32.mrf.mxu0
        %v6190 = vadd.f32 %v6117, %v6189
        %v6191 = vpop.f32.mrf.mxu0
        %v6192 = vadd.f32 %v6119, %v6191
        %v6193 = vpop.f32.mrf.mxu0
        %v6194 = vadd.f32 %v6121, %v6193
        %6195 = vmatprep.mubr.bf16.mxu0 %v5557
        %6196 = vmatmul.mubr.bf16.gmra.mxu0 %v5556
        %v6197 = vpop.f32.mrf.mxu0
        %v6198 = vadd.f32 %v6125, %v6197
        %v6199 = vpop.f32.mrf.mxu0
        %v6200 = vadd.f32 %v6127, %v6199
        %v6201 = vpop.f32.mrf.mxu0
        %v6202 = vadd.f32 %v6129, %v6201
        %v6203 = vpop.f32.mrf.mxu0
        %v6204 = vadd.f32 %v6131, %v6203
        %6205 = vmatprep.mubr.bf16.mxu0 %v5563
        %6206 = vmatmul.mubr.bf16.gmra.mxu0 %v5562
        %v6207 = vpop.f32.mrf.mxu0
        %v6208 = vadd.f32 %v6135, %v6207
        %v6209 = vpop.f32.mrf.mxu0
        %v6210 = vadd.f32 %v6137, %v6209
        %v6211 = vpop.f32.mrf.mxu0
        %v6212 = vadd.f32 %v6139, %v6211
        %v6213 = vpop.f32.mrf.mxu0
        %v6214 = vadd.f32 %v6141, %v6213
        %6215 = vdwg.mxu0
        %6216 = vmatprep.subr.bf16.mxu0 %v5957
        %6217 = vmatpush1.bf16.msra.mxu0 %v5956
        %6218 = vmatprep.subr.bf16.mxu0 %v5955
        %6219 = vmatpush1.bf16.msra.mxu0 %v5954
        %6220 = vmatprep.subr.bf16.mxu0 %v5953
        %6221 = vmatpush1.bf16.msra.mxu0 %v5952
        %6222 = vmatprep.subr.bf16.mxu0 %v5951
        %6223 = vmatpush1.bf16.msra.mxu0 %v5950
        %6224 = vmatprep.subr.bf16.mxu0 %v5949
        %6225 = vmatpush1.bf16.msra.mxu0 %v5948
        %6226 = vmatprep.subr.bf16.mxu0 %v5947
        %6227 = vmatpush1.bf16.msra.mxu0 %v5946
        %6228 = vmatprep.subr.bf16.mxu0 %v5945
        %6229 = vmatpush1.bf16.msra.mxu0 %v5944
        %6230 = vmatprep.subr.bf16.mxu0 %v5943
        %6231 = vmatpush1.bf16.msra.mxu0 %v5942
        %6232 = vmatprep.subr.bf16.mxu0 %v5973
        %6233 = vmatpush2.bf16.msra.mxu0 %v5972
        %6234 = vmatprep.subr.bf16.mxu0 %v5971
        %6235 = vmatpush2.bf16.msra.mxu0 %v5970
        %6236 = vmatprep.subr.bf16.mxu0 %v5969
        %6237 = vmatpush2.bf16.msra.mxu0 %v5968
        %6238 = vmatprep.subr.bf16.mxu0 %v5967
        %6239 = vmatpush2.bf16.msra.mxu0 %v5966
        %6240 = vmatprep.subr.bf16.mxu0 %v5965
        %6241 = vmatpush2.bf16.msra.mxu0 %v5964
        %6242 = vmatprep.subr.bf16.mxu0 %v5963
        %6243 = vmatpush2.bf16.msra.mxu0 %v5962
        %6244 = vmatprep.subr.bf16.mxu0 %v5961
        %6245 = vmatpush2.bf16.msra.mxu0 %v5960
        %6246 = vmatprep.subr.bf16.mxu0 %v5959
        %6247 = vmatpush2.bf16.msra.mxu0 %v5958
        %6248 = vmatprep.mubr.bf16.mxu0 %v5547
        %6249 = vmatmul.mubr.bf16.gmra.mxu0 %v5546
        %v6250 = vpop.f32.mrf.mxu0
        %v6251 = vadd.f32 %v6178, %v6250
        %v6252 = vpop.f32.mrf.mxu0
        %v6253 = vadd.f32 %v6180, %v6252
        %v6254 = vpop.f32.mrf.mxu0
        %v6255 = vadd.f32 %v6182, %v6254
        %v6256 = vpop.f32.mrf.mxu0
        %v6257 = vadd.f32 %v6184, %v6256
        %6258 = vmatprep.mubr.bf16.mxu0 %v5553
        %6259 = vmatmul.mubr.bf16.gmra.mxu0 %v5552
        %v6260 = vpop.f32.mrf.mxu0
        %v6261 = vadd.f32 %v6188, %v6260
        %v6262 = vpop.f32.mrf.mxu0
        %v6263 = vadd.f32 %v6190, %v6262
        %v6264 = vpop.f32.mrf.mxu0
        %v6265 = vadd.f32 %v6192, %v6264
        %v6266 = vpop.f32.mrf.mxu0
        %v6267 = vadd.f32 %v6194, %v6266
        %6268 = vmatprep.mubr.bf16.mxu0 %v5559
        %6269 = vmatmul.mubr.bf16.gmra.mxu0 %v5558
        %v6270 = vpop.f32.mrf.mxu0
        %v6271 = vadd.f32 %v6198, %v6270
        %v6272 = vpop.f32.mrf.mxu0
        %v6273 = vadd.f32 %v6200, %v6272
        %v6274 = vpop.f32.mrf.mxu0
        %v6275 = vadd.f32 %v6202, %v6274
        %v6276 = vpop.f32.mrf.mxu0
        %v6277 = vadd.f32 %v6204, %v6276
        %6278 = vmatprep.mubr.bf16.mxu0 %v5565
        %6279 = vmatmul.mubr.bf16.gmra.mxu0 %v5564
        %v6280 = vpop.f32.mrf.mxu0
        %v6281 = vadd.f32 %v6208, %v6280
        %v6282 = vpop.f32.mrf.mxu0
        %v6283 = vadd.f32 %v6210, %v6282
        %v6284 = vpop.f32.mrf.mxu0
        %v6285 = vadd.f32 %v6212, %v6284
        %v6286 = vpop.f32.mrf.mxu0
        %v6287 = vadd.f32 %v6214, %v6286
        %6288 = vdwg.mxu0
        %v6289 = vpack.c.b16 %v4894, %v4892
        %v6290 = vpack.c.b16 %v4895, %v4893
        %v6291 = vpack.c.b16 %v5080, %v5076
        %v6292 = vpack.c.b16 %v5081, %v5077
        %v6293 = vpack.c.b16 %v5082, %v5078
        %v6294 = vpack.c.b16 %v5083, %v5079
        %v6295 = vpack.c.b16 %v4898, %v4896
        %v6296 = vpack.c.b16 %v4899, %v4897
        %v6297 = vpack.c.b16 %v5088, %v5084
        %v6298 = vpack.c.b16 %v5089, %v5085
        %v6299 = vpack.c.b16 %v5090, %v5086
        %v6300 = vpack.c.b16 %v5091, %v5087
        %v6301 = vpack.c.b16 %v4902, %v4900
        %v6302 = vpack.c.b16 %v4903, %v4901
        %v6303 = vpack.c.b16 %v5096, %v5092
        %v6304 = vpack.c.b16 %v5097, %v5093
        %v6305 = vpack.c.b16 %v5098, %v5094
        %v6306 = vpack.c.b16 %v5099, %v5095
        %v6307 = vpack.c.b16 %v4906, %v4904
        %v6308 = vpack.c.b16 %v4907, %v4905
        %v6309 = vpack.c.b16 %v5104, %v5100
        %v6310 = vpack.c.b16 %v5105, %v5101
        %v6311 = vpack.c.b16 %v5106, %v5102
        %v6312 = vpack.c.b16 %v5107, %v5103
        %v6433 = vunpack.c.l.b16 %v5108
        %v6434 = vunpack.c.h.b16 %v5108
        %v6435 = vunpack.c.l.b16 %v5109
        %v6436 = vunpack.c.h.b16 %v5109
        %v6437 = vunpack.c.l.b16 %v5110
        %v6438 = vunpack.c.h.b16 %v5110
        %v6439 = vunpack.c.l.b16 %v5111
        %v6440 = vunpack.c.h.b16 %v5111
        %v6441 = vunpack.c.l.b16 %v5112
        %v6442 = vunpack.c.h.b16 %v5112
        %v6443 = vunpack.c.l.b16 %v5113
        %v6444 = vunpack.c.h.b16 %v5113
        %v6445 = vunpack.c.l.b16 %v5114
        %v6446 = vunpack.c.h.b16 %v5114
        %v6447 = vunpack.c.l.b16 %v5115
        %v6448 = vunpack.c.h.b16 %v5115
        %v6449 = vunpack.c.l.b16 %v5116
        %v6450 = vunpack.c.h.b16 %v5116
        %v6451 = vunpack.c.l.b16 %v5117
        %v6452 = vunpack.c.h.b16 %v5117
        %v6453 = vunpack.c.l.b16 %v5118
        %v6454 = vunpack.c.h.b16 %v5118
        %v6455 = vunpack.c.l.b16 %v5119
        %v6456 = vunpack.c.h.b16 %v5119
        %v6457 = vunpack.c.l.b16 %v5120
        %v6458 = vunpack.c.h.b16 %v5120
        %v6459 = vunpack.c.l.b16 %v5121
        %v6460 = vunpack.c.h.b16 %v5121
        %v6461 = vunpack.c.l.b16 %v5122
        %v6462 = vunpack.c.h.b16 %v5122
        %v6463 = vunpack.c.l.b16 %v5123
        %v6464 = vunpack.c.h.b16 %v5123
        %v6465 = vunpack.c.l.b16 %v5124
        %v6466 = vunpack.c.h.b16 %v5124
        %v6467 = vunpack.c.l.b16 %v5125
        %v6468 = vunpack.c.h.b16 %v5125
        %v6469 = vunpack.c.l.b16 %v5126
        %v6470 = vunpack.c.h.b16 %v5126
        %v6471 = vunpack.c.l.b16 %v5127
        %v6472 = vunpack.c.h.b16 %v5127
        %v6473 = vunpack.c.l.b16 %v5128
        %v6474 = vunpack.c.h.b16 %v5128
        %v6475 = vunpack.c.l.b16 %v5129
        %v6476 = vunpack.c.h.b16 %v5129
        %v6477 = vunpack.c.l.b16 %v5130
        %v6478 = vunpack.c.h.b16 %v5130
        %v6479 = vunpack.c.l.b16 %v5131
        %v6480 = vunpack.c.h.b16 %v5131
        %v6481 = vunpack.c.l.b16 %v5132
        %v6482 = vunpack.c.h.b16 %v5132
        %v6483 = vunpack.c.l.b16 %v5133
        %v6484 = vunpack.c.h.b16 %v5133
        %v6485 = vunpack.c.l.b16 %v5134
        %v6486 = vunpack.c.h.b16 %v5134
        %v6487 = vunpack.c.l.b16 %v5135
        %v6488 = vunpack.c.h.b16 %v5135
        %v6489 = vunpack.c.l.b16 %v5136
        %v6490 = vunpack.c.h.b16 %v5136
        %v6491 = vunpack.c.l.b16 %v5137
        %v6492 = vunpack.c.h.b16 %v5137
        %v6493 = vunpack.c.l.b16 %v5138
        %v6494 = vunpack.c.h.b16 %v5138
        %v6495 = vunpack.c.l.b16 %v5139
        %v6496 = vunpack.c.h.b16 %v5139
        %v6497 = vunpack.c.l.b16 %v5140
        %v6498 = vunpack.c.h.b16 %v5140
        %v6499 = vunpack.c.l.b16 %v5141
        %v6500 = vunpack.c.h.b16 %v5141
        %v6501 = vunpack.c.l.b16 %v5142
        %v6502 = vunpack.c.h.b16 %v5142
        %v6503 = vunpack.c.l.b16 %v5143
        %v6504 = vunpack.c.h.b16 %v5143
        %v6505 = vunpack.c.l.b16 %v5144
        %v6506 = vunpack.c.h.b16 %v5144
        %v6507 = vunpack.c.l.b16 %v5145
        %v6508 = vunpack.c.h.b16 %v5145
        %v6509 = vunpack.c.l.b16 %v5146
        %v6510 = vunpack.c.h.b16 %v5146
        %v6511 = vunpack.c.l.b16 %v5147
        %v6512 = vunpack.c.h.b16 %v5147
        %v6513 = vunpack.c.l.b16 %v5148
        %v6514 = vunpack.c.h.b16 %v5148
        %v6515 = vunpack.c.l.b16 %v5149
        %v6516 = vunpack.c.h.b16 %v5149
        %v6517 = vunpack.c.l.b16 %v5150
        %v6518 = vunpack.c.h.b16 %v5150
        %v6519 = vunpack.c.l.b16 %v5151
        %v6520 = vunpack.c.h.b16 %v5151
        %v6521 = vunpack.c.l.b16 %v5152
        %v6522 = vunpack.c.h.b16 %v5152
        %v6523 = vunpack.c.l.b16 %v5153
        %v6524 = vunpack.c.h.b16 %v5153
        %v6525 = vunpack.c.l.b16 %v5154
        %v6526 = vunpack.c.h.b16 %v5154
        %v6527 = vunpack.c.l.b16 %v5155
        %v6528 = vunpack.c.h.b16 %v5155
        %v6529 = vunpack.c.l.b16 %v5156
        %v6530 = vunpack.c.h.b16 %v5156
        %v6531 = vunpack.c.l.b16 %v5157
        %v6532 = vunpack.c.h.b16 %v5157
        %v6533 = vunpack.c.l.b16 %v5158
        %v6534 = vunpack.c.h.b16 %v5158
        %v6535 = vunpack.c.l.b16 %v5159
        %v6536 = vunpack.c.h.b16 %v5159
        %v6537 = vunpack.c.l.b16 %v5160
        %v6538 = vunpack.c.h.b16 %v5160
        %v6539 = vunpack.c.l.b16 %v5161
        %v6540 = vunpack.c.h.b16 %v5161
        %v6541 = vunpack.c.l.b16 %v5162
        %v6542 = vunpack.c.h.b16 %v5162
        %v6543 = vunpack.c.l.b16 %v5163
        %v6544 = vunpack.c.h.b16 %v5163
        %v6545 = vunpack.c.l.b16 %v5164
        %v6546 = vunpack.c.h.b16 %v5164
        %v6547 = vunpack.c.l.b16 %v5165
        %v6548 = vunpack.c.h.b16 %v5165
        %v6549 = vunpack.c.l.b16 %v5166
        %v6550 = vunpack.c.h.b16 %v5166
        %v6551 = vunpack.c.l.b16 %v5167
        %v6552 = vunpack.c.h.b16 %v5167
        %v6553 = vunpack.c.l.b16 %v5168
        %v6554 = vunpack.c.h.b16 %v5168
        %v6555 = vunpack.c.l.b16 %v5169
        %v6556 = vunpack.c.h.b16 %v5169
        %v6557 = vunpack.c.l.b16 %v5170
        %v6558 = vunpack.c.h.b16 %v5170
        %v6559 = vunpack.c.l.b16 %v5171
        %v6560 = vunpack.c.h.b16 %v5171
        %v6561 = vunpack.c.l.b16 %v5172
        %v6562 = vunpack.c.h.b16 %v5172
        %v6563 = vunpack.c.l.b16 %v5173
        %v6564 = vunpack.c.h.b16 %v5173
        %v6565 = vunpack.c.l.b16 %v5174
        %v6566 = vunpack.c.h.b16 %v5174
        %v6567 = vunpack.c.l.b16 %v5175
        %v6568 = vunpack.c.h.b16 %v5175
        %v6569 = vunpack.c.l.b16 %v5176
        %v6570 = vunpack.c.h.b16 %v5176
        %v6571 = vunpack.c.l.b16 %v5177
        %v6572 = vunpack.c.h.b16 %v5177
        %v6573 = vunpack.c.l.b16 %v5178
        %v6574 = vunpack.c.h.b16 %v5178
        %v6575 = vunpack.c.l.b16 %v5179
        %v6576 = vunpack.c.h.b16 %v5179
        %v6577 = vunpack.c.l.b16 %v5180
        %v6578 = vunpack.c.h.b16 %v5180
        %v6579 = vunpack.c.l.b16 %v5181
        %v6580 = vunpack.c.h.b16 %v5181
        %v6581 = vunpack.c.l.b16 %v5182
        %v6582 = vunpack.c.h.b16 %v5182
        %v6583 = vunpack.c.l.b16 %v5183
        %v6584 = vunpack.c.h.b16 %v5183
        %v6585 = vunpack.c.l.b16 %v5184
        %v6586 = vunpack.c.h.b16 %v5184
        %v6587 = vunpack.c.l.b16 %v5185
        %v6588 = vunpack.c.h.b16 %v5185
        %v6589 = vunpack.c.l.b16 %v5186
        %v6590 = vunpack.c.h.b16 %v5186
        %v6591 = vunpack.c.l.b16 %v5187
        %v6592 = vunpack.c.h.b16 %v5187
        %v6593 = vunpack.c.l.b16 %v5188
        %v6594 = vunpack.c.h.b16 %v5188
        %v6595 = vunpack.c.l.b16 %v5189
        %v6596 = vunpack.c.h.b16 %v5189
        %v6597 = vunpack.c.l.b16 %v5190
        %v6598 = vunpack.c.h.b16 %v5190
        %v6599 = vunpack.c.l.b16 %v5191
        %v6600 = vunpack.c.h.b16 %v5191
        %v6601 = vunpack.c.l.b16 %v5192
        %v6602 = vunpack.c.h.b16 %v5192
        %v6603 = vunpack.c.l.b16 %v5193
        %v6604 = vunpack.c.h.b16 %v5193
        %v6605 = vunpack.c.l.b16 %v5194
        %v6606 = vunpack.c.h.b16 %v5194
        %v6607 = vunpack.c.l.b16 %v5195
        %v6608 = vunpack.c.h.b16 %v5195
        %v6609 = vunpack.c.l.b16 %v5196
        %v6610 = vunpack.c.h.b16 %v5196
        %v6611 = vunpack.c.l.b16 %v5197
        %v6612 = vunpack.c.h.b16 %v5197
        %v6613 = vunpack.c.l.b16 %v5198
        %v6614 = vunpack.c.h.b16 %v5198
        %v6615 = vunpack.c.l.b16 %v5199
        %v6616 = vunpack.c.h.b16 %v5199
        %v6617 = vunpack.c.l.b16 %v5200
        %v6618 = vunpack.c.h.b16 %v5200
        %v6619 = vunpack.c.l.b16 %v5201
        %v6620 = vunpack.c.h.b16 %v5201
        %v6621 = vunpack.c.l.b16 %v5202
        %v6622 = vunpack.c.h.b16 %v5202
        %v6623 = vunpack.c.l.b16 %v5203
        %v6624 = vunpack.c.h.b16 %v5203
        %v6625 = vpack.c.b16 %v6435, %v6433
        %v6626 = vpack.c.b16 %v6436, %v6434
        %v6627 = vpack.c.b16 %v6439, %v6437
        %v6628 = vpack.c.b16 %v6440, %v6438
        %v6629 = vpack.c.b16 %v6443, %v6441
        %v6630 = vpack.c.b16 %v6444, %v6442
        %v6631 = vpack.c.b16 %v6447, %v6445
        %v6632 = vpack.c.b16 %v6448, %v6446
        %v6633 = vpack.c.b16 %v6451, %v6449
        %v6634 = vpack.c.b16 %v6452, %v6450
        %v6635 = vpack.c.b16 %v6455, %v6453
        %v6636 = vpack.c.b16 %v6456, %v6454
        %v6637 = vpack.c.b16 %v6459, %v6457
        %v6638 = vpack.c.b16 %v6460, %v6458
        %v6639 = vpack.c.b16 %v6463, %v6461
        %v6640 = vpack.c.b16 %v6464, %v6462
        %v6641 = vpack.c.b16 %v6467, %v6465
        %v6642 = vpack.c.b16 %v6468, %v6466
        %v6643 = vpack.c.b16 %v6471, %v6469
        %v6644 = vpack.c.b16 %v6472, %v6470
        %v6645 = vpack.c.b16 %v6475, %v6473
        %v6646 = vpack.c.b16 %v6476, %v6474
        %v6647 = vpack.c.b16 %v6479, %v6477
        %v6648 = vpack.c.b16 %v6480, %v6478
        %v6649 = vpack.c.b16 %v6483, %v6481
        %v6650 = vpack.c.b16 %v6484, %v6482
        %v6651 = vpack.c.b16 %v6487, %v6485
        %v6652 = vpack.c.b16 %v6488, %v6486
        %v6653 = vpack.c.b16 %v6491, %v6489
        %v6654 = vpack.c.b16 %v6492, %v6490
        %v6655 = vpack.c.b16 %v6495, %v6493
        %v6656 = vpack.c.b16 %v6496, %v6494
        %v6657 = vpack.c.b16 %v6499, %v6497
        %v6658 = vpack.c.b16 %v6500, %v6498
        %v6659 = vpack.c.b16 %v6503, %v6501
        %v6660 = vpack.c.b16 %v6504, %v6502
        %v6661 = vpack.c.b16 %v6507, %v6505
        %v6662 = vpack.c.b16 %v6508, %v6506
        %v6663 = vpack.c.b16 %v6511, %v6509
        %v6664 = vpack.c.b16 %v6512, %v6510
        %v6665 = vpack.c.b16 %v6515, %v6513
        %v6666 = vpack.c.b16 %v6516, %v6514
        %v6667 = vpack.c.b16 %v6519, %v6517
        %v6668 = vpack.c.b16 %v6520, %v6518
        %v6669 = vpack.c.b16 %v6523, %v6521
        %v6670 = vpack.c.b16 %v6524, %v6522
        %v6671 = vpack.c.b16 %v6527, %v6525
        %v6672 = vpack.c.b16 %v6528, %v6526
        %v6673 = vpack.c.b16 %v6531, %v6529
        %v6674 = vpack.c.b16 %v6532, %v6530
        %v6675 = vpack.c.b16 %v6535, %v6533
        %v6676 = vpack.c.b16 %v6536, %v6534
        %v6677 = vpack.c.b16 %v6539, %v6537
        %v6678 = vpack.c.b16 %v6540, %v6538
        %v6679 = vpack.c.b16 %v6543, %v6541
        %v6680 = vpack.c.b16 %v6544, %v6542
        %v6681 = vpack.c.b16 %v6547, %v6545
        %v6682 = vpack.c.b16 %v6548, %v6546
        %v6683 = vpack.c.b16 %v6551, %v6549
        %v6684 = vpack.c.b16 %v6552, %v6550
        %v6685 = vpack.c.b16 %v6555, %v6553
        %v6686 = vpack.c.b16 %v6556, %v6554
        %v6687 = vpack.c.b16 %v6559, %v6557
        %v6688 = vpack.c.b16 %v6560, %v6558
        %v6689 = vpack.c.b16 %v6563, %v6561
        %v6690 = vpack.c.b16 %v6564, %v6562
        %v6691 = vpack.c.b16 %v6567, %v6565
        %v6692 = vpack.c.b16 %v6568, %v6566
        %v6693 = vpack.c.b16 %v6571, %v6569
        %v6694 = vpack.c.b16 %v6572, %v6570
        %v6695 = vpack.c.b16 %v6575, %v6573
        %v6696 = vpack.c.b16 %v6576, %v6574
        %v6697 = vpack.c.b16 %v6579, %v6577
        %v6698 = vpack.c.b16 %v6580, %v6578
        %v6699 = vpack.c.b16 %v6583, %v6581
        %v6700 = vpack.c.b16 %v6584, %v6582
        %v6701 = vpack.c.b16 %v6587, %v6585
        %v6702 = vpack.c.b16 %v6588, %v6586
        %v6703 = vpack.c.b16 %v6591, %v6589
        %v6704 = vpack.c.b16 %v6592, %v6590
        %v6705 = vpack.c.b16 %v6595, %v6593
        %v6706 = vpack.c.b16 %v6596, %v6594
        %v6707 = vpack.c.b16 %v6599, %v6597
        %v6708 = vpack.c.b16 %v6600, %v6598
        %v6709 = vpack.c.b16 %v6603, %v6601
        %v6710 = vpack.c.b16 %v6604, %v6602
        %v6711 = vpack.c.b16 %v6607, %v6605
        %v6712 = vpack.c.b16 %v6608, %v6606
        %v6713 = vpack.c.b16 %v6611, %v6609
        %v6714 = vpack.c.b16 %v6612, %v6610
        %v6715 = vpack.c.b16 %v6615, %v6613
        %v6716 = vpack.c.b16 %v6616, %v6614
        %v6717 = vpack.c.b16 %v6619, %v6617
        %v6718 = vpack.c.b16 %v6620, %v6618
        %v6719 = vpack.c.b16 %v6623, %v6621
        %v6720 = vpack.c.b16 %v6624, %v6622
        %6817 = vmatprep.subr.bf16.mxu0 %v6640
        %6818 = vmatpush1.bf16.msra.mxu0 %v6639
        %6819 = vmatprep.subr.bf16.mxu0 %v6638
        %6820 = vmatpush1.bf16.msra.mxu0 %v6637
        %6821 = vmatprep.subr.bf16.mxu0 %v6636
        %6822 = vmatpush1.bf16.msra.mxu0 %v6635
        %6823 = vmatprep.subr.bf16.mxu0 %v6634
        %6824 = vmatpush1.bf16.msra.mxu0 %v6633
        %6825 = vmatprep.subr.bf16.mxu0 %v6632
        %6826 = vmatpush1.bf16.msra.mxu0 %v6631
        %6827 = vmatprep.subr.bf16.mxu0 %v6630
        %6828 = vmatpush1.bf16.msra.mxu0 %v6629
        %6829 = vmatprep.subr.bf16.mxu0 %v6628
        %6830 = vmatpush1.bf16.msra.mxu0 %v6627
        %6831 = vmatprep.subr.bf16.mxu0 %v6626
        %6832 = vmatpush1.bf16.msra.mxu0 %v6625
        %6833 = vmatprep.subr.bf16.mxu0 %v6656
        %6834 = vmatpush2.bf16.msra.mxu0 %v6655
        %6835 = vmatprep.subr.bf16.mxu0 %v6654
        %6836 = vmatpush2.bf16.msra.mxu0 %v6653
        %6837 = vmatprep.subr.bf16.mxu0 %v6652
        %6838 = vmatpush2.bf16.msra.mxu0 %v6651
        %6839 = vmatprep.subr.bf16.mxu0 %v6650
        %6840 = vmatpush2.bf16.msra.mxu0 %v6649
        %6841 = vmatprep.subr.bf16.mxu0 %v6648
        %6842 = vmatpush2.bf16.msra.mxu0 %v6647
        %6843 = vmatprep.subr.bf16.mxu0 %v6646
        %6844 = vmatpush2.bf16.msra.mxu0 %v6645
        %6845 = vmatprep.subr.bf16.mxu0 %v6644
        %6846 = vmatpush2.bf16.msra.mxu0 %v6643
        %6847 = vmatprep.subr.bf16.mxu0 %v6642
        %6848 = vmatpush2.bf16.msra.mxu0 %v6641
        %6849 = vmatprep.mubr.bf16.mxu0 %v6290
        %6850 = vmatmul.mubr.bf16.gmra.mxu0 %v6289
        %v6851 = vpop.f32.mrf.mxu0
        %v6852 = vadd.f32 %v6251, %v6851
        %v6853 = vpop.f32.mrf.mxu0
        %v6854 = vadd.f32 %v6253, %v6853
        %v6855 = vpop.f32.mrf.mxu0
        %v6856 = vadd.f32 %v6255, %v6855
        %v6857 = vpop.f32.mrf.mxu0
        %v6858 = vadd.f32 %v6257, %v6857
        %6859 = vmatprep.mubr.bf16.mxu0 %v6296
        %6860 = vmatmul.mubr.bf16.gmra.mxu0 %v6295
        %v6861 = vpop.f32.mrf.mxu0
        %v6862 = vadd.f32 %v6261, %v6861
        %v6863 = vpop.f32.mrf.mxu0
        %v6864 = vadd.f32 %v6263, %v6863
        %v6865 = vpop.f32.mrf.mxu0
        %v6866 = vadd.f32 %v6265, %v6865
        %v6867 = vpop.f32.mrf.mxu0
        %v6868 = vadd.f32 %v6267, %v6867
        %6869 = vmatprep.mubr.bf16.mxu0 %v6302
        %6870 = vmatmul.mubr.bf16.gmra.mxu0 %v6301
        %v6871 = vpop.f32.mrf.mxu0
        %v6872 = vadd.f32 %v6271, %v6871
        %v6873 = vpop.f32.mrf.mxu0
        %v6874 = vadd.f32 %v6273, %v6873
        %v6875 = vpop.f32.mrf.mxu0
        %v6876 = vadd.f32 %v6275, %v6875
        %v6877 = vpop.f32.mrf.mxu0
        %v6878 = vadd.f32 %v6277, %v6877
        %6879 = vmatprep.mubr.bf16.mxu0 %v6308
        %6880 = vmatmul.mubr.bf16.gmra.mxu0 %v6307
        %v6881 = vpop.f32.mrf.mxu0
        %v6882 = vadd.f32 %v6281, %v6881
        %v6883 = vpop.f32.mrf.mxu0
        %v6884 = vadd.f32 %v6283, %v6883
        %v6885 = vpop.f32.mrf.mxu0
        %v6886 = vadd.f32 %v6285, %v6885
        %v6887 = vpop.f32.mrf.mxu0
        %v6888 = vadd.f32 %v6287, %v6887
        %6889 = vdwg.mxu0
        %6890 = vmatprep.subr.bf16.mxu0 %v6672
        %6891 = vmatpush1.bf16.msra.mxu0 %v6671
        %6892 = vmatprep.subr.bf16.mxu0 %v6670
        %6893 = vmatpush1.bf16.msra.mxu0 %v6669
        %6894 = vmatprep.subr.bf16.mxu0 %v6668
        %6895 = vmatpush1.bf16.msra.mxu0 %v6667
        %6896 = vmatprep.subr.bf16.mxu0 %v6666
        %6897 = vmatpush1.bf16.msra.mxu0 %v6665
        %6898 = vmatprep.subr.bf16.mxu0 %v6664
        %6899 = vmatpush1.bf16.msra.mxu0 %v6663
        %6900 = vmatprep.subr.bf16.mxu0 %v6662
        %6901 = vmatpush1.bf16.msra.mxu0 %v6661
        %6902 = vmatprep.subr.bf16.mxu0 %v6660
        %6903 = vmatpush1.bf16.msra.mxu0 %v6659
        %6904 = vmatprep.subr.bf16.mxu0 %v6658
        %6905 = vmatpush1.bf16.msra.mxu0 %v6657
        %6906 = vmatprep.subr.bf16.mxu0 %v6688
        %6907 = vmatpush2.bf16.msra.mxu0 %v6687
        %6908 = vmatprep.subr.bf16.mxu0 %v6686
        %6909 = vmatpush2.bf16.msra.mxu0 %v6685
        %6910 = vmatprep.subr.bf16.mxu0 %v6684
        %6911 = vmatpush2.bf16.msra.mxu0 %v6683
        %6912 = vmatprep.subr.bf16.mxu0 %v6682
        %6913 = vmatpush2.bf16.msra.mxu0 %v6681
        %6914 = vmatprep.subr.bf16.mxu0 %v6680
        %6915 = vmatpush2.bf16.msra.mxu0 %v6679
        %6916 = vmatprep.subr.bf16.mxu0 %v6678
        %6917 = vmatpush2.bf16.msra.mxu0 %v6677
        %6918 = vmatprep.subr.bf16.mxu0 %v6676
        %6919 = vmatpush2.bf16.msra.mxu0 %v6675
        %6920 = vmatprep.subr.bf16.mxu0 %v6674
        %6921 = vmatpush2.bf16.msra.mxu0 %v6673
        %6922 = vmatprep.mubr.bf16.mxu0 %v6292
        %6923 = vmatmul.mubr.bf16.gmra.mxu0 %v6291
        %v6924 = vpop.f32.mrf.mxu0
        %v6925 = vadd.f32 %v6852, %v6924
        %v6926 = vpop.f32.mrf.mxu0
        %v6927 = vadd.f32 %v6854, %v6926
        %v6928 = vpop.f32.mrf.mxu0
        %v6929 = vadd.f32 %v6856, %v6928
        %v6930 = vpop.f32.mrf.mxu0
        %v6931 = vadd.f32 %v6858, %v6930
        %6932 = vmatprep.mubr.bf16.mxu0 %v6298
        %6933 = vmatmul.mubr.bf16.gmra.mxu0 %v6297
        %v6934 = vpop.f32.mrf.mxu0
        %v6935 = vadd.f32 %v6862, %v6934
        %v6936 = vpop.f32.mrf.mxu0
        %v6937 = vadd.f32 %v6864, %v6936
        %v6938 = vpop.f32.mrf.mxu0
        %v6939 = vadd.f32 %v6866, %v6938
        %v6940 = vpop.f32.mrf.mxu0
        %v6941 = vadd.f32 %v6868, %v6940
        %6942 = vmatprep.mubr.bf16.mxu0 %v6304
        %6943 = vmatmul.mubr.bf16.gmra.mxu0 %v6303
        %v6944 = vpop.f32.mrf.mxu0
        %v6945 = vadd.f32 %v6872, %v6944
        %v6946 = vpop.f32.mrf.mxu0
        %v6947 = vadd.f32 %v6874, %v6946
        %v6948 = vpop.f32.mrf.mxu0
        %v6949 = vadd.f32 %v6876, %v6948
        %v6950 = vpop.f32.mrf.mxu0
        %v6951 = vadd.f32 %v6878, %v6950
        %6952 = vmatprep.mubr.bf16.mxu0 %v6310
        %6953 = vmatmul.mubr.bf16.gmra.mxu0 %v6309
        %v6954 = vpop.f32.mrf.mxu0
        %v6955 = vadd.f32 %v6882, %v6954
        %v6956 = vpop.f32.mrf.mxu0
        %v6957 = vadd.f32 %v6884, %v6956
        %v6958 = vpop.f32.mrf.mxu0
        %v6959 = vadd.f32 %v6886, %v6958
        %v6960 = vpop.f32.mrf.mxu0
        %v6961 = vadd.f32 %v6888, %v6960
        %6962 = vdwg.mxu0
        %6963 = vmatprep.subr.bf16.mxu0 %v6704
        %6964 = vmatpush1.bf16.msra.mxu0 %v6703
        %6965 = vmatprep.subr.bf16.mxu0 %v6702
        %6966 = vmatpush1.bf16.msra.mxu0 %v6701
        %6967 = vmatprep.subr.bf16.mxu0 %v6700
        %6968 = vmatpush1.bf16.msra.mxu0 %v6699
        %6969 = vmatprep.subr.bf16.mxu0 %v6698
        %6970 = vmatpush1.bf16.msra.mxu0 %v6697
        %6971 = vmatprep.subr.bf16.mxu0 %v6696
        %6972 = vmatpush1.bf16.msra.mxu0 %v6695
        %6973 = vmatprep.subr.bf16.mxu0 %v6694
        %6974 = vmatpush1.bf16.msra.mxu0 %v6693
        %6975 = vmatprep.subr.bf16.mxu0 %v6692
        %6976 = vmatpush1.bf16.msra.mxu0 %v6691
        %6977 = vmatprep.subr.bf16.mxu0 %v6690
        %6978 = vmatpush1.bf16.msra.mxu0 %v6689
        %6979 = vmatprep.subr.bf16.mxu0 %v6720
        %6980 = vmatpush2.bf16.msra.mxu0 %v6719
        %6981 = vmatprep.subr.bf16.mxu0 %v6718
        %6982 = vmatpush2.bf16.msra.mxu0 %v6717
        %6983 = vmatprep.subr.bf16.mxu0 %v6716
        %6984 = vmatpush2.bf16.msra.mxu0 %v6715
        %6985 = vmatprep.subr.bf16.mxu0 %v6714
        %6986 = vmatpush2.bf16.msra.mxu0 %v6713
        %6987 = vmatprep.subr.bf16.mxu0 %v6712
        %6988 = vmatpush2.bf16.msra.mxu0 %v6711
        %6989 = vmatprep.subr.bf16.mxu0 %v6710
        %6990 = vmatpush2.bf16.msra.mxu0 %v6709
        %6991 = vmatprep.subr.bf16.mxu0 %v6708
        %6992 = vmatpush2.bf16.msra.mxu0 %v6707
        %6993 = vmatprep.subr.bf16.mxu0 %v6706
        %6994 = vmatpush2.bf16.msra.mxu0 %v6705
        %6995 = vmatprep.mubr.bf16.mxu0 %v6294
        %6996 = vmatmul.mubr.bf16.gmra.mxu0 %v6293
        %v6997 = vpop.f32.mrf.mxu0
        %v6998 = vadd.f32 %v6925, %v6997
        %v6999 = vpop.f32.mrf.mxu0
        %v7000 = vadd.f32 %v6927, %v6999
        %v7001 = vpop.f32.mrf.mxu0
        %v7002 = vadd.f32 %v6929, %v7001
        %v7003 = vpop.f32.mrf.mxu0
        %v7004 = vadd.f32 %v6931, %v7003
        %7005 = vmatprep.mubr.bf16.mxu0 %v6300
        %7006 = vmatmul.mubr.bf16.gmra.mxu0 %v6299
        %v7007 = vpop.f32.mrf.mxu0
        %v7008 = vadd.f32 %v6935, %v7007
        %v7009 = vpop.f32.mrf.mxu0
        %v7010 = vadd.f32 %v6937, %v7009
        %v7011 = vpop.f32.mrf.mxu0
        %v7012 = vadd.f32 %v6939, %v7011
        %v7013 = vpop.f32.mrf.mxu0
        %v7014 = vadd.f32 %v6941, %v7013
        %7015 = vmatprep.mubr.bf16.mxu0 %v6306
        %7016 = vmatmul.mubr.bf16.gmra.mxu0 %v6305
        %v7017 = vpop.f32.mrf.mxu0
        %v7018 = vadd.f32 %v6945, %v7017
        %v7019 = vpop.f32.mrf.mxu0
        %v7020 = vadd.f32 %v6947, %v7019
        %v7021 = vpop.f32.mrf.mxu0
        %v7022 = vadd.f32 %v6949, %v7021
        %v7023 = vpop.f32.mrf.mxu0
        %v7024 = vadd.f32 %v6951, %v7023
        %7025 = vmatprep.mubr.bf16.mxu0 %v6312
        %7026 = vmatmul.mubr.bf16.gmra.mxu0 %v6311
        %v7027 = vpop.f32.mrf.mxu0
        %v7028 = vadd.f32 %v6955, %v7027
        %v7029 = vpop.f32.mrf.mxu0
        %v7030 = vadd.f32 %v6957, %v7029
        %v7031 = vpop.f32.mrf.mxu0
        %v7032 = vadd.f32 %v6959, %v7031
        %v7033 = vpop.f32.mrf.mxu0
        %v7034 = vadd.f32 %v6961, %v7033
        %7035 = vdwg.mxu0
        %s7036 = scalar_lea.vmem [#allocation3], 32
        %v7037 = vld [vmem:[%s7036] sm:$0xff]
        %v7038 = vld [vmem:[%s7036 + $0x8] sm:$0x11]
        %v7039 = vld [vmem:[%s7036 + $0x10] sm:$0xff]
        %v7040 = vld [vmem:[%s7036 + $0x18] sm:$0x11]
        %v7041 = vld [vmem:[%s7036 + $0x20] sm:$0xff]
        %v7042 = vld [vmem:[%s7036 + $0x28] sm:$0x11]
        %v7043 = vld [vmem:[%s7036 + $0x30] sm:$0xff]
        %v7044 = vld [vmem:[%s7036 + $0x38] sm:$0x11]
        %v7045 = vld [vmem:[%s7036 + $0x40] sm:$0xff]
        %v7046 = vld [vmem:[%s7036 + $0x48] sm:$0x11]
        %v7047 = vld [vmem:[%s7036 + $0x50] sm:$0xff]
        %v7048 = vld [vmem:[%s7036 + $0x58] sm:$0x11]
        %v7049 = vld [vmem:[%s7036 + $0x60] sm:$0xff]
        %v7050 = vld [vmem:[%s7036 + $0x68] sm:$0x11]
        %v7051 = vld [vmem:[%s7036 + $0x70] sm:$0xff]
        %v7052 = vld [vmem:[%s7036 + $0x78] sm:$0x11]
        %v7061 = vunpack.c.l.b16 %v7037
        %v7062 = vunpack.c.h.b16 %v7037
        %v7063 = vunpack.c.l.b16 %v7039
        %v7064 = vunpack.c.h.b16 %v7039
        %v7065 = vunpack.c.l.b16 %v7041
        %v7066 = vunpack.c.h.b16 %v7041
        %v7067 = vunpack.c.l.b16 %v7043
        %v7068 = vunpack.c.h.b16 %v7043
        %v7069 = vunpack.c.l.b16 %v7045
        %v7070 = vunpack.c.h.b16 %v7045
        %v7071 = vunpack.c.l.b16 %v7047
        %v7072 = vunpack.c.h.b16 %v7047
        %v7073 = vunpack.c.l.b16 %v7049
        %v7074 = vunpack.c.h.b16 %v7049
        %v7075 = vunpack.c.l.b16 %v7051
        %v7076 = vunpack.c.h.b16 %v7051
        %v7085 = vunpack.c.l.b16 %v7038
        %v7086 = vunpack.c.h.b16 %v7038
        %v7087 = vunpack.c.l.b16 %v7040
        %v7088 = vunpack.c.h.b16 %v7040
        %v7089 = vunpack.c.l.b16 %v7042
        %v7090 = vunpack.c.h.b16 %v7042
        %v7091 = vunpack.c.l.b16 %v7044
        %v7092 = vunpack.c.h.b16 %v7044
        %v7093 = vunpack.c.l.b16 %v7046
        %v7094 = vunpack.c.h.b16 %v7046
        %v7095 = vunpack.c.l.b16 %v7048
        %v7096 = vunpack.c.h.b16 %v7048
        %v7097 = vunpack.c.l.b16 %v7050
        %v7098 = vunpack.c.h.b16 %v7050
        %v7099 = vunpack.c.l.b16 %v7052
        %v7100 = vunpack.c.h.b16 %v7052
        %v7101 = vpack.c.b16 %v7085, %v7061
        %v7102 = vpack.c.b16 %v7086, %v7062
        %v7103 = vpack.c.b16 %v7087, %v7063
        %v7104 = vpack.c.b16 %v7088, %v7064
        %v7105 = vpack.c.b16 %v7089, %v7065
        %v7106 = vpack.c.b16 %v7090, %v7066
        %v7107 = vpack.c.b16 %v7091, %v7067
        %v7108 = vpack.c.b16 %v7092, %v7068
        %v7109 = vpack.c.b16 %v7093, %v7069
        %v7110 = vpack.c.b16 %v7094, %v7070
        %v7111 = vpack.c.b16 %v7095, %v7071
        %v7112 = vpack.c.b16 %v7096, %v7072
        %v7113 = vpack.c.b16 %v7097, %v7073
        %v7114 = vpack.c.b16 %v7098, %v7074
        %v7115 = vpack.c.b16 %v7099, %v7075
        %v7116 = vpack.c.b16 %v7100, %v7076
        %v7118 = vshrl.u32 %v7101, 16
        %v7120 = vshll.u32 %v7101, 16
        %v7122 = vrot.slane %v7120, 1
        %v7123 = vor.u32 %v7118, %v7122
        %v7125 = vshrl.u32 %v7102, 16
        %v7127 = vshll.u32 %v7102, 16
        %v7129 = vrot.slane %v7127, 1
        %v7130 = vor.u32 %v7125, %v7129
        %v7132 = vshrl.u32 %v7103, 16
        %v7134 = vshll.u32 %v7103, 16
        %v7136 = vrot.slane %v7134, 1
        %v7137 = vor.u32 %v7132, %v7136
        %v7139 = vshrl.u32 %v7104, 16
        %v7141 = vshll.u32 %v7104, 16
        %v7143 = vrot.slane %v7141, 1
        %v7144 = vor.u32 %v7139, %v7143
        %v7146 = vshrl.u32 %v7105, 16
        %v7148 = vshll.u32 %v7105, 16
        %v7150 = vrot.slane %v7148, 1
        %v7151 = vor.u32 %v7146, %v7150
        %v7153 = vshrl.u32 %v7106, 16
        %v7155 = vshll.u32 %v7106, 16
        %v7157 = vrot.slane %v7155, 1
        %v7158 = vor.u32 %v7153, %v7157
        %v7160 = vshrl.u32 %v7107, 16
        %v7162 = vshll.u32 %v7107, 16
        %v7164 = vrot.slane %v7162, 1
        %v7165 = vor.u32 %v7160, %v7164
        %v7167 = vshrl.u32 %v7108, 16
        %v7169 = vshll.u32 %v7108, 16
        %v7171 = vrot.slane %v7169, 1
        %v7172 = vor.u32 %v7167, %v7171
        %v7174 = vshrl.u32 %v7109, 16
        %v7176 = vshll.u32 %v7109, 16
        %v7178 = vrot.slane %v7176, 1
        %v7179 = vor.u32 %v7174, %v7178
        %v7181 = vshrl.u32 %v7110, 16
        %v7183 = vshll.u32 %v7110, 16
        %v7185 = vrot.slane %v7183, 1
        %v7186 = vor.u32 %v7181, %v7185
        %v7188 = vshrl.u32 %v7111, 16
        %v7190 = vshll.u32 %v7111, 16
        %v7192 = vrot.slane %v7190, 1
        %v7193 = vor.u32 %v7188, %v7192
        %v7195 = vshrl.u32 %v7112, 16
        %v7197 = vshll.u32 %v7112, 16
        %v7199 = vrot.slane %v7197, 1
        %v7200 = vor.u32 %v7195, %v7199
        %v7202 = vshrl.u32 %v7113, 16
        %v7204 = vshll.u32 %v7113, 16
        %v7206 = vrot.slane %v7204, 1
        %v7207 = vor.u32 %v7202, %v7206
        %v7209 = vshrl.u32 %v7114, 16
        %v7211 = vshll.u32 %v7114, 16
        %v7213 = vrot.slane %v7211, 1
        %v7214 = vor.u32 %v7209, %v7213
        %v7216 = vshrl.u32 %v7115, 16
        %v7218 = vshll.u32 %v7115, 16
        %v7220 = vrot.slane %v7218, 1
        %v7221 = vor.u32 %v7216, %v7220
        %v7223 = vshrl.u32 %v7116, 16
        %v7225 = vshll.u32 %v7116, 16
        %v7227 = vrot.slane %v7225, 1
        %v7228 = vor.u32 %v7223, %v7227
        %v7229 = vrot.slane %v7101, 1
        %v7230 = vrot.slane %v7102, 1
        %v7231 = vrot.slane %v7103, 1
        %v7232 = vrot.slane %v7104, 1
        %v7233 = vrot.slane %v7105, 1
        %v7234 = vrot.slane %v7106, 1
        %v7235 = vrot.slane %v7107, 1
        %v7236 = vrot.slane %v7108, 1
        %v7237 = vrot.slane %v7109, 1
        %v7238 = vrot.slane %v7110, 1
        %v7239 = vrot.slane %v7111, 1
        %v7240 = vrot.slane %v7112, 1
        %v7241 = vrot.slane %v7113, 1
        %v7242 = vrot.slane %v7114, 1
        %v7243 = vrot.slane %v7115, 1
        %v7244 = vrot.slane %v7116, 1
        %v7245 = vunpack.c.l.b16 %v7123
        %v7246 = vunpack.c.l.b16 %v7130
        %v7247 = vunpack.c.l.b16 %v7229
        %v7248 = vunpack.c.l.b16 %v7230
        %v7249 = vunpack.c.l.b16 %v7137
        %v7250 = vunpack.c.l.b16 %v7144
        %v7251 = vunpack.c.l.b16 %v7231
        %v7252 = vunpack.c.l.b16 %v7232
        %v7253 = vunpack.c.l.b16 %v7151
        %v7254 = vunpack.c.l.b16 %v7158
        %v7255 = vunpack.c.l.b16 %v7233
        %v7256 = vunpack.c.l.b16 %v7234
        %v7257 = vunpack.c.l.b16 %v7165
        %v7258 = vunpack.c.l.b16 %v7172
        %v7259 = vunpack.c.l.b16 %v7235
        %v7260 = vunpack.c.l.b16 %v7236
        %v7261 = vunpack.c.l.b16 %v7179
        %v7262 = vunpack.c.l.b16 %v7186
        %v7263 = vunpack.c.l.b16 %v7237
        %v7264 = vunpack.c.l.b16 %v7238
        %v7265 = vunpack.c.l.b16 %v7193
        %v7266 = vunpack.c.l.b16 %v7200
        %v7267 = vunpack.c.l.b16 %v7239
        %v7268 = vunpack.c.l.b16 %v7240
        %v7269 = vunpack.c.l.b16 %v7207
        %v7270 = vunpack.c.l.b16 %v7214
        %v7271 = vunpack.c.l.b16 %v7241
        %v7272 = vunpack.c.l.b16 %v7242
        %v7273 = vunpack.c.l.b16 %v7221
        %v7274 = vunpack.c.l.b16 %v7228
        %v7275 = vunpack.c.l.b16 %v7243
        %v7276 = vunpack.c.l.b16 %v7244
        %s7277 = scalar_lea.vmem %s6, 1536
        %v7278 = vld [vmem:[%s7277] sm:$0xff]
        %v7279 = vld [vmem:[%s7277 + $0x8] sm:$0xff]
        %v7280 = vld [vmem:[%s7277 + $0x10] sm:$0xff]
        %v7281 = vld [vmem:[%s7277 + $0x18] sm:$0xff]
        %v7282 = vld [vmem:[%s7277 + $0x20] sm:$0xff]
        %v7283 = vld [vmem:[%s7277 + $0x28] sm:$0xff]
        %v7284 = vld [vmem:[%s7277 + $0x30] sm:$0xff]
        %v7285 = vld [vmem:[%s7277 + $0x38] sm:$0xff]
        %v7286 = vld [vmem:[%s7277 + $0x40] sm:$0xff]
        %v7287 = vld [vmem:[%s7277 + $0x48] sm:$0xff]
        %v7288 = vld [vmem:[%s7277 + $0x50] sm:$0xff]
        %v7289 = vld [vmem:[%s7277 + $0x58] sm:$0xff]
        %v7290 = vld [vmem:[%s7277 + $0x60] sm:$0xff]
        %v7291 = vld [vmem:[%s7277 + $0x68] sm:$0xff]
        %v7292 = vld [vmem:[%s7277 + $0x70] sm:$0xff]
        %v7293 = vld [vmem:[%s7277 + $0x78] sm:$0xff]
        %v7294 = vld [vmem:[%s7277 + $0x80] sm:$0xff]
        %v7295 = vld [vmem:[%s7277 + $0x88] sm:$0xff]
        %v7296 = vld [vmem:[%s7277 + $0x90] sm:$0xff]
        %v7297 = vld [vmem:[%s7277 + $0x98] sm:$0xff]
        %v7298 = vld [vmem:[%s7277 + $0xa0] sm:$0xff]
        %v7299 = vld [vmem:[%s7277 + $0xa8] sm:$0xff]
        %v7300 = vld [vmem:[%s7277 + $0xb0] sm:$0xff]
        %v7301 = vld [vmem:[%s7277 + $0xb8] sm:$0xff]
        %v7302 = vld [vmem:[%s7277 + $0xc0] sm:$0xff]
        %v7303 = vld [vmem:[%s7277 + $0xc8] sm:$0xff]
        %v7304 = vld [vmem:[%s7277 + $0xd0] sm:$0xff]
        %v7305 = vld [vmem:[%s7277 + $0xd8] sm:$0xff]
        %v7306 = vld [vmem:[%s7277 + $0xe0] sm:$0xff]
        %v7307 = vld [vmem:[%s7277 + $0xe8] sm:$0xff]
        %v7308 = vld [vmem:[%s7277 + $0xf0] sm:$0xff]
        %v7309 = vld [vmem:[%s7277 + $0xf8] sm:$0xff]
        %v7310 = vld [vmem:[%s7277 + $0x100] sm:$0xff]
        %v7311 = vld [vmem:[%s7277 + $0x108] sm:$0xff]
        %v7312 = vld [vmem:[%s7277 + $0x110] sm:$0xff]
        %v7313 = vld [vmem:[%s7277 + $0x118] sm:$0xff]
        %v7314 = vld [vmem:[%s7277 + $0x120] sm:$0xff]
        %v7315 = vld [vmem:[%s7277 + $0x128] sm:$0xff]
        %v7316 = vld [vmem:[%s7277 + $0x130] sm:$0xff]
        %v7317 = vld [vmem:[%s7277 + $0x138] sm:$0xff]
        %v7318 = vld [vmem:[%s7277 + $0x140] sm:$0xff]
        %v7319 = vld [vmem:[%s7277 + $0x148] sm:$0xff]
        %v7320 = vld [vmem:[%s7277 + $0x150] sm:$0xff]
        %v7321 = vld [vmem:[%s7277 + $0x158] sm:$0xff]
        %v7322 = vld [vmem:[%s7277 + $0x160] sm:$0xff]
        %v7323 = vld [vmem:[%s7277 + $0x168] sm:$0xff]
        %v7324 = vld [vmem:[%s7277 + $0x170] sm:$0xff]
        %v7325 = vld [vmem:[%s7277 + $0x178] sm:$0xff]
        %v7326 = vld [vmem:[%s7277 + $0x180] sm:$0xff]
        %v7327 = vld [vmem:[%s7277 + $0x188] sm:$0xff]
        %v7328 = vld [vmem:[%s7277 + $0x190] sm:$0xff]
        %v7329 = vld [vmem:[%s7277 + $0x198] sm:$0xff]
        %v7330 = vld [vmem:[%s7277 + $0x1a0] sm:$0xff]
        %v7331 = vld [vmem:[%s7277 + $0x1a8] sm:$0xff]
        %v7332 = vld [vmem:[%s7277 + $0x1b0] sm:$0xff]
        %v7333 = vld [vmem:[%s7277 + $0x1b8] sm:$0xff]
        %v7334 = vld [vmem:[%s7277 + $0x1c0] sm:$0xff]
        %v7335 = vld [vmem:[%s7277 + $0x1c8] sm:$0xff]
        %v7336 = vld [vmem:[%s7277 + $0x1d0] sm:$0xff]
        %v7337 = vld [vmem:[%s7277 + $0x1d8] sm:$0xff]
        %v7338 = vld [vmem:[%s7277 + $0x1e0] sm:$0xff]
        %v7339 = vld [vmem:[%s7277 + $0x1e8] sm:$0xff]
        %v7340 = vld [vmem:[%s7277 + $0x1f0] sm:$0xff]
        %v7341 = vld [vmem:[%s7277 + $0x1f8] sm:$0xff]
        %v7342 = vld [vmem:[%s7277 + $0x200] sm:$0xff]
        %v7343 = vld [vmem:[%s7277 + $0x208] sm:$0xff]
        %v7344 = vld [vmem:[%s7277 + $0x210] sm:$0xff]
        %v7345 = vld [vmem:[%s7277 + $0x218] sm:$0xff]
        %v7346 = vld [vmem:[%s7277 + $0x220] sm:$0xff]
        %v7347 = vld [vmem:[%s7277 + $0x228] sm:$0xff]
        %v7348 = vld [vmem:[%s7277 + $0x230] sm:$0xff]
        %v7349 = vld [vmem:[%s7277 + $0x238] sm:$0xff]
        %v7350 = vld [vmem:[%s7277 + $0x240] sm:$0xff]
        %v7351 = vld [vmem:[%s7277 + $0x248] sm:$0xff]
        %v7352 = vld [vmem:[%s7277 + $0x250] sm:$0xff]
        %v7353 = vld [vmem:[%s7277 + $0x258] sm:$0xff]
        %v7354 = vld [vmem:[%s7277 + $0x260] sm:$0xff]
        %v7355 = vld [vmem:[%s7277 + $0x268] sm:$0xff]
        %v7356 = vld [vmem:[%s7277 + $0x270] sm:$0xff]
        %v7357 = vld [vmem:[%s7277 + $0x278] sm:$0xff]
        %v7358 = vld [vmem:[%s7277 + $0x280] sm:$0xff]
        %v7359 = vld [vmem:[%s7277 + $0x288] sm:$0xff]
        %v7360 = vld [vmem:[%s7277 + $0x290] sm:$0xff]
        %v7361 = vld [vmem:[%s7277 + $0x298] sm:$0xff]
        %v7362 = vld [vmem:[%s7277 + $0x2a0] sm:$0xff]
        %v7363 = vld [vmem:[%s7277 + $0x2a8] sm:$0xff]
        %v7364 = vld [vmem:[%s7277 + $0x2b0] sm:$0xff]
        %v7365 = vld [vmem:[%s7277 + $0x2b8] sm:$0xff]
        %v7366 = vld [vmem:[%s7277 + $0x2c0] sm:$0xff]
        %v7367 = vld [vmem:[%s7277 + $0x2c8] sm:$0xff]
        %v7368 = vld [vmem:[%s7277 + $0x2d0] sm:$0xff]
        %v7369 = vld [vmem:[%s7277 + $0x2d8] sm:$0xff]
        %v7370 = vld [vmem:[%s7277 + $0x2e0] sm:$0xff]
        %v7371 = vld [vmem:[%s7277 + $0x2e8] sm:$0xff]
        %v7372 = vld [vmem:[%s7277 + $0x2f0] sm:$0xff]
        %v7373 = vld [vmem:[%s7277 + $0x2f8] sm:$0xff]
        %v7374 = vpack.c.b16 %v7063, %v7061
        %v7375 = vpack.c.b16 %v7064, %v7062
        %v7376 = vpack.c.b16 %v7249, %v7245
        %v7377 = vpack.c.b16 %v7250, %v7246
        %v7378 = vpack.c.b16 %v7251, %v7247
        %v7379 = vpack.c.b16 %v7252, %v7248
        %v7380 = vpack.c.b16 %v7067, %v7065
        %v7381 = vpack.c.b16 %v7068, %v7066
        %v7382 = vpack.c.b16 %v7257, %v7253
        %v7383 = vpack.c.b16 %v7258, %v7254
        %v7384 = vpack.c.b16 %v7259, %v7255
        %v7385 = vpack.c.b16 %v7260, %v7256
        %v7386 = vpack.c.b16 %v7071, %v7069
        %v7387 = vpack.c.b16 %v7072, %v7070
        %v7388 = vpack.c.b16 %v7265, %v7261
        %v7389 = vpack.c.b16 %v7266, %v7262
        %v7390 = vpack.c.b16 %v7267, %v7263
        %v7391 = vpack.c.b16 %v7268, %v7264
        %v7392 = vpack.c.b16 %v7075, %v7073
        %v7393 = vpack.c.b16 %v7076, %v7074
        %v7394 = vpack.c.b16 %v7273, %v7269
        %v7395 = vpack.c.b16 %v7274, %v7270
        %v7396 = vpack.c.b16 %v7275, %v7271
        %v7397 = vpack.c.b16 %v7276, %v7272
        %v7518 = vunpack.c.l.b16 %v7278
        %v7519 = vunpack.c.h.b16 %v7278
        %v7520 = vunpack.c.l.b16 %v7279
        %v7521 = vunpack.c.h.b16 %v7279
        %v7522 = vunpack.c.l.b16 %v7280
        %v7523 = vunpack.c.h.b16 %v7280
        %v7524 = vunpack.c.l.b16 %v7281
        %v7525 = vunpack.c.h.b16 %v7281
        %v7526 = vunpack.c.l.b16 %v7282
        %v7527 = vunpack.c.h.b16 %v7282
        %v7528 = vunpack.c.l.b16 %v7283
        %v7529 = vunpack.c.h.b16 %v7283
        %v7530 = vunpack.c.l.b16 %v7284
        %v7531 = vunpack.c.h.b16 %v7284
        %v7532 = vunpack.c.l.b16 %v7285
        %v7533 = vunpack.c.h.b16 %v7285
        %v7534 = vunpack.c.l.b16 %v7286
        %v7535 = vunpack.c.h.b16 %v7286
        %v7536 = vunpack.c.l.b16 %v7287
        %v7537 = vunpack.c.h.b16 %v7287
        %v7538 = vunpack.c.l.b16 %v7288
        %v7539 = vunpack.c.h.b16 %v7288
        %v7540 = vunpack.c.l.b16 %v7289
        %v7541 = vunpack.c.h.b16 %v7289
        %v7542 = vunpack.c.l.b16 %v7290
        %v7543 = vunpack.c.h.b16 %v7290
        %v7544 = vunpack.c.l.b16 %v7291
        %v7545 = vunpack.c.h.b16 %v7291
        %v7546 = vunpack.c.l.b16 %v7292
        %v7547 = vunpack.c.h.b16 %v7292
        %v7548 = vunpack.c.l.b16 %v7293
        %v7549 = vunpack.c.h.b16 %v7293
        %v7550 = vunpack.c.l.b16 %v7294
        %v7551 = vunpack.c.h.b16 %v7294
        %v7552 = vunpack.c.l.b16 %v7295
        %v7553 = vunpack.c.h.b16 %v7295
        %v7554 = vunpack.c.l.b16 %v7296
        %v7555 = vunpack.c.h.b16 %v7296
        %v7556 = vunpack.c.l.b16 %v7297
        %v7557 = vunpack.c.h.b16 %v7297
        %v7558 = vunpack.c.l.b16 %v7298
        %v7559 = vunpack.c.h.b16 %v7298
        %v7560 = vunpack.c.l.b16 %v7299
        %v7561 = vunpack.c.h.b16 %v7299
        %v7562 = vunpack.c.l.b16 %v7300
        %v7563 = vunpack.c.h.b16 %v7300
        %v7564 = vunpack.c.l.b16 %v7301
        %v7565 = vunpack.c.h.b16 %v7301
        %v7566 = vunpack.c.l.b16 %v7302
        %v7567 = vunpack.c.h.b16 %v7302
        %v7568 = vunpack.c.l.b16 %v7303
        %v7569 = vunpack.c.h.b16 %v7303
        %v7570 = vunpack.c.l.b16 %v7304
        %v7571 = vunpack.c.h.b16 %v7304
        %v7572 = vunpack.c.l.b16 %v7305
        %v7573 = vunpack.c.h.b16 %v7305
        %v7574 = vunpack.c.l.b16 %v7306
        %v7575 = vunpack.c.h.b16 %v7306
        %v7576 = vunpack.c.l.b16 %v7307
        %v7577 = vunpack.c.h.b16 %v7307
        %v7578 = vunpack.c.l.b16 %v7308
        %v7579 = vunpack.c.h.b16 %v7308
        %v7580 = vunpack.c.l.b16 %v7309
        %v7581 = vunpack.c.h.b16 %v7309
        %v7582 = vunpack.c.l.b16 %v7310
        %v7583 = vunpack.c.h.b16 %v7310
        %v7584 = vunpack.c.l.b16 %v7311
        %v7585 = vunpack.c.h.b16 %v7311
        %v7586 = vunpack.c.l.b16 %v7312
        %v7587 = vunpack.c.h.b16 %v7312
        %v7588 = vunpack.c.l.b16 %v7313
        %v7589 = vunpack.c.h.b16 %v7313
        %v7590 = vunpack.c.l.b16 %v7314
        %v7591 = vunpack.c.h.b16 %v7314
        %v7592 = vunpack.c.l.b16 %v7315
        %v7593 = vunpack.c.h.b16 %v7315
        %v7594 = vunpack.c.l.b16 %v7316
        %v7595 = vunpack.c.h.b16 %v7316
        %v7596 = vunpack.c.l.b16 %v7317
        %v7597 = vunpack.c.h.b16 %v7317
        %v7598 = vunpack.c.l.b16 %v7318
        %v7599 = vunpack.c.h.b16 %v7318
        %v7600 = vunpack.c.l.b16 %v7319
        %v7601 = vunpack.c.h.b16 %v7319
        %v7602 = vunpack.c.l.b16 %v7320
        %v7603 = vunpack.c.h.b16 %v7320
        %v7604 = vunpack.c.l.b16 %v7321
        %v7605 = vunpack.c.h.b16 %v7321
        %v7606 = vunpack.c.l.b16 %v7322
        %v7607 = vunpack.c.h.b16 %v7322
        %v7608 = vunpack.c.l.b16 %v7323
        %v7609 = vunpack.c.h.b16 %v7323
        %v7610 = vunpack.c.l.b16 %v7324
        %v7611 = vunpack.c.h.b16 %v7324
        %v7612 = vunpack.c.l.b16 %v7325
        %v7613 = vunpack.c.h.b16 %v7325
        %v7614 = vunpack.c.l.b16 %v7326
        %v7615 = vunpack.c.h.b16 %v7326
        %v7616 = vunpack.c.l.b16 %v7327
        %v7617 = vunpack.c.h.b16 %v7327
        %v7618 = vunpack.c.l.b16 %v7328
        %v7619 = vunpack.c.h.b16 %v7328
        %v7620 = vunpack.c.l.b16 %v7329
        %v7621 = vunpack.c.h.b16 %v7329
        %v7622 = vunpack.c.l.b16 %v7330
        %v7623 = vunpack.c.h.b16 %v7330
        %v7624 = vunpack.c.l.b16 %v7331
        %v7625 = vunpack.c.h.b16 %v7331
        %v7626 = vunpack.c.l.b16 %v7332
        %v7627 = vunpack.c.h.b16 %v7332
        %v7628 = vunpack.c.l.b16 %v7333
        %v7629 = vunpack.c.h.b16 %v7333
        %v7630 = vunpack.c.l.b16 %v7334
        %v7631 = vunpack.c.h.b16 %v7334
        %v7632 = vunpack.c.l.b16 %v7335
        %v7633 = vunpack.c.h.b16 %v7335
        %v7634 = vunpack.c.l.b16 %v7336
        %v7635 = vunpack.c.h.b16 %v7336
        %v7636 = vunpack.c.l.b16 %v7337
        %v7637 = vunpack.c.h.b16 %v7337
        %v7638 = vunpack.c.l.b16 %v7338
        %v7639 = vunpack.c.h.b16 %v7338
        %v7640 = vunpack.c.l.b16 %v7339
        %v7641 = vunpack.c.h.b16 %v7339
        %v7642 = vunpack.c.l.b16 %v7340
        %v7643 = vunpack.c.h.b16 %v7340
        %v7644 = vunpack.c.l.b16 %v7341
        %v7645 = vunpack.c.h.b16 %v7341
        %v7646 = vunpack.c.l.b16 %v7342
        %v7647 = vunpack.c.h.b16 %v7342
        %v7648 = vunpack.c.l.b16 %v7343
        %v7649 = vunpack.c.h.b16 %v7343
        %v7650 = vunpack.c.l.b16 %v7344
        %v7651 = vunpack.c.h.b16 %v7344
        %v7652 = vunpack.c.l.b16 %v7345
        %v7653 = vunpack.c.h.b16 %v7345
        %v7654 = vunpack.c.l.b16 %v7346
        %v7655 = vunpack.c.h.b16 %v7346
        %v7656 = vunpack.c.l.b16 %v7347
        %v7657 = vunpack.c.h.b16 %v7347
        %v7658 = vunpack.c.l.b16 %v7348
        %v7659 = vunpack.c.h.b16 %v7348
        %v7660 = vunpack.c.l.b16 %v7349
        %v7661 = vunpack.c.h.b16 %v7349
        %v7662 = vunpack.c.l.b16 %v7350
        %v7663 = vunpack.c.h.b16 %v7350
        %v7664 = vunpack.c.l.b16 %v7351
        %v7665 = vunpack.c.h.b16 %v7351
        %v7666 = vunpack.c.l.b16 %v7352
        %v7667 = vunpack.c.h.b16 %v7352
        %v7668 = vunpack.c.l.b16 %v7353
        %v7669 = vunpack.c.h.b16 %v7353
        %v7670 = vunpack.c.l.b16 %v7354
        %v7671 = vunpack.c.h.b16 %v7354
        %v7672 = vunpack.c.l.b16 %v7355
        %v7673 = vunpack.c.h.b16 %v7355
        %v7674 = vunpack.c.l.b16 %v7356
        %v7675 = vunpack.c.h.b16 %v7356
        %v7676 = vunpack.c.l.b16 %v7357
        %v7677 = vunpack.c.h.b16 %v7357
        %v7678 = vunpack.c.l.b16 %v7358
        %v7679 = vunpack.c.h.b16 %v7358
        %v7680 = vunpack.c.l.b16 %v7359
        %v7681 = vunpack.c.h.b16 %v7359
        %v7682 = vunpack.c.l.b16 %v7360
        %v7683 = vunpack.c.h.b16 %v7360
        %v7684 = vunpack.c.l.b16 %v7361
        %v7685 = vunpack.c.h.b16 %v7361
        %v7686 = vunpack.c.l.b16 %v7362
        %v7687 = vunpack.c.h.b16 %v7362
        %v7688 = vunpack.c.l.b16 %v7363
        %v7689 = vunpack.c.h.b16 %v7363
        %v7690 = vunpack.c.l.b16 %v7364
        %v7691 = vunpack.c.h.b16 %v7364
        %v7692 = vunpack.c.l.b16 %v7365
        %v7693 = vunpack.c.h.b16 %v7365
        %v7694 = vunpack.c.l.b16 %v7366
        %v7695 = vunpack.c.h.b16 %v7366
        %v7696 = vunpack.c.l.b16 %v7367
        %v7697 = vunpack.c.h.b16 %v7367
        %v7698 = vunpack.c.l.b16 %v7368
        %v7699 = vunpack.c.h.b16 %v7368
        %v7700 = vunpack.c.l.b16 %v7369
        %v7701 = vunpack.c.h.b16 %v7369
        %v7702 = vunpack.c.l.b16 %v7370
        %v7703 = vunpack.c.h.b16 %v7370
        %v7704 = vunpack.c.l.b16 %v7371
        %v7705 = vunpack.c.h.b16 %v7371
        %v7706 = vunpack.c.l.b16 %v7372
        %v7707 = vunpack.c.h.b16 %v7372
        %v7708 = vunpack.c.l.b16 %v7373
        %v7709 = vunpack.c.h.b16 %v7373
        %v7710 = vpack.c.b16 %v7520, %v7518
        %v7711 = vpack.c.b16 %v7521, %v7519
        %v7712 = vpack.c.b16 %v7524, %v7522
        %v7713 = vpack.c.b16 %v7525, %v7523
        %v7714 = vpack.c.b16 %v7528, %v7526
        %v7715 = vpack.c.b16 %v7529, %v7527
        %v7716 = vpack.c.b16 %v7532, %v7530
        %v7717 = vpack.c.b16 %v7533, %v7531
        %v7718 = vpack.c.b16 %v7536, %v7534
        %v7719 = vpack.c.b16 %v7537, %v7535
        %v7720 = vpack.c.b16 %v7540, %v7538
        %v7721 = vpack.c.b16 %v7541, %v7539
        %v7722 = vpack.c.b16 %v7544, %v7542
        %v7723 = vpack.c.b16 %v7545, %v7543
        %v7724 = vpack.c.b16 %v7548, %v7546
        %v7725 = vpack.c.b16 %v7549, %v7547
        %v7726 = vpack.c.b16 %v7552, %v7550
        %v7727 = vpack.c.b16 %v7553, %v7551
        %v7728 = vpack.c.b16 %v7556, %v7554
        %v7729 = vpack.c.b16 %v7557, %v7555
        %v7730 = vpack.c.b16 %v7560, %v7558
        %v7731 = vpack.c.b16 %v7561, %v7559
        %v7732 = vpack.c.b16 %v7564, %v7562
        %v7733 = vpack.c.b16 %v7565, %v7563
        %v7734 = vpack.c.b16 %v7568, %v7566
        %v7735 = vpack.c.b16 %v7569, %v7567
        %v7736 = vpack.c.b16 %v7572, %v7570
        %v7737 = vpack.c.b16 %v7573, %v7571
        %v7738 = vpack.c.b16 %v7576, %v7574
        %v7739 = vpack.c.b16 %v7577, %v7575
        %v7740 = vpack.c.b16 %v7580, %v7578
        %v7741 = vpack.c.b16 %v7581, %v7579
        %v7742 = vpack.c.b16 %v7584, %v7582
        %v7743 = vpack.c.b16 %v7585, %v7583
        %v7744 = vpack.c.b16 %v7588, %v7586
        %v7745 = vpack.c.b16 %v7589, %v7587
        %v7746 = vpack.c.b16 %v7592, %v7590
        %v7747 = vpack.c.b16 %v7593, %v7591
        %v7748 = vpack.c.b16 %v7596, %v7594
        %v7749 = vpack.c.b16 %v7597, %v7595
        %v7750 = vpack.c.b16 %v7600, %v7598
        %v7751 = vpack.c.b16 %v7601, %v7599
        %v7752 = vpack.c.b16 %v7604, %v7602
        %v7753 = vpack.c.b16 %v7605, %v7603
        %v7754 = vpack.c.b16 %v7608, %v7606
        %v7755 = vpack.c.b16 %v7609, %v7607
        %v7756 = vpack.c.b16 %v7612, %v7610
        %v7757 = vpack.c.b16 %v7613, %v7611
        %v7758 = vpack.c.b16 %v7616, %v7614
        %v7759 = vpack.c.b16 %v7617, %v7615
        %v7760 = vpack.c.b16 %v7620, %v7618
        %v7761 = vpack.c.b16 %v7621, %v7619
        %v7762 = vpack.c.b16 %v7624, %v7622
        %v7763 = vpack.c.b16 %v7625, %v7623
        %v7764 = vpack.c.b16 %v7628, %v7626
        %v7765 = vpack.c.b16 %v7629, %v7627
        %v7766 = vpack.c.b16 %v7632, %v7630
        %v7767 = vpack.c.b16 %v7633, %v7631
        %v7768 = vpack.c.b16 %v7636, %v7634
        %v7769 = vpack.c.b16 %v7637, %v7635
        %v7770 = vpack.c.b16 %v7640, %v7638
        %v7771 = vpack.c.b16 %v7641, %v7639
        %v7772 = vpack.c.b16 %v7644, %v7642
        %v7773 = vpack.c.b16 %v7645, %v7643
        %v7774 = vpack.c.b16 %v7648, %v7646
        %v7775 = vpack.c.b16 %v7649, %v7647
        %v7776 = vpack.c.b16 %v7652, %v7650
        %v7777 = vpack.c.b16 %v7653, %v7651
        %v7778 = vpack.c.b16 %v7656, %v7654
        %v7779 = vpack.c.b16 %v7657, %v7655
        %v7780 = vpack.c.b16 %v7660, %v7658
        %v7781 = vpack.c.b16 %v7661, %v7659
        %v7782 = vpack.c.b16 %v7664, %v7662
        %v7783 = vpack.c.b16 %v7665, %v7663
        %v7784 = vpack.c.b16 %v7668, %v7666
        %v7785 = vpack.c.b16 %v7669, %v7667
        %v7786 = vpack.c.b16 %v7672, %v7670
        %v7787 = vpack.c.b16 %v7673, %v7671
        %v7788 = vpack.c.b16 %v7676, %v7674
        %v7789 = vpack.c.b16 %v7677, %v7675
        %v7790 = vpack.c.b16 %v7680, %v7678
        %v7791 = vpack.c.b16 %v7681, %v7679
        %v7792 = vpack.c.b16 %v7684, %v7682
        %v7793 = vpack.c.b16 %v7685, %v7683
        %v7794 = vpack.c.b16 %v7688, %v7686
        %v7795 = vpack.c.b16 %v7689, %v7687
        %v7796 = vpack.c.b16 %v7692, %v7690
        %v7797 = vpack.c.b16 %v7693, %v7691
        %v7798 = vpack.c.b16 %v7696, %v7694
        %v7799 = vpack.c.b16 %v7697, %v7695
        %v7800 = vpack.c.b16 %v7700, %v7698
        %v7801 = vpack.c.b16 %v7701, %v7699
        %v7802 = vpack.c.b16 %v7704, %v7702
        %v7803 = vpack.c.b16 %v7705, %v7703
        %v7804 = vpack.c.b16 %v7708, %v7706
        %v7805 = vpack.c.b16 %v7709, %v7707
        %7902 = vmatprep.subr.bf16.mxu0 %v7725
        %7903 = vmatpush1.bf16.msra.mxu0 %v7724
        %7904 = vmatprep.subr.bf16.mxu0 %v7723
        %7905 = vmatpush1.bf16.msra.mxu0 %v7722
        %7906 = vmatprep.subr.bf16.mxu0 %v7721
        %7907 = vmatpush1.bf16.msra.mxu0 %v7720
        %7908 = vmatprep.subr.bf16.mxu0 %v7719
        %7909 = vmatpush1.bf16.msra.mxu0 %v7718
        %7910 = vmatprep.subr.bf16.mxu0 %v7717
        %7911 = vmatpush1.bf16.msra.mxu0 %v7716
        %7912 = vmatprep.subr.bf16.mxu0 %v7715
        %7913 = vmatpush1.bf16.msra.mxu0 %v7714
        %7914 = vmatprep.subr.bf16.mxu0 %v7713
        %7915 = vmatpush1.bf16.msra.mxu0 %v7712
        %7916 = vmatprep.subr.bf16.mxu0 %v7711
        %7917 = vmatpush1.bf16.msra.mxu0 %v7710
        %7918 = vmatprep.subr.bf16.mxu0 %v7741
        %7919 = vmatpush2.bf16.msra.mxu0 %v7740
        %7920 = vmatprep.subr.bf16.mxu0 %v7739
        %7921 = vmatpush2.bf16.msra.mxu0 %v7738
        %7922 = vmatprep.subr.bf16.mxu0 %v7737
        %7923 = vmatpush2.bf16.msra.mxu0 %v7736
        %7924 = vmatprep.subr.bf16.mxu0 %v7735
        %7925 = vmatpush2.bf16.msra.mxu0 %v7734
        %7926 = vmatprep.subr.bf16.mxu0 %v7733
        %7927 = vmatpush2.bf16.msra.mxu0 %v7732
        %7928 = vmatprep.subr.bf16.mxu0 %v7731
        %7929 = vmatpush2.bf16.msra.mxu0 %v7730
        %7930 = vmatprep.subr.bf16.mxu0 %v7729
        %7931 = vmatpush2.bf16.msra.mxu0 %v7728
        %7932 = vmatprep.subr.bf16.mxu0 %v7727
        %7933 = vmatpush2.bf16.msra.mxu0 %v7726
        %7934 = vmatprep.mubr.bf16.mxu0 %v7375
        %7935 = vmatmul.mubr.bf16.gmra.mxu0 %v7374
        %v7936 = vpop.f32.mrf.mxu0
        %v7937 = vadd.f32 0.0, %v7936
        %v7938 = vpop.f32.mrf.mxu0
        %v7939 = vadd.f32 0.0, %v7938
        %v7940 = vpop.f32.mrf.mxu0
        %v7941 = vadd.f32 0.0, %v7940
        %v7942 = vpop.f32.mrf.mxu0
        %v7943 = vadd.f32 0.0, %v7942
        %7944 = vmatprep.mubr.bf16.mxu0 %v7381
        %7945 = vmatmul.mubr.bf16.gmra.mxu0 %v7380
        %v7946 = vpop.f32.mrf.mxu0
        %v7947 = vadd.f32 0.0, %v7946
        %v7948 = vpop.f32.mrf.mxu0
        %v7949 = vadd.f32 0.0, %v7948
        %v7950 = vpop.f32.mrf.mxu0
        %v7951 = vadd.f32 0.0, %v7950
        %v7952 = vpop.f32.mrf.mxu0
        %v7953 = vadd.f32 0.0, %v7952
        %7954 = vmatprep.mubr.bf16.mxu0 %v7387
        %7955 = vmatmul.mubr.bf16.gmra.mxu0 %v7386
        %v7956 = vpop.f32.mrf.mxu0
        %v7957 = vadd.f32 0.0, %v7956
        %v7958 = vpop.f32.mrf.mxu0
        %v7959 = vadd.f32 0.0, %v7958
        %v7960 = vpop.f32.mrf.mxu0
        %v7961 = vadd.f32 0.0, %v7960
        %v7962 = vpop.f32.mrf.mxu0
        %v7963 = vadd.f32 0.0, %v7962
        %7964 = vmatprep.mubr.bf16.mxu0 %v7393
        %7965 = vmatmul.mubr.bf16.gmra.mxu0 %v7392
        %v7966 = vpop.f32.mrf.mxu0
        %v7967 = vadd.f32 0.0, %v7966
        %v7968 = vpop.f32.mrf.mxu0
        %v7969 = vadd.f32 0.0, %v7968
        %v7970 = vpop.f32.mrf.mxu0
        %v7971 = vadd.f32 0.0, %v7970
        %v7972 = vpop.f32.mrf.mxu0
        %v7973 = vadd.f32 0.0, %v7972
        %7974 = vdwg.mxu0
        %7975 = vmatprep.subr.bf16.mxu0 %v7757
        %7976 = vmatpush1.bf16.msra.mxu0 %v7756
        %7977 = vmatprep.subr.bf16.mxu0 %v7755
        %7978 = vmatpush1.bf16.msra.mxu0 %v7754
        %7979 = vmatprep.subr.bf16.mxu0 %v7753
        %7980 = vmatpush1.bf16.msra.mxu0 %v7752
        %7981 = vmatprep.subr.bf16.mxu0 %v7751
        %7982 = vmatpush1.bf16.msra.mxu0 %v7750
        %7983 = vmatprep.subr.bf16.mxu0 %v7749
        %7984 = vmatpush1.bf16.msra.mxu0 %v7748
        %7985 = vmatprep.subr.bf16.mxu0 %v7747
        %7986 = vmatpush1.bf16.msra.mxu0 %v7746
        %7987 = vmatprep.subr.bf16.mxu0 %v7745
        %7988 = vmatpush1.bf16.msra.mxu0 %v7744
        %7989 = vmatprep.subr.bf16.mxu0 %v7743
        %7990 = vmatpush1.bf16.msra.mxu0 %v7742
        %7991 = vmatprep.subr.bf16.mxu0 %v7773
        %7992 = vmatpush2.bf16.msra.mxu0 %v7772
        %7993 = vmatprep.subr.bf16.mxu0 %v7771
        %7994 = vmatpush2.bf16.msra.mxu0 %v7770
        %7995 = vmatprep.subr.bf16.mxu0 %v7769
        %7996 = vmatpush2.bf16.msra.mxu0 %v7768
        %7997 = vmatprep.subr.bf16.mxu0 %v7767
        %7998 = vmatpush2.bf16.msra.mxu0 %v7766
        %7999 = vmatprep.subr.bf16.mxu0 %v7765
        %8000 = vmatpush2.bf16.msra.mxu0 %v7764
        %8001 = vmatprep.subr.bf16.mxu0 %v7763
        %8002 = vmatpush2.bf16.msra.mxu0 %v7762
        %8003 = vmatprep.subr.bf16.mxu0 %v7761
        %8004 = vmatpush2.bf16.msra.mxu0 %v7760
        %8005 = vmatprep.subr.bf16.mxu0 %v7759
        %8006 = vmatpush2.bf16.msra.mxu0 %v7758
        %8007 = vmatprep.mubr.bf16.mxu0 %v7377
        %8008 = vmatmul.mubr.bf16.gmra.mxu0 %v7376
        %v8009 = vpop.f32.mrf.mxu0
        %v8010 = vadd.f32 %v7937, %v8009
        %v8011 = vpop.f32.mrf.mxu0
        %v8012 = vadd.f32 %v7939, %v8011
        %v8013 = vpop.f32.mrf.mxu0
        %v8014 = vadd.f32 %v7941, %v8013
        %v8015 = vpop.f32.mrf.mxu0
        %v8016 = vadd.f32 %v7943, %v8015
        %8017 = vmatprep.mubr.bf16.mxu0 %v7383
        %8018 = vmatmul.mubr.bf16.gmra.mxu0 %v7382
        %v8019 = vpop.f32.mrf.mxu0
        %v8020 = vadd.f32 %v7947, %v8019
        %v8021 = vpop.f32.mrf.mxu0
        %v8022 = vadd.f32 %v7949, %v8021
        %v8023 = vpop.f32.mrf.mxu0
        %v8024 = vadd.f32 %v7951, %v8023
        %v8025 = vpop.f32.mrf.mxu0
        %v8026 = vadd.f32 %v7953, %v8025
        %8027 = vmatprep.mubr.bf16.mxu0 %v7389
        %8028 = vmatmul.mubr.bf16.gmra.mxu0 %v7388
        %v8029 = vpop.f32.mrf.mxu0
        %v8030 = vadd.f32 %v7957, %v8029
        %v8031 = vpop.f32.mrf.mxu0
        %v8032 = vadd.f32 %v7959, %v8031
        %v8033 = vpop.f32.mrf.mxu0
        %v8034 = vadd.f32 %v7961, %v8033
        %v8035 = vpop.f32.mrf.mxu0
        %v8036 = vadd.f32 %v7963, %v8035
        %8037 = vmatprep.mubr.bf16.mxu0 %v7395
        %8038 = vmatmul.mubr.bf16.gmra.mxu0 %v7394
        %v8039 = vpop.f32.mrf.mxu0
        %v8040 = vadd.f32 %v7967, %v8039
        %v8041 = vpop.f32.mrf.mxu0
        %v8042 = vadd.f32 %v7969, %v8041
        %v8043 = vpop.f32.mrf.mxu0
        %v8044 = vadd.f32 %v7971, %v8043
        %v8045 = vpop.f32.mrf.mxu0
        %v8046 = vadd.f32 %v7973, %v8045
        %8047 = vdwg.mxu0
        %8048 = vmatprep.subr.bf16.mxu0 %v7789
        %8049 = vmatpush1.bf16.msra.mxu0 %v7788
        %8050 = vmatprep.subr.bf16.mxu0 %v7787
        %8051 = vmatpush1.bf16.msra.mxu0 %v7786
        %8052 = vmatprep.subr.bf16.mxu0 %v7785
        %8053 = vmatpush1.bf16.msra.mxu0 %v7784
        %8054 = vmatprep.subr.bf16.mxu0 %v7783
        %8055 = vmatpush1.bf16.msra.mxu0 %v7782
        %8056 = vmatprep.subr.bf16.mxu0 %v7781
        %8057 = vmatpush1.bf16.msra.mxu0 %v7780
        %8058 = vmatprep.subr.bf16.mxu0 %v7779
        %8059 = vmatpush1.bf16.msra.mxu0 %v7778
        %8060 = vmatprep.subr.bf16.mxu0 %v7777
        %8061 = vmatpush1.bf16.msra.mxu0 %v7776
        %8062 = vmatprep.subr.bf16.mxu0 %v7775
        %8063 = vmatpush1.bf16.msra.mxu0 %v7774
        %8064 = vmatprep.subr.bf16.mxu0 %v7805
        %8065 = vmatpush2.bf16.msra.mxu0 %v7804
        %8066 = vmatprep.subr.bf16.mxu0 %v7803
        %8067 = vmatpush2.bf16.msra.mxu0 %v7802
        %8068 = vmatprep.subr.bf16.mxu0 %v7801
        %8069 = vmatpush2.bf16.msra.mxu0 %v7800
        %8070 = vmatprep.subr.bf16.mxu0 %v7799
        %8071 = vmatpush2.bf16.msra.mxu0 %v7798
        %8072 = vmatprep.subr.bf16.mxu0 %v7797
        %8073 = vmatpush2.bf16.msra.mxu0 %v7796
        %8074 = vmatprep.subr.bf16.mxu0 %v7795
        %8075 = vmatpush2.bf16.msra.mxu0 %v7794
        %8076 = vmatprep.subr.bf16.mxu0 %v7793
        %8077 = vmatpush2.bf16.msra.mxu0 %v7792
        %8078 = vmatprep.subr.bf16.mxu0 %v7791
        %8079 = vmatpush2.bf16.msra.mxu0 %v7790
        %8080 = vmatprep.mubr.bf16.mxu0 %v7379
        %8081 = vmatmul.mubr.bf16.gmra.mxu0 %v7378
        %v8082 = vpop.f32.mrf.mxu0
        %v8083 = vadd.f32 %v8010, %v8082
        %v8084 = vpop.f32.mrf.mxu0
        %v8085 = vadd.f32 %v8012, %v8084
        %v8086 = vpop.f32.mrf.mxu0
        %v8087 = vadd.f32 %v8014, %v8086
        %v8088 = vpop.f32.mrf.mxu0
        %v8089 = vadd.f32 %v8016, %v8088
        %8090 = vmatprep.mubr.bf16.mxu0 %v7385
        %8091 = vmatmul.mubr.bf16.gmra.mxu0 %v7384
        %v8092 = vpop.f32.mrf.mxu0
        %v8093 = vadd.f32 %v8020, %v8092
        %v8094 = vpop.f32.mrf.mxu0
        %v8095 = vadd.f32 %v8022, %v8094
        %v8096 = vpop.f32.mrf.mxu0
        %v8097 = vadd.f32 %v8024, %v8096
        %v8098 = vpop.f32.mrf.mxu0
        %v8099 = vadd.f32 %v8026, %v8098
        %8100 = vmatprep.mubr.bf16.mxu0 %v7391
        %8101 = vmatmul.mubr.bf16.gmra.mxu0 %v7390
        %v8102 = vpop.f32.mrf.mxu0
        %v8103 = vadd.f32 %v8030, %v8102
        %v8104 = vpop.f32.mrf.mxu0
        %v8105 = vadd.f32 %v8032, %v8104
        %v8106 = vpop.f32.mrf.mxu0
        %v8107 = vadd.f32 %v8034, %v8106
        %v8108 = vpop.f32.mrf.mxu0
        %v8109 = vadd.f32 %v8036, %v8108
        %8110 = vmatprep.mubr.bf16.mxu0 %v7397
        %8111 = vmatmul.mubr.bf16.gmra.mxu0 %v7396
        %v8112 = vpop.f32.mrf.mxu0
        %v8113 = vadd.f32 %v8040, %v8112
        %v8114 = vpop.f32.mrf.mxu0
        %v8115 = vadd.f32 %v8042, %v8114
        %v8116 = vpop.f32.mrf.mxu0
        %v8117 = vadd.f32 %v8044, %v8116
        %v8118 = vpop.f32.mrf.mxu0
        %v8119 = vadd.f32 %v8046, %v8118
        %8120 = vdwg.mxu0
        %v8121 = vadd.f32 %v6998, %v8083
        %v8122 = vadd.f32 %v7000, %v8085
        %v8123 = vadd.f32 %v7002, %v8087
        %v8124 = vadd.f32 %v7004, %v8089
        %v8125 = vadd.f32 %v7008, %v8093
        %v8126 = vadd.f32 %v7010, %v8095
        %v8127 = vadd.f32 %v7012, %v8097
        %v8128 = vadd.f32 %v7014, %v8099
        %v8129 = vadd.f32 %v7018, %v8103
        %v8130 = vadd.f32 %v7020, %v8105
        %v8131 = vadd.f32 %v7022, %v8107
        %v8132 = vadd.f32 %v7024, %v8109
        %v8133 = vadd.f32 %v7028, %v8113
        %v8134 = vadd.f32 %v7030, %v8115
        %v8135 = vadd.f32 %v7032, %v8117
        %v8136 = vadd.f32 %v7034, %v8119
        %v8137 = vld [vmem:[%s7] sm:$0x3]
        %v8139 = vlaneseq
        %v8140 = vshrl.u32 %v8139, 7
        %v8141 = vsub.s32 0, %v8140
        %v8142 = vrot.slane %v8137, %v8141
        %v8143 = vlaneseq
        %v8144 = vshrl.u32 %v8143, 7
        %v8145 = vsub.s32 1, %v8144
        %v8146 = vrot.slane %v8137, %v8145
        %v8149 = vmul.f32 %v8121, %v8142
        %v8150 = vmul.f32 %v8122, %v8146
        %v8151 = vmul.f32 %v8123, %v8142
        %v8152 = vmul.f32 %v8124, %v8146
        %v8153 = vmul.f32 %v8125, %v8142
        %v8154 = vmul.f32 %v8126, %v8146
        %v8155 = vmul.f32 %v8127, %v8142
        %v8156 = vmul.f32 %v8128, %v8146
        %v8157 = vmul.f32 %v8129, %v8142
        %v8158 = vmul.f32 %v8130, %v8146
        %v8159 = vmul.f32 %v8131, %v8142
        %v8160 = vmul.f32 %v8132, %v8146
        %v8161 = vmul.f32 %v8133, %v8142
        %v8162 = vmul.f32 %v8134, %v8146
        %v8163 = vmul.f32 %v8135, %v8142
        %v8164 = vmul.f32 %v8136, %v8146
        %v8165 = vld [vmem:[%s8] sm:$0x3]
        %v8167 = vlaneseq
        %v8168 = vshrl.u32 %v8167, 7
        %v8169 = vsub.s32 0, %v8168
        %v8170 = vrot.slane %v8165, %v8169
        %v8171 = vlaneseq
        %v8172 = vshrl.u32 %v8171, 7
        %v8173 = vsub.s32 1, %v8172
        %v8174 = vrot.slane %v8165, %v8173
        %v8177 = vadd.f32 %v8149, %v8170
        %v8178 = vadd.f32 %v8150, %v8174
        %v8179 = vadd.f32 %v8151, %v8170
        %v8180 = vadd.f32 %v8152, %v8174
        %v8181 = vadd.f32 %v8153, %v8170
        %v8182 = vadd.f32 %v8154, %v8174
        %v8183 = vadd.f32 %v8155, %v8170
        %v8184 = vadd.f32 %v8156, %v8174
        %v8185 = vadd.f32 %v8157, %v8170
        %v8186 = vadd.f32 %v8158, %v8174
        %v8187 = vadd.f32 %v8159, %v8170
        %v8188 = vadd.f32 %v8160, %v8174
        %v8189 = vadd.f32 %v8161, %v8170
        %v8190 = vadd.f32 %v8162, %v8174
        %v8191 = vadd.f32 %v8163, %v8170
        %v8192 = vadd.f32 %v8164, %v8174
        %v8193 = vld [vmem:[%s458] sm:$0xff]
        %v8194 = vld [vmem:[%s458 + $0x8] sm:$0xff]
        %v8195 = vld [vmem:[%s458 + $0x10] sm:$0xff]
        %v8196 = vld [vmem:[%s458 + $0x18] sm:$0xff]
        %v8197 = vld [vmem:[%s458 + $0x20] sm:$0xff]
        %v8198 = vld [vmem:[%s458 + $0x28] sm:$0xff]
        %v8199 = vld [vmem:[%s458 + $0x30] sm:$0xff]
        %v8200 = vld [vmem:[%s458 + $0x38] sm:$0xff]
        %v8201 = vld [vmem:[%s458 + $0x40] sm:$0xff]
        %v8202 = vld [vmem:[%s458 + $0x48] sm:$0xff]
        %v8203 = vld [vmem:[%s458 + $0x50] sm:$0xff]
        %v8204 = vld [vmem:[%s458 + $0x58] sm:$0xff]
        %v8205 = vld [vmem:[%s458 + $0x60] sm:$0xff]
        %v8206 = vld [vmem:[%s458 + $0x68] sm:$0xff]
        %v8207 = vld [vmem:[%s458 + $0x70] sm:$0xff]
        %v8208 = vld [vmem:[%s458 + $0x78] sm:$0xff]
        %v8209 = vadd.f32 %v8177, %v8193
        %v8210 = vadd.f32 %v8178, %v8194
        %v8211 = vadd.f32 %v8179, %v8195
        %v8212 = vadd.f32 %v8180, %v8196
        %v8213 = vadd.f32 %v8181, %v8197
        %v8214 = vadd.f32 %v8182, %v8198
        %v8215 = vadd.f32 %v8183, %v8199
        %v8216 = vadd.f32 %v8184, %v8200
        %v8217 = vadd.f32 %v8185, %v8201
        %v8218 = vadd.f32 %v8186, %v8202
        %v8219 = vadd.f32 %v8187, %v8203
        %v8220 = vadd.f32 %v8188, %v8204
        %v8221 = vadd.f32 %v8189, %v8205
        %v8222 = vadd.f32 %v8190, %v8206
        %v8223 = vadd.f32 %v8191, %v8207
        %v8224 = vadd.f32 %v8192, %v8208
        %v8225 = vmax.f32 %v8209, 0.0
        %v8226 = vmax.f32 %v8210, 0.0
        %v8227 = vmax.f32 %v8211, 0.0
        %v8228 = vmax.f32 %v8212, 0.0
        %v8229 = vmax.f32 %v8213, 0.0
        %v8230 = vmax.f32 %v8214, 0.0
        %v8231 = vmax.f32 %v8215, 0.0
        %v8232 = vmax.f32 %v8216, 0.0
        %v8233 = vmax.f32 %v8217, 0.0
        %v8234 = vmax.f32 %v8218, 0.0
        %v8235 = vmax.f32 %v8219, 0.0
        %v8236 = vmax.f32 %v8220, 0.0
        %v8237 = vmax.f32 %v8221, 0.0
        %v8238 = vmax.f32 %v8222, 0.0
        %v8239 = vmax.f32 %v8223, 0.0
        %v8240 = vmax.f32 %v8224, 0.0
        %8241 = vst [vmem:[%s448] sm:$0xff] %v8225
        %8242 = vst [vmem:[%s448 + $0x8] sm:$0xff] %v8226
        %8243 = vst [vmem:[%s448 + $0x10] sm:$0xff] %v8227
        %8244 = vst [vmem:[%s448 + $0x18] sm:$0xff] %v8228
        %8245 = vst [vmem:[%s448 + $0x20] sm:$0xff] %v8229
        %8246 = vst [vmem:[%s448 + $0x28] sm:$0xff] %v8230
        %8247 = vst [vmem:[%s448 + $0x30] sm:$0xff] %v8231
        %8248 = vst [vmem:[%s448 + $0x38] sm:$0xff] %v8232
        %8249 = vst [vmem:[%s448 + $0x40] sm:$0xff] %v8233
        %8250 = vst [vmem:[%s448 + $0x48] sm:$0xff] %v8234
        %8251 = vst [vmem:[%s448 + $0x50] sm:$0xff] %v8235
        %8252 = vst [vmem:[%s448 + $0x58] sm:$0xff] %v8236
        %8253 = vst [vmem:[%s448 + $0x60] sm:$0xff] %v8237
        %8254 = vst [vmem:[%s448 + $0x68] sm:$0xff] %v8238
        %8255 = vst [vmem:[%s448 + $0x70] sm:$0xff] %v8239
        %8256 = vst [vmem:[%s448 + $0x78] sm:$0xff] %v8240
        %s8257 = sand.u32 %s271, 1
        %s8258 = scalar_lea.sflag [#allocation5], %s8257
        %s8259 = sand.u32 %s271, 1
        %s8260 = smul.addr %s8259, 128
        %s8261 = scalar_lea.vmem [#allocation4], %s8260
        // Predicated region
        $region61: #{residual_forward.1} parent=55 // pred_check
          %p8262 = pneg %p281
        $region62: #{residual_forward.1} parent=55 // pred_check_branch
          %8264 = sbr.rel (%p8262) target = $region64
        $region63: #{residual_forward.1} parent=55 // pred_region
          %s8265 = smul.u32 8, %s28
          %s8267 = ssub.s32 2048, 2048
          %8268 = vsyncadd %s8258, %s8267
          %s8269 = smul.addr %s8265, 2
          %s8270 = smul.addr %s27, 16
          %s8271 = sadd.s32 %s8269, %s8270
          %s8272 = smul.addr %s8271, 128
          %s8273 = scalar_lea.hbm %s9, %s8272
          %s8274 = sshll.u32 %s8261, 4
          %s8275 = int_to_ptr.vmem [resolvable:$true] %s8274
          %8280 = dma.vmem_to_hbm [thread:$0]  %s8275, 2048, %s8273, %s8258, 256, 256, 16
        $region64: #{residual_forward.1} parent=55 // pred_fallthru
          _
      $region56: #{residual_forward.1} parent=5 // pred_fallthru
        _
      %p8281 = scmp.le.s32.totalorder 2, %s18
      // Predicated region
      $region65: #{residual_forward.1} parent=5 // pred_check
        %p8282 = pneg %p8281
      $region66: #{residual_forward.1} parent=5 // pred_check_branch
        %8284 = sbr.rel (%p8282) target = $region68
      $region67: #{residual_forward.1} parent=5 // pred_region
        %s8285 = ssub.s32 %s18, 2
        // Predicated region
        $region69: #{residual_forward.1} parent=67 // pred_check
          %p8286 = pneg %p287
        $region70: #{residual_forward.1} parent=67 // pred_check_branch
          %8288 = sbr.rel (%p8286) target = $region72
        $region71: #{residual_forward.1} parent=67 // pred_region
          %s8289 = sand.u32 %s272, 1
          %s8290 = scalar_lea.sflag [#allocation5], %s8289
          %s8291 = sand.u32 %s272, 1
          %s8292 = smul.addr %s8291, 128
          %s8293 = scalar_lea.vmem [#allocation4], %s8292
          %8294 = dma.done %s8290, 2048
        $region72: #{residual_forward.1} parent=67 // pred_fallthru
          _
      $region68: #{residual_forward.1} parent=5 // pred_fallthru
        _
    $region6: #{residual_forward.1} parent=1 // loop_footer
      %s22 = sadd.s32 1, %s18
    $region7: #{residual_forward.1} parent=1 // loop_footer_branch
      %17 = sbr.rel target = $region3
    $region8: #{residual_forward.1} parent=1 // loop_exit
      _
    %8295 = vsyncpa [#allocation5], 1
    %s8296 = scalar_lea.sflag [#allocation5], 1
    %8297 = vsyncpa %s8296, 1

</llo_original>
